<compile_context>
chip_gen: v5e
topology: v5e:2x2
jax: 0.10.0
libtpu: 0.0.40
codegen_flags: <defaults>
</compile_context>

<pallas_src>
import functools

import jax
import jax.numpy as jnp
from jax.experimental import pallas as pl
from jax.experimental.pallas import tpu as pltpu


# ----------------------------- Pallas kernel --------------------------------
def _matmul_bias_act_kernel(x_ref, w_ref, b_ref, o_ref, *, apply_relu):
    acc = jnp.dot(x_ref[...], w_ref[...], preferred_element_type=jnp.float32)
    acc = acc + b_ref[...]
    if apply_relu:
        acc = jnp.maximum(acc, 0.0)
    o_ref[...] = acc.astype(o_ref.dtype)


def _row_tiling(m, k, n, *, in_bytes=2, out_bytes=2, vmem_row_budget=8 << 20):
    """Pick (tile_m, padded_m, num_tiles).

    Default is a single tile (nt=1): at this problem size the GEMMs are
    launch/overhead bound and v5e/v6e have one TensorCore, so extra grid steps
    are pure serial overhead.  Only split when the double-buffered row slabs
    would exceed a conservative VMEM budget; split tiles are rounded to 8
    sublanes (M is then zero-padded).
    """
    per_row = 2 * k * in_bytes + 2 * n * out_bytes   # dbl-buffered in + out
    max_rows = max(8, vmem_row_budget // max(per_row, 1))
    if m <= max_rows:
        return m, m, 1
    nt = -(-m // max_rows)
    tm = -(-m // nt)
    tm = -(-tm // 8) * 8
    return tm, tm * nt, nt


def matmul_bias_act(x, w, b2, *, apply_relu, out_dtype=jnp.bfloat16):
    """relu_opt(x @ w + b) on the MXU (bf16 operands, f32 accumulation).

    x: (M, K) any float dtype, w: (K, N) bf16 (pre-packed), b2: (1, N) f32.
    Blocks equal full array dims (nt=1) for these shapes, so no K/N padding
    or post-slicing is needed.
    """
    m, k = x.shape
    k2, n = w.shape
    assert k == k2, (k, k2)
    assert b2.shape == (1, n), (b2.shape, n)

    x = x.astype(jnp.bfloat16)
    tm, m_pad, nt = _row_tiling(m, k, n)
    if m_pad != m:
        x = jnp.pad(x, ((0, m_pad - m), (0, 0)))

    kernel = functools.partial(_matmul_bias_act_kernel, apply_relu=apply_relu)
    out = pl.pallas_call(
        kernel,
        out_shape=jax.ShapeDtypeStruct((m_pad, n), out_dtype),
        grid_spec=pltpu.PrefetchScalarGridSpec(
            num_scalar_prefetch=0,
            grid=(nt,),
            in_specs=[
                pl.BlockSpec((tm, k), lambda i: (i, 0)),
                pl.BlockSpec((k, n), lambda i: (0, 0)),
                pl.BlockSpec((1, n), lambda i: (0, 0)),
            ],
            out_specs=pl.BlockSpec((tm, n), lambda i: (i, 0)),
        ),
        compiler_params=pltpu.CompilerParams(
            dimension_semantics=("parallel",),
            vmem_limit_bytes=32 * 1024 * 1024),
    )(x, w, b2)
    if m_pad != m:
        out = out[:m]
    return out


# ------------------------------ conv as GEMM ---------------------------------
def _im2col_nhwc(x, k, s, p):
    """x NHWC -> patches (B*OH*OW, k*k*C); feature order (kh, kw, c)."""
    bsz, h, w, c = x.shape
    xp = jnp.pad(x, ((0, 0), (p, p), (p, p), (0, 0)))
    oh = (h + 2 * p - k) // s + 1
    ow = (w + 2 * p - k) // s + 1
    cols = [xp[:, kh:kh + oh * s:s, kw:kw + ow * s:s, :]
            for kh in range(k) for kw in range(k)]
    patches = jnp.concatenate(cols, axis=-1)          # (B, OH, OW, k*k*C)
    return patches.reshape(bsz * oh * ow, k * k * c), oh, ow


def conv2d_relu_nhwc(x, wmat, b2, *, ksize, stride, padding, apply_relu=True,
                     out_dtype=jnp.bfloat16):
    """Conv2d (+ReLU) via im2col + Pallas GEMM; NHWC in/out.
    wmat is the pre-packed (k*k*cin, cout) bf16 weight."""
    bsz, _, _, c = x.shape
    assert wmat.shape[0] == ksize * ksize * c, (wmat.shape, ksize, c)
    patches, oh, ow = _im2col_nhwc(x, ksize, stride, padding)
    out = matmul_bias_act(patches, wmat, b2, apply_relu=apply_relu,
                          out_dtype=out_dtype)
    return out.reshape(bsz, oh, ow, wmat.shape[1])


def adaptive_avg_pool_8x8_nhwc(x):
    """AdaptiveAvgPool2d((8,8)) for H,W divisible by 8: VPU reshape+mean,
    accumulated in f32 (input is bf16)."""
    # TODO(synk): general adaptive pooling (H or W not divisible by 8).
    bsz, h, w, c = x.shape
    return x.astype(jnp.float32).reshape(
        bsz, 8, h // 8, 8, w // 8, c).mean(axis=(2, 4))


# ------------------------------ parameters -----------------------------------
def init_params(key, uv_channels, dp_channels, latent_dim):
    cc = uv_channels + dp_channels
    keys = jax.random.split(key, 12)

    def conv_init(kw, kb, cout, cin, ksz):
        fan_in = cin * ksz * ksz
        bound = 1.0 / (fan_in ** 0.5)
        w = jax.random.uniform(kw, (cout, cin, ksz, ksz), jnp.float32,
                               -bound, bound)
        b = jax.random.uniform(kb, (cout,), jnp.float32, -bound, bound)
        return w, b

    def lin_init(kw, kb, out_f, in_f):
        bound = 1.0 / (in_f ** 0.5)
        w = jax.random.uniform(kw, (out_f, in_f), jnp.float32, -bound, bound)
        b = jax.random.uniform(kb, (out_f,), jnp.float32, -bound, bound)
        return w, b

    return {
        "conv1": conv_init(keys[0], keys[1], 32, cc, 4),
        "conv2": conv_init(keys[2], keys[3], 64, 32, 4),
        "center_conv1": conv_init(keys[4], keys[5], 128, 64, 3),
        "center_conv2": conv_init(keys[6], keys[7], 64, 128, 3),
        "fc_mu": lin_init(keys[8], keys[9], latent_dim, 64 * 8 * 8),
        "fc_logvar": lin_init(keys[10], keys[11], latent_dim, 64 * 8 * 8),
    }


def prepare_params(params):
    """One-time repack of PyTorch-layout params into GEMM-ready operands.
    Runs once outside the jitted forward (no per-step weight glue)."""

    def conv_pack(wb, cin_pad=None):
        w, b = wb
        cout, cin, k, _ = w.shape
        if cin_pad is not None and cin_pad > cin:
            w = jnp.pad(w, ((0, 0), (0, cin_pad - cin), (0, 0), (0, 0)))
        cin_eff = w.shape[1]
        # (kh, kw, cin, cout) flattening matches the (kh, kw, c) patch order.
        wmat = w.transpose(2, 3, 1, 0).reshape(k * k * cin_eff, cout)
        return wmat.astype(jnp.bfloat16), b.astype(jnp.float32).reshape(1, -1)

    # conv1: pad cin so K = 4*4*cin_pad is lane-dense (multiple of 128).
    cin1 = params["conv1"][0].shape[1]
    cin1_pad = -(-cin1 // 8) * 8

    w_mu, b_mu = params["fc_mu"]
    w_lv, b_lv = params["fc_logvar"]
    latent = w_mu.shape[0]
    assert w_mu.shape[1] == 64 * 8 * 8

    def to_hwc(wm):
        # PyTorch flatten order is (c, h, w); reorder columns to NHWC (h, w, c)
        # so the forward can flatten pooled NHWC features with no transpose.
        return wm.reshape(latent, 64, 8, 8).transpose(0, 2, 3, 1).reshape(
            latent, 64 * 8 * 8)

    w_fc = jnp.concatenate([to_hwc(w_mu).T, to_hwc(w_lv).T], axis=1)  # (4096,2L)
    b_fc = jnp.concatenate([b_mu, b_lv]).reshape(1, -1)

    return {
        "conv1": conv_pack(params["conv1"], cin_pad=cin1_pad),
        "conv2": conv_pack(params["conv2"]),
        "center_conv1": conv_pack(params["center_conv1"]),
        "center_conv2": conv_pack(params["center_conv2"]),
        "fc": (w_fc.astype(jnp.bfloat16), b_fc.astype(jnp.float32)),
    }


# ------------------------------ forward pass ----------------------------------
# The reference computes center_conv1/center_conv2 and writes the result into
# a clone that is never read again -> it cannot affect (mu, logvar).  Kept
# behind a flag for parity experiments; disabled (and DCE'd under jit) here.
_RUN_DEAD_CENTER_BRANCH = False


@jax.jit
def vae_encoder_forward(packed, uv, dp):
    # Single NCHW->NHWC transpose + bf16 cast + conv1 channel pad (fused by
    # XLA on the small input tensor); activations stay NHWC bf16 afterwards.
    x = jnp.concatenate((uv, dp), axis=1).transpose(0, 2, 3, 1)
    x = x.astype(jnp.bfloat16)
    w1, b1 = packed["conv1"]
    cin1_pad = w1.shape[0] // 16            # conv1 is 4x4 -> K = 16 * cin_pad
    if cin1_pad > x.shape[-1]:
        x = jnp.pad(x, ((0, 0), (0, 0), (0, 0), (0, cin1_pad - x.shape[-1])))

    x = conv2d_relu_nhwc(x, w1, b1, ksize=4, stride=2, padding=1)     # (B,H/2,W/2,32)
    x = conv2d_relu_nhwc(x, *packed["conv2"], ksize=4, stride=2,
                         padding=1)                                   # (B,H/4,W/4,64)

    if _RUN_DEAD_CENTER_BRANCH:  # dead value in the reference
        center = x[:, 8:24, 8:24, :]
        center = conv2d_relu_nhwc(center, *packed["center_conv1"],
                                  ksize=3, stride=1, padding=1)
        center = conv2d_relu_nhwc(center, *packed["center_conv2"],
                                  ksize=3, stride=1, padding=1)
        _ = x.at[:, 8:24, 8:24, :].set(center)

    pooled = adaptive_avg_pool_8x8_nhwc(x)          # (B, 8, 8, 64) f32
    feat = pooled.reshape(pooled.shape[0], -1)      # (h,w,c) order, fc pre-permuted
    w_fc, b_fc = packed["fc"]
    latent = w_fc.shape[1] // 2
    out = matmul_bias_act(feat, w_fc, b_fc, apply_relu=False,
                          out_dtype=jnp.float32)    # fused mu/logvar heads
    return out[:, :latent], out[:, latent:]


# ------------------------------ pure-XLA reference ----------------------------
def _reference_forward(params, uv, dp):
    x = jnp.concatenate((uv, dp), axis=1)

    def conv(x, w, b, stride, padding):
        y = jax.lax.conv_general_dilated(
            x, w, window_strides=(stride, stride),
            padding=((padding, padding), (padding, padding)),
            dimension_numbers=("NCHW", "OIHW", "NCHW"))
        return jax.nn.relu(y + b[None, :, None, None])

    x = conv(x, *params["conv1"], 2, 1)
    x = conv(x, *params["conv2"], 2, 1)
    b_, c_, h_, w_ = x.shape
    pooled = x.reshape(b_, c_, 8, h_ // 8, 8, w_ // 8).mean(axis=(3, 5))
    feat = pooled.reshape(b_, -1)
    w_mu, b_mu = params["fc_mu"]
    w_lv, b_lv = params["fc_logvar"]
    return feat @ w_mu.T + b_mu, feat @ w_lv.T + b_lv


if __name__ == "__main__":
    uv_channels, dp_channels, latent_dim = 2, 2, 8
    # H/4 must be >= 24 so the reference's x[:, :, 8:24, 8:24] crop is valid.
    B, H, W = 2, 96, 96

    key = jax.random.PRNGKey(0)
    k_uv, k_dp, k_param = jax.random.split(key, 3)
    uv = jax.random.normal(k_uv, (B, uv_channels, H, W), jnp.float32)
    dp = jax.random.normal(k_dp, (B, dp_channels, H, W), jnp.float32)

    params = init_params(k_param, uv_channels, dp_channels, latent_dim)
    packed = prepare_params(params)     # one-time repack, outside the jit

    mu, logvar = vae_encoder_forward(packed, uv, dp)
    jax.block_until_ready((mu, logvar))

    assert mu.shape == (B, latent_dim), mu.shape
    assert logvar.shape == (B, latent_dim), logvar.shape
    assert bool(jnp.isfinite(mu).all()) and bool(jnp.isfinite(logvar).all())

    # Cross-check against the f32 XLA reference (loose tolerance: bf16 MXU
    # operands / bf16 inter-layer activations with f32 accumulation).
    mu_ref, lv_ref = _reference_forward(params, uv, dp)
    err = max(float(jnp.max(jnp.abs(mu - mu_ref))),
              float(jnp.max(jnp.abs(logvar - lv_ref))))
    assert err < 5e-2, f"mismatch vs reference: {err}"

    print("KERNEL_OK")
</pallas_src>

<mosaic_0001>
module attributes {stable_mosaic.version = 11 : i64} {
  func.func @_matmul_bias_act_kernel(%arg0: i32, %arg1: memref<4608x128xbf16, #tpu.memory_space<vmem>>, %arg2: memref<128x32xbf16, #tpu.memory_space<vmem>>, %arg3: memref<1x32xf32, #tpu.memory_space<vmem>>, %arg4: memref<4608x32xbf16, #tpu.memory_space<vmem>>) attributes {dimension_semantics = [#tpu.dimension_semantics<parallel>], iteration_bounds = array<i64: 1>, scalar_prefetch = 0 : i64, scratch_operands = 0 : i64, tpu.core_type = #tpu.core_type<tc>, window_params = [{transform_indices = @transform_0, window_bounds = array<i64: 4608, 128>}, {pipeline_mode = #tpu.pipeline_mode<synchronous>, transform_indices = @transform_1, window_bounds = array<i64: 128, 32>}, {pipeline_mode = #tpu.pipeline_mode<synchronous>, transform_indices = @transform_2, window_bounds = array<i64: 1, 32>}, {transform_indices = @transform_3, window_bounds = array<i64: 4608, 32>}]} {
    %c0 = arith.constant 0 : index
    %c0_0 = arith.constant 0 : index
    %0 = vector.load %arg1[%c0, %c0_0] : memref<4608x128xbf16, #tpu.memory_space<vmem>>, vector<4608x128xbf16>
    %c0_1 = arith.constant 0 : index
    %c0_2 = arith.constant 0 : index
    %1 = vector.load %arg2[%c0_1, %c0_2] : memref<128x32xbf16, #tpu.memory_space<vmem>>, vector<128x32xbf16>
    %cst = arith.constant dense<0.000000e+00> : vector<4608x32xf32>
    %2 = tpu.matmul %0, %1, %cst {dimension_numbers = #tpu.dot_dimension_numbers<[1], [0], [0], [1], [0, 0, 1, 1], [], []>} : vector<4608x128xbf16>, vector<128x32xbf16>, vector<4608x32xf32> -> vector<4608x32xf32>
    %c0_3 = arith.constant 0 : index
    %c0_4 = arith.constant 0 : index
    %3 = vector.load %arg3[%c0_3, %c0_4] : memref<1x32xf32, #tpu.memory_space<vmem>>, vector<1x32xf32>
    %4 = vector.broadcast %3 : vector<1x32xf32> to vector<4608x32xf32>
    %5 = arith.addf %2, %4 : vector<4608x32xf32>
    %cst_5 = arith.constant 0.000000e+00 : f32
    %6 = vector.broadcast %cst_5 : f32 to vector<4608x32xf32>
    %7 = arith.maximumf %5, %6 : vector<4608x32xf32>
    %8 = arith.truncf %7 : vector<4608x32xf32> to vector<4608x32xbf16>
    %c0_6 = arith.constant 0 : index
    %c0_7 = arith.constant 0 : index
    %9 = vector.load %arg4[%c0_6, %c0_7] : memref<4608x32xbf16, #tpu.memory_space<vmem>>, vector<4608x32xbf16>
    tpu.vector_store %arg4[%c0_6, %c0_7], %8 {strides = array<i32>} : memref<4608x32xbf16, #tpu.memory_space<vmem>>, vector<4608x32xbf16>,
    return
  }
  func.func @transform_0(%arg0: i32) -> (i32, i32) {
    %c0_i32 = arith.constant 0 : i32
    %c0_i32_0 = arith.constant 0 : i32
    return %arg0, %c0_i32 : i32, i32
  }
  func.func @transform_1(%arg0: i32) -> (i32, i32) {
    %c0_i32 = arith.constant 0 : i32
    %c0_i32_0 = arith.constant 0 : i32
    %c0_i32_1 = arith.constant 0 : i32
    return %c0_i32, %c0_i32_0 : i32, i32
  }
  func.func @transform_2(%arg0: i32) -> (i32, i32) {
    %c0_i32 = arith.constant 0 : i32
    %c0_i32_0 = arith.constant 0 : i32
    %c0_i32_1 = arith.constant 0 : i32
    return %c0_i32, %c0_i32_0 : i32, i32
  }
  func.func @transform_3(%arg0: i32) -> (i32, i32) {
    %c0_i32 = arith.constant 0 : i32
    %c0_i32_0 = arith.constant 0 : i32
    return %arg0, %c0_i32 : i32, i32
  }
}

module attributes {stable_mosaic.version = 11 : i64} {
  func.func @_matmul_bias_act_kernel(%arg0: i32, %arg1: memref<1152x512xbf16, #tpu.memory_space<vmem>>, %arg2: memref<512x64xbf16, #tpu.memory_space<vmem>>, %arg3: memref<1x64xf32, #tpu.memory_space<vmem>>, %arg4: memref<1152x64xbf16, #tpu.memory_space<vmem>>) attributes {dimension_semantics = [#tpu.dimension_semantics<parallel>], iteration_bounds = array<i64: 1>, scalar_prefetch = 0 : i64, scratch_operands = 0 : i64, tpu.core_type = #tpu.core_type<tc>, window_params = [{transform_indices = @transform_0, window_bounds = array<i64: 1152, 512>}, {pipeline_mode = #tpu.pipeline_mode<synchronous>, transform_indices = @transform_1, window_bounds = array<i64: 512, 64>}, {pipeline_mode = #tpu.pipeline_mode<synchronous>, transform_indices = @transform_2, window_bounds = array<i64: 1, 64>}, {transform_indices = @transform_3, window_bounds = array<i64: 1152, 64>}]} {
    %c0 = arith.constant 0 : index
    %c0_0 = arith.constant 0 : index
    %0 = vector.load %arg1[%c0, %c0_0] : memref<1152x512xbf16, #tpu.memory_space<vmem>>, vector<1152x512xbf16>
    %c0_1 = arith.constant 0 : index
    %c0_2 = arith.constant 0 : index
    %1 = vector.load %arg2[%c0_1, %c0_2] : memref<512x64xbf16, #tpu.memory_space<vmem>>, vector<512x64xbf16>
    %cst = arith.constant dense<0.000000e+00> : vector<1152x64xf32>
    %2 = tpu.matmul %0, %1, %cst {dimension_numbers = #tpu.dot_dimension_numbers<[1], [0], [0], [1], [0, 0, 1, 1], [], []>} : vector<1152x512xbf16>, vector<512x64xbf16>, vector<1152x64xf32> -> vector<1152x64xf32>
    %c0_3 = arith.constant 0 : index
    %c0_4 = arith.constant 0 : index
    %3 = vector.load %arg3[%c0_3, %c0_4] : memref<1x64xf32, #tpu.memory_space<vmem>>, vector<1x64xf32>
    %4 = vector.broadcast %3 : vector<1x64xf32> to vector<1152x64xf32>
    %5 = arith.addf %2, %4 : vector<1152x64xf32>
    %cst_5 = arith.constant 0.000000e+00 : f32
    %6 = vector.broadcast %cst_5 : f32 to vector<1152x64xf32>
    %7 = arith.maximumf %5, %6 : vector<1152x64xf32>
    %8 = arith.truncf %7 : vector<1152x64xf32> to vector<1152x64xbf16>
    %c0_6 = arith.constant 0 : index
    %c0_7 = arith.constant 0 : index
    %9 = vector.load %arg4[%c0_6, %c0_7] : memref<1152x64xbf16, #tpu.memory_space<vmem>>, vector<1152x64xbf16>
    tpu.vector_store %arg4[%c0_6, %c0_7], %8 {strides = array<i32>} : memref<1152x64xbf16, #tpu.memory_space<vmem>>, vector<1152x64xbf16>,
    return
  }
  func.func @transform_0(%arg0: i32) -> (i32, i32) {
    %c0_i32 = arith.constant 0 : i32
    %c0_i32_0 = arith.constant 0 : i32
    return %arg0, %c0_i32 : i32, i32
  }
  func.func @transform_1(%arg0: i32) -> (i32, i32) {
    %c0_i32 = arith.constant 0 : i32
    %c0_i32_0 = arith.constant 0 : i32
    %c0_i32_1 = arith.constant 0 : i32
    return %c0_i32, %c0_i32_0 : i32, i32
  }
  func.func @transform_2(%arg0: i32) -> (i32, i32) {
    %c0_i32 = arith.constant 0 : i32
    %c0_i32_0 = arith.constant 0 : i32
    %c0_i32_1 = arith.constant 0 : i32
    return %c0_i32, %c0_i32_0 : i32, i32
  }
  func.func @transform_3(%arg0: i32) -> (i32, i32) {
    %c0_i32 = arith.constant 0 : i32
    %c0_i32_0 = arith.constant 0 : i32
    return %arg0, %c0_i32 : i32, i32
  }
}

module attributes {stable_mosaic.version = 11 : i64} {
  func.func @_matmul_bias_act_kernel(%arg0: i32, %arg1: memref<2x4096xbf16, #tpu.memory_space<vmem>>, %arg2: memref<4096x16xbf16, #tpu.memory_space<vmem>>, %arg3: memref<1x16xf32, #tpu.memory_space<vmem>>, %arg4: memref<2x16xf32, #tpu.memory_space<vmem>>) attributes {dimension_semantics = [#tpu.dimension_semantics<parallel>], iteration_bounds = array<i64: 1>, scalar_prefetch = 0 : i64, scratch_operands = 0 : i64, tpu.core_type = #tpu.core_type<tc>, window_params = [{transform_indices = @transform_0, window_bounds = array<i64: 2, 4096>}, {pipeline_mode = #tpu.pipeline_mode<synchronous>, transform_indices = @transform_1, window_bounds = array<i64: 4096, 16>}, {pipeline_mode = #tpu.pipeline_mode<synchronous>, transform_indices = @transform_2, window_bounds = array<i64: 1, 16>}, {transform_indices = @transform_3, window_bounds = array<i64: 2, 16>}]} {
    %c0 = arith.constant 0 : index
    %c0_0 = arith.constant 0 : index
    %0 = vector.load %arg1[%c0, %c0_0] : memref<2x4096xbf16, #tpu.memory_space<vmem>>, vector<2x4096xbf16>
    %c0_1 = arith.constant 0 : index
    %c0_2 = arith.constant 0 : index
    %1 = vector.load %arg2[%c0_1, %c0_2] : memref<4096x16xbf16, #tpu.memory_space<vmem>>, vector<4096x16xbf16>
    %cst = arith.constant dense<0.000000e+00> : vector<2x16xf32>
    %2 = tpu.matmul %0, %1, %cst {dimension_numbers = #tpu.dot_dimension_numbers<[1], [0], [0], [1], [0, 0, 1, 1], [], []>} : vector<2x4096xbf16>, vector<4096x16xbf16>, vector<2x16xf32> -> vector<2x16xf32>
    %c0_3 = arith.constant 0 : index
    %c0_4 = arith.constant 0 : index
    %3 = vector.load %arg3[%c0_3, %c0_4] : memref<1x16xf32, #tpu.memory_space<vmem>>, vector<1x16xf32>
    %4 = vector.broadcast %3 : vector<1x16xf32> to vector<2x16xf32>
    %5 = arith.addf %2, %4 : vector<2x16xf32>
    %c0_5 = arith.constant 0 : index
    %c0_6 = arith.constant 0 : index
    %6 = vector.load %arg4[%c0_5, %c0_6] : memref<2x16xf32, #tpu.memory_space<vmem>>, vector<2x16xf32>
    tpu.vector_store %arg4[%c0_5, %c0_6], %5 {strides = array<i32>} : memref<2x16xf32, #tpu.memory_space<vmem>>, vector<2x16xf32>,
    return
  }
  func.func @transform_0(%arg0: i32) -> (i32, i32) {
    %c0_i32 = arith.constant 0 : i32
    %c0_i32_0 = arith.constant 0 : i32
    return %arg0, %c0_i32 : i32, i32
  }
  func.func @transform_1(%arg0: i32) -> (i32, i32) {
    %c0_i32 = arith.constant 0 : i32
    %c0_i32_0 = arith.constant 0 : i32
    %c0_i32_1 = arith.constant 0 : i32
    return %c0_i32, %c0_i32_0 : i32, i32
  }
  func.func @transform_2(%arg0: i32) -> (i32, i32) {
    %c0_i32 = arith.constant 0 : i32
    %c0_i32_0 = arith.constant 0 : i32
    %c0_i32_1 = arith.constant 0 : i32
    return %c0_i32, %c0_i32_0 : i32, i32
  }
  func.func @transform_3(%arg0: i32) -> (i32, i32) {
    %c0_i32 = arith.constant 0 : i32
    %c0_i32_0 = arith.constant 0 : i32
    return %arg0, %c0_i32 : i32, i32
  }
}

</mosaic_0001>

<llo_original>
// kernel: vae_encoder_forward.3
$region0: #{vae_encoder_forward.3}
  #allocation0 [shape = 'u32[]', space=smem, size = 0x4, offset = 0x4, fixed_abs, tag = 'smem constant byte address 0x4 - core index']
  #allocation1 [shape = 'u32[72,128]{1,0:T(1,128)}', space=vmem, size = 0x9000, scoped, tag = 'internal scratch']
  %s0 = inlined_call_operand.vmem [shape: bf16[4608,128], index: 0, kind: input, shape index: {}]
  %s1 = inlined_call_operand.vmem [shape: bf16[128,32], index: 1, kind: input, shape index: {}]
  %s2 = inlined_call_operand.vmem [shape: f32[1,32], index: 2, kind: input, shape index: {}]
  %s3 = inlined_call_operand.vmem [shape: bf16[4608,32], index: 3, kind: output, shape index: {}]
  %s4 = sld [smem:[#allocation0]]
  $region22: #{vae_encoder_forward.3} parent=0
    _
  %s6 = ssub.s32 1, %s4
  %s7 = scalar_select 0, %s6, %s4
  // Predicated region
  $region2: #{vae_encoder_forward.3} parent=0 // pred_check
    _
  $region3: #{vae_encoder_forward.3} parent=0 // pred_check_branch
    %9 = sbr.rel (0) target = $region5
  $region4: #{vae_encoder_forward.3} parent=0 // pred_region
    _
  $region5: #{vae_encoder_forward.3} parent=0 // pred_fallthru
    _
  // Predicated region
  $region6: #{vae_encoder_forward.3} parent=0 // pred_check
    _
  $region7: #{vae_encoder_forward.3} parent=0 // pred_check_branch
    %11 = sbr.rel (0) target = $region9
  $region8: #{vae_encoder_forward.3} parent=0 // pred_region
    _
  $region9: #{vae_encoder_forward.3} parent=0 // pred_fallthru
    _
  // Predicated region
  $region10: #{vae_encoder_forward.3} parent=0 // pred_check
    _
  $region11: #{vae_encoder_forward.3} parent=0 // pred_check_branch
    %13 = sbr.rel (0) target = $region13
  $region12: #{vae_encoder_forward.3} parent=0 // pred_region
    _
  $region13: #{vae_encoder_forward.3} parent=0 // pred_fallthru
    _
  %v14 = vld [vmem:[%s0] sm:$0xf]
  %v15 = vld [vmem:[%s0 + $0x4] sm:$0xf]
  %v16 = vld [vmem:[%s0 + $0x8] sm:$0xf]
  %v17 = vld [vmem:[%s0 + $0xc] sm:$0xf]
  %v18 = vld [vmem:[%s0 + $0x10] sm:$0xf]
  %v19 = vld [vmem:[%s0 + $0x14] sm:$0xf]
  %v20 = vld [vmem:[%s0 + $0x18] sm:$0xf]
  %v21 = vld [vmem:[%s0 + $0x1c] sm:$0xf]
  %v22 = vld [vmem:[%s0 + $0x20] sm:$0xf]
  %v23 = vld [vmem:[%s0 + $0x24] sm:$0xf]
  %v24 = vld [vmem:[%s0 + $0x28] sm:$0xf]
  %v25 = vld [vmem:[%s0 + $0x2c] sm:$0xf]
  %v26 = vld [vmem:[%s0 + $0x30] sm:$0xf]
  %v27 = vld [vmem:[%s0 + $0x34] sm:$0xf]
  %v28 = vld [vmem:[%s0 + $0x38] sm:$0xf]
  %v29 = vld [vmem:[%s0 + $0x3c] sm:$0xf]
  %v30 = vld [vmem:[%s0 + $0x40] sm:$0xf]
  %v31 = vld [vmem:[%s0 + $0x44] sm:$0xf]
  %v32 = vld [vmem:[%s0 + $0x48] sm:$0xf]
  %v33 = vld [vmem:[%s0 + $0x4c] sm:$0xf]
  %v34 = vld [vmem:[%s0 + $0x50] sm:$0xf]
  %v35 = vld [vmem:[%s0 + $0x54] sm:$0xf]
  %v36 = vld [vmem:[%s0 + $0x58] sm:$0xf]
  %v37 = vld [vmem:[%s0 + $0x5c] sm:$0xf]
  %v38 = vld [vmem:[%s0 + $0x60] sm:$0xf]
  %v39 = vld [vmem:[%s0 + $0x64] sm:$0xf]
  %v40 = vld [vmem:[%s0 + $0x68] sm:$0xf]
  %v41 = vld [vmem:[%s0 + $0x6c] sm:$0xf]
  %v42 = vld [vmem:[%s0 + $0x70] sm:$0xf]
  %v43 = vld [vmem:[%s0 + $0x74] sm:$0xf]
  %v44 = vld [vmem:[%s0 + $0x78] sm:$0xf]
  %v45 = vld [vmem:[%s0 + $0x7c] sm:$0xf]
  %v46 = vld [vmem:[%s0 + $0x80] sm:$0xf]
  %v47 = vld [vmem:[%s0 + $0x84] sm:$0xf]
  %v48 = vld [vmem:[%s0 + $0x88] sm:$0xf]
  %v49 = vld [vmem:[%s0 + $0x8c] sm:$0xf]
  %v50 = vld [vmem:[%s0 + $0x90] sm:$0xf]
  %v51 = vld [vmem:[%s0 + $0x94] sm:$0xf]
  %v52 = vld [vmem:[%s0 + $0x98] sm:$0xf]
  %v53 = vld [vmem:[%s0 + $0x9c] sm:$0xf]
  %v54 = vld [vmem:[%s0 + $0xa0] sm:$0xf]
  %v55 = vld [vmem:[%s0 + $0xa4] sm:$0xf]
  %v56 = vld [vmem:[%s0 + $0xa8] sm:$0xf]
  %v57 = vld [vmem:[%s0 + $0xac] sm:$0xf]
  %v58 = vld [vmem:[%s0 + $0xb0] sm:$0xf]
  %v59 = vld [vmem:[%s0 + $0xb4] sm:$0xf]
  %v60 = vld [vmem:[%s0 + $0xb8] sm:$0xf]
  %v61 = vld [vmem:[%s0 + $0xbc] sm:$0xf]
  %v62 = vld [vmem:[%s0 + $0xc0] sm:$0xf]
  %v63 = vld [vmem:[%s0 + $0xc4] sm:$0xf]
  %v64 = vld [vmem:[%s0 + $0xc8] sm:$0xf]
  %v65 = vld [vmem:[%s0 + $0xcc] sm:$0xf]
  %v66 = vld [vmem:[%s0 + $0xd0] sm:$0xf]
  %v67 = vld [vmem:[%s0 + $0xd4] sm:$0xf]
  %v68 = vld [vmem:[%s0 + $0xd8] sm:$0xf]
  %v69 = vld [vmem:[%s0 + $0xdc] sm:$0xf]
  %v70 = vld [vmem:[%s0 + $0xe0] sm:$0xf]
  %v71 = vld [vmem:[%s0 + $0xe4] sm:$0xf]
  %v72 = vld [vmem:[%s0 + $0xe8] sm:$0xf]
  %v73 = vld [vmem:[%s0 + $0xec] sm:$0xf]
  %v74 = vld [vmem:[%s0 + $0xf0] sm:$0xf]
  %v75 = vld [vmem:[%s0 + $0xf4] sm:$0xf]
  %v76 = vld [vmem:[%s0 + $0xf8] sm:$0xf]
  %v77 = vld [vmem:[%s0 + $0xfc] sm:$0xf]
  %v78 = vld [vmem:[%s0 + $0x100] sm:$0xf]
  %v79 = vld [vmem:[%s0 + $0x104] sm:$0xf]
  %v80 = vld [vmem:[%s0 + $0x108] sm:$0xf]
  %v81 = vld [vmem:[%s0 + $0x10c] sm:$0xf]
  %v82 = vld [vmem:[%s0 + $0x110] sm:$0xf]
  %v83 = vld [vmem:[%s0 + $0x114] sm:$0xf]
  %v84 = vld [vmem:[%s0 + $0x118] sm:$0xf]
  %v85 = vld [vmem:[%s0 + $0x11c] sm:$0xf]
  %v86 = vld [vmem:[%s0 + $0x120] sm:$0xf]
  %v87 = vld [vmem:[%s0 + $0x124] sm:$0xf]
  %v88 = vld [vmem:[%s0 + $0x128] sm:$0xf]
  %v89 = vld [vmem:[%s0 + $0x12c] sm:$0xf]
  %v90 = vld [vmem:[%s0 + $0x130] sm:$0xf]
  %v91 = vld [vmem:[%s0 + $0x134] sm:$0xf]
  %v92 = vld [vmem:[%s0 + $0x138] sm:$0xf]
  %v93 = vld [vmem:[%s0 + $0x13c] sm:$0xf]
  %v94 = vld [vmem:[%s0 + $0x140] sm:$0xf]
  %v95 = vld [vmem:[%s0 + $0x144] sm:$0xf]
  %v96 = vld [vmem:[%s0 + $0x148] sm:$0xf]
  %v97 = vld [vmem:[%s0 + $0x14c] sm:$0xf]
  %v98 = vld [vmem:[%s0 + $0x150] sm:$0xf]
  %v99 = vld [vmem:[%s0 + $0x154] sm:$0xf]
  %v100 = vld [vmem:[%s0 + $0x158] sm:$0xf]
  %v101 = vld [vmem:[%s0 + $0x15c] sm:$0xf]
  %v102 = vld [vmem:[%s0 + $0x160] sm:$0xf]
  %v103 = vld [vmem:[%s0 + $0x164] sm:$0xf]
  %v104 = vld [vmem:[%s0 + $0x168] sm:$0xf]
  %v105 = vld [vmem:[%s0 + $0x16c] sm:$0xf]
  %v106 = vld [vmem:[%s0 + $0x170] sm:$0xf]
  %v107 = vld [vmem:[%s0 + $0x174] sm:$0xf]
  %v108 = vld [vmem:[%s0 + $0x178] sm:$0xf]
  %v109 = vld [vmem:[%s0 + $0x17c] sm:$0xf]
  %v110 = vld [vmem:[%s0 + $0x180] sm:$0xf]
  %v111 = vld [vmem:[%s0 + $0x184] sm:$0xf]
  %v112 = vld [vmem:[%s0 + $0x188] sm:$0xf]
  %v113 = vld [vmem:[%s0 + $0x18c] sm:$0xf]
  %v114 = vld [vmem:[%s0 + $0x190] sm:$0xf]
  %v115 = vld [vmem:[%s0 + $0x194] sm:$0xf]
  %v116 = vld [vmem:[%s0 + $0x198] sm:$0xf]
  %v117 = vld [vmem:[%s0 + $0x19c] sm:$0xf]
  %v118 = vld [vmem:[%s0 + $0x1a0] sm:$0xf]
  %v119 = vld [vmem:[%s0 + $0x1a4] sm:$0xf]
  %v120 = vld [vmem:[%s0 + $0x1a8] sm:$0xf]
  %v121 = vld [vmem:[%s0 + $0x1ac] sm:$0xf]
  %v122 = vld [vmem:[%s0 + $0x1b0] sm:$0xf]
  %v123 = vld [vmem:[%s0 + $0x1b4] sm:$0xf]
  %v124 = vld [vmem:[%s0 + $0x1b8] sm:$0xf]
  %v125 = vld [vmem:[%s0 + $0x1bc] sm:$0xf]
  %v126 = vld [vmem:[%s0 + $0x1c0] sm:$0xf]
  %v127 = vld [vmem:[%s0 + $0x1c4] sm:$0xf]
  %v128 = vld [vmem:[%s0 + $0x1c8] sm:$0xf]
  %v129 = vld [vmem:[%s0 + $0x1cc] sm:$0xf]
  %v130 = vld [vmem:[%s0 + $0x1d0] sm:$0xf]
  %v131 = vld [vmem:[%s0 + $0x1d4] sm:$0xf]
  %v132 = vld [vmem:[%s0 + $0x1d8] sm:$0xf]
  %v133 = vld [vmem:[%s0 + $0x1dc] sm:$0xf]
  %v134 = vld [vmem:[%s0 + $0x1e0] sm:$0xf]
  %v135 = vld [vmem:[%s0 + $0x1e4] sm:$0xf]
  %v136 = vld [vmem:[%s0 + $0x1e8] sm:$0xf]
  %v137 = vld [vmem:[%s0 + $0x1ec] sm:$0xf]
  %v138 = vld [vmem:[%s0 + $0x1f0] sm:$0xf]
  %v139 = vld [vmem:[%s0 + $0x1f4] sm:$0xf]
  %v140 = vld [vmem:[%s0 + $0x1f8] sm:$0xf]
  %v141 = vld [vmem:[%s0 + $0x1fc] sm:$0xf]
  %v142 = vld [vmem:[%s0 + $0x200] sm:$0xf]
  %v143 = vld [vmem:[%s0 + $0x204] sm:$0xf]
  %v144 = vld [vmem:[%s0 + $0x208] sm:$0xf]
  %v145 = vld [vmem:[%s0 + $0x20c] sm:$0xf]
  %v146 = vld [vmem:[%s0 + $0x210] sm:$0xf]
  %v147 = vld [vmem:[%s0 + $0x214] sm:$0xf]
  %v148 = vld [vmem:[%s0 + $0x218] sm:$0xf]
  %v149 = vld [vmem:[%s0 + $0x21c] sm:$0xf]
  %v150 = vld [vmem:[%s0 + $0x220] sm:$0xf]
  %v151 = vld [vmem:[%s0 + $0x224] sm:$0xf]
  %v152 = vld [vmem:[%s0 + $0x228] sm:$0xf]
  %v153 = vld [vmem:[%s0 + $0x22c] sm:$0xf]
  %v154 = vld [vmem:[%s0 + $0x230] sm:$0xf]
  %v155 = vld [vmem:[%s0 + $0x234] sm:$0xf]
  %v156 = vld [vmem:[%s0 + $0x238] sm:$0xf]
  %v157 = vld [vmem:[%s0 + $0x23c] sm:$0xf]
  %v158 = vld [vmem:[%s0 + $0x240] sm:$0xf]
  %v159 = vld [vmem:[%s0 + $0x244] sm:$0xf]
  %v160 = vld [vmem:[%s0 + $0x248] sm:$0xf]
  %v161 = vld [vmem:[%s0 + $0x24c] sm:$0xf]
  %v162 = vld [vmem:[%s0 + $0x250] sm:$0xf]
  %v163 = vld [vmem:[%s0 + $0x254] sm:$0xf]
  %v164 = vld [vmem:[%s0 + $0x258] sm:$0xf]
  %v165 = vld [vmem:[%s0 + $0x25c] sm:$0xf]
  %v166 = vld [vmem:[%s0 + $0x260] sm:$0xf]
  %v167 = vld [vmem:[%s0 + $0x264] sm:$0xf]
  %v168 = vld [vmem:[%s0 + $0x268] sm:$0xf]
  %v169 = vld [vmem:[%s0 + $0x26c] sm:$0xf]
  %v170 = vld [vmem:[%s0 + $0x270] sm:$0xf]
  %v171 = vld [vmem:[%s0 + $0x274] sm:$0xf]
  %v172 = vld [vmem:[%s0 + $0x278] sm:$0xf]
  %v173 = vld [vmem:[%s0 + $0x27c] sm:$0xf]
  %v174 = vld [vmem:[%s0 + $0x280] sm:$0xf]
  %v175 = vld [vmem:[%s0 + $0x284] sm:$0xf]
  %v176 = vld [vmem:[%s0 + $0x288] sm:$0xf]
  %v177 = vld [vmem:[%s0 + $0x28c] sm:$0xf]
  %v178 = vld [vmem:[%s0 + $0x290] sm:$0xf]
  %v179 = vld [vmem:[%s0 + $0x294] sm:$0xf]
  %v180 = vld [vmem:[%s0 + $0x298] sm:$0xf]
  %v181 = vld [vmem:[%s0 + $0x29c] sm:$0xf]
  %v182 = vld [vmem:[%s0 + $0x2a0] sm:$0xf]
  %v183 = vld [vmem:[%s0 + $0x2a4] sm:$0xf]
  %v184 = vld [vmem:[%s0 + $0x2a8] sm:$0xf]
  %v185 = vld [vmem:[%s0 + $0x2ac] sm:$0xf]
  %v186 = vld [vmem:[%s0 + $0x2b0] sm:$0xf]
  %v187 = vld [vmem:[%s0 + $0x2b4] sm:$0xf]
  %v188 = vld [vmem:[%s0 + $0x2b8] sm:$0xf]
  %v189 = vld [vmem:[%s0 + $0x2bc] sm:$0xf]
  %v190 = vld [vmem:[%s0 + $0x2c0] sm:$0xf]
  %v191 = vld [vmem:[%s0 + $0x2c4] sm:$0xf]
  %v192 = vld [vmem:[%s0 + $0x2c8] sm:$0xf]
  %v193 = vld [vmem:[%s0 + $0x2cc] sm:$0xf]
  %v194 = vld [vmem:[%s0 + $0x2d0] sm:$0xf]
  %v195 = vld [vmem:[%s0 + $0x2d4] sm:$0xf]
  %v196 = vld [vmem:[%s0 + $0x2d8] sm:$0xf]
  %v197 = vld [vmem:[%s0 + $0x2dc] sm:$0xf]
  %v198 = vld [vmem:[%s0 + $0x2e0] sm:$0xf]
  %v199 = vld [vmem:[%s0 + $0x2e4] sm:$0xf]
  %v200 = vld [vmem:[%s0 + $0x2e8] sm:$0xf]
  %v201 = vld [vmem:[%s0 + $0x2ec] sm:$0xf]
  %v202 = vld [vmem:[%s0 + $0x2f0] sm:$0xf]
  %v203 = vld [vmem:[%s0 + $0x2f4] sm:$0xf]
  %v204 = vld [vmem:[%s0 + $0x2f8] sm:$0xf]
  %v205 = vld [vmem:[%s0 + $0x2fc] sm:$0xf]
  %v206 = vld [vmem:[%s0 + $0x300] sm:$0xf]
  %v207 = vld [vmem:[%s0 + $0x304] sm:$0xf]
  %v208 = vld [vmem:[%s0 + $0x308] sm:$0xf]
  %v209 = vld [vmem:[%s0 + $0x30c] sm:$0xf]
  %v210 = vld [vmem:[%s0 + $0x310] sm:$0xf]
  %v211 = vld [vmem:[%s0 + $0x314] sm:$0xf]
  %v212 = vld [vmem:[%s0 + $0x318] sm:$0xf]
  %v213 = vld [vmem:[%s0 + $0x31c] sm:$0xf]
  %v214 = vld [vmem:[%s0 + $0x320] sm:$0xf]
  %v215 = vld [vmem:[%s0 + $0x324] sm:$0xf]
  %v216 = vld [vmem:[%s0 + $0x328] sm:$0xf]
  %v217 = vld [vmem:[%s0 + $0x32c] sm:$0xf]
  %v218 = vld [vmem:[%s0 + $0x330] sm:$0xf]
  %v219 = vld [vmem:[%s0 + $0x334] sm:$0xf]
  %v220 = vld [vmem:[%s0 + $0x338] sm:$0xf]
  %v221 = vld [vmem:[%s0 + $0x33c] sm:$0xf]
  %v222 = vld [vmem:[%s0 + $0x340] sm:$0xf]
  %v223 = vld [vmem:[%s0 + $0x344] sm:$0xf]
  %v224 = vld [vmem:[%s0 + $0x348] sm:$0xf]
  %v225 = vld [vmem:[%s0 + $0x34c] sm:$0xf]
  %v226 = vld [vmem:[%s0 + $0x350] sm:$0xf]
  %v227 = vld [vmem:[%s0 + $0x354] sm:$0xf]
  %v228 = vld [vmem:[%s0 + $0x358] sm:$0xf]
  %v229 = vld [vmem:[%s0 + $0x35c] sm:$0xf]
  %v230 = vld [vmem:[%s0 + $0x360] sm:$0xf]
  %v231 = vld [vmem:[%s0 + $0x364] sm:$0xf]
  %v232 = vld [vmem:[%s0 + $0x368] sm:$0xf]
  %v233 = vld [vmem:[%s0 + $0x36c] sm:$0xf]
  %v234 = vld [vmem:[%s0 + $0x370] sm:$0xf]
  %v235 = vld [vmem:[%s0 + $0x374] sm:$0xf]
  %v236 = vld [vmem:[%s0 + $0x378] sm:$0xf]
  %v237 = vld [vmem:[%s0 + $0x37c] sm:$0xf]
  %v238 = vld [vmem:[%s0 + $0x380] sm:$0xf]
  %v239 = vld [vmem:[%s0 + $0x384] sm:$0xf]
  %v240 = vld [vmem:[%s0 + $0x388] sm:$0xf]
  %v241 = vld [vmem:[%s0 + $0x38c] sm:$0xf]
  %v242 = vld [vmem:[%s0 + $0x390] sm:$0xf]
  %v243 = vld [vmem:[%s0 + $0x394] sm:$0xf]
  %v244 = vld [vmem:[%s0 + $0x398] sm:$0xf]
  %v245 = vld [vmem:[%s0 + $0x39c] sm:$0xf]
  %v246 = vld [vmem:[%s0 + $0x3a0] sm:$0xf]
  %v247 = vld [vmem:[%s0 + $0x3a4] sm:$0xf]
  %v248 = vld [vmem:[%s0 + $0x3a8] sm:$0xf]
  %v249 = vld [vmem:[%s0 + $0x3ac] sm:$0xf]
  %v250 = vld [vmem:[%s0 + $0x3b0] sm:$0xf]
  %v251 = vld [vmem:[%s0 + $0x3b4] sm:$0xf]
  %v252 = vld [vmem:[%s0 + $0x3b8] sm:$0xf]
  %v253 = vld [vmem:[%s0 + $0x3bc] sm:$0xf]
  %v254 = vld [vmem:[%s0 + $0x3c0] sm:$0xf]
  %v255 = vld [vmem:[%s0 + $0x3c4] sm:$0xf]
  %v256 = vld [vmem:[%s0 + $0x3c8] sm:$0xf]
  %v257 = vld [vmem:[%s0 + $0x3cc] sm:$0xf]
  %v258 = vld [vmem:[%s0 + $0x3d0] sm:$0xf]
  %v259 = vld [vmem:[%s0 + $0x3d4] sm:$0xf]
  %v260 = vld [vmem:[%s0 + $0x3d8] sm:$0xf]
  %v261 = vld [vmem:[%s0 + $0x3dc] sm:$0xf]
  %v262 = vld [vmem:[%s0 + $0x3e0] sm:$0xf]
  %v263 = vld [vmem:[%s0 + $0x3e4] sm:$0xf]
  %v264 = vld [vmem:[%s0 + $0x3e8] sm:$0xf]
  %v265 = vld [vmem:[%s0 + $0x3ec] sm:$0xf]
  %v266 = vld [vmem:[%s0 + $0x3f0] sm:$0xf]
  %v267 = vld [vmem:[%s0 + $0x3f4] sm:$0xf]
  %v268 = vld [vmem:[%s0 + $0x3f8] sm:$0xf]
  %v269 = vld [vmem:[%s0 + $0x3fc] sm:$0xf]
  %v270 = vld [vmem:[%s0 + $0x400] sm:$0xf]
  %v271 = vld [vmem:[%s0 + $0x404] sm:$0xf]
  %v272 = vld [vmem:[%s0 + $0x408] sm:$0xf]
  %v273 = vld [vmem:[%s0 + $0x40c] sm:$0xf]
  %v274 = vld [vmem:[%s0 + $0x410] sm:$0xf]
  %v275 = vld [vmem:[%s0 + $0x414] sm:$0xf]
  %v276 = vld [vmem:[%s0 + $0x418] sm:$0xf]
  %v277 = vld [vmem:[%s0 + $0x41c] sm:$0xf]
  %v278 = vld [vmem:[%s0 + $0x420] sm:$0xf]
  %v279 = vld [vmem:[%s0 + $0x424] sm:$0xf]
  %v280 = vld [vmem:[%s0 + $0x428] sm:$0xf]
  %v281 = vld [vmem:[%s0 + $0x42c] sm:$0xf]
  %v282 = vld [vmem:[%s0 + $0x430] sm:$0xf]
  %v283 = vld [vmem:[%s0 + $0x434] sm:$0xf]
  %v284 = vld [vmem:[%s0 + $0x438] sm:$0xf]
  %v285 = vld [vmem:[%s0 + $0x43c] sm:$0xf]
  %v286 = vld [vmem:[%s0 + $0x440] sm:$0xf]
  %v287 = vld [vmem:[%s0 + $0x444] sm:$0xf]
  %v288 = vld [vmem:[%s0 + $0x448] sm:$0xf]
  %v289 = vld [vmem:[%s0 + $0x44c] sm:$0xf]
  %v290 = vld [vmem:[%s0 + $0x450] sm:$0xf]
  %v291 = vld [vmem:[%s0 + $0x454] sm:$0xf]
  %v292 = vld [vmem:[%s0 + $0x458] sm:$0xf]
  %v293 = vld [vmem:[%s0 + $0x45c] sm:$0xf]
  %v294 = vld [vmem:[%s0 + $0x460] sm:$0xf]
  %v295 = vld [vmem:[%s0 + $0x464] sm:$0xf]
  %v296 = vld [vmem:[%s0 + $0x468] sm:$0xf]
  %v297 = vld [vmem:[%s0 + $0x46c] sm:$0xf]
  %v298 = vld [vmem:[%s0 + $0x470] sm:$0xf]
  %v299 = vld [vmem:[%s0 + $0x474] sm:$0xf]
  %v300 = vld [vmem:[%s0 + $0x478] sm:$0xf]
  %v301 = vld [vmem:[%s0 + $0x47c] sm:$0xf]
  %v302 = vld [vmem:[%s0 + $0x480] sm:$0xf]
  %v303 = vld [vmem:[%s0 + $0x484] sm:$0xf]
  %v304 = vld [vmem:[%s0 + $0x488] sm:$0xf]
  %v305 = vld [vmem:[%s0 + $0x48c] sm:$0xf]
  %v306 = vld [vmem:[%s0 + $0x490] sm:$0xf]
  %v307 = vld [vmem:[%s0 + $0x494] sm:$0xf]
  %v308 = vld [vmem:[%s0 + $0x498] sm:$0xf]
  %v309 = vld [vmem:[%s0 + $0x49c] sm:$0xf]
  %v310 = vld [vmem:[%s0 + $0x4a0] sm:$0xf]
  %v311 = vld [vmem:[%s0 + $0x4a4] sm:$0xf]
  %v312 = vld [vmem:[%s0 + $0x4a8] sm:$0xf]
  %v313 = vld [vmem:[%s0 + $0x4ac] sm:$0xf]
  %v314 = vld [vmem:[%s0 + $0x4b0] sm:$0xf]
  %v315 = vld [vmem:[%s0 + $0x4b4] sm:$0xf]
  %v316 = vld [vmem:[%s0 + $0x4b8] sm:$0xf]
  %v317 = vld [vmem:[%s0 + $0x4bc] sm:$0xf]
  %v318 = vld [vmem:[%s0 + $0x4c0] sm:$0xf]
  %v319 = vld [vmem:[%s0 + $0x4c4] sm:$0xf]
  %v320 = vld [vmem:[%s0 + $0x4c8] sm:$0xf]
  %v321 = vld [vmem:[%s0 + $0x4cc] sm:$0xf]
  %v322 = vld [vmem:[%s0 + $0x4d0] sm:$0xf]
  %v323 = vld [vmem:[%s0 + $0x4d4] sm:$0xf]
  %v324 = vld [vmem:[%s0 + $0x4d8] sm:$0xf]
  %v325 = vld [vmem:[%s0 + $0x4dc] sm:$0xf]
  %v326 = vld [vmem:[%s0 + $0x4e0] sm:$0xf]
  %v327 = vld [vmem:[%s0 + $0x4e4] sm:$0xf]
  %v328 = vld [vmem:[%s0 + $0x4e8] sm:$0xf]
  %v329 = vld [vmem:[%s0 + $0x4ec] sm:$0xf]
  %v330 = vld [vmem:[%s0 + $0x4f0] sm:$0xf]
  %v331 = vld [vmem:[%s0 + $0x4f4] sm:$0xf]
  %v332 = vld [vmem:[%s0 + $0x4f8] sm:$0xf]
  %v333 = vld [vmem:[%s0 + $0x4fc] sm:$0xf]
  %v334 = vld [vmem:[%s0 + $0x500] sm:$0xf]
  %v335 = vld [vmem:[%s0 + $0x504] sm:$0xf]
  %v336 = vld [vmem:[%s0 + $0x508] sm:$0xf]
  %v337 = vld [vmem:[%s0 + $0x50c] sm:$0xf]
  %v338 = vld [vmem:[%s0 + $0x510] sm:$0xf]
  %v339 = vld [vmem:[%s0 + $0x514] sm:$0xf]
  %v340 = vld [vmem:[%s0 + $0x518] sm:$0xf]
  %v341 = vld [vmem:[%s0 + $0x51c] sm:$0xf]
  %v342 = vld [vmem:[%s0 + $0x520] sm:$0xf]
  %v343 = vld [vmem:[%s0 + $0x524] sm:$0xf]
  %v344 = vld [vmem:[%s0 + $0x528] sm:$0xf]
  %v345 = vld [vmem:[%s0 + $0x52c] sm:$0xf]
  %v346 = vld [vmem:[%s0 + $0x530] sm:$0xf]
  %v347 = vld [vmem:[%s0 + $0x534] sm:$0xf]
  %v348 = vld [vmem:[%s0 + $0x538] sm:$0xf]
  %v349 = vld [vmem:[%s0 + $0x53c] sm:$0xf]
  %v350 = vld [vmem:[%s0 + $0x540] sm:$0xf]
  %v351 = vld [vmem:[%s0 + $0x544] sm:$0xf]
  %v352 = vld [vmem:[%s0 + $0x548] sm:$0xf]
  %v353 = vld [vmem:[%s0 + $0x54c] sm:$0xf]
  %v354 = vld [vmem:[%s0 + $0x550] sm:$0xf]
  %v355 = vld [vmem:[%s0 + $0x554] sm:$0xf]
  %v356 = vld [vmem:[%s0 + $0x558] sm:$0xf]
  %v357 = vld [vmem:[%s0 + $0x55c] sm:$0xf]
  %v358 = vld [vmem:[%s0 + $0x560] sm:$0xf]
  %v359 = vld [vmem:[%s0 + $0x564] sm:$0xf]
  %v360 = vld [vmem:[%s0 + $0x568] sm:$0xf]
  %v361 = vld [vmem:[%s0 + $0x56c] sm:$0xf]
  %v362 = vld [vmem:[%s0 + $0x570] sm:$0xf]
  %v363 = vld [vmem:[%s0 + $0x574] sm:$0xf]
  %v364 = vld [vmem:[%s0 + $0x578] sm:$0xf]
  %v365 = vld [vmem:[%s0 + $0x57c] sm:$0xf]
  %v366 = vld [vmem:[%s0 + $0x580] sm:$0xf]
  %v367 = vld [vmem:[%s0 + $0x584] sm:$0xf]
  %v368 = vld [vmem:[%s0 + $0x588] sm:$0xf]
  %v369 = vld [vmem:[%s0 + $0x58c] sm:$0xf]
  %v370 = vld [vmem:[%s0 + $0x590] sm:$0xf]
  %v371 = vld [vmem:[%s0 + $0x594] sm:$0xf]
  %v372 = vld [vmem:[%s0 + $0x598] sm:$0xf]
  %v373 = vld [vmem:[%s0 + $0x59c] sm:$0xf]
  %v374 = vld [vmem:[%s0 + $0x5a0] sm:$0xf]
  %v375 = vld [vmem:[%s0 + $0x5a4] sm:$0xf]
  %v376 = vld [vmem:[%s0 + $0x5a8] sm:$0xf]
  %v377 = vld [vmem:[%s0 + $0x5ac] sm:$0xf]
  %v378 = vld [vmem:[%s0 + $0x5b0] sm:$0xf]
  %v379 = vld [vmem:[%s0 + $0x5b4] sm:$0xf]
  %v380 = vld [vmem:[%s0 + $0x5b8] sm:$0xf]
  %v381 = vld [vmem:[%s0 + $0x5bc] sm:$0xf]
  %v382 = vld [vmem:[%s0 + $0x5c0] sm:$0xf]
  %v383 = vld [vmem:[%s0 + $0x5c4] sm:$0xf]
  %v384 = vld [vmem:[%s0 + $0x5c8] sm:$0xf]
  %v385 = vld [vmem:[%s0 + $0x5cc] sm:$0xf]
  %v386 = vld [vmem:[%s0 + $0x5d0] sm:$0xf]
  %v387 = vld [vmem:[%s0 + $0x5d4] sm:$0xf]
  %v388 = vld [vmem:[%s0 + $0x5d8] sm:$0xf]
  %v389 = vld [vmem:[%s0 + $0x5dc] sm:$0xf]
  %v390 = vld [vmem:[%s0 + $0x5e0] sm:$0xf]
  %v391 = vld [vmem:[%s0 + $0x5e4] sm:$0xf]
  %v392 = vld [vmem:[%s0 + $0x5e8] sm:$0xf]
  %v393 = vld [vmem:[%s0 + $0x5ec] sm:$0xf]
  %v394 = vld [vmem:[%s0 + $0x5f0] sm:$0xf]
  %v395 = vld [vmem:[%s0 + $0x5f4] sm:$0xf]
  %v396 = vld [vmem:[%s0 + $0x5f8] sm:$0xf]
  %v397 = vld [vmem:[%s0 + $0x5fc] sm:$0xf]
  %v398 = vld [vmem:[%s0 + $0x600] sm:$0xf]
  %v399 = vld [vmem:[%s0 + $0x604] sm:$0xf]
  %v400 = vld [vmem:[%s0 + $0x608] sm:$0xf]
  %v401 = vld [vmem:[%s0 + $0x60c] sm:$0xf]
  %v402 = vld [vmem:[%s0 + $0x610] sm:$0xf]
  %v403 = vld [vmem:[%s0 + $0x614] sm:$0xf]
  %v404 = vld [vmem:[%s0 + $0x618] sm:$0xf]
  %v405 = vld [vmem:[%s0 + $0x61c] sm:$0xf]
  %v406 = vld [vmem:[%s0 + $0x620] sm:$0xf]
  %v407 = vld [vmem:[%s0 + $0x624] sm:$0xf]
  %v408 = vld [vmem:[%s0 + $0x628] sm:$0xf]
  %v409 = vld [vmem:[%s0 + $0x62c] sm:$0xf]
  %v410 = vld [vmem:[%s0 + $0x630] sm:$0xf]
  %v411 = vld [vmem:[%s0 + $0x634] sm:$0xf]
  %v412 = vld [vmem:[%s0 + $0x638] sm:$0xf]
  %v413 = vld [vmem:[%s0 + $0x63c] sm:$0xf]
  %v414 = vld [vmem:[%s0 + $0x640] sm:$0xf]
  %v415 = vld [vmem:[%s0 + $0x644] sm:$0xf]
  %v416 = vld [vmem:[%s0 + $0x648] sm:$0xf]
  %v417 = vld [vmem:[%s0 + $0x64c] sm:$0xf]
  %v418 = vld [vmem:[%s0 + $0x650] sm:$0xf]
  %v419 = vld [vmem:[%s0 + $0x654] sm:$0xf]
  %v420 = vld [vmem:[%s0 + $0x658] sm:$0xf]
  %v421 = vld [vmem:[%s0 + $0x65c] sm:$0xf]
  %v422 = vld [vmem:[%s0 + $0x660] sm:$0xf]
  %v423 = vld [vmem:[%s0 + $0x664] sm:$0xf]
  %v424 = vld [vmem:[%s0 + $0x668] sm:$0xf]
  %v425 = vld [vmem:[%s0 + $0x66c] sm:$0xf]
  %v426 = vld [vmem:[%s0 + $0x670] sm:$0xf]
  %v427 = vld [vmem:[%s0 + $0x674] sm:$0xf]
  %v428 = vld [vmem:[%s0 + $0x678] sm:$0xf]
  %v429 = vld [vmem:[%s0 + $0x67c] sm:$0xf]
  %v430 = vld [vmem:[%s0 + $0x680] sm:$0xf]
  %v431 = vld [vmem:[%s0 + $0x684] sm:$0xf]
  %v432 = vld [vmem:[%s0 + $0x688] sm:$0xf]
  %v433 = vld [vmem:[%s0 + $0x68c] sm:$0xf]
  %v434 = vld [vmem:[%s0 + $0x690] sm:$0xf]
  %v435 = vld [vmem:[%s0 + $0x694] sm:$0xf]
  %v436 = vld [vmem:[%s0 + $0x698] sm:$0xf]
  %v437 = vld [vmem:[%s0 + $0x69c] sm:$0xf]
  %v438 = vld [vmem:[%s0 + $0x6a0] sm:$0xf]
  %v439 = vld [vmem:[%s0 + $0x6a4] sm:$0xf]
  %v440 = vld [vmem:[%s0 + $0x6a8] sm:$0xf]
  %v441 = vld [vmem:[%s0 + $0x6ac] sm:$0xf]
  %v442 = vld [vmem:[%s0 + $0x6b0] sm:$0xf]
  %v443 = vld [vmem:[%s0 + $0x6b4] sm:$0xf]
  %v444 = vld [vmem:[%s0 + $0x6b8] sm:$0xf]
  %v445 = vld [vmem:[%s0 + $0x6bc] sm:$0xf]
  %v446 = vld [vmem:[%s0 + $0x6c0] sm:$0xf]
  %v447 = vld [vmem:[%s0 + $0x6c4] sm:$0xf]
  %v448 = vld [vmem:[%s0 + $0x6c8] sm:$0xf]
  %v449 = vld [vmem:[%s0 + $0x6cc] sm:$0xf]
  %v450 = vld [vmem:[%s0 + $0x6d0] sm:$0xf]
  %v451 = vld [vmem:[%s0 + $0x6d4] sm:$0xf]
  %v452 = vld [vmem:[%s0 + $0x6d8] sm:$0xf]
  %v453 = vld [vmem:[%s0 + $0x6dc] sm:$0xf]
  %v454 = vld [vmem:[%s0 + $0x6e0] sm:$0xf]
  %v455 = vld [vmem:[%s0 + $0x6e4] sm:$0xf]
  %v456 = vld [vmem:[%s0 + $0x6e8] sm:$0xf]
  %v457 = vld [vmem:[%s0 + $0x6ec] sm:$0xf]
  %v458 = vld [vmem:[%s0 + $0x6f0] sm:$0xf]
  %v459 = vld [vmem:[%s0 + $0x6f4] sm:$0xf]
  %v460 = vld [vmem:[%s0 + $0x6f8] sm:$0xf]
  %v461 = vld [vmem:[%s0 + $0x6fc] sm:$0xf]
  %v462 = vld [vmem:[%s0 + $0x700] sm:$0xf]
  %v463 = vld [vmem:[%s0 + $0x704] sm:$0xf]
  %v464 = vld [vmem:[%s0 + $0x708] sm:$0xf]
  %v465 = vld [vmem:[%s0 + $0x70c] sm:$0xf]
  %v466 = vld [vmem:[%s0 + $0x710] sm:$0xf]
  %v467 = vld [vmem:[%s0 + $0x714] sm:$0xf]
  %v468 = vld [vmem:[%s0 + $0x718] sm:$0xf]
  %v469 = vld [vmem:[%s0 + $0x71c] sm:$0xf]
  %v470 = vld [vmem:[%s0 + $0x720] sm:$0xf]
  %v471 = vld [vmem:[%s0 + $0x724] sm:$0xf]
  %v472 = vld [vmem:[%s0 + $0x728] sm:$0xf]
  %v473 = vld [vmem:[%s0 + $0x72c] sm:$0xf]
  %v474 = vld [vmem:[%s0 + $0x730] sm:$0xf]
  %v475 = vld [vmem:[%s0 + $0x734] sm:$0xf]
  %v476 = vld [vmem:[%s0 + $0x738] sm:$0xf]
  %v477 = vld [vmem:[%s0 + $0x73c] sm:$0xf]
  %v478 = vld [vmem:[%s0 + $0x740] sm:$0xf]
  %v479 = vld [vmem:[%s0 + $0x744] sm:$0xf]
  %v480 = vld [vmem:[%s0 + $0x748] sm:$0xf]
  %v481 = vld [vmem:[%s0 + $0x74c] sm:$0xf]
  %v482 = vld [vmem:[%s0 + $0x750] sm:$0xf]
  %v483 = vld [vmem:[%s0 + $0x754] sm:$0xf]
  %v484 = vld [vmem:[%s0 + $0x758] sm:$0xf]
  %v485 = vld [vmem:[%s0 + $0x75c] sm:$0xf]
  %v486 = vld [vmem:[%s0 + $0x760] sm:$0xf]
  %v487 = vld [vmem:[%s0 + $0x764] sm:$0xf]
  %v488 = vld [vmem:[%s0 + $0x768] sm:$0xf]
  %v489 = vld [vmem:[%s0 + $0x76c] sm:$0xf]
  %v490 = vld [vmem:[%s0 + $0x770] sm:$0xf]
  %v491 = vld [vmem:[%s0 + $0x774] sm:$0xf]
  %v492 = vld [vmem:[%s0 + $0x778] sm:$0xf]
  %v493 = vld [vmem:[%s0 + $0x77c] sm:$0xf]
  %v494 = vld [vmem:[%s0 + $0x780] sm:$0xf]
  %v495 = vld [vmem:[%s0 + $0x784] sm:$0xf]
  %v496 = vld [vmem:[%s0 + $0x788] sm:$0xf]
  %v497 = vld [vmem:[%s0 + $0x78c] sm:$0xf]
  %v498 = vld [vmem:[%s0 + $0x790] sm:$0xf]
  %v499 = vld [vmem:[%s0 + $0x794] sm:$0xf]
  %v500 = vld [vmem:[%s0 + $0x798] sm:$0xf]
  %v501 = vld [vmem:[%s0 + $0x79c] sm:$0xf]
  %v502 = vld [vmem:[%s0 + $0x7a0] sm:$0xf]
  %v503 = vld [vmem:[%s0 + $0x7a4] sm:$0xf]
  %v504 = vld [vmem:[%s0 + $0x7a8] sm:$0xf]
  %v505 = vld [vmem:[%s0 + $0x7ac] sm:$0xf]
  %v506 = vld [vmem:[%s0 + $0x7b0] sm:$0xf]
  %v507 = vld [vmem:[%s0 + $0x7b4] sm:$0xf]
  %v508 = vld [vmem:[%s0 + $0x7b8] sm:$0xf]
  %v509 = vld [vmem:[%s0 + $0x7bc] sm:$0xf]
  %v510 = vld [vmem:[%s0 + $0x7c0] sm:$0xf]
  %v511 = vld [vmem:[%s0 + $0x7c4] sm:$0xf]
  %v512 = vld [vmem:[%s0 + $0x7c8] sm:$0xf]
  %v513 = vld [vmem:[%s0 + $0x7cc] sm:$0xf]
  %v514 = vld [vmem:[%s0 + $0x7d0] sm:$0xf]
  %v515 = vld [vmem:[%s0 + $0x7d4] sm:$0xf]
  %v516 = vld [vmem:[%s0 + $0x7d8] sm:$0xf]
  %v517 = vld [vmem:[%s0 + $0x7dc] sm:$0xf]
  %v518 = vld [vmem:[%s0 + $0x7e0] sm:$0xf]
  %v519 = vld [vmem:[%s0 + $0x7e4] sm:$0xf]
  %v520 = vld [vmem:[%s0 + $0x7e8] sm:$0xf]
  %v521 = vld [vmem:[%s0 + $0x7ec] sm:$0xf]
  %v522 = vld [vmem:[%s0 + $0x7f0] sm:$0xf]
  %v523 = vld [vmem:[%s0 + $0x7f4] sm:$0xf]
  %v524 = vld [vmem:[%s0 + $0x7f8] sm:$0xf]
  %v525 = vld [vmem:[%s0 + $0x7fc] sm:$0xf]
  %v526 = vld [vmem:[%s0 + $0x800] sm:$0xf]
  %v527 = vld [vmem:[%s0 + $0x804] sm:$0xf]
  %v528 = vld [vmem:[%s0 + $0x808] sm:$0xf]
  %v529 = vld [vmem:[%s0 + $0x80c] sm:$0xf]
  %v530 = vld [vmem:[%s0 + $0x810] sm:$0xf]
  %v531 = vld [vmem:[%s0 + $0x814] sm:$0xf]
  %v532 = vld [vmem:[%s0 + $0x818] sm:$0xf]
  %v533 = vld [vmem:[%s0 + $0x81c] sm:$0xf]
  %v534 = vld [vmem:[%s0 + $0x820] sm:$0xf]
  %v535 = vld [vmem:[%s0 + $0x824] sm:$0xf]
  %v536 = vld [vmem:[%s0 + $0x828] sm:$0xf]
  %v537 = vld [vmem:[%s0 + $0x82c] sm:$0xf]
  %v538 = vld [vmem:[%s0 + $0x830] sm:$0xf]
  %v539 = vld [vmem:[%s0 + $0x834] sm:$0xf]
  %v540 = vld [vmem:[%s0 + $0x838] sm:$0xf]
  %v541 = vld [vmem:[%s0 + $0x83c] sm:$0xf]
  %v542 = vld [vmem:[%s0 + $0x840] sm:$0xf]
  %v543 = vld [vmem:[%s0 + $0x844] sm:$0xf]
  %v544 = vld [vmem:[%s0 + $0x848] sm:$0xf]
  %v545 = vld [vmem:[%s0 + $0x84c] sm:$0xf]
  %v546 = vld [vmem:[%s0 + $0x850] sm:$0xf]
  %v547 = vld [vmem:[%s0 + $0x854] sm:$0xf]
  %v548 = vld [vmem:[%s0 + $0x858] sm:$0xf]
  %v549 = vld [vmem:[%s0 + $0x85c] sm:$0xf]
  %v550 = vld [vmem:[%s0 + $0x860] sm:$0xf]
  %v551 = vld [vmem:[%s0 + $0x864] sm:$0xf]
  %v552 = vld [vmem:[%s0 + $0x868] sm:$0xf]
  %v553 = vld [vmem:[%s0 + $0x86c] sm:$0xf]
  %v554 = vld [vmem:[%s0 + $0x870] sm:$0xf]
  %v555 = vld [vmem:[%s0 + $0x874] sm:$0xf]
  %v556 = vld [vmem:[%s0 + $0x878] sm:$0xf]
  %v557 = vld [vmem:[%s0 + $0x87c] sm:$0xf]
  %v558 = vld [vmem:[%s0 + $0x880] sm:$0xf]
  %v559 = vld [vmem:[%s0 + $0x884] sm:$0xf]
  %v560 = vld [vmem:[%s0 + $0x888] sm:$0xf]
  %v561 = vld [vmem:[%s0 + $0x88c] sm:$0xf]
  %v562 = vld [vmem:[%s0 + $0x890] sm:$0xf]
  %v563 = vld [vmem:[%s0 + $0x894] sm:$0xf]
  %v564 = vld [vmem:[%s0 + $0x898] sm:$0xf]
  %v565 = vld [vmem:[%s0 + $0x89c] sm:$0xf]
  %v566 = vld [vmem:[%s0 + $0x8a0] sm:$0xf]
  %v567 = vld [vmem:[%s0 + $0x8a4] sm:$0xf]
  %v568 = vld [vmem:[%s0 + $0x8a8] sm:$0xf]
  %v569 = vld [vmem:[%s0 + $0x8ac] sm:$0xf]
  %v570 = vld [vmem:[%s0 + $0x8b0] sm:$0xf]
  %v571 = vld [vmem:[%s0 + $0x8b4] sm:$0xf]
  %v572 = vld [vmem:[%s0 + $0x8b8] sm:$0xf]
  %v573 = vld [vmem:[%s0 + $0x8bc] sm:$0xf]
  %v574 = vld [vmem:[%s0 + $0x8c0] sm:$0xf]
  %v575 = vld [vmem:[%s0 + $0x8c4] sm:$0xf]
  %v576 = vld [vmem:[%s0 + $0x8c8] sm:$0xf]
  %v577 = vld [vmem:[%s0 + $0x8cc] sm:$0xf]
  %v578 = vld [vmem:[%s0 + $0x8d0] sm:$0xf]
  %v579 = vld [vmem:[%s0 + $0x8d4] sm:$0xf]
  %v580 = vld [vmem:[%s0 + $0x8d8] sm:$0xf]
  %v581 = vld [vmem:[%s0 + $0x8dc] sm:$0xf]
  %v582 = vld [vmem:[%s0 + $0x8e0] sm:$0xf]
  %v583 = vld [vmem:[%s0 + $0x8e4] sm:$0xf]
  %v584 = vld [vmem:[%s0 + $0x8e8] sm:$0xf]
  %v585 = vld [vmem:[%s0 + $0x8ec] sm:$0xf]
  %v586 = vld [vmem:[%s0 + $0x8f0] sm:$0xf]
  %v587 = vld [vmem:[%s0 + $0x8f4] sm:$0xf]
  %v588 = vld [vmem:[%s0 + $0x8f8] sm:$0xf]
  %v589 = vld [vmem:[%s0 + $0x8fc] sm:$0xf]
  %v590 = vld [vmem:[%s1] sm:$0xf]
  %v591 = vld [vmem:[%s1 + $0x4] sm:$0xf]
  %v592 = vld [vmem:[%s1 + $0x8] sm:$0xf]
  %v593 = vld [vmem:[%s1 + $0xc] sm:$0xf]
  %v594 = vld [vmem:[%s1 + $0x10] sm:$0xf]
  %v595 = vld [vmem:[%s1 + $0x14] sm:$0xf]
  %v596 = vld [vmem:[%s1 + $0x18] sm:$0xf]
  %v597 = vld [vmem:[%s1 + $0x1c] sm:$0xf]
  %v598 = vld [vmem:[%s1 + $0x20] sm:$0xf]
  %v599 = vld [vmem:[%s1 + $0x24] sm:$0xf]
  %v600 = vld [vmem:[%s1 + $0x28] sm:$0xf]
  %v601 = vld [vmem:[%s1 + $0x2c] sm:$0xf]
  %v602 = vld [vmem:[%s1 + $0x30] sm:$0xf]
  %v603 = vld [vmem:[%s1 + $0x34] sm:$0xf]
  %v604 = vld [vmem:[%s1 + $0x38] sm:$0xf]
  %v605 = vld [vmem:[%s1 + $0x3c] sm:$0xf]
  %v606 = vld [vmem:[%s2] sm:$0x1]
  %v608 = vperm.slane %v606, 0
  %v1186 = vunpack.c.l.b16 %v14
  %v1187 = vunpack.c.l.b16 %v15
  %v1188 = vunpack.c.l.b16 %v16
  %v1189 = vunpack.c.l.b16 %v17
  %v1190 = vunpack.c.l.b16 %v18
  %v1191 = vunpack.c.l.b16 %v19
  %v1192 = vunpack.c.l.b16 %v20
  %v1193 = vunpack.c.l.b16 %v21
  %v1194 = vunpack.c.l.b16 %v22
  %v1195 = vunpack.c.l.b16 %v23
  %v1196 = vunpack.c.l.b16 %v24
  %v1197 = vunpack.c.l.b16 %v25
  %v1198 = vunpack.c.l.b16 %v26
  %v1199 = vunpack.c.l.b16 %v27
  %v1200 = vunpack.c.l.b16 %v28
  %v1201 = vunpack.c.l.b16 %v29
  %v1202 = vunpack.c.l.b16 %v30
  %v1203 = vunpack.c.l.b16 %v31
  %v1204 = vunpack.c.l.b16 %v32
  %v1205 = vunpack.c.l.b16 %v33
  %v1206 = vunpack.c.l.b16 %v34
  %v1207 = vunpack.c.l.b16 %v35
  %v1208 = vunpack.c.l.b16 %v36
  %v1209 = vunpack.c.l.b16 %v37
  %v1210 = vunpack.c.l.b16 %v38
  %v1211 = vunpack.c.l.b16 %v39
  %v1212 = vunpack.c.l.b16 %v40
  %v1213 = vunpack.c.l.b16 %v41
  %v1214 = vunpack.c.l.b16 %v42
  %v1215 = vunpack.c.l.b16 %v43
  %v1216 = vunpack.c.l.b16 %v44
  %v1217 = vunpack.c.l.b16 %v45
  %v1218 = vunpack.c.l.b16 %v46
  %v1219 = vunpack.c.l.b16 %v47
  %v1220 = vunpack.c.l.b16 %v48
  %v1221 = vunpack.c.l.b16 %v49
  %v1222 = vunpack.c.l.b16 %v50
  %v1223 = vunpack.c.l.b16 %v51
  %v1224 = vunpack.c.l.b16 %v52
  %v1225 = vunpack.c.l.b16 %v53
  %v1226 = vunpack.c.l.b16 %v54
  %v1227 = vunpack.c.l.b16 %v55
  %v1228 = vunpack.c.l.b16 %v56
  %v1229 = vunpack.c.l.b16 %v57
  %v1230 = vunpack.c.l.b16 %v58
  %v1231 = vunpack.c.l.b16 %v59
  %v1232 = vunpack.c.l.b16 %v60
  %v1233 = vunpack.c.l.b16 %v61
  %v1234 = vunpack.c.l.b16 %v62
  %v1235 = vunpack.c.l.b16 %v63
  %v1236 = vunpack.c.l.b16 %v64
  %v1237 = vunpack.c.l.b16 %v65
  %v1238 = vunpack.c.l.b16 %v66
  %v1239 = vunpack.c.l.b16 %v67
  %v1240 = vunpack.c.l.b16 %v68
  %v1241 = vunpack.c.l.b16 %v69
  %v1242 = vunpack.c.l.b16 %v70
  %v1243 = vunpack.c.l.b16 %v71
  %v1244 = vunpack.c.l.b16 %v72
  %v1245 = vunpack.c.l.b16 %v73
  %v1246 = vunpack.c.l.b16 %v74
  %v1247 = vunpack.c.l.b16 %v75
  %v1248 = vunpack.c.l.b16 %v76
  %v1249 = vunpack.c.l.b16 %v77
  %v1250 = vunpack.c.l.b16 %v78
  %v1251 = vunpack.c.l.b16 %v79
  %v1252 = vunpack.c.l.b16 %v80
  %v1253 = vunpack.c.l.b16 %v81
  %v1254 = vunpack.c.l.b16 %v82
  %v1255 = vunpack.c.l.b16 %v83
  %v1256 = vunpack.c.l.b16 %v84
  %v1257 = vunpack.c.l.b16 %v85
  %v1258 = vunpack.c.l.b16 %v86
  %v1259 = vunpack.c.l.b16 %v87
  %v1260 = vunpack.c.l.b16 %v88
  %v1261 = vunpack.c.l.b16 %v89
  %v1262 = vunpack.c.l.b16 %v90
  %v1263 = vunpack.c.l.b16 %v91
  %v1264 = vunpack.c.l.b16 %v92
  %v1265 = vunpack.c.l.b16 %v93
  %v1266 = vunpack.c.l.b16 %v94
  %v1267 = vunpack.c.l.b16 %v95
  %v1268 = vunpack.c.l.b16 %v96
  %v1269 = vunpack.c.l.b16 %v97
  %v1270 = vunpack.c.l.b16 %v98
  %v1271 = vunpack.c.l.b16 %v99
  %v1272 = vunpack.c.l.b16 %v100
  %v1273 = vunpack.c.l.b16 %v101
  %v1274 = vunpack.c.l.b16 %v102
  %v1275 = vunpack.c.l.b16 %v103
  %v1276 = vunpack.c.l.b16 %v104
  %v1277 = vunpack.c.l.b16 %v105
  %v1278 = vunpack.c.l.b16 %v106
  %v1279 = vunpack.c.l.b16 %v107
  %v1280 = vunpack.c.l.b16 %v108
  %v1281 = vunpack.c.l.b16 %v109
  %v1282 = vunpack.c.l.b16 %v110
  %v1283 = vunpack.c.l.b16 %v111
  %v1284 = vunpack.c.l.b16 %v112
  %v1285 = vunpack.c.l.b16 %v113
  %v1286 = vunpack.c.l.b16 %v114
  %v1287 = vunpack.c.l.b16 %v115
  %v1288 = vunpack.c.l.b16 %v116
  %v1289 = vunpack.c.l.b16 %v117
  %v1290 = vunpack.c.l.b16 %v118
  %v1291 = vunpack.c.l.b16 %v119
  %v1292 = vunpack.c.l.b16 %v120
  %v1293 = vunpack.c.l.b16 %v121
  %v1294 = vunpack.c.l.b16 %v122
  %v1295 = vunpack.c.l.b16 %v123
  %v1296 = vunpack.c.l.b16 %v124
  %v1297 = vunpack.c.l.b16 %v125
  %v1298 = vunpack.c.l.b16 %v126
  %v1299 = vunpack.c.l.b16 %v127
  %v1300 = vunpack.c.l.b16 %v128
  %v1301 = vunpack.c.l.b16 %v129
  %v1302 = vunpack.c.l.b16 %v130
  %v1303 = vunpack.c.l.b16 %v131
  %v1304 = vunpack.c.l.b16 %v132
  %v1305 = vunpack.c.l.b16 %v133
  %v1306 = vunpack.c.l.b16 %v134
  %v1307 = vunpack.c.l.b16 %v135
  %v1308 = vunpack.c.l.b16 %v136
  %v1309 = vunpack.c.l.b16 %v137
  %v1310 = vunpack.c.l.b16 %v138
  %v1311 = vunpack.c.l.b16 %v139
  %v1312 = vunpack.c.l.b16 %v140
  %v1313 = vunpack.c.l.b16 %v141
  %v1314 = vunpack.c.l.b16 %v142
  %v1315 = vunpack.c.l.b16 %v143
  %v1316 = vunpack.c.l.b16 %v144
  %v1317 = vunpack.c.l.b16 %v145
  %v1318 = vunpack.c.l.b16 %v146
  %v1319 = vunpack.c.l.b16 %v147
  %v1320 = vunpack.c.l.b16 %v148
  %v1321 = vunpack.c.l.b16 %v149
  %v1322 = vunpack.c.l.b16 %v150
  %v1323 = vunpack.c.l.b16 %v151
  %v1324 = vunpack.c.l.b16 %v152
  %v1325 = vunpack.c.l.b16 %v153
  %v1326 = vunpack.c.l.b16 %v154
  %v1327 = vunpack.c.l.b16 %v155
  %v1328 = vunpack.c.l.b16 %v156
  %v1329 = vunpack.c.l.b16 %v157
  %v1330 = vunpack.c.l.b16 %v158
  %v1331 = vunpack.c.l.b16 %v159
  %v1332 = vunpack.c.l.b16 %v160
  %v1333 = vunpack.c.l.b16 %v161
  %v1334 = vunpack.c.l.b16 %v162
  %v1335 = vunpack.c.l.b16 %v163
  %v1336 = vunpack.c.l.b16 %v164
  %v1337 = vunpack.c.l.b16 %v165
  %v1338 = vunpack.c.l.b16 %v166
  %v1339 = vunpack.c.l.b16 %v167
  %v1340 = vunpack.c.l.b16 %v168
  %v1341 = vunpack.c.l.b16 %v169
  %v1342 = vunpack.c.l.b16 %v170
  %v1343 = vunpack.c.l.b16 %v171
  %v1344 = vunpack.c.l.b16 %v172
  %v1345 = vunpack.c.l.b16 %v173
  %v1346 = vunpack.c.l.b16 %v174
  %v1347 = vunpack.c.l.b16 %v175
  %v1348 = vunpack.c.l.b16 %v176
  %v1349 = vunpack.c.l.b16 %v177
  %v1350 = vunpack.c.l.b16 %v178
  %v1351 = vunpack.c.l.b16 %v179
  %v1352 = vunpack.c.l.b16 %v180
  %v1353 = vunpack.c.l.b16 %v181
  %v1354 = vunpack.c.l.b16 %v182
  %v1355 = vunpack.c.l.b16 %v183
  %v1356 = vunpack.c.l.b16 %v184
  %v1357 = vunpack.c.l.b16 %v185
  %v1358 = vunpack.c.l.b16 %v186
  %v1359 = vunpack.c.l.b16 %v187
  %v1360 = vunpack.c.l.b16 %v188
  %v1361 = vunpack.c.l.b16 %v189
  %v1362 = vunpack.c.l.b16 %v190
  %v1363 = vunpack.c.l.b16 %v191
  %v1364 = vunpack.c.l.b16 %v192
  %v1365 = vunpack.c.l.b16 %v193
  %v1366 = vunpack.c.l.b16 %v194
  %v1367 = vunpack.c.l.b16 %v195
  %v1368 = vunpack.c.l.b16 %v196
  %v1369 = vunpack.c.l.b16 %v197
  %v1370 = vunpack.c.l.b16 %v198
  %v1371 = vunpack.c.l.b16 %v199
  %v1372 = vunpack.c.l.b16 %v200
  %v1373 = vunpack.c.l.b16 %v201
  %v1374 = vunpack.c.l.b16 %v202
  %v1375 = vunpack.c.l.b16 %v203
  %v1376 = vunpack.c.l.b16 %v204
  %v1377 = vunpack.c.l.b16 %v205
  %v1378 = vunpack.c.l.b16 %v206
  %v1379 = vunpack.c.l.b16 %v207
  %v1380 = vunpack.c.l.b16 %v208
  %v1381 = vunpack.c.l.b16 %v209
  %v1382 = vunpack.c.l.b16 %v210
  %v1383 = vunpack.c.l.b16 %v211
  %v1384 = vunpack.c.l.b16 %v212
  %v1385 = vunpack.c.l.b16 %v213
  %v1386 = vunpack.c.l.b16 %v214
  %v1387 = vunpack.c.l.b16 %v215
  %v1388 = vunpack.c.l.b16 %v216
  %v1389 = vunpack.c.l.b16 %v217
  %v1390 = vunpack.c.l.b16 %v218
  %v1391 = vunpack.c.l.b16 %v219
  %v1392 = vunpack.c.l.b16 %v220
  %v1393 = vunpack.c.l.b16 %v221
  %v1394 = vunpack.c.l.b16 %v222
  %v1395 = vunpack.c.l.b16 %v223
  %v1396 = vunpack.c.l.b16 %v224
  %v1397 = vunpack.c.l.b16 %v225
  %v1398 = vunpack.c.l.b16 %v226
  %v1399 = vunpack.c.l.b16 %v227
  %v1400 = vunpack.c.l.b16 %v228
  %v1401 = vunpack.c.l.b16 %v229
  %v1402 = vunpack.c.l.b16 %v230
  %v1403 = vunpack.c.l.b16 %v231
  %v1404 = vunpack.c.l.b16 %v232
  %v1405 = vunpack.c.l.b16 %v233
  %v1406 = vunpack.c.l.b16 %v234
  %v1407 = vunpack.c.l.b16 %v235
  %v1408 = vunpack.c.l.b16 %v236
  %v1409 = vunpack.c.l.b16 %v237
  %v1410 = vunpack.c.l.b16 %v238
  %v1411 = vunpack.c.l.b16 %v239
  %v1412 = vunpack.c.l.b16 %v240
  %v1413 = vunpack.c.l.b16 %v241
  %v1414 = vunpack.c.l.b16 %v242
  %v1415 = vunpack.c.l.b16 %v243
  %v1416 = vunpack.c.l.b16 %v244
  %v1417 = vunpack.c.l.b16 %v245
  %v1418 = vunpack.c.l.b16 %v246
  %v1419 = vunpack.c.l.b16 %v247
  %v1420 = vunpack.c.l.b16 %v248
  %v1421 = vunpack.c.l.b16 %v249
  %v1422 = vunpack.c.l.b16 %v250
  %v1423 = vunpack.c.l.b16 %v251
  %v1424 = vunpack.c.l.b16 %v252
  %v1425 = vunpack.c.l.b16 %v253
  %v1426 = vunpack.c.l.b16 %v254
  %v1427 = vunpack.c.l.b16 %v255
  %v1428 = vunpack.c.l.b16 %v256
  %v1429 = vunpack.c.l.b16 %v257
  %v1430 = vunpack.c.l.b16 %v258
  %v1431 = vunpack.c.l.b16 %v259
  %v1432 = vunpack.c.l.b16 %v260
  %v1433 = vunpack.c.l.b16 %v261
  %v1434 = vunpack.c.l.b16 %v262
  %v1435 = vunpack.c.l.b16 %v263
  %v1436 = vunpack.c.l.b16 %v264
  %v1437 = vunpack.c.l.b16 %v265
  %v1438 = vunpack.c.l.b16 %v266
  %v1439 = vunpack.c.l.b16 %v267
  %v1440 = vunpack.c.l.b16 %v268
  %v1441 = vunpack.c.l.b16 %v269
  %v1442 = vunpack.c.l.b16 %v270
  %v1443 = vunpack.c.l.b16 %v271
  %v1444 = vunpack.c.l.b16 %v272
  %v1445 = vunpack.c.l.b16 %v273
  %v1446 = vunpack.c.l.b16 %v274
  %v1447 = vunpack.c.l.b16 %v275
  %v1448 = vunpack.c.l.b16 %v276
  %v1449 = vunpack.c.l.b16 %v277
  %v1450 = vunpack.c.l.b16 %v278
  %v1451 = vunpack.c.l.b16 %v279
  %v1452 = vunpack.c.l.b16 %v280
  %v1453 = vunpack.c.l.b16 %v281
  %v1454 = vunpack.c.l.b16 %v282
  %v1455 = vunpack.c.l.b16 %v283
  %v1456 = vunpack.c.l.b16 %v284
  %v1457 = vunpack.c.l.b16 %v285
  %v1458 = vunpack.c.l.b16 %v286
  %v1459 = vunpack.c.l.b16 %v287
  %v1460 = vunpack.c.l.b16 %v288
  %v1461 = vunpack.c.l.b16 %v289
  %v1462 = vunpack.c.l.b16 %v290
  %v1463 = vunpack.c.l.b16 %v291
  %v1464 = vunpack.c.l.b16 %v292
  %v1465 = vunpack.c.l.b16 %v293
  %v1466 = vunpack.c.l.b16 %v294
  %v1467 = vunpack.c.l.b16 %v295
  %v1468 = vunpack.c.l.b16 %v296
  %v1469 = vunpack.c.l.b16 %v297
  %v1470 = vunpack.c.l.b16 %v298
  %v1471 = vunpack.c.l.b16 %v299
  %v1472 = vunpack.c.l.b16 %v300
  %v1473 = vunpack.c.l.b16 %v301
  %v1474 = vunpack.c.l.b16 %v302
  %v1475 = vunpack.c.l.b16 %v303
  %v1476 = vunpack.c.l.b16 %v304
  %v1477 = vunpack.c.l.b16 %v305
  %v1478 = vunpack.c.l.b16 %v306
  %v1479 = vunpack.c.l.b16 %v307
  %v1480 = vunpack.c.l.b16 %v308
  %v1481 = vunpack.c.l.b16 %v309
  %v1482 = vunpack.c.l.b16 %v310
  %v1483 = vunpack.c.l.b16 %v311
  %v1484 = vunpack.c.l.b16 %v312
  %v1485 = vunpack.c.l.b16 %v313
  %v1486 = vunpack.c.l.b16 %v314
  %v1487 = vunpack.c.l.b16 %v315
  %v1488 = vunpack.c.l.b16 %v316
  %v1489 = vunpack.c.l.b16 %v317
  %v1490 = vunpack.c.l.b16 %v318
  %v1491 = vunpack.c.l.b16 %v319
  %v1492 = vunpack.c.l.b16 %v320
  %v1493 = vunpack.c.l.b16 %v321
  %v1494 = vunpack.c.l.b16 %v322
  %v1495 = vunpack.c.l.b16 %v323
  %v1496 = vunpack.c.l.b16 %v324
  %v1497 = vunpack.c.l.b16 %v325
  %v1498 = vunpack.c.l.b16 %v326
  %v1499 = vunpack.c.l.b16 %v327
  %v1500 = vunpack.c.l.b16 %v328
  %v1501 = vunpack.c.l.b16 %v329
  %v1502 = vunpack.c.l.b16 %v330
  %v1503 = vunpack.c.l.b16 %v331
  %v1504 = vunpack.c.l.b16 %v332
  %v1505 = vunpack.c.l.b16 %v333
  %v1506 = vunpack.c.l.b16 %v334
  %v1507 = vunpack.c.l.b16 %v335
  %v1508 = vunpack.c.l.b16 %v336
  %v1509 = vunpack.c.l.b16 %v337
  %v1510 = vunpack.c.l.b16 %v338
  %v1511 = vunpack.c.l.b16 %v339
  %v1512 = vunpack.c.l.b16 %v340
  %v1513 = vunpack.c.l.b16 %v341
  %v1514 = vunpack.c.l.b16 %v342
  %v1515 = vunpack.c.l.b16 %v343
  %v1516 = vunpack.c.l.b16 %v344
  %v1517 = vunpack.c.l.b16 %v345
  %v1518 = vunpack.c.l.b16 %v346
  %v1519 = vunpack.c.l.b16 %v347
  %v1520 = vunpack.c.l.b16 %v348
  %v1521 = vunpack.c.l.b16 %v349
  %v1522 = vunpack.c.l.b16 %v350
  %v1523 = vunpack.c.l.b16 %v351
  %v1524 = vunpack.c.l.b16 %v352
  %v1525 = vunpack.c.l.b16 %v353
  %v1526 = vunpack.c.l.b16 %v354
  %v1527 = vunpack.c.l.b16 %v355
  %v1528 = vunpack.c.l.b16 %v356
  %v1529 = vunpack.c.l.b16 %v357
  %v1530 = vunpack.c.l.b16 %v358
  %v1531 = vunpack.c.l.b16 %v359
  %v1532 = vunpack.c.l.b16 %v360
  %v1533 = vunpack.c.l.b16 %v361
  %v1534 = vunpack.c.l.b16 %v362
  %v1535 = vunpack.c.l.b16 %v363
  %v1536 = vunpack.c.l.b16 %v364
  %v1537 = vunpack.c.l.b16 %v365
  %v1538 = vunpack.c.l.b16 %v366
  %v1539 = vunpack.c.l.b16 %v367
  %v1540 = vunpack.c.l.b16 %v368
  %v1541 = vunpack.c.l.b16 %v369
  %v1542 = vunpack.c.l.b16 %v370
  %v1543 = vunpack.c.l.b16 %v371
  %v1544 = vunpack.c.l.b16 %v372
  %v1545 = vunpack.c.l.b16 %v373
  %v1546 = vunpack.c.l.b16 %v374
  %v1547 = vunpack.c.l.b16 %v375
  %v1548 = vunpack.c.l.b16 %v376
  %v1549 = vunpack.c.l.b16 %v377
  %v1550 = vunpack.c.l.b16 %v378
  %v1551 = vunpack.c.l.b16 %v379
  %v1552 = vunpack.c.l.b16 %v380
  %v1553 = vunpack.c.l.b16 %v381
  %v1554 = vunpack.c.l.b16 %v382
  %v1555 = vunpack.c.l.b16 %v383
  %v1556 = vunpack.c.l.b16 %v384
  %v1557 = vunpack.c.l.b16 %v385
  %v1558 = vunpack.c.l.b16 %v386
  %v1559 = vunpack.c.l.b16 %v387
  %v1560 = vunpack.c.l.b16 %v388
  %v1561 = vunpack.c.l.b16 %v389
  %v1562 = vunpack.c.l.b16 %v390
  %v1563 = vunpack.c.l.b16 %v391
  %v1564 = vunpack.c.l.b16 %v392
  %v1565 = vunpack.c.l.b16 %v393
  %v1566 = vunpack.c.l.b16 %v394
  %v1567 = vunpack.c.l.b16 %v395
  %v1568 = vunpack.c.l.b16 %v396
  %v1569 = vunpack.c.l.b16 %v397
  %v1570 = vunpack.c.l.b16 %v398
  %v1571 = vunpack.c.l.b16 %v399
  %v1572 = vunpack.c.l.b16 %v400
  %v1573 = vunpack.c.l.b16 %v401
  %v1574 = vunpack.c.l.b16 %v402
  %v1575 = vunpack.c.l.b16 %v403
  %v1576 = vunpack.c.l.b16 %v404
  %v1577 = vunpack.c.l.b16 %v405
  %v1578 = vunpack.c.l.b16 %v406
  %v1579 = vunpack.c.l.b16 %v407
  %v1580 = vunpack.c.l.b16 %v408
  %v1581 = vunpack.c.l.b16 %v409
  %v1582 = vunpack.c.l.b16 %v410
  %v1583 = vunpack.c.l.b16 %v411
  %v1584 = vunpack.c.l.b16 %v412
  %v1585 = vunpack.c.l.b16 %v413
  %v1586 = vunpack.c.l.b16 %v414
  %v1587 = vunpack.c.l.b16 %v415
  %v1588 = vunpack.c.l.b16 %v416
  %v1589 = vunpack.c.l.b16 %v417
  %v1590 = vunpack.c.l.b16 %v418
  %v1591 = vunpack.c.l.b16 %v419
  %v1592 = vunpack.c.l.b16 %v420
  %v1593 = vunpack.c.l.b16 %v421
  %v1594 = vunpack.c.l.b16 %v422
  %v1595 = vunpack.c.l.b16 %v423
  %v1596 = vunpack.c.l.b16 %v424
  %v1597 = vunpack.c.l.b16 %v425
  %v1598 = vunpack.c.l.b16 %v426
  %v1599 = vunpack.c.l.b16 %v427
  %v1600 = vunpack.c.l.b16 %v428
  %v1601 = vunpack.c.l.b16 %v429
  %v1602 = vunpack.c.l.b16 %v430
  %v1603 = vunpack.c.l.b16 %v431
  %v1604 = vunpack.c.l.b16 %v432
  %v1605 = vunpack.c.l.b16 %v433
  %v1606 = vunpack.c.l.b16 %v434
  %v1607 = vunpack.c.l.b16 %v435
  %v1608 = vunpack.c.l.b16 %v436
  %v1609 = vunpack.c.l.b16 %v437
  %v1610 = vunpack.c.l.b16 %v438
  %v1611 = vunpack.c.l.b16 %v439
  %v1612 = vunpack.c.l.b16 %v440
  %v1613 = vunpack.c.l.b16 %v441
  %v1614 = vunpack.c.l.b16 %v442
  %v1615 = vunpack.c.l.b16 %v443
  %v1616 = vunpack.c.l.b16 %v444
  %v1617 = vunpack.c.l.b16 %v445
  %v1618 = vunpack.c.l.b16 %v446
  %v1619 = vunpack.c.l.b16 %v447
  %v1620 = vunpack.c.l.b16 %v448
  %v1621 = vunpack.c.l.b16 %v449
  %v1622 = vunpack.c.l.b16 %v450
  %v1623 = vunpack.c.l.b16 %v451
  %v1624 = vunpack.c.l.b16 %v452
  %v1625 = vunpack.c.l.b16 %v453
  %v1626 = vunpack.c.l.b16 %v454
  %v1627 = vunpack.c.l.b16 %v455
  %v1628 = vunpack.c.l.b16 %v456
  %v1629 = vunpack.c.l.b16 %v457
  %v1630 = vunpack.c.l.b16 %v458
  %v1631 = vunpack.c.l.b16 %v459
  %v1632 = vunpack.c.l.b16 %v460
  %v1633 = vunpack.c.l.b16 %v461
  %v1634 = vunpack.c.l.b16 %v462
  %v1635 = vunpack.c.l.b16 %v463
  %v1636 = vunpack.c.l.b16 %v464
  %v1637 = vunpack.c.l.b16 %v465
  %v1638 = vunpack.c.l.b16 %v466
  %v1639 = vunpack.c.l.b16 %v467
  %v1640 = vunpack.c.l.b16 %v468
  %v1641 = vunpack.c.l.b16 %v469
  %v1642 = vunpack.c.l.b16 %v470
  %v1643 = vunpack.c.l.b16 %v471
  %v1644 = vunpack.c.l.b16 %v472
  %v1645 = vunpack.c.l.b16 %v473
  %v1646 = vunpack.c.l.b16 %v474
  %v1647 = vunpack.c.l.b16 %v475
  %v1648 = vunpack.c.l.b16 %v476
  %v1649 = vunpack.c.l.b16 %v477
  %v1650 = vunpack.c.l.b16 %v478
  %v1651 = vunpack.c.l.b16 %v479
  %v1652 = vunpack.c.l.b16 %v480
  %v1653 = vunpack.c.l.b16 %v481
  %v1654 = vunpack.c.l.b16 %v482
  %v1655 = vunpack.c.l.b16 %v483
  %v1656 = vunpack.c.l.b16 %v484
  %v1657 = vunpack.c.l.b16 %v485
  %v1658 = vunpack.c.l.b16 %v486
  %v1659 = vunpack.c.l.b16 %v487
  %v1660 = vunpack.c.l.b16 %v488
  %v1661 = vunpack.c.l.b16 %v489
  %v1662 = vunpack.c.l.b16 %v490
  %v1663 = vunpack.c.l.b16 %v491
  %v1664 = vunpack.c.l.b16 %v492
  %v1665 = vunpack.c.l.b16 %v493
  %v1666 = vunpack.c.l.b16 %v494
  %v1667 = vunpack.c.l.b16 %v495
  %v1668 = vunpack.c.l.b16 %v496
  %v1669 = vunpack.c.l.b16 %v497
  %v1670 = vunpack.c.l.b16 %v498
  %v1671 = vunpack.c.l.b16 %v499
  %v1672 = vunpack.c.l.b16 %v500
  %v1673 = vunpack.c.l.b16 %v501
  %v1674 = vunpack.c.l.b16 %v502
  %v1675 = vunpack.c.l.b16 %v503
  %v1676 = vunpack.c.l.b16 %v504
  %v1677 = vunpack.c.l.b16 %v505
  %v1678 = vunpack.c.l.b16 %v506
  %v1679 = vunpack.c.l.b16 %v507
  %v1680 = vunpack.c.l.b16 %v508
  %v1681 = vunpack.c.l.b16 %v509
  %v1682 = vunpack.c.l.b16 %v510
  %v1683 = vunpack.c.l.b16 %v511
  %v1684 = vunpack.c.l.b16 %v512
  %v1685 = vunpack.c.l.b16 %v513
  %v1686 = vunpack.c.l.b16 %v514
  %v1687 = vunpack.c.l.b16 %v515
  %v1688 = vunpack.c.l.b16 %v516
  %v1689 = vunpack.c.l.b16 %v517
  %v1690 = vunpack.c.l.b16 %v518
  %v1691 = vunpack.c.l.b16 %v519
  %v1692 = vunpack.c.l.b16 %v520
  %v1693 = vunpack.c.l.b16 %v521
  %v1694 = vunpack.c.l.b16 %v522
  %v1695 = vunpack.c.l.b16 %v523
  %v1696 = vunpack.c.l.b16 %v524
  %v1697 = vunpack.c.l.b16 %v525
  %v1698 = vunpack.c.l.b16 %v526
  %v1699 = vunpack.c.l.b16 %v527
  %v1700 = vunpack.c.l.b16 %v528
  %v1701 = vunpack.c.l.b16 %v529
  %v1702 = vunpack.c.l.b16 %v530
  %v1703 = vunpack.c.l.b16 %v531
  %v1704 = vunpack.c.l.b16 %v532
  %v1705 = vunpack.c.l.b16 %v533
  %v1706 = vunpack.c.l.b16 %v534
  %v1707 = vunpack.c.l.b16 %v535
  %v1708 = vunpack.c.l.b16 %v536
  %v1709 = vunpack.c.l.b16 %v537
  %v1710 = vunpack.c.l.b16 %v538
  %v1711 = vunpack.c.l.b16 %v539
  %v1712 = vunpack.c.l.b16 %v540
  %v1713 = vunpack.c.l.b16 %v541
  %v1714 = vunpack.c.l.b16 %v542
  %v1715 = vunpack.c.l.b16 %v543
  %v1716 = vunpack.c.l.b16 %v544
  %v1717 = vunpack.c.l.b16 %v545
  %v1718 = vunpack.c.l.b16 %v546
  %v1719 = vunpack.c.l.b16 %v547
  %v1720 = vunpack.c.l.b16 %v548
  %v1721 = vunpack.c.l.b16 %v549
  %v1722 = vunpack.c.l.b16 %v550
  %v1723 = vunpack.c.l.b16 %v551
  %v1724 = vunpack.c.l.b16 %v552
  %v1725 = vunpack.c.l.b16 %v553
  %v1726 = vunpack.c.l.b16 %v554
  %v1727 = vunpack.c.l.b16 %v555
  %v1728 = vunpack.c.l.b16 %v556
  %v1729 = vunpack.c.l.b16 %v557
  %v1730 = vunpack.c.l.b16 %v558
  %v1731 = vunpack.c.l.b16 %v559
  %v1732 = vunpack.c.l.b16 %v560
  %v1733 = vunpack.c.l.b16 %v561
  %v1734 = vunpack.c.l.b16 %v562
  %v1735 = vunpack.c.l.b16 %v563
  %v1736 = vunpack.c.l.b16 %v564
  %v1737 = vunpack.c.l.b16 %v565
  %v1738 = vunpack.c.l.b16 %v566
  %v1739 = vunpack.c.l.b16 %v567
  %v1740 = vunpack.c.l.b16 %v568
  %v1741 = vunpack.c.l.b16 %v569
  %v1742 = vunpack.c.l.b16 %v570
  %v1743 = vunpack.c.l.b16 %v571
  %v1744 = vunpack.c.l.b16 %v572
  %v1745 = vunpack.c.l.b16 %v573
  %v1746 = vunpack.c.l.b16 %v574
  %v1747 = vunpack.c.l.b16 %v575
  %v1748 = vunpack.c.l.b16 %v576
  %v1749 = vunpack.c.l.b16 %v577
  %v1750 = vunpack.c.l.b16 %v578
  %v1751 = vunpack.c.l.b16 %v579
  %v1752 = vunpack.c.l.b16 %v580
  %v1753 = vunpack.c.l.b16 %v581
  %v1754 = vunpack.c.l.b16 %v582
  %v1755 = vunpack.c.l.b16 %v583
  %v1756 = vunpack.c.l.b16 %v584
  %v1757 = vunpack.c.l.b16 %v585
  %v1758 = vunpack.c.l.b16 %v586
  %v1759 = vunpack.c.l.b16 %v587
  %v1760 = vunpack.c.l.b16 %v588
  %v1761 = vunpack.c.l.b16 %v589
  %v1762 = vpack.c.b16 %v1187, %v1186
  %v1763 = vpack.c.b16 %v1189, %v1188
  %v1764 = vpack.c.b16 %v1191, %v1190
  %v1765 = vpack.c.b16 %v1193, %v1192
  %v1766 = vpack.c.b16 %v1195, %v1194
  %v1767 = vpack.c.b16 %v1197, %v1196
  %v1768 = vpack.c.b16 %v1199, %v1198
  %v1769 = vpack.c.b16 %v1201, %v1200
  %v1770 = vpack.c.b16 %v1203, %v1202
  %v1771 = vpack.c.b16 %v1205, %v1204
  %v1772 = vpack.c.b16 %v1207, %v1206
  %v1773 = vpack.c.b16 %v1209, %v1208
  %v1774 = vpack.c.b16 %v1211, %v1210
  %v1775 = vpack.c.b16 %v1213, %v1212
  %v1776 = vpack.c.b16 %v1215, %v1214
  %v1777 = vpack.c.b16 %v1217, %v1216
  %v1778 = vpack.c.b16 %v1219, %v1218
  %v1779 = vpack.c.b16 %v1221, %v1220
  %v1780 = vpack.c.b16 %v1223, %v1222
  %v1781 = vpack.c.b16 %v1225, %v1224
  %v1782 = vpack.c.b16 %v1227, %v1226
  %v1783 = vpack.c.b16 %v1229, %v1228
  %v1784 = vpack.c.b16 %v1231, %v1230
  %v1785 = vpack.c.b16 %v1233, %v1232
  %v1786 = vpack.c.b16 %v1235, %v1234
  %v1787 = vpack.c.b16 %v1237, %v1236
  %v1788 = vpack.c.b16 %v1239, %v1238
  %v1789 = vpack.c.b16 %v1241, %v1240
  %v1790 = vpack.c.b16 %v1243, %v1242
  %v1791 = vpack.c.b16 %v1245, %v1244
  %v1792 = vpack.c.b16 %v1247, %v1246
  %v1793 = vpack.c.b16 %v1249, %v1248
  %v1794 = vpack.c.b16 %v1251, %v1250
  %v1795 = vpack.c.b16 %v1253, %v1252
  %v1796 = vpack.c.b16 %v1255, %v1254
  %v1797 = vpack.c.b16 %v1257, %v1256
  %v1798 = vpack.c.b16 %v1259, %v1258
  %v1799 = vpack.c.b16 %v1261, %v1260
  %v1800 = vpack.c.b16 %v1263, %v1262
  %v1801 = vpack.c.b16 %v1265, %v1264
  %v1802 = vpack.c.b16 %v1267, %v1266
  %v1803 = vpack.c.b16 %v1269, %v1268
  %v1804 = vpack.c.b16 %v1271, %v1270
  %v1805 = vpack.c.b16 %v1273, %v1272
  %v1806 = vpack.c.b16 %v1275, %v1274
  %v1807 = vpack.c.b16 %v1277, %v1276
  %v1808 = vpack.c.b16 %v1279, %v1278
  %v1809 = vpack.c.b16 %v1281, %v1280
  %v1810 = vpack.c.b16 %v1283, %v1282
  %v1811 = vpack.c.b16 %v1285, %v1284
  %v1812 = vpack.c.b16 %v1287, %v1286
  %v1813 = vpack.c.b16 %v1289, %v1288
  %v1814 = vpack.c.b16 %v1291, %v1290
  %v1815 = vpack.c.b16 %v1293, %v1292
  %v1816 = vpack.c.b16 %v1295, %v1294
  %v1817 = vpack.c.b16 %v1297, %v1296
  %v1818 = vpack.c.b16 %v1299, %v1298
  %v1819 = vpack.c.b16 %v1301, %v1300
  %v1820 = vpack.c.b16 %v1303, %v1302
  %v1821 = vpack.c.b16 %v1305, %v1304
  %v1822 = vpack.c.b16 %v1307, %v1306
  %v1823 = vpack.c.b16 %v1309, %v1308
  %v1824 = vpack.c.b16 %v1311, %v1310
  %v1825 = vpack.c.b16 %v1313, %v1312
  %v1826 = vpack.c.b16 %v1315, %v1314
  %v1827 = vpack.c.b16 %v1317, %v1316
  %v1828 = vpack.c.b16 %v1319, %v1318
  %v1829 = vpack.c.b16 %v1321, %v1320
  %v1830 = vpack.c.b16 %v1323, %v1322
  %v1831 = vpack.c.b16 %v1325, %v1324
  %v1832 = vpack.c.b16 %v1327, %v1326
  %v1833 = vpack.c.b16 %v1329, %v1328
  %v1834 = vpack.c.b16 %v1331, %v1330
  %v1835 = vpack.c.b16 %v1333, %v1332
  %v1836 = vpack.c.b16 %v1335, %v1334
  %v1837 = vpack.c.b16 %v1337, %v1336
  %v1838 = vpack.c.b16 %v1339, %v1338
  %v1839 = vpack.c.b16 %v1341, %v1340
  %v1840 = vpack.c.b16 %v1343, %v1342
  %v1841 = vpack.c.b16 %v1345, %v1344
  %v1842 = vpack.c.b16 %v1347, %v1346
  %v1843 = vpack.c.b16 %v1349, %v1348
  %v1844 = vpack.c.b16 %v1351, %v1350
  %v1845 = vpack.c.b16 %v1353, %v1352
  %v1846 = vpack.c.b16 %v1355, %v1354
  %v1847 = vpack.c.b16 %v1357, %v1356
  %v1848 = vpack.c.b16 %v1359, %v1358
  %v1849 = vpack.c.b16 %v1361, %v1360
  %v1850 = vpack.c.b16 %v1363, %v1362
  %v1851 = vpack.c.b16 %v1365, %v1364
  %v1852 = vpack.c.b16 %v1367, %v1366
  %v1853 = vpack.c.b16 %v1369, %v1368
  %v1854 = vpack.c.b16 %v1371, %v1370
  %v1855 = vpack.c.b16 %v1373, %v1372
  %v1856 = vpack.c.b16 %v1375, %v1374
  %v1857 = vpack.c.b16 %v1377, %v1376
  %v1858 = vpack.c.b16 %v1379, %v1378
  %v1859 = vpack.c.b16 %v1381, %v1380
  %v1860 = vpack.c.b16 %v1383, %v1382
  %v1861 = vpack.c.b16 %v1385, %v1384
  %v1862 = vpack.c.b16 %v1387, %v1386
  %v1863 = vpack.c.b16 %v1389, %v1388
  %v1864 = vpack.c.b16 %v1391, %v1390
  %v1865 = vpack.c.b16 %v1393, %v1392
  %v1866 = vpack.c.b16 %v1395, %v1394
  %v1867 = vpack.c.b16 %v1397, %v1396
  %v1868 = vpack.c.b16 %v1399, %v1398
  %v1869 = vpack.c.b16 %v1401, %v1400
  %v1870 = vpack.c.b16 %v1403, %v1402
  %v1871 = vpack.c.b16 %v1405, %v1404
  %v1872 = vpack.c.b16 %v1407, %v1406
  %v1873 = vpack.c.b16 %v1409, %v1408
  %v1874 = vpack.c.b16 %v1411, %v1410
  %v1875 = vpack.c.b16 %v1413, %v1412
  %v1876 = vpack.c.b16 %v1415, %v1414
  %v1877 = vpack.c.b16 %v1417, %v1416
  %v1878 = vpack.c.b16 %v1419, %v1418
  %v1879 = vpack.c.b16 %v1421, %v1420
  %v1880 = vpack.c.b16 %v1423, %v1422
  %v1881 = vpack.c.b16 %v1425, %v1424
  %v1882 = vpack.c.b16 %v1427, %v1426
  %v1883 = vpack.c.b16 %v1429, %v1428
  %v1884 = vpack.c.b16 %v1431, %v1430
  %v1885 = vpack.c.b16 %v1433, %v1432
  %v1886 = vpack.c.b16 %v1435, %v1434
  %v1887 = vpack.c.b16 %v1437, %v1436
  %v1888 = vpack.c.b16 %v1439, %v1438
  %v1889 = vpack.c.b16 %v1441, %v1440
  %v1890 = vpack.c.b16 %v1443, %v1442
  %v1891 = vpack.c.b16 %v1445, %v1444
  %v1892 = vpack.c.b16 %v1447, %v1446
  %v1893 = vpack.c.b16 %v1449, %v1448
  %v1894 = vpack.c.b16 %v1451, %v1450
  %v1895 = vpack.c.b16 %v1453, %v1452
  %v1896 = vpack.c.b16 %v1455, %v1454
  %v1897 = vpack.c.b16 %v1457, %v1456
  %v1898 = vpack.c.b16 %v1459, %v1458
  %v1899 = vpack.c.b16 %v1461, %v1460
  %v1900 = vpack.c.b16 %v1463, %v1462
  %v1901 = vpack.c.b16 %v1465, %v1464
  %v1902 = vpack.c.b16 %v1467, %v1466
  %v1903 = vpack.c.b16 %v1469, %v1468
  %v1904 = vpack.c.b16 %v1471, %v1470
  %v1905 = vpack.c.b16 %v1473, %v1472
  %v1906 = vpack.c.b16 %v1475, %v1474
  %v1907 = vpack.c.b16 %v1477, %v1476
  %v1908 = vpack.c.b16 %v1479, %v1478
  %v1909 = vpack.c.b16 %v1481, %v1480
  %v1910 = vpack.c.b16 %v1483, %v1482
  %v1911 = vpack.c.b16 %v1485, %v1484
  %v1912 = vpack.c.b16 %v1487, %v1486
  %v1913 = vpack.c.b16 %v1489, %v1488
  %v1914 = vpack.c.b16 %v1491, %v1490
  %v1915 = vpack.c.b16 %v1493, %v1492
  %v1916 = vpack.c.b16 %v1495, %v1494
  %v1917 = vpack.c.b16 %v1497, %v1496
  %v1918 = vpack.c.b16 %v1499, %v1498
  %v1919 = vpack.c.b16 %v1501, %v1500
  %v1920 = vpack.c.b16 %v1503, %v1502
  %v1921 = vpack.c.b16 %v1505, %v1504
  %v1922 = vpack.c.b16 %v1507, %v1506
  %v1923 = vpack.c.b16 %v1509, %v1508
  %v1924 = vpack.c.b16 %v1511, %v1510
  %v1925 = vpack.c.b16 %v1513, %v1512
  %v1926 = vpack.c.b16 %v1515, %v1514
  %v1927 = vpack.c.b16 %v1517, %v1516
  %v1928 = vpack.c.b16 %v1519, %v1518
  %v1929 = vpack.c.b16 %v1521, %v1520
  %v1930 = vpack.c.b16 %v1523, %v1522
  %v1931 = vpack.c.b16 %v1525, %v1524
  %v1932 = vpack.c.b16 %v1527, %v1526
  %v1933 = vpack.c.b16 %v1529, %v1528
  %v1934 = vpack.c.b16 %v1531, %v1530
  %v1935 = vpack.c.b16 %v1533, %v1532
  %v1936 = vpack.c.b16 %v1535, %v1534
  %v1937 = vpack.c.b16 %v1537, %v1536
  %v1938 = vpack.c.b16 %v1539, %v1538
  %v1939 = vpack.c.b16 %v1541, %v1540
  %v1940 = vpack.c.b16 %v1543, %v1542
  %v1941 = vpack.c.b16 %v1545, %v1544
  %v1942 = vpack.c.b16 %v1547, %v1546
  %v1943 = vpack.c.b16 %v1549, %v1548
  %v1944 = vpack.c.b16 %v1551, %v1550
  %v1945 = vpack.c.b16 %v1553, %v1552
  %v1946 = vpack.c.b16 %v1555, %v1554
  %v1947 = vpack.c.b16 %v1557, %v1556
  %v1948 = vpack.c.b16 %v1559, %v1558
  %v1949 = vpack.c.b16 %v1561, %v1560
  %v1950 = vpack.c.b16 %v1563, %v1562
  %v1951 = vpack.c.b16 %v1565, %v1564
  %v1952 = vpack.c.b16 %v1567, %v1566
  %v1953 = vpack.c.b16 %v1569, %v1568
  %v1954 = vpack.c.b16 %v1571, %v1570
  %v1955 = vpack.c.b16 %v1573, %v1572
  %v1956 = vpack.c.b16 %v1575, %v1574
  %v1957 = vpack.c.b16 %v1577, %v1576
  %v1958 = vpack.c.b16 %v1579, %v1578
  %v1959 = vpack.c.b16 %v1581, %v1580
  %v1960 = vpack.c.b16 %v1583, %v1582
  %v1961 = vpack.c.b16 %v1585, %v1584
  %v1962 = vpack.c.b16 %v1587, %v1586
  %v1963 = vpack.c.b16 %v1589, %v1588
  %v1964 = vpack.c.b16 %v1591, %v1590
  %v1965 = vpack.c.b16 %v1593, %v1592
  %v1966 = vpack.c.b16 %v1595, %v1594
  %v1967 = vpack.c.b16 %v1597, %v1596
  %v1968 = vpack.c.b16 %v1599, %v1598
  %v1969 = vpack.c.b16 %v1601, %v1600
  %v1970 = vpack.c.b16 %v1603, %v1602
  %v1971 = vpack.c.b16 %v1605, %v1604
  %v1972 = vpack.c.b16 %v1607, %v1606
  %v1973 = vpack.c.b16 %v1609, %v1608
  %v1974 = vpack.c.b16 %v1611, %v1610
  %v1975 = vpack.c.b16 %v1613, %v1612
  %v1976 = vpack.c.b16 %v1615, %v1614
  %v1977 = vpack.c.b16 %v1617, %v1616
  %v1978 = vpack.c.b16 %v1619, %v1618
  %v1979 = vpack.c.b16 %v1621, %v1620
  %v1980 = vpack.c.b16 %v1623, %v1622
  %v1981 = vpack.c.b16 %v1625, %v1624
  %v1982 = vpack.c.b16 %v1627, %v1626
  %v1983 = vpack.c.b16 %v1629, %v1628
  %v1984 = vpack.c.b16 %v1631, %v1630
  %v1985 = vpack.c.b16 %v1633, %v1632
  %v1986 = vpack.c.b16 %v1635, %v1634
  %v1987 = vpack.c.b16 %v1637, %v1636
  %v1988 = vpack.c.b16 %v1639, %v1638
  %v1989 = vpack.c.b16 %v1641, %v1640
  %v1990 = vpack.c.b16 %v1643, %v1642
  %v1991 = vpack.c.b16 %v1645, %v1644
  %v1992 = vpack.c.b16 %v1647, %v1646
  %v1993 = vpack.c.b16 %v1649, %v1648
  %v1994 = vpack.c.b16 %v1651, %v1650
  %v1995 = vpack.c.b16 %v1653, %v1652
  %v1996 = vpack.c.b16 %v1655, %v1654
  %v1997 = vpack.c.b16 %v1657, %v1656
  %v1998 = vpack.c.b16 %v1659, %v1658
  %v1999 = vpack.c.b16 %v1661, %v1660
  %v2000 = vpack.c.b16 %v1663, %v1662
  %v2001 = vpack.c.b16 %v1665, %v1664
  %v2002 = vpack.c.b16 %v1667, %v1666
  %v2003 = vpack.c.b16 %v1669, %v1668
  %v2004 = vpack.c.b16 %v1671, %v1670
  %v2005 = vpack.c.b16 %v1673, %v1672
  %v2006 = vpack.c.b16 %v1675, %v1674
  %v2007 = vpack.c.b16 %v1677, %v1676
  %v2008 = vpack.c.b16 %v1679, %v1678
  %v2009 = vpack.c.b16 %v1681, %v1680
  %v2010 = vpack.c.b16 %v1683, %v1682
  %v2011 = vpack.c.b16 %v1685, %v1684
  %v2012 = vpack.c.b16 %v1687, %v1686
  %v2013 = vpack.c.b16 %v1689, %v1688
  %v2014 = vpack.c.b16 %v1691, %v1690
  %v2015 = vpack.c.b16 %v1693, %v1692
  %v2016 = vpack.c.b16 %v1695, %v1694
  %v2017 = vpack.c.b16 %v1697, %v1696
  %v2018 = vpack.c.b16 %v1699, %v1698
  %v2019 = vpack.c.b16 %v1701, %v1700
  %v2020 = vpack.c.b16 %v1703, %v1702
  %v2021 = vpack.c.b16 %v1705, %v1704
  %v2022 = vpack.c.b16 %v1707, %v1706
  %v2023 = vpack.c.b16 %v1709, %v1708
  %v2024 = vpack.c.b16 %v1711, %v1710
  %v2025 = vpack.c.b16 %v1713, %v1712
  %v2026 = vpack.c.b16 %v1715, %v1714
  %v2027 = vpack.c.b16 %v1717, %v1716
  %v2028 = vpack.c.b16 %v1719, %v1718
  %v2029 = vpack.c.b16 %v1721, %v1720
  %v2030 = vpack.c.b16 %v1723, %v1722
  %v2031 = vpack.c.b16 %v1725, %v1724
  %v2032 = vpack.c.b16 %v1727, %v1726
  %v2033 = vpack.c.b16 %v1729, %v1728
  %v2034 = vpack.c.b16 %v1731, %v1730
  %v2035 = vpack.c.b16 %v1733, %v1732
  %v2036 = vpack.c.b16 %v1735, %v1734
  %v2037 = vpack.c.b16 %v1737, %v1736
  %v2038 = vpack.c.b16 %v1739, %v1738
  %v2039 = vpack.c.b16 %v1741, %v1740
  %v2040 = vpack.c.b16 %v1743, %v1742
  %v2041 = vpack.c.b16 %v1745, %v1744
  %v2042 = vpack.c.b16 %v1747, %v1746
  %v2043 = vpack.c.b16 %v1749, %v1748
  %v2044 = vpack.c.b16 %v1751, %v1750
  %v2045 = vpack.c.b16 %v1753, %v1752
  %v2046 = vpack.c.b16 %v1755, %v1754
  %v2047 = vpack.c.b16 %v1757, %v1756
  %v2048 = vpack.c.b16 %v1759, %v1758
  %v2049 = vpack.c.b16 %v1761, %v1760
  %v2354 = vunpack.c.l.b16 %v590
  %v2355 = vunpack.c.l.b16 %v591
  %v2356 = vunpack.c.l.b16 %v592
  %v2357 = vunpack.c.l.b16 %v593
  %v2358 = vunpack.c.l.b16 %v594
  %v2359 = vunpack.c.l.b16 %v595
  %v2360 = vunpack.c.l.b16 %v596
  %v2361 = vunpack.c.l.b16 %v597
  %v2362 = vunpack.c.l.b16 %v598
  %v2363 = vunpack.c.l.b16 %v599
  %v2364 = vunpack.c.l.b16 %v600
  %v2365 = vunpack.c.l.b16 %v601
  %v2366 = vunpack.c.l.b16 %v602
  %v2367 = vunpack.c.l.b16 %v603
  %v2368 = vunpack.c.l.b16 %v604
  %v2369 = vunpack.c.l.b16 %v605
  %v2370 = vpack.c.b16 %v2355, %v2354
  %v2371 = vpack.c.b16 %v2357, %v2356
  %v2372 = vpack.c.b16 %v2359, %v2358
  %v2373 = vpack.c.b16 %v2361, %v2360
  %v2374 = vpack.c.b16 %v2363, %v2362
  %v2375 = vpack.c.b16 %v2365, %v2364
  %v2376 = vpack.c.b16 %v2367, %v2366
  %v2377 = vpack.c.b16 %v2369, %v2368
  %2386 = vmatpush.bf16.msra.mxu0 %v2377
  %2387 = vmatpush.bf16.msra.mxu0 %v2376
  %2388 = vmatpush.bf16.msra.mxu0 %v2375
  %2389 = vmatpush.bf16.msra.mxu0 %v2374
  %2390 = vmatpush.bf16.msra.mxu0 %v2373
  %2391 = vmatpush.bf16.msra.mxu0 %v2372
  %2392 = vmatpush.bf16.msra.mxu0 %v2371
  %2393 = vmatpush.bf16.msra.mxu0 %v2370
  %2394 = vmatmul.bf16.gmra.mxu0 %v1762
  %v2395 = vpop.f32.mrf.mxu0
  %v2396 = vadd.f32 %v608, %v2395
  %v2397 = vpop.f32.mrf.mxu0
  %v2398 = vadd.f32 %v608, %v2397
  %2399 = vmatmul.bf16.gmra.mxu0 %v1763
  %v2400 = vpop.f32.mrf.mxu0
  %v2401 = vadd.f32 %v608, %v2400
  %v2402 = vpop.f32.mrf.mxu0
  %v2403 = vadd.f32 %v608, %v2402
  %2404 = vmatmul.bf16.gmra.mxu0 %v1764
  %v2405 = vpop.f32.mrf.mxu0
  %v2406 = vadd.f32 %v608, %v2405
  %v2407 = vpop.f32.mrf.mxu0
  %v2408 = vadd.f32 %v608, %v2407
  %2409 = vmatmul.bf16.gmra.mxu0 %v1765
  %v2410 = vpop.f32.mrf.mxu0
  %v2411 = vadd.f32 %v608, %v2410
  %v2412 = vpop.f32.mrf.mxu0
  %v2413 = vadd.f32 %v608, %v2412
  %2414 = vmatmul.bf16.gmra.mxu0 %v1766
  %v2415 = vpop.f32.mrf.mxu0
  %v2416 = vadd.f32 %v608, %v2415
  %v2417 = vpop.f32.mrf.mxu0
  %v2418 = vadd.f32 %v608, %v2417
  %2419 = vmatmul.bf16.gmra.mxu0 %v1767
  %v2420 = vpop.f32.mrf.mxu0
  %v2421 = vadd.f32 %v608, %v2420
  %v2422 = vpop.f32.mrf.mxu0
  %v2423 = vadd.f32 %v608, %v2422
  %2424 = vmatmul.bf16.gmra.mxu0 %v1768
  %v2425 = vpop.f32.mrf.mxu0
  %v2426 = vadd.f32 %v608, %v2425
  %v2427 = vpop.f32.mrf.mxu0
  %v2428 = vadd.f32 %v608, %v2427
  %2429 = vmatmul.bf16.gmra.mxu0 %v1769
  %v2430 = vpop.f32.mrf.mxu0
  %v2431 = vadd.f32 %v608, %v2430
  %v2432 = vpop.f32.mrf.mxu0
  %v2433 = vadd.f32 %v608, %v2432
  %2434 = vmatmul.bf16.gmra.mxu0 %v1770
  %v2435 = vpop.f32.mrf.mxu0
  %v2436 = vadd.f32 %v608, %v2435
  %v2437 = vpop.f32.mrf.mxu0
  %v2438 = vadd.f32 %v608, %v2437
  %2439 = vmatmul.bf16.gmra.mxu0 %v1771
  %v2440 = vpop.f32.mrf.mxu0
  %v2441 = vadd.f32 %v608, %v2440
  %v2442 = vpop.f32.mrf.mxu0
  %v2443 = vadd.f32 %v608, %v2442
  %2444 = vmatmul.bf16.gmra.mxu0 %v1772
  %v2445 = vpop.f32.mrf.mxu0
  %v2446 = vadd.f32 %v608, %v2445
  %v2447 = vpop.f32.mrf.mxu0
  %v2448 = vadd.f32 %v608, %v2447
  %2449 = vmatmul.bf16.gmra.mxu0 %v1773
  %v2450 = vpop.f32.mrf.mxu0
  %v2451 = vadd.f32 %v608, %v2450
  %v2452 = vpop.f32.mrf.mxu0
  %v2453 = vadd.f32 %v608, %v2452
  %2454 = vmatmul.bf16.gmra.mxu0 %v1774
  %v2455 = vpop.f32.mrf.mxu0
  %v2456 = vadd.f32 %v608, %v2455
  %v2457 = vpop.f32.mrf.mxu0
  %v2458 = vadd.f32 %v608, %v2457
  %2459 = vmatmul.bf16.gmra.mxu0 %v1775
  %v2460 = vpop.f32.mrf.mxu0
  %v2461 = vadd.f32 %v608, %v2460
  %v2462 = vpop.f32.mrf.mxu0
  %v2463 = vadd.f32 %v608, %v2462
  %2464 = vmatmul.bf16.gmra.mxu0 %v1776
  %v2465 = vpop.f32.mrf.mxu0
  %v2466 = vadd.f32 %v608, %v2465
  %v2467 = vpop.f32.mrf.mxu0
  %v2468 = vadd.f32 %v608, %v2467
  %2469 = vmatmul.bf16.gmra.mxu0 %v1777
  %v2470 = vpop.f32.mrf.mxu0
  %v2471 = vadd.f32 %v608, %v2470
  %v2472 = vpop.f32.mrf.mxu0
  %v2473 = vadd.f32 %v608, %v2472
  %2474 = vmatmul.bf16.gmra.mxu0 %v1778
  %v2475 = vpop.f32.mrf.mxu0
  %v2476 = vadd.f32 %v608, %v2475
  %v2477 = vpop.f32.mrf.mxu0
  %v2478 = vadd.f32 %v608, %v2477
  %2479 = vmatmul.bf16.gmra.mxu0 %v1779
  %v2480 = vpop.f32.mrf.mxu0
  %v2481 = vadd.f32 %v608, %v2480
  %v2482 = vpop.f32.mrf.mxu0
  %v2483 = vadd.f32 %v608, %v2482
  %2484 = vmatmul.bf16.gmra.mxu0 %v1780
  %v2485 = vpop.f32.mrf.mxu0
  %v2486 = vadd.f32 %v608, %v2485
  %v2487 = vpop.f32.mrf.mxu0
  %v2488 = vadd.f32 %v608, %v2487
  %2489 = vmatmul.bf16.gmra.mxu0 %v1781
  %v2490 = vpop.f32.mrf.mxu0
  %v2491 = vadd.f32 %v608, %v2490
  %v2492 = vpop.f32.mrf.mxu0
  %v2493 = vadd.f32 %v608, %v2492
  %2494 = vmatmul.bf16.gmra.mxu0 %v1782
  %v2495 = vpop.f32.mrf.mxu0
  %v2496 = vadd.f32 %v608, %v2495
  %v2497 = vpop.f32.mrf.mxu0
  %v2498 = vadd.f32 %v608, %v2497
  %2499 = vmatmul.bf16.gmra.mxu0 %v1783
  %v2500 = vpop.f32.mrf.mxu0
  %v2501 = vadd.f32 %v608, %v2500
  %v2502 = vpop.f32.mrf.mxu0
  %v2503 = vadd.f32 %v608, %v2502
  %2504 = vmatmul.bf16.gmra.mxu0 %v1784
  %v2505 = vpop.f32.mrf.mxu0
  %v2506 = vadd.f32 %v608, %v2505
  %v2507 = vpop.f32.mrf.mxu0
  %v2508 = vadd.f32 %v608, %v2507
  %2509 = vmatmul.bf16.gmra.mxu0 %v1785
  %v2510 = vpop.f32.mrf.mxu0
  %v2511 = vadd.f32 %v608, %v2510
  %v2512 = vpop.f32.mrf.mxu0
  %v2513 = vadd.f32 %v608, %v2512
  %2514 = vmatmul.bf16.gmra.mxu0 %v1786
  %v2515 = vpop.f32.mrf.mxu0
  %v2516 = vadd.f32 %v608, %v2515
  %v2517 = vpop.f32.mrf.mxu0
  %v2518 = vadd.f32 %v608, %v2517
  %2519 = vmatmul.bf16.gmra.mxu0 %v1787
  %v2520 = vpop.f32.mrf.mxu0
  %v2521 = vadd.f32 %v608, %v2520
  %v2522 = vpop.f32.mrf.mxu0
  %v2523 = vadd.f32 %v608, %v2522
  %2524 = vmatmul.bf16.gmra.mxu0 %v1788
  %v2525 = vpop.f32.mrf.mxu0
  %v2526 = vadd.f32 %v608, %v2525
  %v2527 = vpop.f32.mrf.mxu0
  %v2528 = vadd.f32 %v608, %v2527
  %2529 = vmatmul.bf16.gmra.mxu0 %v1789
  %v2530 = vpop.f32.mrf.mxu0
  %v2531 = vadd.f32 %v608, %v2530
  %v2532 = vpop.f32.mrf.mxu0
  %v2533 = vadd.f32 %v608, %v2532
  %2534 = vmatmul.bf16.gmra.mxu0 %v1790
  %v2535 = vpop.f32.mrf.mxu0
  %v2536 = vadd.f32 %v608, %v2535
  %v2537 = vpop.f32.mrf.mxu0
  %v2538 = vadd.f32 %v608, %v2537
  %2539 = vmatmul.bf16.gmra.mxu0 %v1791
  %v2540 = vpop.f32.mrf.mxu0
  %v2541 = vadd.f32 %v608, %v2540
  %v2542 = vpop.f32.mrf.mxu0
  %v2543 = vadd.f32 %v608, %v2542
  %2544 = vmatmul.bf16.gmra.mxu0 %v1792
  %v2545 = vpop.f32.mrf.mxu0
  %v2546 = vadd.f32 %v608, %v2545
  %v2547 = vpop.f32.mrf.mxu0
  %v2548 = vadd.f32 %v608, %v2547
  %2549 = vmatmul.bf16.gmra.mxu0 %v1793
  %v2550 = vpop.f32.mrf.mxu0
  %v2551 = vadd.f32 %v608, %v2550
  %v2552 = vpop.f32.mrf.mxu0
  %v2553 = vadd.f32 %v608, %v2552
  %2554 = vmatmul.bf16.gmra.mxu0 %v1794
  %v2555 = vpop.f32.mrf.mxu0
  %v2556 = vadd.f32 %v608, %v2555
  %v2557 = vpop.f32.mrf.mxu0
  %v2558 = vadd.f32 %v608, %v2557
  %2559 = vmatmul.bf16.gmra.mxu0 %v1795
  %v2560 = vpop.f32.mrf.mxu0
  %v2561 = vadd.f32 %v608, %v2560
  %v2562 = vpop.f32.mrf.mxu0
  %v2563 = vadd.f32 %v608, %v2562
  %2564 = vmatmul.bf16.gmra.mxu0 %v1796
  %v2565 = vpop.f32.mrf.mxu0
  %v2566 = vadd.f32 %v608, %v2565
  %v2567 = vpop.f32.mrf.mxu0
  %v2568 = vadd.f32 %v608, %v2567
  %2569 = vmatmul.bf16.gmra.mxu0 %v1797
  %v2570 = vpop.f32.mrf.mxu0
  %v2571 = vadd.f32 %v608, %v2570
  %v2572 = vpop.f32.mrf.mxu0
  %v2573 = vadd.f32 %v608, %v2572
  %2574 = vmatmul.bf16.gmra.mxu0 %v1798
  %v2575 = vpop.f32.mrf.mxu0
  %v2576 = vadd.f32 %v608, %v2575
  %v2577 = vpop.f32.mrf.mxu0
  %v2578 = vadd.f32 %v608, %v2577
  %2579 = vmatmul.bf16.gmra.mxu0 %v1799
  %v2580 = vpop.f32.mrf.mxu0
  %v2581 = vadd.f32 %v608, %v2580
  %v2582 = vpop.f32.mrf.mxu0
  %v2583 = vadd.f32 %v608, %v2582
  %2584 = vmatmul.bf16.gmra.mxu0 %v1800
  %v2585 = vpop.f32.mrf.mxu0
  %v2586 = vadd.f32 %v608, %v2585
  %v2587 = vpop.f32.mrf.mxu0
  %v2588 = vadd.f32 %v608, %v2587
  %2589 = vmatmul.bf16.gmra.mxu0 %v1801
  %v2590 = vpop.f32.mrf.mxu0
  %v2591 = vadd.f32 %v608, %v2590
  %v2592 = vpop.f32.mrf.mxu0
  %v2593 = vadd.f32 %v608, %v2592
  %2594 = vmatmul.bf16.gmra.mxu0 %v1802
  %v2595 = vpop.f32.mrf.mxu0
  %v2596 = vadd.f32 %v608, %v2595
  %v2597 = vpop.f32.mrf.mxu0
  %v2598 = vadd.f32 %v608, %v2597
  %2599 = vmatmul.bf16.gmra.mxu0 %v1803
  %v2600 = vpop.f32.mrf.mxu0
  %v2601 = vadd.f32 %v608, %v2600
  %v2602 = vpop.f32.mrf.mxu0
  %v2603 = vadd.f32 %v608, %v2602
  %2604 = vmatmul.bf16.gmra.mxu0 %v1804
  %v2605 = vpop.f32.mrf.mxu0
  %v2606 = vadd.f32 %v608, %v2605
  %v2607 = vpop.f32.mrf.mxu0
  %v2608 = vadd.f32 %v608, %v2607
  %2609 = vmatmul.bf16.gmra.mxu0 %v1805
  %v2610 = vpop.f32.mrf.mxu0
  %v2611 = vadd.f32 %v608, %v2610
  %v2612 = vpop.f32.mrf.mxu0
  %v2613 = vadd.f32 %v608, %v2612
  %2614 = vmatmul.bf16.gmra.mxu0 %v1806
  %v2615 = vpop.f32.mrf.mxu0
  %v2616 = vadd.f32 %v608, %v2615
  %v2617 = vpop.f32.mrf.mxu0
  %v2618 = vadd.f32 %v608, %v2617
  %2619 = vmatmul.bf16.gmra.mxu0 %v1807
  %v2620 = vpop.f32.mrf.mxu0
  %v2621 = vadd.f32 %v608, %v2620
  %v2622 = vpop.f32.mrf.mxu0
  %v2623 = vadd.f32 %v608, %v2622
  %2624 = vmatmul.bf16.gmra.mxu0 %v1808
  %v2625 = vpop.f32.mrf.mxu0
  %v2626 = vadd.f32 %v608, %v2625
  %v2627 = vpop.f32.mrf.mxu0
  %v2628 = vadd.f32 %v608, %v2627
  %2629 = vmatmul.bf16.gmra.mxu0 %v1809
  %v2630 = vpop.f32.mrf.mxu0
  %v2631 = vadd.f32 %v608, %v2630
  %v2632 = vpop.f32.mrf.mxu0
  %v2633 = vadd.f32 %v608, %v2632
  %2634 = vmatmul.bf16.gmra.mxu0 %v1810
  %v2635 = vpop.f32.mrf.mxu0
  %v2636 = vadd.f32 %v608, %v2635
  %v2637 = vpop.f32.mrf.mxu0
  %v2638 = vadd.f32 %v608, %v2637
  %2639 = vmatmul.bf16.gmra.mxu0 %v1811
  %v2640 = vpop.f32.mrf.mxu0
  %v2641 = vadd.f32 %v608, %v2640
  %v2642 = vpop.f32.mrf.mxu0
  %v2643 = vadd.f32 %v608, %v2642
  %2644 = vmatmul.bf16.gmra.mxu0 %v1812
  %v2645 = vpop.f32.mrf.mxu0
  %v2646 = vadd.f32 %v608, %v2645
  %v2647 = vpop.f32.mrf.mxu0
  %v2648 = vadd.f32 %v608, %v2647
  %2649 = vmatmul.bf16.gmra.mxu0 %v1813
  %v2650 = vpop.f32.mrf.mxu0
  %v2651 = vadd.f32 %v608, %v2650
  %v2652 = vpop.f32.mrf.mxu0
  %v2653 = vadd.f32 %v608, %v2652
  %2654 = vmatmul.bf16.gmra.mxu0 %v1814
  %v2655 = vpop.f32.mrf.mxu0
  %v2656 = vadd.f32 %v608, %v2655
  %v2657 = vpop.f32.mrf.mxu0
  %v2658 = vadd.f32 %v608, %v2657
  %2659 = vmatmul.bf16.gmra.mxu0 %v1815
  %v2660 = vpop.f32.mrf.mxu0
  %v2661 = vadd.f32 %v608, %v2660
  %v2662 = vpop.f32.mrf.mxu0
  %v2663 = vadd.f32 %v608, %v2662
  %2664 = vmatmul.bf16.gmra.mxu0 %v1816
  %v2665 = vpop.f32.mrf.mxu0
  %v2666 = vadd.f32 %v608, %v2665
  %v2667 = vpop.f32.mrf.mxu0
  %v2668 = vadd.f32 %v608, %v2667
  %2669 = vmatmul.bf16.gmra.mxu0 %v1817
  %v2670 = vpop.f32.mrf.mxu0
  %v2671 = vadd.f32 %v608, %v2670
  %v2672 = vpop.f32.mrf.mxu0
  %v2673 = vadd.f32 %v608, %v2672
  %2674 = vmatmul.bf16.gmra.mxu0 %v1818
  %v2675 = vpop.f32.mrf.mxu0
  %v2676 = vadd.f32 %v608, %v2675
  %v2677 = vpop.f32.mrf.mxu0
  %v2678 = vadd.f32 %v608, %v2677
  %2679 = vmatmul.bf16.gmra.mxu0 %v1819
  %v2680 = vpop.f32.mrf.mxu0
  %v2681 = vadd.f32 %v608, %v2680
  %v2682 = vpop.f32.mrf.mxu0
  %v2683 = vadd.f32 %v608, %v2682
  %2684 = vmatmul.bf16.gmra.mxu0 %v1820
  %v2685 = vpop.f32.mrf.mxu0
  %v2686 = vadd.f32 %v608, %v2685
  %v2687 = vpop.f32.mrf.mxu0
  %v2688 = vadd.f32 %v608, %v2687
  %2689 = vmatmul.bf16.gmra.mxu0 %v1821
  %v2690 = vpop.f32.mrf.mxu0
  %v2691 = vadd.f32 %v608, %v2690
  %v2692 = vpop.f32.mrf.mxu0
  %v2693 = vadd.f32 %v608, %v2692
  %2694 = vmatmul.bf16.gmra.mxu0 %v1822
  %v2695 = vpop.f32.mrf.mxu0
  %v2696 = vadd.f32 %v608, %v2695
  %v2697 = vpop.f32.mrf.mxu0
  %v2698 = vadd.f32 %v608, %v2697
  %2699 = vmatmul.bf16.gmra.mxu0 %v1823
  %v2700 = vpop.f32.mrf.mxu0
  %v2701 = vadd.f32 %v608, %v2700
  %v2702 = vpop.f32.mrf.mxu0
  %v2703 = vadd.f32 %v608, %v2702
  %2704 = vmatmul.bf16.gmra.mxu0 %v1824
  %v2705 = vpop.f32.mrf.mxu0
  %v2706 = vadd.f32 %v608, %v2705
  %v2707 = vpop.f32.mrf.mxu0
  %v2708 = vadd.f32 %v608, %v2707
  %2709 = vmatmul.bf16.gmra.mxu0 %v1825
  %v2710 = vpop.f32.mrf.mxu0
  %v2711 = vadd.f32 %v608, %v2710
  %v2712 = vpop.f32.mrf.mxu0
  %v2713 = vadd.f32 %v608, %v2712
  %2714 = vmatmul.bf16.gmra.mxu0 %v1826
  %v2715 = vpop.f32.mrf.mxu0
  %v2716 = vadd.f32 %v608, %v2715
  %v2717 = vpop.f32.mrf.mxu0
  %v2718 = vadd.f32 %v608, %v2717
  %2719 = vmatmul.bf16.gmra.mxu0 %v1827
  %v2720 = vpop.f32.mrf.mxu0
  %v2721 = vadd.f32 %v608, %v2720
  %v2722 = vpop.f32.mrf.mxu0
  %v2723 = vadd.f32 %v608, %v2722
  %2724 = vmatmul.bf16.gmra.mxu0 %v1828
  %v2725 = vpop.f32.mrf.mxu0
  %v2726 = vadd.f32 %v608, %v2725
  %v2727 = vpop.f32.mrf.mxu0
  %v2728 = vadd.f32 %v608, %v2727
  %2729 = vmatmul.bf16.gmra.mxu0 %v1829
  %v2730 = vpop.f32.mrf.mxu0
  %v2731 = vadd.f32 %v608, %v2730
  %v2732 = vpop.f32.mrf.mxu0
  %v2733 = vadd.f32 %v608, %v2732
  %2734 = vmatmul.bf16.gmra.mxu0 %v1830
  %v2735 = vpop.f32.mrf.mxu0
  %v2736 = vadd.f32 %v608, %v2735
  %v2737 = vpop.f32.mrf.mxu0
  %v2738 = vadd.f32 %v608, %v2737
  %2739 = vmatmul.bf16.gmra.mxu0 %v1831
  %v2740 = vpop.f32.mrf.mxu0
  %v2741 = vadd.f32 %v608, %v2740
  %v2742 = vpop.f32.mrf.mxu0
  %v2743 = vadd.f32 %v608, %v2742
  %2744 = vmatmul.bf16.gmra.mxu0 %v1832
  %v2745 = vpop.f32.mrf.mxu0
  %v2746 = vadd.f32 %v608, %v2745
  %v2747 = vpop.f32.mrf.mxu0
  %v2748 = vadd.f32 %v608, %v2747
  %2749 = vmatmul.bf16.gmra.mxu0 %v1833
  %v2750 = vpop.f32.mrf.mxu0
  %v2751 = vadd.f32 %v608, %v2750
  %v2752 = vpop.f32.mrf.mxu0
  %v2753 = vadd.f32 %v608, %v2752
  %2754 = vmatmul.bf16.gmra.mxu0 %v1834
  %v2755 = vpop.f32.mrf.mxu0
  %v2756 = vadd.f32 %v608, %v2755
  %v2757 = vpop.f32.mrf.mxu0
  %v2758 = vadd.f32 %v608, %v2757
  %2759 = vmatmul.bf16.gmra.mxu0 %v1835
  %v2760 = vpop.f32.mrf.mxu0
  %v2761 = vadd.f32 %v608, %v2760
  %v2762 = vpop.f32.mrf.mxu0
  %v2763 = vadd.f32 %v608, %v2762
  %2764 = vmatmul.bf16.gmra.mxu0 %v1836
  %v2765 = vpop.f32.mrf.mxu0
  %v2766 = vadd.f32 %v608, %v2765
  %v2767 = vpop.f32.mrf.mxu0
  %v2768 = vadd.f32 %v608, %v2767
  %2769 = vmatmul.bf16.gmra.mxu0 %v1837
  %v2770 = vpop.f32.mrf.mxu0
  %v2771 = vadd.f32 %v608, %v2770
  %v2772 = vpop.f32.mrf.mxu0
  %v2773 = vadd.f32 %v608, %v2772
  %2774 = vmatmul.bf16.gmra.mxu0 %v1838
  %v2775 = vpop.f32.mrf.mxu0
  %v2776 = vadd.f32 %v608, %v2775
  %v2777 = vpop.f32.mrf.mxu0
  %v2778 = vadd.f32 %v608, %v2777
  %2779 = vmatmul.bf16.gmra.mxu0 %v1839
  %v2780 = vpop.f32.mrf.mxu0
  %v2781 = vadd.f32 %v608, %v2780
  %v2782 = vpop.f32.mrf.mxu0
  %v2783 = vadd.f32 %v608, %v2782
  %2784 = vmatmul.bf16.gmra.mxu0 %v1840
  %v2785 = vpop.f32.mrf.mxu0
  %v2786 = vadd.f32 %v608, %v2785
  %v2787 = vpop.f32.mrf.mxu0
  %v2788 = vadd.f32 %v608, %v2787
  %2789 = vmatmul.bf16.gmra.mxu0 %v1841
  %v2790 = vpop.f32.mrf.mxu0
  %v2791 = vadd.f32 %v608, %v2790
  %v2792 = vpop.f32.mrf.mxu0
  %v2793 = vadd.f32 %v608, %v2792
  %2794 = vmatmul.bf16.gmra.mxu0 %v1842
  %v2795 = vpop.f32.mrf.mxu0
  %v2796 = vadd.f32 %v608, %v2795
  %v2797 = vpop.f32.mrf.mxu0
  %v2798 = vadd.f32 %v608, %v2797
  %2799 = vmatmul.bf16.gmra.mxu0 %v1843
  %v2800 = vpop.f32.mrf.mxu0
  %v2801 = vadd.f32 %v608, %v2800
  %v2802 = vpop.f32.mrf.mxu0
  %v2803 = vadd.f32 %v608, %v2802
  %2804 = vmatmul.bf16.gmra.mxu0 %v1844
  %v2805 = vpop.f32.mrf.mxu0
  %v2806 = vadd.f32 %v608, %v2805
  %v2807 = vpop.f32.mrf.mxu0
  %v2808 = vadd.f32 %v608, %v2807
  %2809 = vmatmul.bf16.gmra.mxu0 %v1845
  %v2810 = vpop.f32.mrf.mxu0
  %v2811 = vadd.f32 %v608, %v2810
  %v2812 = vpop.f32.mrf.mxu0
  %v2813 = vadd.f32 %v608, %v2812
  %2814 = vmatmul.bf16.gmra.mxu0 %v1846
  %v2815 = vpop.f32.mrf.mxu0
  %v2816 = vadd.f32 %v608, %v2815
  %v2817 = vpop.f32.mrf.mxu0
  %v2818 = vadd.f32 %v608, %v2817
  %2819 = vmatmul.bf16.gmra.mxu0 %v1847
  %v2820 = vpop.f32.mrf.mxu0
  %v2821 = vadd.f32 %v608, %v2820
  %v2822 = vpop.f32.mrf.mxu0
  %v2823 = vadd.f32 %v608, %v2822
  %2824 = vmatmul.bf16.gmra.mxu0 %v1848
  %v2825 = vpop.f32.mrf.mxu0
  %v2826 = vadd.f32 %v608, %v2825
  %v2827 = vpop.f32.mrf.mxu0
  %v2828 = vadd.f32 %v608, %v2827
  %2829 = vmatmul.bf16.gmra.mxu0 %v1849
  %v2830 = vpop.f32.mrf.mxu0
  %v2831 = vadd.f32 %v608, %v2830
  %v2832 = vpop.f32.mrf.mxu0
  %v2833 = vadd.f32 %v608, %v2832
  %2834 = vmatmul.bf16.gmra.mxu0 %v1850
  %v2835 = vpop.f32.mrf.mxu0
  %v2836 = vadd.f32 %v608, %v2835
  %v2837 = vpop.f32.mrf.mxu0
  %v2838 = vadd.f32 %v608, %v2837
  %2839 = vmatmul.bf16.gmra.mxu0 %v1851
  %v2840 = vpop.f32.mrf.mxu0
  %v2841 = vadd.f32 %v608, %v2840
  %v2842 = vpop.f32.mrf.mxu0
  %v2843 = vadd.f32 %v608, %v2842
  %2844 = vmatmul.bf16.gmra.mxu0 %v1852
  %v2845 = vpop.f32.mrf.mxu0
  %v2846 = vadd.f32 %v608, %v2845
  %v2847 = vpop.f32.mrf.mxu0
  %v2848 = vadd.f32 %v608, %v2847
  %2849 = vmatmul.bf16.gmra.mxu0 %v1853
  %v2850 = vpop.f32.mrf.mxu0
  %v2851 = vadd.f32 %v608, %v2850
  %v2852 = vpop.f32.mrf.mxu0
  %v2853 = vadd.f32 %v608, %v2852
  %2854 = vmatmul.bf16.gmra.mxu0 %v1854
  %v2855 = vpop.f32.mrf.mxu0
  %v2856 = vadd.f32 %v608, %v2855
  %v2857 = vpop.f32.mrf.mxu0
  %v2858 = vadd.f32 %v608, %v2857
  %2859 = vmatmul.bf16.gmra.mxu0 %v1855
  %v2860 = vpop.f32.mrf.mxu0
  %v2861 = vadd.f32 %v608, %v2860
  %v2862 = vpop.f32.mrf.mxu0
  %v2863 = vadd.f32 %v608, %v2862
  %2864 = vmatmul.bf16.gmra.mxu0 %v1856
  %v2865 = vpop.f32.mrf.mxu0
  %v2866 = vadd.f32 %v608, %v2865
  %v2867 = vpop.f32.mrf.mxu0
  %v2868 = vadd.f32 %v608, %v2867
  %2869 = vmatmul.bf16.gmra.mxu0 %v1857
  %v2870 = vpop.f32.mrf.mxu0
  %v2871 = vadd.f32 %v608, %v2870
  %v2872 = vpop.f32.mrf.mxu0
  %v2873 = vadd.f32 %v608, %v2872
  %2874 = vmatmul.bf16.gmra.mxu0 %v1858
  %v2875 = vpop.f32.mrf.mxu0
  %v2876 = vadd.f32 %v608, %v2875
  %v2877 = vpop.f32.mrf.mxu0
  %v2878 = vadd.f32 %v608, %v2877
  %2879 = vmatmul.bf16.gmra.mxu0 %v1859
  %v2880 = vpop.f32.mrf.mxu0
  %v2881 = vadd.f32 %v608, %v2880
  %v2882 = vpop.f32.mrf.mxu0
  %v2883 = vadd.f32 %v608, %v2882
  %2884 = vmatmul.bf16.gmra.mxu0 %v1860
  %v2885 = vpop.f32.mrf.mxu0
  %v2886 = vadd.f32 %v608, %v2885
  %v2887 = vpop.f32.mrf.mxu0
  %v2888 = vadd.f32 %v608, %v2887
  %2889 = vmatmul.bf16.gmra.mxu0 %v1861
  %v2890 = vpop.f32.mrf.mxu0
  %v2891 = vadd.f32 %v608, %v2890
  %v2892 = vpop.f32.mrf.mxu0
  %v2893 = vadd.f32 %v608, %v2892
  %2894 = vmatmul.bf16.gmra.mxu0 %v1862
  %v2895 = vpop.f32.mrf.mxu0
  %v2896 = vadd.f32 %v608, %v2895
  %v2897 = vpop.f32.mrf.mxu0
  %v2898 = vadd.f32 %v608, %v2897
  %2899 = vmatmul.bf16.gmra.mxu0 %v1863
  %v2900 = vpop.f32.mrf.mxu0
  %v2901 = vadd.f32 %v608, %v2900
  %v2902 = vpop.f32.mrf.mxu0
  %v2903 = vadd.f32 %v608, %v2902
  %2904 = vmatmul.bf16.gmra.mxu0 %v1864
  %v2905 = vpop.f32.mrf.mxu0
  %v2906 = vadd.f32 %v608, %v2905
  %v2907 = vpop.f32.mrf.mxu0
  %v2908 = vadd.f32 %v608, %v2907
  %2909 = vmatmul.bf16.gmra.mxu0 %v1865
  %v2910 = vpop.f32.mrf.mxu0
  %v2911 = vadd.f32 %v608, %v2910
  %v2912 = vpop.f32.mrf.mxu0
  %v2913 = vadd.f32 %v608, %v2912
  %2914 = vmatmul.bf16.gmra.mxu0 %v1866
  %v2915 = vpop.f32.mrf.mxu0
  %v2916 = vadd.f32 %v608, %v2915
  %v2917 = vpop.f32.mrf.mxu0
  %v2918 = vadd.f32 %v608, %v2917
  %2919 = vmatmul.bf16.gmra.mxu0 %v1867
  %v2920 = vpop.f32.mrf.mxu0
  %v2921 = vadd.f32 %v608, %v2920
  %v2922 = vpop.f32.mrf.mxu0
  %v2923 = vadd.f32 %v608, %v2922
  %2924 = vmatmul.bf16.gmra.mxu0 %v1868
  %v2925 = vpop.f32.mrf.mxu0
  %v2926 = vadd.f32 %v608, %v2925
  %v2927 = vpop.f32.mrf.mxu0
  %v2928 = vadd.f32 %v608, %v2927
  %2929 = vmatmul.bf16.gmra.mxu0 %v1869
  %v2930 = vpop.f32.mrf.mxu0
  %v2931 = vadd.f32 %v608, %v2930
  %v2932 = vpop.f32.mrf.mxu0
  %v2933 = vadd.f32 %v608, %v2932
  %2934 = vmatmul.bf16.gmra.mxu0 %v1870
  %v2935 = vpop.f32.mrf.mxu0
  %v2936 = vadd.f32 %v608, %v2935
  %v2937 = vpop.f32.mrf.mxu0
  %v2938 = vadd.f32 %v608, %v2937
  %2939 = vmatmul.bf16.gmra.mxu0 %v1871
  %v2940 = vpop.f32.mrf.mxu0
  %v2941 = vadd.f32 %v608, %v2940
  %v2942 = vpop.f32.mrf.mxu0
  %v2943 = vadd.f32 %v608, %v2942
  %2944 = vmatmul.bf16.gmra.mxu0 %v1872
  %v2945 = vpop.f32.mrf.mxu0
  %v2946 = vadd.f32 %v608, %v2945
  %v2947 = vpop.f32.mrf.mxu0
  %v2948 = vadd.f32 %v608, %v2947
  %2949 = vmatmul.bf16.gmra.mxu0 %v1873
  %v2950 = vpop.f32.mrf.mxu0
  %v2951 = vadd.f32 %v608, %v2950
  %v2952 = vpop.f32.mrf.mxu0
  %v2953 = vadd.f32 %v608, %v2952
  %2954 = vmatmul.bf16.gmra.mxu0 %v1874
  %v2955 = vpop.f32.mrf.mxu0
  %v2956 = vadd.f32 %v608, %v2955
  %v2957 = vpop.f32.mrf.mxu0
  %v2958 = vadd.f32 %v608, %v2957
  %2959 = vmatmul.bf16.gmra.mxu0 %v1875
  %v2960 = vpop.f32.mrf.mxu0
  %v2961 = vadd.f32 %v608, %v2960
  %v2962 = vpop.f32.mrf.mxu0
  %v2963 = vadd.f32 %v608, %v2962
  %2964 = vmatmul.bf16.gmra.mxu0 %v1876
  %v2965 = vpop.f32.mrf.mxu0
  %v2966 = vadd.f32 %v608, %v2965
  %v2967 = vpop.f32.mrf.mxu0
  %v2968 = vadd.f32 %v608, %v2967
  %2969 = vmatmul.bf16.gmra.mxu0 %v1877
  %v2970 = vpop.f32.mrf.mxu0
  %v2971 = vadd.f32 %v608, %v2970
  %v2972 = vpop.f32.mrf.mxu0
  %v2973 = vadd.f32 %v608, %v2972
  %2974 = vmatmul.bf16.gmra.mxu0 %v1878
  %v2975 = vpop.f32.mrf.mxu0
  %v2976 = vadd.f32 %v608, %v2975
  %v2977 = vpop.f32.mrf.mxu0
  %v2978 = vadd.f32 %v608, %v2977
  %2979 = vmatmul.bf16.gmra.mxu0 %v1879
  %v2980 = vpop.f32.mrf.mxu0
  %v2981 = vadd.f32 %v608, %v2980
  %v2982 = vpop.f32.mrf.mxu0
  %v2983 = vadd.f32 %v608, %v2982
  %2984 = vmatmul.bf16.gmra.mxu0 %v1880
  %v2985 = vpop.f32.mrf.mxu0
  %v2986 = vadd.f32 %v608, %v2985
  %v2987 = vpop.f32.mrf.mxu0
  %v2988 = vadd.f32 %v608, %v2987
  %2989 = vmatmul.bf16.gmra.mxu0 %v1881
  %v2990 = vpop.f32.mrf.mxu0
  %v2991 = vadd.f32 %v608, %v2990
  %v2992 = vpop.f32.mrf.mxu0
  %v2993 = vadd.f32 %v608, %v2992
  %2994 = vmatmul.bf16.gmra.mxu0 %v1882
  %v2995 = vpop.f32.mrf.mxu0
  %v2996 = vadd.f32 %v608, %v2995
  %v2997 = vpop.f32.mrf.mxu0
  %v2998 = vadd.f32 %v608, %v2997
  %2999 = vmatmul.bf16.gmra.mxu0 %v1883
  %v3000 = vpop.f32.mrf.mxu0
  %v3001 = vadd.f32 %v608, %v3000
  %v3002 = vpop.f32.mrf.mxu0
  %v3003 = vadd.f32 %v608, %v3002
  %3004 = vmatmul.bf16.gmra.mxu0 %v1884
  %v3005 = vpop.f32.mrf.mxu0
  %v3006 = vadd.f32 %v608, %v3005
  %v3007 = vpop.f32.mrf.mxu0
  %v3008 = vadd.f32 %v608, %v3007
  %3009 = vmatmul.bf16.gmra.mxu0 %v1885
  %v3010 = vpop.f32.mrf.mxu0
  %v3011 = vadd.f32 %v608, %v3010
  %v3012 = vpop.f32.mrf.mxu0
  %v3013 = vadd.f32 %v608, %v3012
  %3014 = vmatmul.bf16.gmra.mxu0 %v1886
  %v3015 = vpop.f32.mrf.mxu0
  %v3016 = vadd.f32 %v608, %v3015
  %v3017 = vpop.f32.mrf.mxu0
  %v3018 = vadd.f32 %v608, %v3017
  %3019 = vmatmul.bf16.gmra.mxu0 %v1887
  %v3020 = vpop.f32.mrf.mxu0
  %v3021 = vadd.f32 %v608, %v3020
  %v3022 = vpop.f32.mrf.mxu0
  %v3023 = vadd.f32 %v608, %v3022
  %3024 = vmatmul.bf16.gmra.mxu0 %v1888
  %v3025 = vpop.f32.mrf.mxu0
  %v3026 = vadd.f32 %v608, %v3025
  %v3027 = vpop.f32.mrf.mxu0
  %v3028 = vadd.f32 %v608, %v3027
  %3029 = vmatmul.bf16.gmra.mxu0 %v1889
  %v3030 = vpop.f32.mrf.mxu0
  %v3031 = vadd.f32 %v608, %v3030
  %v3032 = vpop.f32.mrf.mxu0
  %v3033 = vadd.f32 %v608, %v3032
  %3034 = vmatmul.bf16.gmra.mxu0 %v1890
  %v3035 = vpop.f32.mrf.mxu0
  %v3036 = vadd.f32 %v608, %v3035
  %v3037 = vpop.f32.mrf.mxu0
  %v3038 = vadd.f32 %v608, %v3037
  %3039 = vmatmul.bf16.gmra.mxu0 %v1891
  %v3040 = vpop.f32.mrf.mxu0
  %v3041 = vadd.f32 %v608, %v3040
  %v3042 = vpop.f32.mrf.mxu0
  %v3043 = vadd.f32 %v608, %v3042
  %3044 = vmatmul.bf16.gmra.mxu0 %v1892
  %v3045 = vpop.f32.mrf.mxu0
  %v3046 = vadd.f32 %v608, %v3045
  %v3047 = vpop.f32.mrf.mxu0
  %v3048 = vadd.f32 %v608, %v3047
  %3049 = vmatmul.bf16.gmra.mxu0 %v1893
  %v3050 = vpop.f32.mrf.mxu0
  %v3051 = vadd.f32 %v608, %v3050
  %v3052 = vpop.f32.mrf.mxu0
  %v3053 = vadd.f32 %v608, %v3052
  %3054 = vmatmul.bf16.gmra.mxu0 %v1894
  %v3055 = vpop.f32.mrf.mxu0
  %v3056 = vadd.f32 %v608, %v3055
  %v3057 = vpop.f32.mrf.mxu0
  %v3058 = vadd.f32 %v608, %v3057
  %3059 = vmatmul.bf16.gmra.mxu0 %v1895
  %v3060 = vpop.f32.mrf.mxu0
  %v3061 = vadd.f32 %v608, %v3060
  %v3062 = vpop.f32.mrf.mxu0
  %v3063 = vadd.f32 %v608, %v3062
  %3064 = vmatmul.bf16.gmra.mxu0 %v1896
  %v3065 = vpop.f32.mrf.mxu0
  %v3066 = vadd.f32 %v608, %v3065
  %v3067 = vpop.f32.mrf.mxu0
  %v3068 = vadd.f32 %v608, %v3067
  %3069 = vmatmul.bf16.gmra.mxu0 %v1897
  %v3070 = vpop.f32.mrf.mxu0
  %v3071 = vadd.f32 %v608, %v3070
  %v3072 = vpop.f32.mrf.mxu0
  %v3073 = vadd.f32 %v608, %v3072
  %3074 = vmatmul.bf16.gmra.mxu0 %v1898
  %v3075 = vpop.f32.mrf.mxu0
  %v3076 = vadd.f32 %v608, %v3075
  %v3077 = vpop.f32.mrf.mxu0
  %v3078 = vadd.f32 %v608, %v3077
  %3079 = vmatmul.bf16.gmra.mxu0 %v1899
  %v3080 = vpop.f32.mrf.mxu0
  %v3081 = vadd.f32 %v608, %v3080
  %v3082 = vpop.f32.mrf.mxu0
  %v3083 = vadd.f32 %v608, %v3082
  %3084 = vmatmul.bf16.gmra.mxu0 %v1900
  %v3085 = vpop.f32.mrf.mxu0
  %v3086 = vadd.f32 %v608, %v3085
  %v3087 = vpop.f32.mrf.mxu0
  %v3088 = vadd.f32 %v608, %v3087
  %3089 = vmatmul.bf16.gmra.mxu0 %v1901
  %v3090 = vpop.f32.mrf.mxu0
  %v3091 = vadd.f32 %v608, %v3090
  %v3092 = vpop.f32.mrf.mxu0
  %v3093 = vadd.f32 %v608, %v3092
  %3094 = vmatmul.bf16.gmra.mxu0 %v1902
  %v3095 = vpop.f32.mrf.mxu0
  %v3096 = vadd.f32 %v608, %v3095
  %v3097 = vpop.f32.mrf.mxu0
  %v3098 = vadd.f32 %v608, %v3097
  %3099 = vmatmul.bf16.gmra.mxu0 %v1903
  %v3100 = vpop.f32.mrf.mxu0
  %v3101 = vadd.f32 %v608, %v3100
  %v3102 = vpop.f32.mrf.mxu0
  %v3103 = vadd.f32 %v608, %v3102
  %3104 = vmatmul.bf16.gmra.mxu0 %v1904
  %v3105 = vpop.f32.mrf.mxu0
  %v3106 = vadd.f32 %v608, %v3105
  %v3107 = vpop.f32.mrf.mxu0
  %v3108 = vadd.f32 %v608, %v3107
  %3109 = vmatmul.bf16.gmra.mxu0 %v1905
  %v3110 = vpop.f32.mrf.mxu0
  %v3111 = vadd.f32 %v608, %v3110
  %v3112 = vpop.f32.mrf.mxu0
  %v3113 = vadd.f32 %v608, %v3112
  %3114 = vmatmul.bf16.gmra.mxu0 %v1906
  %v3115 = vpop.f32.mrf.mxu0
  %v3116 = vadd.f32 %v608, %v3115
  %v3117 = vpop.f32.mrf.mxu0
  %v3118 = vadd.f32 %v608, %v3117
  %3119 = vmatmul.bf16.gmra.mxu0 %v1907
  %v3120 = vpop.f32.mrf.mxu0
  %v3121 = vadd.f32 %v608, %v3120
  %v3122 = vpop.f32.mrf.mxu0
  %v3123 = vadd.f32 %v608, %v3122
  %3124 = vmatmul.bf16.gmra.mxu0 %v1908
  %v3125 = vpop.f32.mrf.mxu0
  %v3126 = vadd.f32 %v608, %v3125
  %v3127 = vpop.f32.mrf.mxu0
  %v3128 = vadd.f32 %v608, %v3127
  %3129 = vmatmul.bf16.gmra.mxu0 %v1909
  %v3130 = vpop.f32.mrf.mxu0
  %v3131 = vadd.f32 %v608, %v3130
  %v3132 = vpop.f32.mrf.mxu0
  %v3133 = vadd.f32 %v608, %v3132
  %3134 = vmatmul.bf16.gmra.mxu0 %v1910
  %v3135 = vpop.f32.mrf.mxu0
  %v3136 = vadd.f32 %v608, %v3135
  %v3137 = vpop.f32.mrf.mxu0
  %v3138 = vadd.f32 %v608, %v3137
  %3139 = vmatmul.bf16.gmra.mxu0 %v1911
  %v3140 = vpop.f32.mrf.mxu0
  %v3141 = vadd.f32 %v608, %v3140
  %v3142 = vpop.f32.mrf.mxu0
  %v3143 = vadd.f32 %v608, %v3142
  %3144 = vmatmul.bf16.gmra.mxu0 %v1912
  %v3145 = vpop.f32.mrf.mxu0
  %v3146 = vadd.f32 %v608, %v3145
  %v3147 = vpop.f32.mrf.mxu0
  %v3148 = vadd.f32 %v608, %v3147
  %3149 = vmatmul.bf16.gmra.mxu0 %v1913
  %v3150 = vpop.f32.mrf.mxu0
  %v3151 = vadd.f32 %v608, %v3150
  %v3152 = vpop.f32.mrf.mxu0
  %v3153 = vadd.f32 %v608, %v3152
  %3154 = vmatmul.bf16.gmra.mxu0 %v1914
  %v3155 = vpop.f32.mrf.mxu0
  %v3156 = vadd.f32 %v608, %v3155
  %v3157 = vpop.f32.mrf.mxu0
  %v3158 = vadd.f32 %v608, %v3157
  %3159 = vmatmul.bf16.gmra.mxu0 %v1915
  %v3160 = vpop.f32.mrf.mxu0
  %v3161 = vadd.f32 %v608, %v3160
  %v3162 = vpop.f32.mrf.mxu0
  %v3163 = vadd.f32 %v608, %v3162
  %3164 = vmatmul.bf16.gmra.mxu0 %v1916
  %v3165 = vpop.f32.mrf.mxu0
  %v3166 = vadd.f32 %v608, %v3165
  %v3167 = vpop.f32.mrf.mxu0
  %v3168 = vadd.f32 %v608, %v3167
  %3169 = vmatmul.bf16.gmra.mxu0 %v1917
  %v3170 = vpop.f32.mrf.mxu0
  %v3171 = vadd.f32 %v608, %v3170
  %v3172 = vpop.f32.mrf.mxu0
  %v3173 = vadd.f32 %v608, %v3172
  %3174 = vmatmul.bf16.gmra.mxu0 %v1918
  %v3175 = vpop.f32.mrf.mxu0
  %v3176 = vadd.f32 %v608, %v3175
  %v3177 = vpop.f32.mrf.mxu0
  %v3178 = vadd.f32 %v608, %v3177
  %3179 = vmatmul.bf16.gmra.mxu0 %v1919
  %v3180 = vpop.f32.mrf.mxu0
  %v3181 = vadd.f32 %v608, %v3180
  %v3182 = vpop.f32.mrf.mxu0
  %v3183 = vadd.f32 %v608, %v3182
  %3184 = vmatmul.bf16.gmra.mxu0 %v1920
  %v3185 = vpop.f32.mrf.mxu0
  %v3186 = vadd.f32 %v608, %v3185
  %v3187 = vpop.f32.mrf.mxu0
  %v3188 = vadd.f32 %v608, %v3187
  %3189 = vmatmul.bf16.gmra.mxu0 %v1921
  %v3190 = vpop.f32.mrf.mxu0
  %v3191 = vadd.f32 %v608, %v3190
  %v3192 = vpop.f32.mrf.mxu0
  %v3193 = vadd.f32 %v608, %v3192
  %3194 = vmatmul.bf16.gmra.mxu0 %v1922
  %v3195 = vpop.f32.mrf.mxu0
  %v3196 = vadd.f32 %v608, %v3195
  %v3197 = vpop.f32.mrf.mxu0
  %v3198 = vadd.f32 %v608, %v3197
  %3199 = vmatmul.bf16.gmra.mxu0 %v1923
  %v3200 = vpop.f32.mrf.mxu0
  %v3201 = vadd.f32 %v608, %v3200
  %v3202 = vpop.f32.mrf.mxu0
  %v3203 = vadd.f32 %v608, %v3202
  %3204 = vmatmul.bf16.gmra.mxu0 %v1924
  %v3205 = vpop.f32.mrf.mxu0
  %v3206 = vadd.f32 %v608, %v3205
  %v3207 = vpop.f32.mrf.mxu0
  %v3208 = vadd.f32 %v608, %v3207
  %3209 = vmatmul.bf16.gmra.mxu0 %v1925
  %v3210 = vpop.f32.mrf.mxu0
  %v3211 = vadd.f32 %v608, %v3210
  %v3212 = vpop.f32.mrf.mxu0
  %v3213 = vadd.f32 %v608, %v3212
  %3214 = vmatmul.bf16.gmra.mxu0 %v1926
  %v3215 = vpop.f32.mrf.mxu0
  %v3216 = vadd.f32 %v608, %v3215
  %v3217 = vpop.f32.mrf.mxu0
  %v3218 = vadd.f32 %v608, %v3217
  %3219 = vmatmul.bf16.gmra.mxu0 %v1927
  %v3220 = vpop.f32.mrf.mxu0
  %v3221 = vadd.f32 %v608, %v3220
  %v3222 = vpop.f32.mrf.mxu0
  %v3223 = vadd.f32 %v608, %v3222
  %3224 = vmatmul.bf16.gmra.mxu0 %v1928
  %v3225 = vpop.f32.mrf.mxu0
  %v3226 = vadd.f32 %v608, %v3225
  %v3227 = vpop.f32.mrf.mxu0
  %v3228 = vadd.f32 %v608, %v3227
  %3229 = vmatmul.bf16.gmra.mxu0 %v1929
  %v3230 = vpop.f32.mrf.mxu0
  %v3231 = vadd.f32 %v608, %v3230
  %v3232 = vpop.f32.mrf.mxu0
  %v3233 = vadd.f32 %v608, %v3232
  %3234 = vmatmul.bf16.gmra.mxu0 %v1930
  %v3235 = vpop.f32.mrf.mxu0
  %v3236 = vadd.f32 %v608, %v3235
  %v3237 = vpop.f32.mrf.mxu0
  %v3238 = vadd.f32 %v608, %v3237
  %3239 = vmatmul.bf16.gmra.mxu0 %v1931
  %v3240 = vpop.f32.mrf.mxu0
  %v3241 = vadd.f32 %v608, %v3240
  %v3242 = vpop.f32.mrf.mxu0
  %v3243 = vadd.f32 %v608, %v3242
  %3244 = vmatmul.bf16.gmra.mxu0 %v1932
  %v3245 = vpop.f32.mrf.mxu0
  %v3246 = vadd.f32 %v608, %v3245
  %v3247 = vpop.f32.mrf.mxu0
  %v3248 = vadd.f32 %v608, %v3247
  %3249 = vmatmul.bf16.gmra.mxu0 %v1933
  %v3250 = vpop.f32.mrf.mxu0
  %v3251 = vadd.f32 %v608, %v3250
  %v3252 = vpop.f32.mrf.mxu0
  %v3253 = vadd.f32 %v608, %v3252
  %3254 = vmatmul.bf16.gmra.mxu0 %v1934
  %v3255 = vpop.f32.mrf.mxu0
  %v3256 = vadd.f32 %v608, %v3255
  %v3257 = vpop.f32.mrf.mxu0
  %v3258 = vadd.f32 %v608, %v3257
  %3259 = vmatmul.bf16.gmra.mxu0 %v1935
  %v3260 = vpop.f32.mrf.mxu0
  %v3261 = vadd.f32 %v608, %v3260
  %v3262 = vpop.f32.mrf.mxu0
  %v3263 = vadd.f32 %v608, %v3262
  %3264 = vmatmul.bf16.gmra.mxu0 %v1936
  %v3265 = vpop.f32.mrf.mxu0
  %v3266 = vadd.f32 %v608, %v3265
  %v3267 = vpop.f32.mrf.mxu0
  %v3268 = vadd.f32 %v608, %v3267
  %3269 = vmatmul.bf16.gmra.mxu0 %v1937
  %v3270 = vpop.f32.mrf.mxu0
  %v3271 = vadd.f32 %v608, %v3270
  %v3272 = vpop.f32.mrf.mxu0
  %v3273 = vadd.f32 %v608, %v3272
  %3274 = vmatmul.bf16.gmra.mxu0 %v1938
  %v3275 = vpop.f32.mrf.mxu0
  %v3276 = vadd.f32 %v608, %v3275
  %v3277 = vpop.f32.mrf.mxu0
  %v3278 = vadd.f32 %v608, %v3277
  %3279 = vmatmul.bf16.gmra.mxu0 %v1939
  %v3280 = vpop.f32.mrf.mxu0
  %v3281 = vadd.f32 %v608, %v3280
  %v3282 = vpop.f32.mrf.mxu0
  %v3283 = vadd.f32 %v608, %v3282
  %3284 = vmatmul.bf16.gmra.mxu0 %v1940
  %v3285 = vpop.f32.mrf.mxu0
  %v3286 = vadd.f32 %v608, %v3285
  %v3287 = vpop.f32.mrf.mxu0
  %v3288 = vadd.f32 %v608, %v3287
  %3289 = vmatmul.bf16.gmra.mxu0 %v1941
  %v3290 = vpop.f32.mrf.mxu0
  %v3291 = vadd.f32 %v608, %v3290
  %v3292 = vpop.f32.mrf.mxu0
  %v3293 = vadd.f32 %v608, %v3292
  %3294 = vmatmul.bf16.gmra.mxu0 %v1942
  %v3295 = vpop.f32.mrf.mxu0
  %v3296 = vadd.f32 %v608, %v3295
  %v3297 = vpop.f32.mrf.mxu0
  %v3298 = vadd.f32 %v608, %v3297
  %3299 = vmatmul.bf16.gmra.mxu0 %v1943
  %v3300 = vpop.f32.mrf.mxu0
  %v3301 = vadd.f32 %v608, %v3300
  %v3302 = vpop.f32.mrf.mxu0
  %v3303 = vadd.f32 %v608, %v3302
  %3304 = vmatmul.bf16.gmra.mxu0 %v1944
  %v3305 = vpop.f32.mrf.mxu0
  %v3306 = vadd.f32 %v608, %v3305
  %v3307 = vpop.f32.mrf.mxu0
  %v3308 = vadd.f32 %v608, %v3307
  %3309 = vmatmul.bf16.gmra.mxu0 %v1945
  %v3310 = vpop.f32.mrf.mxu0
  %v3311 = vadd.f32 %v608, %v3310
  %v3312 = vpop.f32.mrf.mxu0
  %v3313 = vadd.f32 %v608, %v3312
  %3314 = vmatmul.bf16.gmra.mxu0 %v1946
  %v3315 = vpop.f32.mrf.mxu0
  %v3316 = vadd.f32 %v608, %v3315
  %v3317 = vpop.f32.mrf.mxu0
  %v3318 = vadd.f32 %v608, %v3317
  %3319 = vmatmul.bf16.gmra.mxu0 %v1947
  %v3320 = vpop.f32.mrf.mxu0
  %v3321 = vadd.f32 %v608, %v3320
  %v3322 = vpop.f32.mrf.mxu0
  %v3323 = vadd.f32 %v608, %v3322
  %3324 = vmatmul.bf16.gmra.mxu0 %v1948
  %v3325 = vpop.f32.mrf.mxu0
  %v3326 = vadd.f32 %v608, %v3325
  %v3327 = vpop.f32.mrf.mxu0
  %v3328 = vadd.f32 %v608, %v3327
  %3329 = vmatmul.bf16.gmra.mxu0 %v1949
  %v3330 = vpop.f32.mrf.mxu0
  %v3331 = vadd.f32 %v608, %v3330
  %v3332 = vpop.f32.mrf.mxu0
  %v3333 = vadd.f32 %v608, %v3332
  %3334 = vmatmul.bf16.gmra.mxu0 %v1950
  %v3335 = vpop.f32.mrf.mxu0
  %v3336 = vadd.f32 %v608, %v3335
  %v3337 = vpop.f32.mrf.mxu0
  %v3338 = vadd.f32 %v608, %v3337
  %3339 = vmatmul.bf16.gmra.mxu0 %v1951
  %v3340 = vpop.f32.mrf.mxu0
  %v3341 = vadd.f32 %v608, %v3340
  %v3342 = vpop.f32.mrf.mxu0
  %v3343 = vadd.f32 %v608, %v3342
  %3344 = vmatmul.bf16.gmra.mxu0 %v1952
  %v3345 = vpop.f32.mrf.mxu0
  %v3346 = vadd.f32 %v608, %v3345
  %v3347 = vpop.f32.mrf.mxu0
  %v3348 = vadd.f32 %v608, %v3347
  %3349 = vmatmul.bf16.gmra.mxu0 %v1953
  %v3350 = vpop.f32.mrf.mxu0
  %v3351 = vadd.f32 %v608, %v3350
  %v3352 = vpop.f32.mrf.mxu0
  %v3353 = vadd.f32 %v608, %v3352
  %3354 = vmatmul.bf16.gmra.mxu0 %v1954
  %v3355 = vpop.f32.mrf.mxu0
  %v3356 = vadd.f32 %v608, %v3355
  %v3357 = vpop.f32.mrf.mxu0
  %v3358 = vadd.f32 %v608, %v3357
  %3359 = vmatmul.bf16.gmra.mxu0 %v1955
  %v3360 = vpop.f32.mrf.mxu0
  %v3361 = vadd.f32 %v608, %v3360
  %v3362 = vpop.f32.mrf.mxu0
  %v3363 = vadd.f32 %v608, %v3362
  %3364 = vmatmul.bf16.gmra.mxu0 %v1956
  %v3365 = vpop.f32.mrf.mxu0
  %v3366 = vadd.f32 %v608, %v3365
  %v3367 = vpop.f32.mrf.mxu0
  %v3368 = vadd.f32 %v608, %v3367
  %3369 = vmatmul.bf16.gmra.mxu0 %v1957
  %v3370 = vpop.f32.mrf.mxu0
  %v3371 = vadd.f32 %v608, %v3370
  %v3372 = vpop.f32.mrf.mxu0
  %v3373 = vadd.f32 %v608, %v3372
  %3374 = vmatmul.bf16.gmra.mxu0 %v1958
  %v3375 = vpop.f32.mrf.mxu0
  %v3376 = vadd.f32 %v608, %v3375
  %v3377 = vpop.f32.mrf.mxu0
  %v3378 = vadd.f32 %v608, %v3377
  %3379 = vmatmul.bf16.gmra.mxu0 %v1959
  %v3380 = vpop.f32.mrf.mxu0
  %v3381 = vadd.f32 %v608, %v3380
  %v3382 = vpop.f32.mrf.mxu0
  %v3383 = vadd.f32 %v608, %v3382
  %3384 = vmatmul.bf16.gmra.mxu0 %v1960
  %v3385 = vpop.f32.mrf.mxu0
  %v3386 = vadd.f32 %v608, %v3385
  %v3387 = vpop.f32.mrf.mxu0
  %v3388 = vadd.f32 %v608, %v3387
  %3389 = vmatmul.bf16.gmra.mxu0 %v1961
  %v3390 = vpop.f32.mrf.mxu0
  %v3391 = vadd.f32 %v608, %v3390
  %v3392 = vpop.f32.mrf.mxu0
  %v3393 = vadd.f32 %v608, %v3392
  %3394 = vmatmul.bf16.gmra.mxu0 %v1962
  %v3395 = vpop.f32.mrf.mxu0
  %v3396 = vadd.f32 %v608, %v3395
  %v3397 = vpop.f32.mrf.mxu0
  %v3398 = vadd.f32 %v608, %v3397
  %3399 = vmatmul.bf16.gmra.mxu0 %v1963
  %v3400 = vpop.f32.mrf.mxu0
  %v3401 = vadd.f32 %v608, %v3400
  %v3402 = vpop.f32.mrf.mxu0
  %v3403 = vadd.f32 %v608, %v3402
  %3404 = vmatmul.bf16.gmra.mxu0 %v1964
  %v3405 = vpop.f32.mrf.mxu0
  %v3406 = vadd.f32 %v608, %v3405
  %v3407 = vpop.f32.mrf.mxu0
  %v3408 = vadd.f32 %v608, %v3407
  %3409 = vmatmul.bf16.gmra.mxu0 %v1965
  %v3410 = vpop.f32.mrf.mxu0
  %v3411 = vadd.f32 %v608, %v3410
  %v3412 = vpop.f32.mrf.mxu0
  %v3413 = vadd.f32 %v608, %v3412
  %3414 = vmatmul.bf16.gmra.mxu0 %v1966
  %v3415 = vpop.f32.mrf.mxu0
  %v3416 = vadd.f32 %v608, %v3415
  %v3417 = vpop.f32.mrf.mxu0
  %v3418 = vadd.f32 %v608, %v3417
  %3419 = vmatmul.bf16.gmra.mxu0 %v1967
  %v3420 = vpop.f32.mrf.mxu0
  %v3421 = vadd.f32 %v608, %v3420
  %v3422 = vpop.f32.mrf.mxu0
  %v3423 = vadd.f32 %v608, %v3422
  %3424 = vmatmul.bf16.gmra.mxu0 %v1968
  %v3425 = vpop.f32.mrf.mxu0
  %v3426 = vadd.f32 %v608, %v3425
  %v3427 = vpop.f32.mrf.mxu0
  %v3428 = vadd.f32 %v608, %v3427
  %3429 = vmatmul.bf16.gmra.mxu0 %v1969
  %v3430 = vpop.f32.mrf.mxu0
  %v3431 = vadd.f32 %v608, %v3430
  %v3432 = vpop.f32.mrf.mxu0
  %v3433 = vadd.f32 %v608, %v3432
  %3434 = vmatmul.bf16.gmra.mxu0 %v1970
  %v3435 = vpop.f32.mrf.mxu0
  %v3436 = vadd.f32 %v608, %v3435
  %v3437 = vpop.f32.mrf.mxu0
  %v3438 = vadd.f32 %v608, %v3437
  %3439 = vmatmul.bf16.gmra.mxu0 %v1971
  %v3440 = vpop.f32.mrf.mxu0
  %v3441 = vadd.f32 %v608, %v3440
  %v3442 = vpop.f32.mrf.mxu0
  %v3443 = vadd.f32 %v608, %v3442
  %3444 = vmatmul.bf16.gmra.mxu0 %v1972
  %v3445 = vpop.f32.mrf.mxu0
  %v3446 = vadd.f32 %v608, %v3445
  %v3447 = vpop.f32.mrf.mxu0
  %v3448 = vadd.f32 %v608, %v3447
  %3449 = vmatmul.bf16.gmra.mxu0 %v1973
  %v3450 = vpop.f32.mrf.mxu0
  %v3451 = vadd.f32 %v608, %v3450
  %v3452 = vpop.f32.mrf.mxu0
  %v3453 = vadd.f32 %v608, %v3452
  %3454 = vmatmul.bf16.gmra.mxu0 %v1974
  %v3455 = vpop.f32.mrf.mxu0
  %v3456 = vadd.f32 %v608, %v3455
  %v3457 = vpop.f32.mrf.mxu0
  %v3458 = vadd.f32 %v608, %v3457
  %3459 = vmatmul.bf16.gmra.mxu0 %v1975
  %v3460 = vpop.f32.mrf.mxu0
  %v3461 = vadd.f32 %v608, %v3460
  %v3462 = vpop.f32.mrf.mxu0
  %v3463 = vadd.f32 %v608, %v3462
  %3464 = vmatmul.bf16.gmra.mxu0 %v1976
  %v3465 = vpop.f32.mrf.mxu0
  %v3466 = vadd.f32 %v608, %v3465
  %v3467 = vpop.f32.mrf.mxu0
  %v3468 = vadd.f32 %v608, %v3467
  %3469 = vmatmul.bf16.gmra.mxu0 %v1977
  %v3470 = vpop.f32.mrf.mxu0
  %v3471 = vadd.f32 %v608, %v3470
  %v3472 = vpop.f32.mrf.mxu0
  %v3473 = vadd.f32 %v608, %v3472
  %3474 = vmatmul.bf16.gmra.mxu0 %v1978
  %v3475 = vpop.f32.mrf.mxu0
  %v3476 = vadd.f32 %v608, %v3475
  %v3477 = vpop.f32.mrf.mxu0
  %v3478 = vadd.f32 %v608, %v3477
  %3479 = vmatmul.bf16.gmra.mxu0 %v1979
  %v3480 = vpop.f32.mrf.mxu0
  %v3481 = vadd.f32 %v608, %v3480
  %v3482 = vpop.f32.mrf.mxu0
  %v3483 = vadd.f32 %v608, %v3482
  %3484 = vmatmul.bf16.gmra.mxu0 %v1980
  %v3485 = vpop.f32.mrf.mxu0
  %v3486 = vadd.f32 %v608, %v3485
  %v3487 = vpop.f32.mrf.mxu0
  %v3488 = vadd.f32 %v608, %v3487
  %3489 = vmatmul.bf16.gmra.mxu0 %v1981
  %v3490 = vpop.f32.mrf.mxu0
  %v3491 = vadd.f32 %v608, %v3490
  %v3492 = vpop.f32.mrf.mxu0
  %v3493 = vadd.f32 %v608, %v3492
  %3494 = vmatmul.bf16.gmra.mxu0 %v1982
  %v3495 = vpop.f32.mrf.mxu0
  %v3496 = vadd.f32 %v608, %v3495
  %v3497 = vpop.f32.mrf.mxu0
  %v3498 = vadd.f32 %v608, %v3497
  %3499 = vmatmul.bf16.gmra.mxu0 %v1983
  %v3500 = vpop.f32.mrf.mxu0
  %v3501 = vadd.f32 %v608, %v3500
  %v3502 = vpop.f32.mrf.mxu0
  %v3503 = vadd.f32 %v608, %v3502
  %3504 = vmatmul.bf16.gmra.mxu0 %v1984
  %v3505 = vpop.f32.mrf.mxu0
  %v3506 = vadd.f32 %v608, %v3505
  %v3507 = vpop.f32.mrf.mxu0
  %v3508 = vadd.f32 %v608, %v3507
  %3509 = vmatmul.bf16.gmra.mxu0 %v1985
  %v3510 = vpop.f32.mrf.mxu0
  %v3511 = vadd.f32 %v608, %v3510
  %v3512 = vpop.f32.mrf.mxu0
  %v3513 = vadd.f32 %v608, %v3512
  %3514 = vmatmul.bf16.gmra.mxu0 %v1986
  %v3515 = vpop.f32.mrf.mxu0
  %v3516 = vadd.f32 %v608, %v3515
  %v3517 = vpop.f32.mrf.mxu0
  %v3518 = vadd.f32 %v608, %v3517
  %3519 = vmatmul.bf16.gmra.mxu0 %v1987
  %v3520 = vpop.f32.mrf.mxu0
  %v3521 = vadd.f32 %v608, %v3520
  %v3522 = vpop.f32.mrf.mxu0
  %v3523 = vadd.f32 %v608, %v3522
  %3524 = vmatmul.bf16.gmra.mxu0 %v1988
  %v3525 = vpop.f32.mrf.mxu0
  %v3526 = vadd.f32 %v608, %v3525
  %v3527 = vpop.f32.mrf.mxu0
  %v3528 = vadd.f32 %v608, %v3527
  %3529 = vmatmul.bf16.gmra.mxu0 %v1989
  %v3530 = vpop.f32.mrf.mxu0
  %v3531 = vadd.f32 %v608, %v3530
  %v3532 = vpop.f32.mrf.mxu0
  %v3533 = vadd.f32 %v608, %v3532
  %3534 = vmatmul.bf16.gmra.mxu0 %v1990
  %v3535 = vpop.f32.mrf.mxu0
  %v3536 = vadd.f32 %v608, %v3535
  %v3537 = vpop.f32.mrf.mxu0
  %v3538 = vadd.f32 %v608, %v3537
  %3539 = vmatmul.bf16.gmra.mxu0 %v1991
  %v3540 = vpop.f32.mrf.mxu0
  %v3541 = vadd.f32 %v608, %v3540
  %v3542 = vpop.f32.mrf.mxu0
  %v3543 = vadd.f32 %v608, %v3542
  %3544 = vmatmul.bf16.gmra.mxu0 %v1992
  %v3545 = vpop.f32.mrf.mxu0
  %v3546 = vadd.f32 %v608, %v3545
  %v3547 = vpop.f32.mrf.mxu0
  %v3548 = vadd.f32 %v608, %v3547
  %3549 = vmatmul.bf16.gmra.mxu0 %v1993
  %v3550 = vpop.f32.mrf.mxu0
  %v3551 = vadd.f32 %v608, %v3550
  %v3552 = vpop.f32.mrf.mxu0
  %v3553 = vadd.f32 %v608, %v3552
  %3554 = vmatmul.bf16.gmra.mxu0 %v1994
  %v3555 = vpop.f32.mrf.mxu0
  %v3556 = vadd.f32 %v608, %v3555
  %v3557 = vpop.f32.mrf.mxu0
  %v3558 = vadd.f32 %v608, %v3557
  %3559 = vmatmul.bf16.gmra.mxu0 %v1995
  %v3560 = vpop.f32.mrf.mxu0
  %v3561 = vadd.f32 %v608, %v3560
  %v3562 = vpop.f32.mrf.mxu0
  %v3563 = vadd.f32 %v608, %v3562
  %3564 = vmatmul.bf16.gmra.mxu0 %v1996
  %v3565 = vpop.f32.mrf.mxu0
  %v3566 = vadd.f32 %v608, %v3565
  %v3567 = vpop.f32.mrf.mxu0
  %v3568 = vadd.f32 %v608, %v3567
  %3569 = vmatmul.bf16.gmra.mxu0 %v1997
  %v3570 = vpop.f32.mrf.mxu0
  %v3571 = vadd.f32 %v608, %v3570
  %v3572 = vpop.f32.mrf.mxu0
  %v3573 = vadd.f32 %v608, %v3572
  %3574 = vmatmul.bf16.gmra.mxu0 %v1998
  %v3575 = vpop.f32.mrf.mxu0
  %v3576 = vadd.f32 %v608, %v3575
  %v3577 = vpop.f32.mrf.mxu0
  %v3578 = vadd.f32 %v608, %v3577
  %3579 = vmatmul.bf16.gmra.mxu0 %v1999
  %v3580 = vpop.f32.mrf.mxu0
  %v3581 = vadd.f32 %v608, %v3580
  %v3582 = vpop.f32.mrf.mxu0
  %v3583 = vadd.f32 %v608, %v3582
  %3584 = vmatmul.bf16.gmra.mxu0 %v2000
  %v3585 = vpop.f32.mrf.mxu0
  %v3586 = vadd.f32 %v608, %v3585
  %v3587 = vpop.f32.mrf.mxu0
  %v3588 = vadd.f32 %v608, %v3587
  %3589 = vmatmul.bf16.gmra.mxu0 %v2001
  %v3590 = vpop.f32.mrf.mxu0
  %v3591 = vadd.f32 %v608, %v3590
  %v3592 = vpop.f32.mrf.mxu0
  %v3593 = vadd.f32 %v608, %v3592
  %3594 = vmatmul.bf16.gmra.mxu0 %v2002
  %v3595 = vpop.f32.mrf.mxu0
  %v3596 = vadd.f32 %v608, %v3595
  %v3597 = vpop.f32.mrf.mxu0
  %v3598 = vadd.f32 %v608, %v3597
  %3599 = vmatmul.bf16.gmra.mxu0 %v2003
  %v3600 = vpop.f32.mrf.mxu0
  %v3601 = vadd.f32 %v608, %v3600
  %v3602 = vpop.f32.mrf.mxu0
  %v3603 = vadd.f32 %v608, %v3602
  %3604 = vmatmul.bf16.gmra.mxu0 %v2004
  %v3605 = vpop.f32.mrf.mxu0
  %v3606 = vadd.f32 %v608, %v3605
  %v3607 = vpop.f32.mrf.mxu0
  %v3608 = vadd.f32 %v608, %v3607
  %3609 = vmatmul.bf16.gmra.mxu0 %v2005
  %v3610 = vpop.f32.mrf.mxu0
  %v3611 = vadd.f32 %v608, %v3610
  %v3612 = vpop.f32.mrf.mxu0
  %v3613 = vadd.f32 %v608, %v3612
  %3614 = vmatmul.bf16.gmra.mxu0 %v2006
  %v3615 = vpop.f32.mrf.mxu0
  %v3616 = vadd.f32 %v608, %v3615
  %v3617 = vpop.f32.mrf.mxu0
  %v3618 = vadd.f32 %v608, %v3617
  %3619 = vmatmul.bf16.gmra.mxu0 %v2007
  %v3620 = vpop.f32.mrf.mxu0
  %v3621 = vadd.f32 %v608, %v3620
  %v3622 = vpop.f32.mrf.mxu0
  %v3623 = vadd.f32 %v608, %v3622
  %3624 = vmatmul.bf16.gmra.mxu0 %v2008
  %v3625 = vpop.f32.mrf.mxu0
  %v3626 = vadd.f32 %v608, %v3625
  %v3627 = vpop.f32.mrf.mxu0
  %v3628 = vadd.f32 %v608, %v3627
  %3629 = vmatmul.bf16.gmra.mxu0 %v2009
  %v3630 = vpop.f32.mrf.mxu0
  %v3631 = vadd.f32 %v608, %v3630
  %v3632 = vpop.f32.mrf.mxu0
  %v3633 = vadd.f32 %v608, %v3632
  %3634 = vmatmul.bf16.gmra.mxu0 %v2010
  %v3635 = vpop.f32.mrf.mxu0
  %v3636 = vadd.f32 %v608, %v3635
  %v3637 = vpop.f32.mrf.mxu0
  %v3638 = vadd.f32 %v608, %v3637
  %3639 = vmatmul.bf16.gmra.mxu0 %v2011
  %v3640 = vpop.f32.mrf.mxu0
  %v3641 = vadd.f32 %v608, %v3640
  %v3642 = vpop.f32.mrf.mxu0
  %v3643 = vadd.f32 %v608, %v3642
  %3644 = vmatmul.bf16.gmra.mxu0 %v2012
  %v3645 = vpop.f32.mrf.mxu0
  %v3646 = vadd.f32 %v608, %v3645
  %v3647 = vpop.f32.mrf.mxu0
  %v3648 = vadd.f32 %v608, %v3647
  %3649 = vmatmul.bf16.gmra.mxu0 %v2013
  %v3650 = vpop.f32.mrf.mxu0
  %v3651 = vadd.f32 %v608, %v3650
  %v3652 = vpop.f32.mrf.mxu0
  %v3653 = vadd.f32 %v608, %v3652
  %3654 = vmatmul.bf16.gmra.mxu0 %v2014
  %v3655 = vpop.f32.mrf.mxu0
  %v3656 = vadd.f32 %v608, %v3655
  %v3657 = vpop.f32.mrf.mxu0
  %v3658 = vadd.f32 %v608, %v3657
  %3659 = vmatmul.bf16.gmra.mxu0 %v2015
  %v3660 = vpop.f32.mrf.mxu0
  %v3661 = vadd.f32 %v608, %v3660
  %v3662 = vpop.f32.mrf.mxu0
  %v3663 = vadd.f32 %v608, %v3662
  %3664 = vmatmul.bf16.gmra.mxu0 %v2016
  %v3665 = vpop.f32.mrf.mxu0
  %v3666 = vadd.f32 %v608, %v3665
  %v3667 = vpop.f32.mrf.mxu0
  %v3668 = vadd.f32 %v608, %v3667
  %3669 = vmatmul.bf16.gmra.mxu0 %v2017
  %v3670 = vpop.f32.mrf.mxu0
  %v3671 = vadd.f32 %v608, %v3670
  %v3672 = vpop.f32.mrf.mxu0
  %v3673 = vadd.f32 %v608, %v3672
  %3674 = vmatmul.bf16.gmra.mxu0 %v2018
  %v3675 = vpop.f32.mrf.mxu0
  %v3676 = vadd.f32 %v608, %v3675
  %v3677 = vpop.f32.mrf.mxu0
  %v3678 = vadd.f32 %v608, %v3677
  %3679 = vmatmul.bf16.gmra.mxu0 %v2019
  %v3680 = vpop.f32.mrf.mxu0
  %v3681 = vadd.f32 %v608, %v3680
  %v3682 = vpop.f32.mrf.mxu0
  %v3683 = vadd.f32 %v608, %v3682
  %3684 = vmatmul.bf16.gmra.mxu0 %v2020
  %v3685 = vpop.f32.mrf.mxu0
  %v3686 = vadd.f32 %v608, %v3685
  %v3687 = vpop.f32.mrf.mxu0
  %v3688 = vadd.f32 %v608, %v3687
  %3689 = vmatmul.bf16.gmra.mxu0 %v2021
  %v3690 = vpop.f32.mrf.mxu0
  %v3691 = vadd.f32 %v608, %v3690
  %v3692 = vpop.f32.mrf.mxu0
  %v3693 = vadd.f32 %v608, %v3692
  %3694 = vmatmul.bf16.gmra.mxu0 %v2022
  %v3695 = vpop.f32.mrf.mxu0
  %v3696 = vadd.f32 %v608, %v3695
  %v3697 = vpop.f32.mrf.mxu0
  %v3698 = vadd.f32 %v608, %v3697
  %3699 = vmatmul.bf16.gmra.mxu0 %v2023
  %v3700 = vpop.f32.mrf.mxu0
  %v3701 = vadd.f32 %v608, %v3700
  %v3702 = vpop.f32.mrf.mxu0
  %v3703 = vadd.f32 %v608, %v3702
  %3704 = vmatmul.bf16.gmra.mxu0 %v2024
  %v3705 = vpop.f32.mrf.mxu0
  %v3706 = vadd.f32 %v608, %v3705
  %v3707 = vpop.f32.mrf.mxu0
  %v3708 = vadd.f32 %v608, %v3707
  %3709 = vmatmul.bf16.gmra.mxu0 %v2025
  %v3710 = vpop.f32.mrf.mxu0
  %v3711 = vadd.f32 %v608, %v3710
  %v3712 = vpop.f32.mrf.mxu0
  %v3713 = vadd.f32 %v608, %v3712
  %3714 = vmatmul.bf16.gmra.mxu0 %v2026
  %v3715 = vpop.f32.mrf.mxu0
  %v3716 = vadd.f32 %v608, %v3715
  %v3717 = vpop.f32.mrf.mxu0
  %v3718 = vadd.f32 %v608, %v3717
  %3719 = vmatmul.bf16.gmra.mxu0 %v2027
  %v3720 = vpop.f32.mrf.mxu0
  %v3721 = vadd.f32 %v608, %v3720
  %v3722 = vpop.f32.mrf.mxu0
  %v3723 = vadd.f32 %v608, %v3722
  %3724 = vmatmul.bf16.gmra.mxu0 %v2028
  %v3725 = vpop.f32.mrf.mxu0
  %v3726 = vadd.f32 %v608, %v3725
  %v3727 = vpop.f32.mrf.mxu0
  %v3728 = vadd.f32 %v608, %v3727
  %3729 = vmatmul.bf16.gmra.mxu0 %v2029
  %v3730 = vpop.f32.mrf.mxu0
  %v3731 = vadd.f32 %v608, %v3730
  %v3732 = vpop.f32.mrf.mxu0
  %v3733 = vadd.f32 %v608, %v3732
  %3734 = vmatmul.bf16.gmra.mxu0 %v2030
  %v3735 = vpop.f32.mrf.mxu0
  %v3736 = vadd.f32 %v608, %v3735
  %v3737 = vpop.f32.mrf.mxu0
  %v3738 = vadd.f32 %v608, %v3737
  %3739 = vmatmul.bf16.gmra.mxu0 %v2031
  %v3740 = vpop.f32.mrf.mxu0
  %v3741 = vadd.f32 %v608, %v3740
  %v3742 = vpop.f32.mrf.mxu0
  %v3743 = vadd.f32 %v608, %v3742
  %3744 = vmatmul.bf16.gmra.mxu0 %v2032
  %v3745 = vpop.f32.mrf.mxu0
  %v3746 = vadd.f32 %v608, %v3745
  %v3747 = vpop.f32.mrf.mxu0
  %v3748 = vadd.f32 %v608, %v3747
  %3749 = vmatmul.bf16.gmra.mxu0 %v2033
  %v3750 = vpop.f32.mrf.mxu0
  %v3751 = vadd.f32 %v608, %v3750
  %v3752 = vpop.f32.mrf.mxu0
  %v3753 = vadd.f32 %v608, %v3752
  %3754 = vmatmul.bf16.gmra.mxu0 %v2034
  %v3755 = vpop.f32.mrf.mxu0
  %v3756 = vadd.f32 %v608, %v3755
  %v3757 = vpop.f32.mrf.mxu0
  %v3758 = vadd.f32 %v608, %v3757
  %3759 = vmatmul.bf16.gmra.mxu0 %v2035
  %v3760 = vpop.f32.mrf.mxu0
  %v3761 = vadd.f32 %v608, %v3760
  %v3762 = vpop.f32.mrf.mxu0
  %v3763 = vadd.f32 %v608, %v3762
  %3764 = vmatmul.bf16.gmra.mxu0 %v2036
  %v3765 = vpop.f32.mrf.mxu0
  %v3766 = vadd.f32 %v608, %v3765
  %v3767 = vpop.f32.mrf.mxu0
  %v3768 = vadd.f32 %v608, %v3767
  %3769 = vmatmul.bf16.gmra.mxu0 %v2037
  %v3770 = vpop.f32.mrf.mxu0
  %v3771 = vadd.f32 %v608, %v3770
  %v3772 = vpop.f32.mrf.mxu0
  %v3773 = vadd.f32 %v608, %v3772
  %3774 = vmatmul.bf16.gmra.mxu0 %v2038
  %v3775 = vpop.f32.mrf.mxu0
  %v3776 = vadd.f32 %v608, %v3775
  %v3777 = vpop.f32.mrf.mxu0
  %v3778 = vadd.f32 %v608, %v3777
  %3779 = vmatmul.bf16.gmra.mxu0 %v2039
  %v3780 = vpop.f32.mrf.mxu0
  %v3781 = vadd.f32 %v608, %v3780
  %v3782 = vpop.f32.mrf.mxu0
  %v3783 = vadd.f32 %v608, %v3782
  %3784 = vmatmul.bf16.gmra.mxu0 %v2040
  %v3785 = vpop.f32.mrf.mxu0
  %v3786 = vadd.f32 %v608, %v3785
  %v3787 = vpop.f32.mrf.mxu0
  %v3788 = vadd.f32 %v608, %v3787
  %3789 = vmatmul.bf16.gmra.mxu0 %v2041
  %v3790 = vpop.f32.mrf.mxu0
  %v3791 = vadd.f32 %v608, %v3790
  %v3792 = vpop.f32.mrf.mxu0
  %v3793 = vadd.f32 %v608, %v3792
  %3794 = vmatmul.bf16.gmra.mxu0 %v2042
  %v3795 = vpop.f32.mrf.mxu0
  %v3796 = vadd.f32 %v608, %v3795
  %v3797 = vpop.f32.mrf.mxu0
  %v3798 = vadd.f32 %v608, %v3797
  %3799 = vmatmul.bf16.gmra.mxu0 %v2043
  %v3800 = vpop.f32.mrf.mxu0
  %v3801 = vadd.f32 %v608, %v3800
  %v3802 = vpop.f32.mrf.mxu0
  %v3803 = vadd.f32 %v608, %v3802
  %3804 = vmatmul.bf16.gmra.mxu0 %v2044
  %v3805 = vpop.f32.mrf.mxu0
  %v3806 = vadd.f32 %v608, %v3805
  %v3807 = vpop.f32.mrf.mxu0
  %v3808 = vadd.f32 %v608, %v3807
  %3809 = vmatmul.bf16.gmra.mxu0 %v2045
  %v3810 = vpop.f32.mrf.mxu0
  %v3811 = vadd.f32 %v608, %v3810
  %v3812 = vpop.f32.mrf.mxu0
  %v3813 = vadd.f32 %v608, %v3812
  %3814 = vmatmul.bf16.gmra.mxu0 %v2046
  %v3815 = vpop.f32.mrf.mxu0
  %v3816 = vadd.f32 %v608, %v3815
  %v3817 = vpop.f32.mrf.mxu0
  %v3818 = vadd.f32 %v608, %v3817
  %3819 = vmatmul.bf16.gmra.mxu0 %v2047
  %v3820 = vpop.f32.mrf.mxu0
  %v3821 = vadd.f32 %v608, %v3820
  %v3822 = vpop.f32.mrf.mxu0
  %v3823 = vadd.f32 %v608, %v3822
  %3824 = vmatmul.bf16.gmra.mxu0 %v2048
  %v3825 = vpop.f32.mrf.mxu0
  %v3826 = vadd.f32 %v608, %v3825
  %v3827 = vpop.f32.mrf.mxu0
  %v3828 = vadd.f32 %v608, %v3827
  %3829 = vmatmul.bf16.gmra.mxu0 %v2049
  %v3830 = vpop.f32.mrf.mxu0
  %v3831 = vadd.f32 %v608, %v3830
  %v3832 = vpop.f32.mrf.mxu0
  %v3833 = vadd.f32 %v608, %v3832
  %3834 = vdwg.mxu0
  %v3835 = vmax.f32 %v2396, 0.0
  %v3836 = vmax.f32 %v2398, 0.0
  %v3837 = vmax.f32 %v2401, 0.0
  %v3838 = vmax.f32 %v2403, 0.0
  %v3839 = vmax.f32 %v2406, 0.0
  %v3840 = vmax.f32 %v2408, 0.0
  %v3841 = vmax.f32 %v2411, 0.0
  %v3842 = vmax.f32 %v2413, 0.0
  %v3843 = vmax.f32 %v2416, 0.0
  %v3844 = vmax.f32 %v2418, 0.0
  %v3845 = vmax.f32 %v2421, 0.0
  %v3846 = vmax.f32 %v2423, 0.0
  %v3847 = vmax.f32 %v2426, 0.0
  %v3848 = vmax.f32 %v2428, 0.0
  %v3849 = vmax.f32 %v2431, 0.0
  %v3850 = vmax.f32 %v2433, 0.0
  %v3851 = vmax.f32 %v2436, 0.0
  %v3852 = vmax.f32 %v2438, 0.0
  %v3853 = vmax.f32 %v2441, 0.0
  %v3854 = vmax.f32 %v2443, 0.0
  %v3855 = vmax.f32 %v2446, 0.0
  %v3856 = vmax.f32 %v2448, 0.0
  %v3857 = vmax.f32 %v2451, 0.0
  %v3858 = vmax.f32 %v2453, 0.0
  %v3859 = vmax.f32 %v2456, 0.0
  %v3860 = vmax.f32 %v2458, 0.0
  %v3861 = vmax.f32 %v2461, 0.0
  %v3862 = vmax.f32 %v2463, 0.0
  %v3863 = vmax.f32 %v2466, 0.0
  %v3864 = vmax.f32 %v2468, 0.0
  %v3865 = vmax.f32 %v2471, 0.0
  %v3866 = vmax.f32 %v2473, 0.0
  %v3867 = vmax.f32 %v2476, 0.0
  %v3868 = vmax.f32 %v2478, 0.0
  %v3869 = vmax.f32 %v2481, 0.0
  %v3870 = vmax.f32 %v2483, 0.0
  %v3871 = vmax.f32 %v2486, 0.0
  %v3872 = vmax.f32 %v2488, 0.0
  %v3873 = vmax.f32 %v2491, 0.0
  %v3874 = vmax.f32 %v2493, 0.0
  %v3875 = vmax.f32 %v2496, 0.0
  %v3876 = vmax.f32 %v2498, 0.0
  %v3877 = vmax.f32 %v2501, 0.0
  %v3878 = vmax.f32 %v2503, 0.0
  %v3879 = vmax.f32 %v2506, 0.0
  %v3880 = vmax.f32 %v2508, 0.0
  %v3881 = vmax.f32 %v2511, 0.0
  %v3882 = vmax.f32 %v2513, 0.0
  %v3883 = vmax.f32 %v2516, 0.0
  %v3884 = vmax.f32 %v2518, 0.0
  %v3885 = vmax.f32 %v2521, 0.0
  %v3886 = vmax.f32 %v2523, 0.0
  %v3887 = vmax.f32 %v2526, 0.0
  %v3888 = vmax.f32 %v2528, 0.0
  %v3889 = vmax.f32 %v2531, 0.0
  %v3890 = vmax.f32 %v2533, 0.0
  %v3891 = vmax.f32 %v2536, 0.0
  %v3892 = vmax.f32 %v2538, 0.0
  %v3893 = vmax.f32 %v2541, 0.0
  %v3894 = vmax.f32 %v2543, 0.0
  %v3895 = vmax.f32 %v2546, 0.0
  %v3896 = vmax.f32 %v2548, 0.0
  %v3897 = vmax.f32 %v2551, 0.0
  %v3898 = vmax.f32 %v2553, 0.0
  %v3899 = vmax.f32 %v2556, 0.0
  %v3900 = vmax.f32 %v2558, 0.0
  %v3901 = vmax.f32 %v2561, 0.0
  %v3902 = vmax.f32 %v2563, 0.0
  %v3903 = vmax.f32 %v2566, 0.0
  %v3904 = vmax.f32 %v2568, 0.0
  %v3905 = vmax.f32 %v2571, 0.0
  %v3906 = vmax.f32 %v2573, 0.0
  %v3907 = vmax.f32 %v2576, 0.0
  %v3908 = vmax.f32 %v2578, 0.0
  %v3909 = vmax.f32 %v2581, 0.0
  %v3910 = vmax.f32 %v2583, 0.0
  %v3911 = vmax.f32 %v2586, 0.0
  %v3912 = vmax.f32 %v2588, 0.0
  %v3913 = vmax.f32 %v2591, 0.0
  %v3914 = vmax.f32 %v2593, 0.0
  %v3915 = vmax.f32 %v2596, 0.0
  %v3916 = vmax.f32 %v2598, 0.0
  %v3917 = vmax.f32 %v2601, 0.0
  %v3918 = vmax.f32 %v2603, 0.0
  %v3919 = vmax.f32 %v2606, 0.0
  %v3920 = vmax.f32 %v2608, 0.0
  %v3921 = vmax.f32 %v2611, 0.0
  %v3922 = vmax.f32 %v2613, 0.0
  %v3923 = vmax.f32 %v2616, 0.0
  %v3924 = vmax.f32 %v2618, 0.0
  %v3925 = vmax.f32 %v2621, 0.0
  %v3926 = vmax.f32 %v2623, 0.0
  %v3927 = vmax.f32 %v2626, 0.0
  %v3928 = vmax.f32 %v2628, 0.0
  %v3929 = vmax.f32 %v2631, 0.0
  %v3930 = vmax.f32 %v2633, 0.0
  %v3931 = vmax.f32 %v2636, 0.0
  %v3932 = vmax.f32 %v2638, 0.0
  %v3933 = vmax.f32 %v2641, 0.0
  %v3934 = vmax.f32 %v2643, 0.0
  %v3935 = vmax.f32 %v2646, 0.0
  %v3936 = vmax.f32 %v2648, 0.0
  %v3937 = vmax.f32 %v2651, 0.0
  %v3938 = vmax.f32 %v2653, 0.0
  %v3939 = vmax.f32 %v2656, 0.0
  %v3940 = vmax.f32 %v2658, 0.0
  %v3941 = vmax.f32 %v2661, 0.0
  %v3942 = vmax.f32 %v2663, 0.0
  %v3943 = vmax.f32 %v2666, 0.0
  %v3944 = vmax.f32 %v2668, 0.0
  %v3945 = vmax.f32 %v2671, 0.0
  %v3946 = vmax.f32 %v2673, 0.0
  %v3947 = vmax.f32 %v2676, 0.0
  %v3948 = vmax.f32 %v2678, 0.0
  %v3949 = vmax.f32 %v2681, 0.0
  %v3950 = vmax.f32 %v2683, 0.0
  %v3951 = vmax.f32 %v2686, 0.0
  %v3952 = vmax.f32 %v2688, 0.0
  %v3953 = vmax.f32 %v2691, 0.0
  %v3954 = vmax.f32 %v2693, 0.0
  %v3955 = vmax.f32 %v2696, 0.0
  %v3956 = vmax.f32 %v2698, 0.0
  %v3957 = vmax.f32 %v2701, 0.0
  %v3958 = vmax.f32 %v2703, 0.0
  %v3959 = vmax.f32 %v2706, 0.0
  %v3960 = vmax.f32 %v2708, 0.0
  %v3961 = vmax.f32 %v2711, 0.0
  %v3962 = vmax.f32 %v2713, 0.0
  %v3963 = vmax.f32 %v2716, 0.0
  %v3964 = vmax.f32 %v2718, 0.0
  %v3965 = vmax.f32 %v2721, 0.0
  %v3966 = vmax.f32 %v2723, 0.0
  %v3967 = vmax.f32 %v2726, 0.0
  %v3968 = vmax.f32 %v2728, 0.0
  %v3969 = vmax.f32 %v2731, 0.0
  %v3970 = vmax.f32 %v2733, 0.0
  %v3971 = vmax.f32 %v2736, 0.0
  %v3972 = vmax.f32 %v2738, 0.0
  %v3973 = vmax.f32 %v2741, 0.0
  %v3974 = vmax.f32 %v2743, 0.0
  %v3975 = vmax.f32 %v2746, 0.0
  %v3976 = vmax.f32 %v2748, 0.0
  %v3977 = vmax.f32 %v2751, 0.0
  %v3978 = vmax.f32 %v2753, 0.0
  %v3979 = vmax.f32 %v2756, 0.0
  %v3980 = vmax.f32 %v2758, 0.0
  %v3981 = vmax.f32 %v2761, 0.0
  %v3982 = vmax.f32 %v2763, 0.0
  %v3983 = vmax.f32 %v2766, 0.0
  %v3984 = vmax.f32 %v2768, 0.0
  %v3985 = vmax.f32 %v2771, 0.0
  %v3986 = vmax.f32 %v2773, 0.0
  %v3987 = vmax.f32 %v2776, 0.0
  %v3988 = vmax.f32 %v2778, 0.0
  %v3989 = vmax.f32 %v2781, 0.0
  %v3990 = vmax.f32 %v2783, 0.0
  %v3991 = vmax.f32 %v2786, 0.0
  %v3992 = vmax.f32 %v2788, 0.0
  %v3993 = vmax.f32 %v2791, 0.0
  %v3994 = vmax.f32 %v2793, 0.0
  %v3995 = vmax.f32 %v2796, 0.0
  %v3996 = vmax.f32 %v2798, 0.0
  %v3997 = vmax.f32 %v2801, 0.0
  %v3998 = vmax.f32 %v2803, 0.0
  %v3999 = vmax.f32 %v2806, 0.0
  %v4000 = vmax.f32 %v2808, 0.0
  %v4001 = vmax.f32 %v2811, 0.0
  %v4002 = vmax.f32 %v2813, 0.0
  %v4003 = vmax.f32 %v2816, 0.0
  %v4004 = vmax.f32 %v2818, 0.0
  %v4005 = vmax.f32 %v2821, 0.0
  %v4006 = vmax.f32 %v2823, 0.0
  %v4007 = vmax.f32 %v2826, 0.0
  %v4008 = vmax.f32 %v2828, 0.0
  %v4009 = vmax.f32 %v2831, 0.0
  %v4010 = vmax.f32 %v2833, 0.0
  %v4011 = vmax.f32 %v2836, 0.0
  %v4012 = vmax.f32 %v2838, 0.0
  %v4013 = vmax.f32 %v2841, 0.0
  %v4014 = vmax.f32 %v2843, 0.0
  %v4015 = vmax.f32 %v2846, 0.0
  %v4016 = vmax.f32 %v2848, 0.0
  %v4017 = vmax.f32 %v2851, 0.0
  %v4018 = vmax.f32 %v2853, 0.0
  %v4019 = vmax.f32 %v2856, 0.0
  %v4020 = vmax.f32 %v2858, 0.0
  %v4021 = vmax.f32 %v2861, 0.0
  %v4022 = vmax.f32 %v2863, 0.0
  %v4023 = vmax.f32 %v2866, 0.0
  %v4024 = vmax.f32 %v2868, 0.0
  %v4025 = vmax.f32 %v2871, 0.0
  %v4026 = vmax.f32 %v2873, 0.0
  %v4027 = vmax.f32 %v2876, 0.0
  %v4028 = vmax.f32 %v2878, 0.0
  %v4029 = vmax.f32 %v2881, 0.0
  %v4030 = vmax.f32 %v2883, 0.0
  %v4031 = vmax.f32 %v2886, 0.0
  %v4032 = vmax.f32 %v2888, 0.0
  %v4033 = vmax.f32 %v2891, 0.0
  %v4034 = vmax.f32 %v2893, 0.0
  %v4035 = vmax.f32 %v2896, 0.0
  %v4036 = vmax.f32 %v2898, 0.0
  %v4037 = vmax.f32 %v2901, 0.0
  %v4038 = vmax.f32 %v2903, 0.0
  %v4039 = vmax.f32 %v2906, 0.0
  %v4040 = vmax.f32 %v2908, 0.0
  %v4041 = vmax.f32 %v2911, 0.0
  %v4042 = vmax.f32 %v2913, 0.0
  %v4043 = vmax.f32 %v2916, 0.0
  %v4044 = vmax.f32 %v2918, 0.0
  %v4045 = vmax.f32 %v2921, 0.0
  %v4046 = vmax.f32 %v2923, 0.0
  %v4047 = vmax.f32 %v2926, 0.0
  %v4048 = vmax.f32 %v2928, 0.0
  %v4049 = vmax.f32 %v2931, 0.0
  %v4050 = vmax.f32 %v2933, 0.0
  %v4051 = vmax.f32 %v2936, 0.0
  %v4052 = vmax.f32 %v2938, 0.0
  %v4053 = vmax.f32 %v2941, 0.0
  %v4054 = vmax.f32 %v2943, 0.0
  %v4055 = vmax.f32 %v2946, 0.0
  %v4056 = vmax.f32 %v2948, 0.0
  %v4057 = vmax.f32 %v2951, 0.0
  %v4058 = vmax.f32 %v2953, 0.0
  %v4059 = vmax.f32 %v2956, 0.0
  %v4060 = vmax.f32 %v2958, 0.0
  %v4061 = vmax.f32 %v2961, 0.0
  %v4062 = vmax.f32 %v2963, 0.0
  %v4063 = vmax.f32 %v2966, 0.0
  %v4064 = vmax.f32 %v2968, 0.0
  %v4065 = vmax.f32 %v2971, 0.0
  %v4066 = vmax.f32 %v2973, 0.0
  %v4067 = vmax.f32 %v2976, 0.0
  %v4068 = vmax.f32 %v2978, 0.0
  %v4069 = vmax.f32 %v2981, 0.0
  %v4070 = vmax.f32 %v2983, 0.0
  %v4071 = vmax.f32 %v2986, 0.0
  %v4072 = vmax.f32 %v2988, 0.0
  %v4073 = vmax.f32 %v2991, 0.0
  %v4074 = vmax.f32 %v2993, 0.0
  %v4075 = vmax.f32 %v2996, 0.0
  %v4076 = vmax.f32 %v2998, 0.0
  %v4077 = vmax.f32 %v3001, 0.0
  %v4078 = vmax.f32 %v3003, 0.0
  %v4079 = vmax.f32 %v3006, 0.0
  %v4080 = vmax.f32 %v3008, 0.0
  %v4081 = vmax.f32 %v3011, 0.0
  %v4082 = vmax.f32 %v3013, 0.0
  %v4083 = vmax.f32 %v3016, 0.0
  %v4084 = vmax.f32 %v3018, 0.0
  %v4085 = vmax.f32 %v3021, 0.0
  %v4086 = vmax.f32 %v3023, 0.0
  %v4087 = vmax.f32 %v3026, 0.0
  %v4088 = vmax.f32 %v3028, 0.0
  %v4089 = vmax.f32 %v3031, 0.0
  %v4090 = vmax.f32 %v3033, 0.0
  %v4091 = vmax.f32 %v3036, 0.0
  %v4092 = vmax.f32 %v3038, 0.0
  %v4093 = vmax.f32 %v3041, 0.0
  %v4094 = vmax.f32 %v3043, 0.0
  %v4095 = vmax.f32 %v3046, 0.0
  %v4096 = vmax.f32 %v3048, 0.0
  %v4097 = vmax.f32 %v3051, 0.0
  %v4098 = vmax.f32 %v3053, 0.0
  %v4099 = vmax.f32 %v3056, 0.0
  %v4100 = vmax.f32 %v3058, 0.0
  %v4101 = vmax.f32 %v3061, 0.0
  %v4102 = vmax.f32 %v3063, 0.0
  %v4103 = vmax.f32 %v3066, 0.0
  %v4104 = vmax.f32 %v3068, 0.0
  %v4105 = vmax.f32 %v3071, 0.0
  %v4106 = vmax.f32 %v3073, 0.0
  %v4107 = vmax.f32 %v3076, 0.0
  %v4108 = vmax.f32 %v3078, 0.0
  %v4109 = vmax.f32 %v3081, 0.0
  %v4110 = vmax.f32 %v3083, 0.0
  %v4111 = vmax.f32 %v3086, 0.0
  %v4112 = vmax.f32 %v3088, 0.0
  %v4113 = vmax.f32 %v3091, 0.0
  %v4114 = vmax.f32 %v3093, 0.0
  %v4115 = vmax.f32 %v3096, 0.0
  %v4116 = vmax.f32 %v3098, 0.0
  %v4117 = vmax.f32 %v3101, 0.0
  %v4118 = vmax.f32 %v3103, 0.0
  %v4119 = vmax.f32 %v3106, 0.0
  %v4120 = vmax.f32 %v3108, 0.0
  %v4121 = vmax.f32 %v3111, 0.0
  %v4122 = vmax.f32 %v3113, 0.0
  %v4123 = vmax.f32 %v3116, 0.0
  %v4124 = vmax.f32 %v3118, 0.0
  %v4125 = vmax.f32 %v3121, 0.0
  %v4126 = vmax.f32 %v3123, 0.0
  %v4127 = vmax.f32 %v3126, 0.0
  %v4128 = vmax.f32 %v3128, 0.0
  %v4129 = vmax.f32 %v3131, 0.0
  %v4130 = vmax.f32 %v3133, 0.0
  %v4131 = vmax.f32 %v3136, 0.0
  %v4132 = vmax.f32 %v3138, 0.0
  %v4133 = vmax.f32 %v3141, 0.0
  %v4134 = vmax.f32 %v3143, 0.0
  %v4135 = vmax.f32 %v3146, 0.0
  %v4136 = vmax.f32 %v3148, 0.0
  %v4137 = vmax.f32 %v3151, 0.0
  %v4138 = vmax.f32 %v3153, 0.0
  %v4139 = vmax.f32 %v3156, 0.0
  %v4140 = vmax.f32 %v3158, 0.0
  %v4141 = vmax.f32 %v3161, 0.0
  %v4142 = vmax.f32 %v3163, 0.0
  %v4143 = vmax.f32 %v3166, 0.0
  %v4144 = vmax.f32 %v3168, 0.0
  %v4145 = vmax.f32 %v3171, 0.0
  %v4146 = vmax.f32 %v3173, 0.0
  %v4147 = vmax.f32 %v3176, 0.0
  %v4148 = vmax.f32 %v3178, 0.0
  %v4149 = vmax.f32 %v3181, 0.0
  %v4150 = vmax.f32 %v3183, 0.0
  %v4151 = vmax.f32 %v3186, 0.0
  %v4152 = vmax.f32 %v3188, 0.0
  %v4153 = vmax.f32 %v3191, 0.0
  %v4154 = vmax.f32 %v3193, 0.0
  %v4155 = vmax.f32 %v3196, 0.0
  %v4156 = vmax.f32 %v3198, 0.0
  %v4157 = vmax.f32 %v3201, 0.0
  %v4158 = vmax.f32 %v3203, 0.0
  %v4159 = vmax.f32 %v3206, 0.0
  %v4160 = vmax.f32 %v3208, 0.0
  %v4161 = vmax.f32 %v3211, 0.0
  %v4162 = vmax.f32 %v3213, 0.0
  %v4163 = vmax.f32 %v3216, 0.0
  %v4164 = vmax.f32 %v3218, 0.0
  %v4165 = vmax.f32 %v3221, 0.0
  %v4166 = vmax.f32 %v3223, 0.0
  %v4167 = vmax.f32 %v3226, 0.0
  %v4168 = vmax.f32 %v3228, 0.0
  %v4169 = vmax.f32 %v3231, 0.0
  %v4170 = vmax.f32 %v3233, 0.0
  %v4171 = vmax.f32 %v3236, 0.0
  %v4172 = vmax.f32 %v3238, 0.0
  %v4173 = vmax.f32 %v3241, 0.0
  %v4174 = vmax.f32 %v3243, 0.0
  %v4175 = vmax.f32 %v3246, 0.0
  %v4176 = vmax.f32 %v3248, 0.0
  %v4177 = vmax.f32 %v3251, 0.0
  %v4178 = vmax.f32 %v3253, 0.0
  %v4179 = vmax.f32 %v3256, 0.0
  %v4180 = vmax.f32 %v3258, 0.0
  %v4181 = vmax.f32 %v3261, 0.0
  %v4182 = vmax.f32 %v3263, 0.0
  %v4183 = vmax.f32 %v3266, 0.0
  %v4184 = vmax.f32 %v3268, 0.0
  %v4185 = vmax.f32 %v3271, 0.0
  %v4186 = vmax.f32 %v3273, 0.0
  %v4187 = vmax.f32 %v3276, 0.0
  %v4188 = vmax.f32 %v3278, 0.0
  %v4189 = vmax.f32 %v3281, 0.0
  %v4190 = vmax.f32 %v3283, 0.0
  %v4191 = vmax.f32 %v3286, 0.0
  %v4192 = vmax.f32 %v3288, 0.0
  %v4193 = vmax.f32 %v3291, 0.0
  %v4194 = vmax.f32 %v3293, 0.0
  %v4195 = vmax.f32 %v3296, 0.0
  %v4196 = vmax.f32 %v3298, 0.0
  %v4197 = vmax.f32 %v3301, 0.0
  %v4198 = vmax.f32 %v3303, 0.0
  %v4199 = vmax.f32 %v3306, 0.0
  %v4200 = vmax.f32 %v3308, 0.0
  %v4201 = vmax.f32 %v3311, 0.0
  %v4202 = vmax.f32 %v3313, 0.0
  %v4203 = vmax.f32 %v3316, 0.0
  %v4204 = vmax.f32 %v3318, 0.0
  %v4205 = vmax.f32 %v3321, 0.0
  %v4206 = vmax.f32 %v3323, 0.0
  %v4207 = vmax.f32 %v3326, 0.0
  %v4208 = vmax.f32 %v3328, 0.0
  %v4209 = vmax.f32 %v3331, 0.0
  %v4210 = vmax.f32 %v3333, 0.0
  %v4211 = vmax.f32 %v3336, 0.0
  %v4212 = vmax.f32 %v3338, 0.0
  %v4213 = vmax.f32 %v3341, 0.0
  %v4214 = vmax.f32 %v3343, 0.0
  %v4215 = vmax.f32 %v3346, 0.0
  %v4216 = vmax.f32 %v3348, 0.0
  %v4217 = vmax.f32 %v3351, 0.0
  %v4218 = vmax.f32 %v3353, 0.0
  %v4219 = vmax.f32 %v3356, 0.0
  %v4220 = vmax.f32 %v3358, 0.0
  %v4221 = vmax.f32 %v3361, 0.0
  %v4222 = vmax.f32 %v3363, 0.0
  %v4223 = vmax.f32 %v3366, 0.0
  %v4224 = vmax.f32 %v3368, 0.0
  %v4225 = vmax.f32 %v3371, 0.0
  %v4226 = vmax.f32 %v3373, 0.0
  %v4227 = vmax.f32 %v3376, 0.0
  %v4228 = vmax.f32 %v3378, 0.0
  %v4229 = vmax.f32 %v3381, 0.0
  %v4230 = vmax.f32 %v3383, 0.0
  %v4231 = vmax.f32 %v3386, 0.0
  %v4232 = vmax.f32 %v3388, 0.0
  %v4233 = vmax.f32 %v3391, 0.0
  %v4234 = vmax.f32 %v3393, 0.0
  %v4235 = vmax.f32 %v3396, 0.0
  %v4236 = vmax.f32 %v3398, 0.0
  %v4237 = vmax.f32 %v3401, 0.0
  %v4238 = vmax.f32 %v3403, 0.0
  %v4239 = vmax.f32 %v3406, 0.0
  %v4240 = vmax.f32 %v3408, 0.0
  %v4241 = vmax.f32 %v3411, 0.0
  %v4242 = vmax.f32 %v3413, 0.0
  %v4243 = vmax.f32 %v3416, 0.0
  %v4244 = vmax.f32 %v3418, 0.0
  %v4245 = vmax.f32 %v3421, 0.0
  %v4246 = vmax.f32 %v3423, 0.0
  %v4247 = vmax.f32 %v3426, 0.0
  %v4248 = vmax.f32 %v3428, 0.0
  %v4249 = vmax.f32 %v3431, 0.0
  %v4250 = vmax.f32 %v3433, 0.0
  %v4251 = vmax.f32 %v3436, 0.0
  %v4252 = vmax.f32 %v3438, 0.0
  %v4253 = vmax.f32 %v3441, 0.0
  %v4254 = vmax.f32 %v3443, 0.0
  %v4255 = vmax.f32 %v3446, 0.0
  %v4256 = vmax.f32 %v3448, 0.0
  %v4257 = vmax.f32 %v3451, 0.0
  %v4258 = vmax.f32 %v3453, 0.0
  %v4259 = vmax.f32 %v3456, 0.0
  %v4260 = vmax.f32 %v3458, 0.0
  %v4261 = vmax.f32 %v3461, 0.0
  %v4262 = vmax.f32 %v3463, 0.0
  %v4263 = vmax.f32 %v3466, 0.0
  %v4264 = vmax.f32 %v3468, 0.0
  %v4265 = vmax.f32 %v3471, 0.0
  %v4266 = vmax.f32 %v3473, 0.0
  %v4267 = vmax.f32 %v3476, 0.0
  %v4268 = vmax.f32 %v3478, 0.0
  %v4269 = vmax.f32 %v3481, 0.0
  %v4270 = vmax.f32 %v3483, 0.0
  %v4271 = vmax.f32 %v3486, 0.0
  %v4272 = vmax.f32 %v3488, 0.0
  %v4273 = vmax.f32 %v3491, 0.0
  %v4274 = vmax.f32 %v3493, 0.0
  %v4275 = vmax.f32 %v3496, 0.0
  %v4276 = vmax.f32 %v3498, 0.0
  %v4277 = vmax.f32 %v3501, 0.0
  %v4278 = vmax.f32 %v3503, 0.0
  %v4279 = vmax.f32 %v3506, 0.0
  %v4280 = vmax.f32 %v3508, 0.0
  %v4281 = vmax.f32 %v3511, 0.0
  %v4282 = vmax.f32 %v3513, 0.0
  %v4283 = vmax.f32 %v3516, 0.0
  %v4284 = vmax.f32 %v3518, 0.0
  %v4285 = vmax.f32 %v3521, 0.0
  %v4286 = vmax.f32 %v3523, 0.0
  %v4287 = vmax.f32 %v3526, 0.0
  %v4288 = vmax.f32 %v3528, 0.0
  %v4289 = vmax.f32 %v3531, 0.0
  %v4290 = vmax.f32 %v3533, 0.0
  %v4291 = vmax.f32 %v3536, 0.0
  %v4292 = vmax.f32 %v3538, 0.0
  %v4293 = vmax.f32 %v3541, 0.0
  %v4294 = vmax.f32 %v3543, 0.0
  %v4295 = vmax.f32 %v3546, 0.0
  %v4296 = vmax.f32 %v3548, 0.0
  %v4297 = vmax.f32 %v3551, 0.0
  %v4298 = vmax.f32 %v3553, 0.0
  %v4299 = vmax.f32 %v3556, 0.0
  %v4300 = vmax.f32 %v3558, 0.0
  %v4301 = vmax.f32 %v3561, 0.0
  %v4302 = vmax.f32 %v3563, 0.0
  %v4303 = vmax.f32 %v3566, 0.0
  %v4304 = vmax.f32 %v3568, 0.0
  %v4305 = vmax.f32 %v3571, 0.0
  %v4306 = vmax.f32 %v3573, 0.0
  %v4307 = vmax.f32 %v3576, 0.0
  %v4308 = vmax.f32 %v3578, 0.0
  %v4309 = vmax.f32 %v3581, 0.0
  %v4310 = vmax.f32 %v3583, 0.0
  %v4311 = vmax.f32 %v3586, 0.0
  %v4312 = vmax.f32 %v3588, 0.0
  %v4313 = vmax.f32 %v3591, 0.0
  %v4314 = vmax.f32 %v3593, 0.0
  %v4315 = vmax.f32 %v3596, 0.0
  %v4316 = vmax.f32 %v3598, 0.0
  %v4317 = vmax.f32 %v3601, 0.0
  %v4318 = vmax.f32 %v3603, 0.0
  %v4319 = vmax.f32 %v3606, 0.0
  %v4320 = vmax.f32 %v3608, 0.0
  %v4321 = vmax.f32 %v3611, 0.0
  %v4322 = vmax.f32 %v3613, 0.0
  %v4323 = vmax.f32 %v3616, 0.0
  %v4324 = vmax.f32 %v3618, 0.0
  %v4325 = vmax.f32 %v3621, 0.0
  %v4326 = vmax.f32 %v3623, 0.0
  %v4327 = vmax.f32 %v3626, 0.0
  %v4328 = vmax.f32 %v3628, 0.0
  %v4329 = vmax.f32 %v3631, 0.0
  %v4330 = vmax.f32 %v3633, 0.0
  %v4331 = vmax.f32 %v3636, 0.0
  %v4332 = vmax.f32 %v3638, 0.0
  %v4333 = vmax.f32 %v3641, 0.0
  %v4334 = vmax.f32 %v3643, 0.0
  %v4335 = vmax.f32 %v3646, 0.0
  %v4336 = vmax.f32 %v3648, 0.0
  %v4337 = vmax.f32 %v3651, 0.0
  %v4338 = vmax.f32 %v3653, 0.0
  %v4339 = vmax.f32 %v3656, 0.0
  %v4340 = vmax.f32 %v3658, 0.0
  %v4341 = vmax.f32 %v3661, 0.0
  %v4342 = vmax.f32 %v3663, 0.0
  %v4343 = vmax.f32 %v3666, 0.0
  %v4344 = vmax.f32 %v3668, 0.0
  %v4345 = vmax.f32 %v3671, 0.0
  %v4346 = vmax.f32 %v3673, 0.0
  %v4347 = vmax.f32 %v3676, 0.0
  %v4348 = vmax.f32 %v3678, 0.0
  %v4349 = vmax.f32 %v3681, 0.0
  %v4350 = vmax.f32 %v3683, 0.0
  %v4351 = vmax.f32 %v3686, 0.0
  %v4352 = vmax.f32 %v3688, 0.0
  %v4353 = vmax.f32 %v3691, 0.0
  %v4354 = vmax.f32 %v3693, 0.0
  %v4355 = vmax.f32 %v3696, 0.0
  %v4356 = vmax.f32 %v3698, 0.0
  %v4357 = vmax.f32 %v3701, 0.0
  %v4358 = vmax.f32 %v3703, 0.0
  %v4359 = vmax.f32 %v3706, 0.0
  %v4360 = vmax.f32 %v3708, 0.0
  %v4361 = vmax.f32 %v3711, 0.0
  %v4362 = vmax.f32 %v3713, 0.0
  %v4363 = vmax.f32 %v3716, 0.0
  %v4364 = vmax.f32 %v3718, 0.0
  %v4365 = vmax.f32 %v3721, 0.0
  %v4366 = vmax.f32 %v3723, 0.0
  %v4367 = vmax.f32 %v3726, 0.0
  %v4368 = vmax.f32 %v3728, 0.0
  %v4369 = vmax.f32 %v3731, 0.0
  %v4370 = vmax.f32 %v3733, 0.0
  %v4371 = vmax.f32 %v3736, 0.0
  %v4372 = vmax.f32 %v3738, 0.0
  %v4373 = vmax.f32 %v3741, 0.0
  %v4374 = vmax.f32 %v3743, 0.0
  %v4375 = vmax.f32 %v3746, 0.0
  %v4376 = vmax.f32 %v3748, 0.0
  %v4377 = vmax.f32 %v3751, 0.0
  %v4378 = vmax.f32 %v3753, 0.0
  %v4379 = vmax.f32 %v3756, 0.0
  %v4380 = vmax.f32 %v3758, 0.0
  %v4381 = vmax.f32 %v3761, 0.0
  %v4382 = vmax.f32 %v3763, 0.0
  %v4383 = vmax.f32 %v3766, 0.0
  %v4384 = vmax.f32 %v3768, 0.0
  %v4385 = vmax.f32 %v3771, 0.0
  %v4386 = vmax.f32 %v3773, 0.0
  %v4387 = vmax.f32 %v3776, 0.0
  %v4388 = vmax.f32 %v3778, 0.0
  %v4389 = vmax.f32 %v3781, 0.0
  %v4390 = vmax.f32 %v3783, 0.0
  %v4391 = vmax.f32 %v3786, 0.0
  %v4392 = vmax.f32 %v3788, 0.0
  %v4393 = vmax.f32 %v3791, 0.0
  %v4394 = vmax.f32 %v3793, 0.0
  %v4395 = vmax.f32 %v3796, 0.0
  %v4396 = vmax.f32 %v3798, 0.0
  %v4397 = vmax.f32 %v3801, 0.0
  %v4398 = vmax.f32 %v3803, 0.0
  %v4399 = vmax.f32 %v3806, 0.0
  %v4400 = vmax.f32 %v3808, 0.0
  %v4401 = vmax.f32 %v3811, 0.0
  %v4402 = vmax.f32 %v3813, 0.0
  %v4403 = vmax.f32 %v3816, 0.0
  %v4404 = vmax.f32 %v3818, 0.0
  %v4405 = vmax.f32 %v3821, 0.0
  %v4406 = vmax.f32 %v3823, 0.0
  %v4407 = vmax.f32 %v3826, 0.0
  %v4408 = vmax.f32 %v3828, 0.0
  %v4409 = vmax.f32 %v3831, 0.0
  %v4410 = vmax.f32 %v3833, 0.0
  %v4411 = vpack.c.bf16 %v3835, %v3835
  %v4412 = vpack.c.bf16 %v3836, %v3836
  %v4413 = vpack.c.bf16 %v3837, %v3837
  %v4414 = vpack.c.bf16 %v3838, %v3838
  %v4415 = vpack.c.bf16 %v3839, %v3839
  %v4416 = vpack.c.bf16 %v3840, %v3840
  %v4417 = vpack.c.bf16 %v3841, %v3841
  %v4418 = vpack.c.bf16 %v3842, %v3842
  %v4419 = vpack.c.bf16 %v3843, %v3843
  %v4420 = vpack.c.bf16 %v3844, %v3844
  %v4421 = vpack.c.bf16 %v3845, %v3845
  %v4422 = vpack.c.bf16 %v3846, %v3846
  %v4423 = vpack.c.bf16 %v3847, %v3847
  %v4424 = vpack.c.bf16 %v3848, %v3848
  %v4425 = vpack.c.bf16 %v3849, %v3849
  %v4426 = vpack.c.bf16 %v3850, %v3850
  %v4427 = vpack.c.bf16 %v3851, %v3851
  %v4428 = vpack.c.bf16 %v3852, %v3852
  %v4429 = vpack.c.bf16 %v3853, %v3853
  %v4430 = vpack.c.bf16 %v3854, %v3854
  %v4431 = vpack.c.bf16 %v3855, %v3855
  %v4432 = vpack.c.bf16 %v3856, %v3856
  %v4433 = vpack.c.bf16 %v3857, %v3857
  %v4434 = vpack.c.bf16 %v3858, %v3858
  %v4435 = vpack.c.bf16 %v3859, %v3859
  %v4436 = vpack.c.bf16 %v3860, %v3860
  %v4437 = vpack.c.bf16 %v3861, %v3861
  %v4438 = vpack.c.bf16 %v3862, %v3862
  %v4439 = vpack.c.bf16 %v3863, %v3863
  %v4440 = vpack.c.bf16 %v3864, %v3864
  %v4441 = vpack.c.bf16 %v3865, %v3865
  %v4442 = vpack.c.bf16 %v3866, %v3866
  %v4443 = vpack.c.bf16 %v3867, %v3867
  %v4444 = vpack.c.bf16 %v3868, %v3868
  %v4445 = vpack.c.bf16 %v3869, %v3869
  %v4446 = vpack.c.bf16 %v3870, %v3870
  %v4447 = vpack.c.bf16 %v3871, %v3871
  %v4448 = vpack.c.bf16 %v3872, %v3872
  %v4449 = vpack.c.bf16 %v3873, %v3873
  %v4450 = vpack.c.bf16 %v3874, %v3874
  %v4451 = vpack.c.bf16 %v3875, %v3875
  %v4452 = vpack.c.bf16 %v3876, %v3876
  %v4453 = vpack.c.bf16 %v3877, %v3877
  %v4454 = vpack.c.bf16 %v3878, %v3878
  %v4455 = vpack.c.bf16 %v3879, %v3879
  %v4456 = vpack.c.bf16 %v3880, %v3880
  %v4457 = vpack.c.bf16 %v3881, %v3881
  %v4458 = vpack.c.bf16 %v3882, %v3882
  %v4459 = vpack.c.bf16 %v3883, %v3883
  %v4460 = vpack.c.bf16 %v3884, %v3884
  %v4461 = vpack.c.bf16 %v3885, %v3885
  %v4462 = vpack.c.bf16 %v3886, %v3886
  %v4463 = vpack.c.bf16 %v3887, %v3887
  %v4464 = vpack.c.bf16 %v3888, %v3888
  %v4465 = vpack.c.bf16 %v3889, %v3889
  %v4466 = vpack.c.bf16 %v3890, %v3890
  %v4467 = vpack.c.bf16 %v3891, %v3891
  %v4468 = vpack.c.bf16 %v3892, %v3892
  %v4469 = vpack.c.bf16 %v3893, %v3893
  %v4470 = vpack.c.bf16 %v3894, %v3894
  %v4471 = vpack.c.bf16 %v3895, %v3895
  %v4472 = vpack.c.bf16 %v3896, %v3896
  %v4473 = vpack.c.bf16 %v3897, %v3897
  %v4474 = vpack.c.bf16 %v3898, %v3898
  %v4475 = vpack.c.bf16 %v3899, %v3899
  %v4476 = vpack.c.bf16 %v3900, %v3900
  %v4477 = vpack.c.bf16 %v3901, %v3901
  %v4478 = vpack.c.bf16 %v3902, %v3902
  %v4479 = vpack.c.bf16 %v3903, %v3903
  %v4480 = vpack.c.bf16 %v3904, %v3904
  %v4481 = vpack.c.bf16 %v3905, %v3905
  %v4482 = vpack.c.bf16 %v3906, %v3906
  %v4483 = vpack.c.bf16 %v3907, %v3907
  %v4484 = vpack.c.bf16 %v3908, %v3908
  %v4485 = vpack.c.bf16 %v3909, %v3909
  %v4486 = vpack.c.bf16 %v3910, %v3910
  %v4487 = vpack.c.bf16 %v3911, %v3911
  %v4488 = vpack.c.bf16 %v3912, %v3912
  %v4489 = vpack.c.bf16 %v3913, %v3913
  %v4490 = vpack.c.bf16 %v3914, %v3914
  %v4491 = vpack.c.bf16 %v3915, %v3915
  %v4492 = vpack.c.bf16 %v3916, %v3916
  %v4493 = vpack.c.bf16 %v3917, %v3917
  %v4494 = vpack.c.bf16 %v3918, %v3918
  %v4495 = vpack.c.bf16 %v3919, %v3919
  %v4496 = vpack.c.bf16 %v3920, %v3920
  %v4497 = vpack.c.bf16 %v3921, %v3921
  %v4498 = vpack.c.bf16 %v3922, %v3922
  %v4499 = vpack.c.bf16 %v3923, %v3923
  %v4500 = vpack.c.bf16 %v3924, %v3924
  %v4501 = vpack.c.bf16 %v3925, %v3925
  %v4502 = vpack.c.bf16 %v3926, %v3926
  %v4503 = vpack.c.bf16 %v3927, %v3927
  %v4504 = vpack.c.bf16 %v3928, %v3928
  %v4505 = vpack.c.bf16 %v3929, %v3929
  %v4506 = vpack.c.bf16 %v3930, %v3930
  %v4507 = vpack.c.bf16 %v3931, %v3931
  %v4508 = vpack.c.bf16 %v3932, %v3932
  %v4509 = vpack.c.bf16 %v3933, %v3933
  %v4510 = vpack.c.bf16 %v3934, %v3934
  %v4511 = vpack.c.bf16 %v3935, %v3935
  %v4512 = vpack.c.bf16 %v3936, %v3936
  %v4513 = vpack.c.bf16 %v3937, %v3937
  %v4514 = vpack.c.bf16 %v3938, %v3938
  %v4515 = vpack.c.bf16 %v3939, %v3939
  %v4516 = vpack.c.bf16 %v3940, %v3940
  %v4517 = vpack.c.bf16 %v3941, %v3941
  %v4518 = vpack.c.bf16 %v3942, %v3942
  %v4519 = vpack.c.bf16 %v3943, %v3943
  %v4520 = vpack.c.bf16 %v3944, %v3944
  %v4521 = vpack.c.bf16 %v3945, %v3945
  %v4522 = vpack.c.bf16 %v3946, %v3946
  %v4523 = vpack.c.bf16 %v3947, %v3947
  %v4524 = vpack.c.bf16 %v3948, %v3948
  %v4525 = vpack.c.bf16 %v3949, %v3949
  %v4526 = vpack.c.bf16 %v3950, %v3950
  %v4527 = vpack.c.bf16 %v3951, %v3951
  %v4528 = vpack.c.bf16 %v3952, %v3952
  %v4529 = vpack.c.bf16 %v3953, %v3953
  %v4530 = vpack.c.bf16 %v3954, %v3954
  %v4531 = vpack.c.bf16 %v3955, %v3955
  %v4532 = vpack.c.bf16 %v3956, %v3956
  %v4533 = vpack.c.bf16 %v3957, %v3957
  %v4534 = vpack.c.bf16 %v3958, %v3958
  %v4535 = vpack.c.bf16 %v3959, %v3959
  %v4536 = vpack.c.bf16 %v3960, %v3960
  %v4537 = vpack.c.bf16 %v3961, %v3961
  %v4538 = vpack.c.bf16 %v3962, %v3962
  %v4539 = vpack.c.bf16 %v3963, %v3963
  %v4540 = vpack.c.bf16 %v3964, %v3964
  %v4541 = vpack.c.bf16 %v3965, %v3965
  %v4542 = vpack.c.bf16 %v3966, %v3966
  %v4543 = vpack.c.bf16 %v3967, %v3967
  %v4544 = vpack.c.bf16 %v3968, %v3968
  %v4545 = vpack.c.bf16 %v3969, %v3969
  %v4546 = vpack.c.bf16 %v3970, %v3970
  %v4547 = vpack.c.bf16 %v3971, %v3971
  %v4548 = vpack.c.bf16 %v3972, %v3972
  %v4549 = vpack.c.bf16 %v3973, %v3973
  %v4550 = vpack.c.bf16 %v3974, %v3974
  %v4551 = vpack.c.bf16 %v3975, %v3975
  %v4552 = vpack.c.bf16 %v3976, %v3976
  %v4553 = vpack.c.bf16 %v3977, %v3977
  %v4554 = vpack.c.bf16 %v3978, %v3978
  %v4555 = vpack.c.bf16 %v3979, %v3979
  %v4556 = vpack.c.bf16 %v3980, %v3980
  %v4557 = vpack.c.bf16 %v3981, %v3981
  %v4558 = vpack.c.bf16 %v3982, %v3982
  %v4559 = vpack.c.bf16 %v3983, %v3983
  %v4560 = vpack.c.bf16 %v3984, %v3984
  %v4561 = vpack.c.bf16 %v3985, %v3985
  %v4562 = vpack.c.bf16 %v3986, %v3986
  %v4563 = vpack.c.bf16 %v3987, %v3987
  %v4564 = vpack.c.bf16 %v3988, %v3988
  %v4565 = vpack.c.bf16 %v3989, %v3989
  %v4566 = vpack.c.bf16 %v3990, %v3990
  %v4567 = vpack.c.bf16 %v3991, %v3991
  %v4568 = vpack.c.bf16 %v3992, %v3992
  %v4569 = vpack.c.bf16 %v3993, %v3993
  %v4570 = vpack.c.bf16 %v3994, %v3994
  %v4571 = vpack.c.bf16 %v3995, %v3995
  %v4572 = vpack.c.bf16 %v3996, %v3996
  %v4573 = vpack.c.bf16 %v3997, %v3997
  %v4574 = vpack.c.bf16 %v3998, %v3998
  %v4575 = vpack.c.bf16 %v3999, %v3999
  %v4576 = vpack.c.bf16 %v4000, %v4000
  %v4577 = vpack.c.bf16 %v4001, %v4001
  %v4578 = vpack.c.bf16 %v4002, %v4002
  %v4579 = vpack.c.bf16 %v4003, %v4003
  %v4580 = vpack.c.bf16 %v4004, %v4004
  %v4581 = vpack.c.bf16 %v4005, %v4005
  %v4582 = vpack.c.bf16 %v4006, %v4006
  %v4583 = vpack.c.bf16 %v4007, %v4007
  %v4584 = vpack.c.bf16 %v4008, %v4008
  %v4585 = vpack.c.bf16 %v4009, %v4009
  %v4586 = vpack.c.bf16 %v4010, %v4010
  %v4587 = vpack.c.bf16 %v4011, %v4011
  %v4588 = vpack.c.bf16 %v4012, %v4012
  %v4589 = vpack.c.bf16 %v4013, %v4013
  %v4590 = vpack.c.bf16 %v4014, %v4014
  %v4591 = vpack.c.bf16 %v4015, %v4015
  %v4592 = vpack.c.bf16 %v4016, %v4016
  %v4593 = vpack.c.bf16 %v4017, %v4017
  %v4594 = vpack.c.bf16 %v4018, %v4018
  %v4595 = vpack.c.bf16 %v4019, %v4019
  %v4596 = vpack.c.bf16 %v4020, %v4020
  %v4597 = vpack.c.bf16 %v4021, %v4021
  %v4598 = vpack.c.bf16 %v4022, %v4022
  %v4599 = vpack.c.bf16 %v4023, %v4023
  %v4600 = vpack.c.bf16 %v4024, %v4024
  %v4601 = vpack.c.bf16 %v4025, %v4025
  %v4602 = vpack.c.bf16 %v4026, %v4026
  %v4603 = vpack.c.bf16 %v4027, %v4027
  %v4604 = vpack.c.bf16 %v4028, %v4028
  %v4605 = vpack.c.bf16 %v4029, %v4029
  %v4606 = vpack.c.bf16 %v4030, %v4030
  %v4607 = vpack.c.bf16 %v4031, %v4031
  %v4608 = vpack.c.bf16 %v4032, %v4032
  %v4609 = vpack.c.bf16 %v4033, %v4033
  %v4610 = vpack.c.bf16 %v4034, %v4034
  %v4611 = vpack.c.bf16 %v4035, %v4035
  %v4612 = vpack.c.bf16 %v4036, %v4036
  %v4613 = vpack.c.bf16 %v4037, %v4037
  %v4614 = vpack.c.bf16 %v4038, %v4038
  %v4615 = vpack.c.bf16 %v4039, %v4039
  %v4616 = vpack.c.bf16 %v4040, %v4040
  %v4617 = vpack.c.bf16 %v4041, %v4041
  %v4618 = vpack.c.bf16 %v4042, %v4042
  %v4619 = vpack.c.bf16 %v4043, %v4043
  %v4620 = vpack.c.bf16 %v4044, %v4044
  %v4621 = vpack.c.bf16 %v4045, %v4045
  %v4622 = vpack.c.bf16 %v4046, %v4046
  %v4623 = vpack.c.bf16 %v4047, %v4047
  %v4624 = vpack.c.bf16 %v4048, %v4048
  %v4625 = vpack.c.bf16 %v4049, %v4049
  %v4626 = vpack.c.bf16 %v4050, %v4050
  %v4627 = vpack.c.bf16 %v4051, %v4051
  %v4628 = vpack.c.bf16 %v4052, %v4052
  %v4629 = vpack.c.bf16 %v4053, %v4053
  %v4630 = vpack.c.bf16 %v4054, %v4054
  %v4631 = vpack.c.bf16 %v4055, %v4055
  %v4632 = vpack.c.bf16 %v4056, %v4056
  %v4633 = vpack.c.bf16 %v4057, %v4057
  %v4634 = vpack.c.bf16 %v4058, %v4058
  %v4635 = vpack.c.bf16 %v4059, %v4059
  %v4636 = vpack.c.bf16 %v4060, %v4060
  %v4637 = vpack.c.bf16 %v4061, %v4061
  %v4638 = vpack.c.bf16 %v4062, %v4062
  %v4639 = vpack.c.bf16 %v4063, %v4063
  %v4640 = vpack.c.bf16 %v4064, %v4064
  %v4641 = vpack.c.bf16 %v4065, %v4065
  %v4642 = vpack.c.bf16 %v4066, %v4066
  %v4643 = vpack.c.bf16 %v4067, %v4067
  %v4644 = vpack.c.bf16 %v4068, %v4068
  %v4645 = vpack.c.bf16 %v4069, %v4069
  %v4646 = vpack.c.bf16 %v4070, %v4070
  %v4647 = vpack.c.bf16 %v4071, %v4071
  %v4648 = vpack.c.bf16 %v4072, %v4072
  %v4649 = vpack.c.bf16 %v4073, %v4073
  %v4650 = vpack.c.bf16 %v4074, %v4074
  %v4651 = vpack.c.bf16 %v4075, %v4075
  %v4652 = vpack.c.bf16 %v4076, %v4076
  %v4653 = vpack.c.bf16 %v4077, %v4077
  %v4654 = vpack.c.bf16 %v4078, %v4078
  %v4655 = vpack.c.bf16 %v4079, %v4079
  %v4656 = vpack.c.bf16 %v4080, %v4080
  %v4657 = vpack.c.bf16 %v4081, %v4081
  %v4658 = vpack.c.bf16 %v4082, %v4082
  %v4659 = vpack.c.bf16 %v4083, %v4083
  %v4660 = vpack.c.bf16 %v4084, %v4084
  %v4661 = vpack.c.bf16 %v4085, %v4085
  %v4662 = vpack.c.bf16 %v4086, %v4086
  %v4663 = vpack.c.bf16 %v4087, %v4087
  %v4664 = vpack.c.bf16 %v4088, %v4088
  %v4665 = vpack.c.bf16 %v4089, %v4089
  %v4666 = vpack.c.bf16 %v4090, %v4090
  %v4667 = vpack.c.bf16 %v4091, %v4091
  %v4668 = vpack.c.bf16 %v4092, %v4092
  %v4669 = vpack.c.bf16 %v4093, %v4093
  %v4670 = vpack.c.bf16 %v4094, %v4094
  %v4671 = vpack.c.bf16 %v4095, %v4095
  %v4672 = vpack.c.bf16 %v4096, %v4096
  %v4673 = vpack.c.bf16 %v4097, %v4097
  %v4674 = vpack.c.bf16 %v4098, %v4098
  %v4675 = vpack.c.bf16 %v4099, %v4099
  %v4676 = vpack.c.bf16 %v4100, %v4100
  %v4677 = vpack.c.bf16 %v4101, %v4101
  %v4678 = vpack.c.bf16 %v4102, %v4102
  %v4679 = vpack.c.bf16 %v4103, %v4103
  %v4680 = vpack.c.bf16 %v4104, %v4104
  %v4681 = vpack.c.bf16 %v4105, %v4105
  %v4682 = vpack.c.bf16 %v4106, %v4106
  %v4683 = vpack.c.bf16 %v4107, %v4107
  %v4684 = vpack.c.bf16 %v4108, %v4108
  %v4685 = vpack.c.bf16 %v4109, %v4109
  %v4686 = vpack.c.bf16 %v4110, %v4110
  %v4687 = vpack.c.bf16 %v4111, %v4111
  %v4688 = vpack.c.bf16 %v4112, %v4112
  %v4689 = vpack.c.bf16 %v4113, %v4113
  %v4690 = vpack.c.bf16 %v4114, %v4114
  %v4691 = vpack.c.bf16 %v4115, %v4115
  %v4692 = vpack.c.bf16 %v4116, %v4116
  %v4693 = vpack.c.bf16 %v4117, %v4117
  %v4694 = vpack.c.bf16 %v4118, %v4118
  %v4695 = vpack.c.bf16 %v4119, %v4119
  %v4696 = vpack.c.bf16 %v4120, %v4120
  %v4697 = vpack.c.bf16 %v4121, %v4121
  %v4698 = vpack.c.bf16 %v4122, %v4122
  %v4699 = vpack.c.bf16 %v4123, %v4123
  %v4700 = vpack.c.bf16 %v4124, %v4124
  %v4701 = vpack.c.bf16 %v4125, %v4125
  %v4702 = vpack.c.bf16 %v4126, %v4126
  %v4703 = vpack.c.bf16 %v4127, %v4127
  %v4704 = vpack.c.bf16 %v4128, %v4128
  %v4705 = vpack.c.bf16 %v4129, %v4129
  %v4706 = vpack.c.bf16 %v4130, %v4130
  %v4707 = vpack.c.bf16 %v4131, %v4131
  %v4708 = vpack.c.bf16 %v4132, %v4132
  %v4709 = vpack.c.bf16 %v4133, %v4133
  %v4710 = vpack.c.bf16 %v4134, %v4134
  %v4711 = vpack.c.bf16 %v4135, %v4135
  %v4712 = vpack.c.bf16 %v4136, %v4136
  %v4713 = vpack.c.bf16 %v4137, %v4137
  %v4714 = vpack.c.bf16 %v4138, %v4138
  %v4715 = vpack.c.bf16 %v4139, %v4139
  %v4716 = vpack.c.bf16 %v4140, %v4140
  %v4717 = vpack.c.bf16 %v4141, %v4141
  %v4718 = vpack.c.bf16 %v4142, %v4142
  %v4719 = vpack.c.bf16 %v4143, %v4143
  %v4720 = vpack.c.bf16 %v4144, %v4144
  %v4721 = vpack.c.bf16 %v4145, %v4145
  %v4722 = vpack.c.bf16 %v4146, %v4146
  %v4723 = vpack.c.bf16 %v4147, %v4147
  %v4724 = vpack.c.bf16 %v4148, %v4148
  %v4725 = vpack.c.bf16 %v4149, %v4149
  %v4726 = vpack.c.bf16 %v4150, %v4150
  %v4727 = vpack.c.bf16 %v4151, %v4151
  %v4728 = vpack.c.bf16 %v4152, %v4152
  %v4729 = vpack.c.bf16 %v4153, %v4153
  %v4730 = vpack.c.bf16 %v4154, %v4154
  %v4731 = vpack.c.bf16 %v4155, %v4155
  %v4732 = vpack.c.bf16 %v4156, %v4156
  %v4733 = vpack.c.bf16 %v4157, %v4157
  %v4734 = vpack.c.bf16 %v4158, %v4158
  %v4735 = vpack.c.bf16 %v4159, %v4159
  %v4736 = vpack.c.bf16 %v4160, %v4160
  %v4737 = vpack.c.bf16 %v4161, %v4161
  %v4738 = vpack.c.bf16 %v4162, %v4162
  %v4739 = vpack.c.bf16 %v4163, %v4163
  %v4740 = vpack.c.bf16 %v4164, %v4164
  %v4741 = vpack.c.bf16 %v4165, %v4165
  %v4742 = vpack.c.bf16 %v4166, %v4166
  %v4743 = vpack.c.bf16 %v4167, %v4167
  %v4744 = vpack.c.bf16 %v4168, %v4168
  %v4745 = vpack.c.bf16 %v4169, %v4169
  %v4746 = vpack.c.bf16 %v4170, %v4170
  %v4747 = vpack.c.bf16 %v4171, %v4171
  %v4748 = vpack.c.bf16 %v4172, %v4172
  %v4749 = vpack.c.bf16 %v4173, %v4173
  %v4750 = vpack.c.bf16 %v4174, %v4174
  %v4751 = vpack.c.bf16 %v4175, %v4175
  %v4752 = vpack.c.bf16 %v4176, %v4176
  %v4753 = vpack.c.bf16 %v4177, %v4177
  %v4754 = vpack.c.bf16 %v4178, %v4178
  %v4755 = vpack.c.bf16 %v4179, %v4179
  %v4756 = vpack.c.bf16 %v4180, %v4180
  %v4757 = vpack.c.bf16 %v4181, %v4181
  %v4758 = vpack.c.bf16 %v4182, %v4182
  %v4759 = vpack.c.bf16 %v4183, %v4183
  %v4760 = vpack.c.bf16 %v4184, %v4184
  %v4761 = vpack.c.bf16 %v4185, %v4185
  %v4762 = vpack.c.bf16 %v4186, %v4186
  %v4763 = vpack.c.bf16 %v4187, %v4187
  %v4764 = vpack.c.bf16 %v4188, %v4188
  %v4765 = vpack.c.bf16 %v4189, %v4189
  %v4766 = vpack.c.bf16 %v4190, %v4190
  %v4767 = vpack.c.bf16 %v4191, %v4191
  %v4768 = vpack.c.bf16 %v4192, %v4192
  %v4769 = vpack.c.bf16 %v4193, %v4193
  %v4770 = vpack.c.bf16 %v4194, %v4194
  %v4771 = vpack.c.bf16 %v4195, %v4195
  %v4772 = vpack.c.bf16 %v4196, %v4196
  %v4773 = vpack.c.bf16 %v4197, %v4197
  %v4774 = vpack.c.bf16 %v4198, %v4198
  %v4775 = vpack.c.bf16 %v4199, %v4199
  %v4776 = vpack.c.bf16 %v4200, %v4200
  %v4777 = vpack.c.bf16 %v4201, %v4201
  %v4778 = vpack.c.bf16 %v4202, %v4202
  %v4779 = vpack.c.bf16 %v4203, %v4203
  %v4780 = vpack.c.bf16 %v4204, %v4204
  %v4781 = vpack.c.bf16 %v4205, %v4205
  %v4782 = vpack.c.bf16 %v4206, %v4206
  %v4783 = vpack.c.bf16 %v4207, %v4207
  %v4784 = vpack.c.bf16 %v4208, %v4208
  %v4785 = vpack.c.bf16 %v4209, %v4209
  %v4786 = vpack.c.bf16 %v4210, %v4210
  %v4787 = vpack.c.bf16 %v4211, %v4211
  %v4788 = vpack.c.bf16 %v4212, %v4212
  %v4789 = vpack.c.bf16 %v4213, %v4213
  %v4790 = vpack.c.bf16 %v4214, %v4214
  %v4791 = vpack.c.bf16 %v4215, %v4215
  %v4792 = vpack.c.bf16 %v4216, %v4216
  %v4793 = vpack.c.bf16 %v4217, %v4217
  %v4794 = vpack.c.bf16 %v4218, %v4218
  %v4795 = vpack.c.bf16 %v4219, %v4219
  %v4796 = vpack.c.bf16 %v4220, %v4220
  %v4797 = vpack.c.bf16 %v4221, %v4221
  %v4798 = vpack.c.bf16 %v4222, %v4222
  %v4799 = vpack.c.bf16 %v4223, %v4223
  %v4800 = vpack.c.bf16 %v4224, %v4224
  %v4801 = vpack.c.bf16 %v4225, %v4225
  %v4802 = vpack.c.bf16 %v4226, %v4226
  %v4803 = vpack.c.bf16 %v4227, %v4227
  %v4804 = vpack.c.bf16 %v4228, %v4228
  %v4805 = vpack.c.bf16 %v4229, %v4229
  %v4806 = vpack.c.bf16 %v4230, %v4230
  %v4807 = vpack.c.bf16 %v4231, %v4231
  %v4808 = vpack.c.bf16 %v4232, %v4232
  %v4809 = vpack.c.bf16 %v4233, %v4233
  %v4810 = vpack.c.bf16 %v4234, %v4234
  %v4811 = vpack.c.bf16 %v4235, %v4235
  %v4812 = vpack.c.bf16 %v4236, %v4236
  %v4813 = vpack.c.bf16 %v4237, %v4237
  %v4814 = vpack.c.bf16 %v4238, %v4238
  %v4815 = vpack.c.bf16 %v4239, %v4239
  %v4816 = vpack.c.bf16 %v4240, %v4240
  %v4817 = vpack.c.bf16 %v4241, %v4241
  %v4818 = vpack.c.bf16 %v4242, %v4242
  %v4819 = vpack.c.bf16 %v4243, %v4243
  %v4820 = vpack.c.bf16 %v4244, %v4244
  %v4821 = vpack.c.bf16 %v4245, %v4245
  %v4822 = vpack.c.bf16 %v4246, %v4246
  %v4823 = vpack.c.bf16 %v4247, %v4247
  %v4824 = vpack.c.bf16 %v4248, %v4248
  %v4825 = vpack.c.bf16 %v4249, %v4249
  %v4826 = vpack.c.bf16 %v4250, %v4250
  %v4827 = vpack.c.bf16 %v4251, %v4251
  %v4828 = vpack.c.bf16 %v4252, %v4252
  %v4829 = vpack.c.bf16 %v4253, %v4253
  %v4830 = vpack.c.bf16 %v4254, %v4254
  %v4831 = vpack.c.bf16 %v4255, %v4255
  %v4832 = vpack.c.bf16 %v4256, %v4256
  %v4833 = vpack.c.bf16 %v4257, %v4257
  %v4834 = vpack.c.bf16 %v4258, %v4258
  %v4835 = vpack.c.bf16 %v4259, %v4259
  %v4836 = vpack.c.bf16 %v4260, %v4260
  %v4837 = vpack.c.bf16 %v4261, %v4261
  %v4838 = vpack.c.bf16 %v4262, %v4262
  %v4839 = vpack.c.bf16 %v4263, %v4263
  %v4840 = vpack.c.bf16 %v4264, %v4264
  %v4841 = vpack.c.bf16 %v4265, %v4265
  %v4842 = vpack.c.bf16 %v4266, %v4266
  %v4843 = vpack.c.bf16 %v4267, %v4267
  %v4844 = vpack.c.bf16 %v4268, %v4268
  %v4845 = vpack.c.bf16 %v4269, %v4269
  %v4846 = vpack.c.bf16 %v4270, %v4270
  %v4847 = vpack.c.bf16 %v4271, %v4271
  %v4848 = vpack.c.bf16 %v4272, %v4272
  %v4849 = vpack.c.bf16 %v4273, %v4273
  %v4850 = vpack.c.bf16 %v4274, %v4274
  %v4851 = vpack.c.bf16 %v4275, %v4275
  %v4852 = vpack.c.bf16 %v4276, %v4276
  %v4853 = vpack.c.bf16 %v4277, %v4277
  %v4854 = vpack.c.bf16 %v4278, %v4278
  %v4855 = vpack.c.bf16 %v4279, %v4279
  %v4856 = vpack.c.bf16 %v4280, %v4280
  %v4857 = vpack.c.bf16 %v4281, %v4281
  %v4858 = vpack.c.bf16 %v4282, %v4282
  %v4859 = vpack.c.bf16 %v4283, %v4283
  %v4860 = vpack.c.bf16 %v4284, %v4284
  %v4861 = vpack.c.bf16 %v4285, %v4285
  %v4862 = vpack.c.bf16 %v4286, %v4286
  %v4863 = vpack.c.bf16 %v4287, %v4287
  %v4864 = vpack.c.bf16 %v4288, %v4288
  %v4865 = vpack.c.bf16 %v4289, %v4289
  %v4866 = vpack.c.bf16 %v4290, %v4290
  %v4867 = vpack.c.bf16 %v4291, %v4291
  %v4868 = vpack.c.bf16 %v4292, %v4292
  %v4869 = vpack.c.bf16 %v4293, %v4293
  %v4870 = vpack.c.bf16 %v4294, %v4294
  %v4871 = vpack.c.bf16 %v4295, %v4295
  %v4872 = vpack.c.bf16 %v4296, %v4296
  %v4873 = vpack.c.bf16 %v4297, %v4297
  %v4874 = vpack.c.bf16 %v4298, %v4298
  %v4875 = vpack.c.bf16 %v4299, %v4299
  %v4876 = vpack.c.bf16 %v4300, %v4300
  %v4877 = vpack.c.bf16 %v4301, %v4301
  %v4878 = vpack.c.bf16 %v4302, %v4302
  %v4879 = vpack.c.bf16 %v4303, %v4303
  %v4880 = vpack.c.bf16 %v4304, %v4304
  %v4881 = vpack.c.bf16 %v4305, %v4305
  %v4882 = vpack.c.bf16 %v4306, %v4306
  %v4883 = vpack.c.bf16 %v4307, %v4307
  %v4884 = vpack.c.bf16 %v4308, %v4308
  %v4885 = vpack.c.bf16 %v4309, %v4309
  %v4886 = vpack.c.bf16 %v4310, %v4310
  %v4887 = vpack.c.bf16 %v4311, %v4311
  %v4888 = vpack.c.bf16 %v4312, %v4312
  %v4889 = vpack.c.bf16 %v4313, %v4313
  %v4890 = vpack.c.bf16 %v4314, %v4314
  %v4891 = vpack.c.bf16 %v4315, %v4315
  %v4892 = vpack.c.bf16 %v4316, %v4316
  %v4893 = vpack.c.bf16 %v4317, %v4317
  %v4894 = vpack.c.bf16 %v4318, %v4318
  %v4895 = vpack.c.bf16 %v4319, %v4319
  %v4896 = vpack.c.bf16 %v4320, %v4320
  %v4897 = vpack.c.bf16 %v4321, %v4321
  %v4898 = vpack.c.bf16 %v4322, %v4322
  %v4899 = vpack.c.bf16 %v4323, %v4323
  %v4900 = vpack.c.bf16 %v4324, %v4324
  %v4901 = vpack.c.bf16 %v4325, %v4325
  %v4902 = vpack.c.bf16 %v4326, %v4326
  %v4903 = vpack.c.bf16 %v4327, %v4327
  %v4904 = vpack.c.bf16 %v4328, %v4328
  %v4905 = vpack.c.bf16 %v4329, %v4329
  %v4906 = vpack.c.bf16 %v4330, %v4330
  %v4907 = vpack.c.bf16 %v4331, %v4331
  %v4908 = vpack.c.bf16 %v4332, %v4332
  %v4909 = vpack.c.bf16 %v4333, %v4333
  %v4910 = vpack.c.bf16 %v4334, %v4334
  %v4911 = vpack.c.bf16 %v4335, %v4335
  %v4912 = vpack.c.bf16 %v4336, %v4336
  %v4913 = vpack.c.bf16 %v4337, %v4337
  %v4914 = vpack.c.bf16 %v4338, %v4338
  %v4915 = vpack.c.bf16 %v4339, %v4339
  %v4916 = vpack.c.bf16 %v4340, %v4340
  %v4917 = vpack.c.bf16 %v4341, %v4341
  %v4918 = vpack.c.bf16 %v4342, %v4342
  %v4919 = vpack.c.bf16 %v4343, %v4343
  %v4920 = vpack.c.bf16 %v4344, %v4344
  %v4921 = vpack.c.bf16 %v4345, %v4345
  %v4922 = vpack.c.bf16 %v4346, %v4346
  %v4923 = vpack.c.bf16 %v4347, %v4347
  %v4924 = vpack.c.bf16 %v4348, %v4348
  %v4925 = vpack.c.bf16 %v4349, %v4349
  %v4926 = vpack.c.bf16 %v4350, %v4350
  %v4927 = vpack.c.bf16 %v4351, %v4351
  %v4928 = vpack.c.bf16 %v4352, %v4352
  %v4929 = vpack.c.bf16 %v4353, %v4353
  %v4930 = vpack.c.bf16 %v4354, %v4354
  %v4931 = vpack.c.bf16 %v4355, %v4355
  %v4932 = vpack.c.bf16 %v4356, %v4356
  %v4933 = vpack.c.bf16 %v4357, %v4357
  %v4934 = vpack.c.bf16 %v4358, %v4358
  %v4935 = vpack.c.bf16 %v4359, %v4359
  %v4936 = vpack.c.bf16 %v4360, %v4360
  %v4937 = vpack.c.bf16 %v4361, %v4361
  %v4938 = vpack.c.bf16 %v4362, %v4362
  %v4939 = vpack.c.bf16 %v4363, %v4363
  %v4940 = vpack.c.bf16 %v4364, %v4364
  %v4941 = vpack.c.bf16 %v4365, %v4365
  %v4942 = vpack.c.bf16 %v4366, %v4366
  %v4943 = vpack.c.bf16 %v4367, %v4367
  %v4944 = vpack.c.bf16 %v4368, %v4368
  %v4945 = vpack.c.bf16 %v4369, %v4369
  %v4946 = vpack.c.bf16 %v4370, %v4370
  %v4947 = vpack.c.bf16 %v4371, %v4371
  %v4948 = vpack.c.bf16 %v4372, %v4372
  %v4949 = vpack.c.bf16 %v4373, %v4373
  %v4950 = vpack.c.bf16 %v4374, %v4374
  %v4951 = vpack.c.bf16 %v4375, %v4375
  %v4952 = vpack.c.bf16 %v4376, %v4376
  %v4953 = vpack.c.bf16 %v4377, %v4377
  %v4954 = vpack.c.bf16 %v4378, %v4378
  %v4955 = vpack.c.bf16 %v4379, %v4379
  %v4956 = vpack.c.bf16 %v4380, %v4380
  %v4957 = vpack.c.bf16 %v4381, %v4381
  %v4958 = vpack.c.bf16 %v4382, %v4382
  %v4959 = vpack.c.bf16 %v4383, %v4383
  %v4960 = vpack.c.bf16 %v4384, %v4384
  %v4961 = vpack.c.bf16 %v4385, %v4385
  %v4962 = vpack.c.bf16 %v4386, %v4386
  %v4963 = vpack.c.bf16 %v4387, %v4387
  %v4964 = vpack.c.bf16 %v4388, %v4388
  %v4965 = vpack.c.bf16 %v4389, %v4389
  %v4966 = vpack.c.bf16 %v4390, %v4390
  %v4967 = vpack.c.bf16 %v4391, %v4391
  %v4968 = vpack.c.bf16 %v4392, %v4392
  %v4969 = vpack.c.bf16 %v4393, %v4393
  %v4970 = vpack.c.bf16 %v4394, %v4394
  %v4971 = vpack.c.bf16 %v4395, %v4395
  %v4972 = vpack.c.bf16 %v4396, %v4396
  %v4973 = vpack.c.bf16 %v4397, %v4397
  %v4974 = vpack.c.bf16 %v4398, %v4398
  %v4975 = vpack.c.bf16 %v4399, %v4399
  %v4976 = vpack.c.bf16 %v4400, %v4400
  %v4977 = vpack.c.bf16 %v4401, %v4401
  %v4978 = vpack.c.bf16 %v4402, %v4402
  %v4979 = vpack.c.bf16 %v4403, %v4403
  %v4980 = vpack.c.bf16 %v4404, %v4404
  %v4981 = vpack.c.bf16 %v4405, %v4405
  %v4982 = vpack.c.bf16 %v4406, %v4406
  %v4983 = vpack.c.bf16 %v4407, %v4407
  %v4984 = vpack.c.bf16 %v4408, %v4408
  %v4985 = vpack.c.bf16 %v4409, %v4409
  %v4986 = vpack.c.bf16 %v4410, %v4410
  %vm4987 = vcmask 257024
  %4988 = vst.msk [vmem:[%s3] sm:$0xf] %vm4987, %v4411
  %4989 = vst.msk [vmem:[%s3 + $0x4] sm:$0xf] %vm4987, %v4412
  %4990 = vst.msk [vmem:[%s3 + $0x8] sm:$0xf] %vm4987, %v4413
  %4991 = vst.msk [vmem:[%s3 + $0xc] sm:$0xf] %vm4987, %v4414
  %4992 = vst.msk [vmem:[%s3 + $0x10] sm:$0xf] %vm4987, %v4415
  %4993 = vst.msk [vmem:[%s3 + $0x14] sm:$0xf] %vm4987, %v4416
  %4994 = vst.msk [vmem:[%s3 + $0x18] sm:$0xf] %vm4987, %v4417
  %4995 = vst.msk [vmem:[%s3 + $0x1c] sm:$0xf] %vm4987, %v4418
  %4996 = vst.msk [vmem:[%s3 + $0x20] sm:$0xf] %vm4987, %v4419
  %4997 = vst.msk [vmem:[%s3 + $0x24] sm:$0xf] %vm4987, %v4420
  %4998 = vst.msk [vmem:[%s3 + $0x28] sm:$0xf] %vm4987, %v4421
  %4999 = vst.msk [vmem:[%s3 + $0x2c] sm:$0xf] %vm4987, %v4422
  %5000 = vst.msk [vmem:[%s3 + $0x30] sm:$0xf] %vm4987, %v4423
  %5001 = vst.msk [vmem:[%s3 + $0x34] sm:$0xf] %vm4987, %v4424
  %5002 = vst.msk [vmem:[%s3 + $0x38] sm:$0xf] %vm4987, %v4425
  %5003 = vst.msk [vmem:[%s3 + $0x3c] sm:$0xf] %vm4987, %v4426
  %5004 = vst.msk [vmem:[%s3 + $0x40] sm:$0xf] %vm4987, %v4427
  %5005 = vst.msk [vmem:[%s3 + $0x44] sm:$0xf] %vm4987, %v4428
  %5006 = vst.msk [vmem:[%s3 + $0x48] sm:$0xf] %vm4987, %v4429
  %5007 = vst.msk [vmem:[%s3 + $0x4c] sm:$0xf] %vm4987, %v4430
  %5008 = vst.msk [vmem:[%s3 + $0x50] sm:$0xf] %vm4987, %v4431
  %5009 = vst.msk [vmem:[%s3 + $0x54] sm:$0xf] %vm4987, %v4432
  %5010 = vst.msk [vmem:[%s3 + $0x58] sm:$0xf] %vm4987, %v4433
  %5011 = vst.msk [vmem:[%s3 + $0x5c] sm:$0xf] %vm4987, %v4434
  %5012 = vst.msk [vmem:[%s3 + $0x60] sm:$0xf] %vm4987, %v4435
  %5013 = vst.msk [vmem:[%s3 + $0x64] sm:$0xf] %vm4987, %v4436
  %5014 = vst.msk [vmem:[%s3 + $0x68] sm:$0xf] %vm4987, %v4437
  %5015 = vst.msk [vmem:[%s3 + $0x6c] sm:$0xf] %vm4987, %v4438
  %5016 = vst.msk [vmem:[%s3 + $0x70] sm:$0xf] %vm4987, %v4439
  %5017 = vst.msk [vmem:[%s3 + $0x74] sm:$0xf] %vm4987, %v4440
  %5018 = vst.msk [vmem:[%s3 + $0x78] sm:$0xf] %vm4987, %v4441
  %5019 = vst.msk [vmem:[%s3 + $0x7c] sm:$0xf] %vm4987, %v4442
  %5020 = vst.msk [vmem:[%s3 + $0x80] sm:$0xf] %vm4987, %v4443
  %5021 = vst.msk [vmem:[%s3 + $0x84] sm:$0xf] %vm4987, %v4444
  %5022 = vst.msk [vmem:[%s3 + $0x88] sm:$0xf] %vm4987, %v4445
  %5023 = vst.msk [vmem:[%s3 + $0x8c] sm:$0xf] %vm4987, %v4446
  %5024 = vst.msk [vmem:[%s3 + $0x90] sm:$0xf] %vm4987, %v4447
  %5025 = vst.msk [vmem:[%s3 + $0x94] sm:$0xf] %vm4987, %v4448
  %5026 = vst.msk [vmem:[%s3 + $0x98] sm:$0xf] %vm4987, %v4449
  %5027 = vst.msk [vmem:[%s3 + $0x9c] sm:$0xf] %vm4987, %v4450
  %5028 = vst.msk [vmem:[%s3 + $0xa0] sm:$0xf] %vm4987, %v4451
  %5029 = vst.msk [vmem:[%s3 + $0xa4] sm:$0xf] %vm4987, %v4452
  %5030 = vst.msk [vmem:[%s3 + $0xa8] sm:$0xf] %vm4987, %v4453
  %5031 = vst.msk [vmem:[%s3 + $0xac] sm:$0xf] %vm4987, %v4454
  %5032 = vst.msk [vmem:[%s3 + $0xb0] sm:$0xf] %vm4987, %v4455
  %5033 = vst.msk [vmem:[%s3 + $0xb4] sm:$0xf] %vm4987, %v4456
  %5034 = vst.msk [vmem:[%s3 + $0xb8] sm:$0xf] %vm4987, %v4457
  %5035 = vst.msk [vmem:[%s3 + $0xbc] sm:$0xf] %vm4987, %v4458
  %5036 = vst.msk [vmem:[%s3 + $0xc0] sm:$0xf] %vm4987, %v4459
  %5037 = vst.msk [vmem:[%s3 + $0xc4] sm:$0xf] %vm4987, %v4460
  %5038 = vst.msk [vmem:[%s3 + $0xc8] sm:$0xf] %vm4987, %v4461
  %5039 = vst.msk [vmem:[%s3 + $0xcc] sm:$0xf] %vm4987, %v4462
  %5040 = vst.msk [vmem:[%s3 + $0xd0] sm:$0xf] %vm4987, %v4463
  %5041 = vst.msk [vmem:[%s3 + $0xd4] sm:$0xf] %vm4987, %v4464
  %5042 = vst.msk [vmem:[%s3 + $0xd8] sm:$0xf] %vm4987, %v4465
  %5043 = vst.msk [vmem:[%s3 + $0xdc] sm:$0xf] %vm4987, %v4466
  %5044 = vst.msk [vmem:[%s3 + $0xe0] sm:$0xf] %vm4987, %v4467
  %5045 = vst.msk [vmem:[%s3 + $0xe4] sm:$0xf] %vm4987, %v4468
  %5046 = vst.msk [vmem:[%s3 + $0xe8] sm:$0xf] %vm4987, %v4469
  %5047 = vst.msk [vmem:[%s3 + $0xec] sm:$0xf] %vm4987, %v4470
  %5048 = vst.msk [vmem:[%s3 + $0xf0] sm:$0xf] %vm4987, %v4471
  %5049 = vst.msk [vmem:[%s3 + $0xf4] sm:$0xf] %vm4987, %v4472
  %5050 = vst.msk [vmem:[%s3 + $0xf8] sm:$0xf] %vm4987, %v4473
  %5051 = vst.msk [vmem:[%s3 + $0xfc] sm:$0xf] %vm4987, %v4474
  %5052 = vst.msk [vmem:[%s3 + $0x100] sm:$0xf] %vm4987, %v4475
  %5053 = vst.msk [vmem:[%s3 + $0x104] sm:$0xf] %vm4987, %v4476
  %5054 = vst.msk [vmem:[%s3 + $0x108] sm:$0xf] %vm4987, %v4477
  %5055 = vst.msk [vmem:[%s3 + $0x10c] sm:$0xf] %vm4987, %v4478
  %5056 = vst.msk [vmem:[%s3 + $0x110] sm:$0xf] %vm4987, %v4479
  %5057 = vst.msk [vmem:[%s3 + $0x114] sm:$0xf] %vm4987, %v4480
  %5058 = vst.msk [vmem:[%s3 + $0x118] sm:$0xf] %vm4987, %v4481
  %5059 = vst.msk [vmem:[%s3 + $0x11c] sm:$0xf] %vm4987, %v4482
  %5060 = vst.msk [vmem:[%s3 + $0x120] sm:$0xf] %vm4987, %v4483
  %5061 = vst.msk [vmem:[%s3 + $0x124] sm:$0xf] %vm4987, %v4484
  %5062 = vst.msk [vmem:[%s3 + $0x128] sm:$0xf] %vm4987, %v4485
  %5063 = vst.msk [vmem:[%s3 + $0x12c] sm:$0xf] %vm4987, %v4486
  %5064 = vst.msk [vmem:[%s3 + $0x130] sm:$0xf] %vm4987, %v4487
  %5065 = vst.msk [vmem:[%s3 + $0x134] sm:$0xf] %vm4987, %v4488
  %5066 = vst.msk [vmem:[%s3 + $0x138] sm:$0xf] %vm4987, %v4489
  %5067 = vst.msk [vmem:[%s3 + $0x13c] sm:$0xf] %vm4987, %v4490
  %5068 = vst.msk [vmem:[%s3 + $0x140] sm:$0xf] %vm4987, %v4491
  %5069 = vst.msk [vmem:[%s3 + $0x144] sm:$0xf] %vm4987, %v4492
  %5070 = vst.msk [vmem:[%s3 + $0x148] sm:$0xf] %vm4987, %v4493
  %5071 = vst.msk [vmem:[%s3 + $0x14c] sm:$0xf] %vm4987, %v4494
  %5072 = vst.msk [vmem:[%s3 + $0x150] sm:$0xf] %vm4987, %v4495
  %5073 = vst.msk [vmem:[%s3 + $0x154] sm:$0xf] %vm4987, %v4496
  %5074 = vst.msk [vmem:[%s3 + $0x158] sm:$0xf] %vm4987, %v4497
  %5075 = vst.msk [vmem:[%s3 + $0x15c] sm:$0xf] %vm4987, %v4498
  %5076 = vst.msk [vmem:[%s3 + $0x160] sm:$0xf] %vm4987, %v4499
  %5077 = vst.msk [vmem:[%s3 + $0x164] sm:$0xf] %vm4987, %v4500
  %5078 = vst.msk [vmem:[%s3 + $0x168] sm:$0xf] %vm4987, %v4501
  %5079 = vst.msk [vmem:[%s3 + $0x16c] sm:$0xf] %vm4987, %v4502
  %5080 = vst.msk [vmem:[%s3 + $0x170] sm:$0xf] %vm4987, %v4503
  %5081 = vst.msk [vmem:[%s3 + $0x174] sm:$0xf] %vm4987, %v4504
  %5082 = vst.msk [vmem:[%s3 + $0x178] sm:$0xf] %vm4987, %v4505
  %5083 = vst.msk [vmem:[%s3 + $0x17c] sm:$0xf] %vm4987, %v4506
  %5084 = vst.msk [vmem:[%s3 + $0x180] sm:$0xf] %vm4987, %v4507
  %5085 = vst.msk [vmem:[%s3 + $0x184] sm:$0xf] %vm4987, %v4508
  %5086 = vst.msk [vmem:[%s3 + $0x188] sm:$0xf] %vm4987, %v4509
  %5087 = vst.msk [vmem:[%s3 + $0x18c] sm:$0xf] %vm4987, %v4510
  %5088 = vst.msk [vmem:[%s3 + $0x190] sm:$0xf] %vm4987, %v4511
  %5089 = vst.msk [vmem:[%s3 + $0x194] sm:$0xf] %vm4987, %v4512
  %5090 = vst.msk [vmem:[%s3 + $0x198] sm:$0xf] %vm4987, %v4513
  %5091 = vst.msk [vmem:[%s3 + $0x19c] sm:$0xf] %vm4987, %v4514
  %5092 = vst.msk [vmem:[%s3 + $0x1a0] sm:$0xf] %vm4987, %v4515
  %5093 = vst.msk [vmem:[%s3 + $0x1a4] sm:$0xf] %vm4987, %v4516
  %5094 = vst.msk [vmem:[%s3 + $0x1a8] sm:$0xf] %vm4987, %v4517
  %5095 = vst.msk [vmem:[%s3 + $0x1ac] sm:$0xf] %vm4987, %v4518
  %5096 = vst.msk [vmem:[%s3 + $0x1b0] sm:$0xf] %vm4987, %v4519
  %5097 = vst.msk [vmem:[%s3 + $0x1b4] sm:$0xf] %vm4987, %v4520
  %5098 = vst.msk [vmem:[%s3 + $0x1b8] sm:$0xf] %vm4987, %v4521
  %5099 = vst.msk [vmem:[%s3 + $0x1bc] sm:$0xf] %vm4987, %v4522
  %5100 = vst.msk [vmem:[%s3 + $0x1c0] sm:$0xf] %vm4987, %v4523
  %5101 = vst.msk [vmem:[%s3 + $0x1c4] sm:$0xf] %vm4987, %v4524
  %5102 = vst.msk [vmem:[%s3 + $0x1c8] sm:$0xf] %vm4987, %v4525
  %5103 = vst.msk [vmem:[%s3 + $0x1cc] sm:$0xf] %vm4987, %v4526
  %5104 = vst.msk [vmem:[%s3 + $0x1d0] sm:$0xf] %vm4987, %v4527
  %5105 = vst.msk [vmem:[%s3 + $0x1d4] sm:$0xf] %vm4987, %v4528
  %5106 = vst.msk [vmem:[%s3 + $0x1d8] sm:$0xf] %vm4987, %v4529
  %5107 = vst.msk [vmem:[%s3 + $0x1dc] sm:$0xf] %vm4987, %v4530
  %5108 = vst.msk [vmem:[%s3 + $0x1e0] sm:$0xf] %vm4987, %v4531
  %5109 = vst.msk [vmem:[%s3 + $0x1e4] sm:$0xf] %vm4987, %v4532
  %5110 = vst.msk [vmem:[%s3 + $0x1e8] sm:$0xf] %vm4987, %v4533
  %5111 = vst.msk [vmem:[%s3 + $0x1ec] sm:$0xf] %vm4987, %v4534
  %5112 = vst.msk [vmem:[%s3 + $0x1f0] sm:$0xf] %vm4987, %v4535
  %5113 = vst.msk [vmem:[%s3 + $0x1f4] sm:$0xf] %vm4987, %v4536
  %5114 = vst.msk [vmem:[%s3 + $0x1f8] sm:$0xf] %vm4987, %v4537
  %5115 = vst.msk [vmem:[%s3 + $0x1fc] sm:$0xf] %vm4987, %v4538
  %5116 = vst.msk [vmem:[%s3 + $0x200] sm:$0xf] %vm4987, %v4539
  %5117 = vst.msk [vmem:[%s3 + $0x204] sm:$0xf] %vm4987, %v4540
  %5118 = vst.msk [vmem:[%s3 + $0x208] sm:$0xf] %vm4987, %v4541
  %5119 = vst.msk [vmem:[%s3 + $0x20c] sm:$0xf] %vm4987, %v4542
  %5120 = vst.msk [vmem:[%s3 + $0x210] sm:$0xf] %vm4987, %v4543
  %5121 = vst.msk [vmem:[%s3 + $0x214] sm:$0xf] %vm4987, %v4544
  %5122 = vst.msk [vmem:[%s3 + $0x218] sm:$0xf] %vm4987, %v4545
  %5123 = vst.msk [vmem:[%s3 + $0x21c] sm:$0xf] %vm4987, %v4546
  %5124 = vst.msk [vmem:[%s3 + $0x220] sm:$0xf] %vm4987, %v4547
  %5125 = vst.msk [vmem:[%s3 + $0x224] sm:$0xf] %vm4987, %v4548
  %5126 = vst.msk [vmem:[%s3 + $0x228] sm:$0xf] %vm4987, %v4549
  %5127 = vst.msk [vmem:[%s3 + $0x22c] sm:$0xf] %vm4987, %v4550
  %5128 = vst.msk [vmem:[%s3 + $0x230] sm:$0xf] %vm4987, %v4551
  %5129 = vst.msk [vmem:[%s3 + $0x234] sm:$0xf] %vm4987, %v4552
  %5130 = vst.msk [vmem:[%s3 + $0x238] sm:$0xf] %vm4987, %v4553
  %5131 = vst.msk [vmem:[%s3 + $0x23c] sm:$0xf] %vm4987, %v4554
  %5132 = vst.msk [vmem:[%s3 + $0x240] sm:$0xf] %vm4987, %v4555
  %5133 = vst.msk [vmem:[%s3 + $0x244] sm:$0xf] %vm4987, %v4556
  %5134 = vst.msk [vmem:[%s3 + $0x248] sm:$0xf] %vm4987, %v4557
  %5135 = vst.msk [vmem:[%s3 + $0x24c] sm:$0xf] %vm4987, %v4558
  %5136 = vst.msk [vmem:[%s3 + $0x250] sm:$0xf] %vm4987, %v4559
  %5137 = vst.msk [vmem:[%s3 + $0x254] sm:$0xf] %vm4987, %v4560
  %5138 = vst.msk [vmem:[%s3 + $0x258] sm:$0xf] %vm4987, %v4561
  %5139 = vst.msk [vmem:[%s3 + $0x25c] sm:$0xf] %vm4987, %v4562
  %5140 = vst.msk [vmem:[%s3 + $0x260] sm:$0xf] %vm4987, %v4563
  %5141 = vst.msk [vmem:[%s3 + $0x264] sm:$0xf] %vm4987, %v4564
  %5142 = vst.msk [vmem:[%s3 + $0x268] sm:$0xf] %vm4987, %v4565
  %5143 = vst.msk [vmem:[%s3 + $0x26c] sm:$0xf] %vm4987, %v4566
  %5144 = vst.msk [vmem:[%s3 + $0x270] sm:$0xf] %vm4987, %v4567
  %5145 = vst.msk [vmem:[%s3 + $0x274] sm:$0xf] %vm4987, %v4568
  %5146 = vst.msk [vmem:[%s3 + $0x278] sm:$0xf] %vm4987, %v4569
  %5147 = vst.msk [vmem:[%s3 + $0x27c] sm:$0xf] %vm4987, %v4570
  %5148 = vst.msk [vmem:[%s3 + $0x280] sm:$0xf] %vm4987, %v4571
  %5149 = vst.msk [vmem:[%s3 + $0x284] sm:$0xf] %vm4987, %v4572
  %5150 = vst.msk [vmem:[%s3 + $0x288] sm:$0xf] %vm4987, %v4573
  %5151 = vst.msk [vmem:[%s3 + $0x28c] sm:$0xf] %vm4987, %v4574
  %5152 = vst.msk [vmem:[%s3 + $0x290] sm:$0xf] %vm4987, %v4575
  %5153 = vst.msk [vmem:[%s3 + $0x294] sm:$0xf] %vm4987, %v4576
  %5154 = vst.msk [vmem:[%s3 + $0x298] sm:$0xf] %vm4987, %v4577
  %5155 = vst.msk [vmem:[%s3 + $0x29c] sm:$0xf] %vm4987, %v4578
  %5156 = vst.msk [vmem:[%s3 + $0x2a0] sm:$0xf] %vm4987, %v4579
  %5157 = vst.msk [vmem:[%s3 + $0x2a4] sm:$0xf] %vm4987, %v4580
  %5158 = vst.msk [vmem:[%s3 + $0x2a8] sm:$0xf] %vm4987, %v4581
  %5159 = vst.msk [vmem:[%s3 + $0x2ac] sm:$0xf] %vm4987, %v4582
  %5160 = vst.msk [vmem:[%s3 + $0x2b0] sm:$0xf] %vm4987, %v4583
  %5161 = vst.msk [vmem:[%s3 + $0x2b4] sm:$0xf] %vm4987, %v4584
  %5162 = vst.msk [vmem:[%s3 + $0x2b8] sm:$0xf] %vm4987, %v4585
  %5163 = vst.msk [vmem:[%s3 + $0x2bc] sm:$0xf] %vm4987, %v4586
  %5164 = vst.msk [vmem:[%s3 + $0x2c0] sm:$0xf] %vm4987, %v4587
  %5165 = vst.msk [vmem:[%s3 + $0x2c4] sm:$0xf] %vm4987, %v4588
  %5166 = vst.msk [vmem:[%s3 + $0x2c8] sm:$0xf] %vm4987, %v4589
  %5167 = vst.msk [vmem:[%s3 + $0x2cc] sm:$0xf] %vm4987, %v4590
  %5168 = vst.msk [vmem:[%s3 + $0x2d0] sm:$0xf] %vm4987, %v4591
  %5169 = vst.msk [vmem:[%s3 + $0x2d4] sm:$0xf] %vm4987, %v4592
  %5170 = vst.msk [vmem:[%s3 + $0x2d8] sm:$0xf] %vm4987, %v4593
  %5171 = vst.msk [vmem:[%s3 + $0x2dc] sm:$0xf] %vm4987, %v4594
  %5172 = vst.msk [vmem:[%s3 + $0x2e0] sm:$0xf] %vm4987, %v4595
  %5173 = vst.msk [vmem:[%s3 + $0x2e4] sm:$0xf] %vm4987, %v4596
  %5174 = vst.msk [vmem:[%s3 + $0x2e8] sm:$0xf] %vm4987, %v4597
  %5175 = vst.msk [vmem:[%s3 + $0x2ec] sm:$0xf] %vm4987, %v4598
  %5176 = vst.msk [vmem:[%s3 + $0x2f0] sm:$0xf] %vm4987, %v4599
  %5177 = vst.msk [vmem:[%s3 + $0x2f4] sm:$0xf] %vm4987, %v4600
  %5178 = vst.msk [vmem:[%s3 + $0x2f8] sm:$0xf] %vm4987, %v4601
  %5179 = vst.msk [vmem:[%s3 + $0x2fc] sm:$0xf] %vm4987, %v4602
  %5180 = vst.msk [vmem:[%s3 + $0x300] sm:$0xf] %vm4987, %v4603
  %5181 = vst.msk [vmem:[%s3 + $0x304] sm:$0xf] %vm4987, %v4604
  %5182 = vst.msk [vmem:[%s3 + $0x308] sm:$0xf] %vm4987, %v4605
  %5183 = vst.msk [vmem:[%s3 + $0x30c] sm:$0xf] %vm4987, %v4606
  %5184 = vst.msk [vmem:[%s3 + $0x310] sm:$0xf] %vm4987, %v4607
  %5185 = vst.msk [vmem:[%s3 + $0x314] sm:$0xf] %vm4987, %v4608
  %5186 = vst.msk [vmem:[%s3 + $0x318] sm:$0xf] %vm4987, %v4609
  %5187 = vst.msk [vmem:[%s3 + $0x31c] sm:$0xf] %vm4987, %v4610
  %5188 = vst.msk [vmem:[%s3 + $0x320] sm:$0xf] %vm4987, %v4611
  %5189 = vst.msk [vmem:[%s3 + $0x324] sm:$0xf] %vm4987, %v4612
  %5190 = vst.msk [vmem:[%s3 + $0x328] sm:$0xf] %vm4987, %v4613
  %5191 = vst.msk [vmem:[%s3 + $0x32c] sm:$0xf] %vm4987, %v4614
  %5192 = vst.msk [vmem:[%s3 + $0x330] sm:$0xf] %vm4987, %v4615
  %5193 = vst.msk [vmem:[%s3 + $0x334] sm:$0xf] %vm4987, %v4616
  %5194 = vst.msk [vmem:[%s3 + $0x338] sm:$0xf] %vm4987, %v4617
  %5195 = vst.msk [vmem:[%s3 + $0x33c] sm:$0xf] %vm4987, %v4618
  %5196 = vst.msk [vmem:[%s3 + $0x340] sm:$0xf] %vm4987, %v4619
  %5197 = vst.msk [vmem:[%s3 + $0x344] sm:$0xf] %vm4987, %v4620
  %5198 = vst.msk [vmem:[%s3 + $0x348] sm:$0xf] %vm4987, %v4621
  %5199 = vst.msk [vmem:[%s3 + $0x34c] sm:$0xf] %vm4987, %v4622
  %5200 = vst.msk [vmem:[%s3 + $0x350] sm:$0xf] %vm4987, %v4623
  %5201 = vst.msk [vmem:[%s3 + $0x354] sm:$0xf] %vm4987, %v4624
  %5202 = vst.msk [vmem:[%s3 + $0x358] sm:$0xf] %vm4987, %v4625
  %5203 = vst.msk [vmem:[%s3 + $0x35c] sm:$0xf] %vm4987, %v4626
  %5204 = vst.msk [vmem:[%s3 + $0x360] sm:$0xf] %vm4987, %v4627
  %5205 = vst.msk [vmem:[%s3 + $0x364] sm:$0xf] %vm4987, %v4628
  %5206 = vst.msk [vmem:[%s3 + $0x368] sm:$0xf] %vm4987, %v4629
  %5207 = vst.msk [vmem:[%s3 + $0x36c] sm:$0xf] %vm4987, %v4630
  %5208 = vst.msk [vmem:[%s3 + $0x370] sm:$0xf] %vm4987, %v4631
  %5209 = vst.msk [vmem:[%s3 + $0x374] sm:$0xf] %vm4987, %v4632
  %5210 = vst.msk [vmem:[%s3 + $0x378] sm:$0xf] %vm4987, %v4633
  %5211 = vst.msk [vmem:[%s3 + $0x37c] sm:$0xf] %vm4987, %v4634
  %5212 = vst.msk [vmem:[%s3 + $0x380] sm:$0xf] %vm4987, %v4635
  %5213 = vst.msk [vmem:[%s3 + $0x384] sm:$0xf] %vm4987, %v4636
  %5214 = vst.msk [vmem:[%s3 + $0x388] sm:$0xf] %vm4987, %v4637
  %5215 = vst.msk [vmem:[%s3 + $0x38c] sm:$0xf] %vm4987, %v4638
  %5216 = vst.msk [vmem:[%s3 + $0x390] sm:$0xf] %vm4987, %v4639
  %5217 = vst.msk [vmem:[%s3 + $0x394] sm:$0xf] %vm4987, %v4640
  %5218 = vst.msk [vmem:[%s3 + $0x398] sm:$0xf] %vm4987, %v4641
  %5219 = vst.msk [vmem:[%s3 + $0x39c] sm:$0xf] %vm4987, %v4642
  %5220 = vst.msk [vmem:[%s3 + $0x3a0] sm:$0xf] %vm4987, %v4643
  %5221 = vst.msk [vmem:[%s3 + $0x3a4] sm:$0xf] %vm4987, %v4644
  %5222 = vst.msk [vmem:[%s3 + $0x3a8] sm:$0xf] %vm4987, %v4645
  %5223 = vst.msk [vmem:[%s3 + $0x3ac] sm:$0xf] %vm4987, %v4646
  %5224 = vst.msk [vmem:[%s3 + $0x3b0] sm:$0xf] %vm4987, %v4647
  %5225 = vst.msk [vmem:[%s3 + $0x3b4] sm:$0xf] %vm4987, %v4648
  %5226 = vst.msk [vmem:[%s3 + $0x3b8] sm:$0xf] %vm4987, %v4649
  %5227 = vst.msk [vmem:[%s3 + $0x3bc] sm:$0xf] %vm4987, %v4650
  %5228 = vst.msk [vmem:[%s3 + $0x3c0] sm:$0xf] %vm4987, %v4651
  %5229 = vst.msk [vmem:[%s3 + $0x3c4] sm:$0xf] %vm4987, %v4652
  %5230 = vst.msk [vmem:[%s3 + $0x3c8] sm:$0xf] %vm4987, %v4653
  %5231 = vst.msk [vmem:[%s3 + $0x3cc] sm:$0xf] %vm4987, %v4654
  %5232 = vst.msk [vmem:[%s3 + $0x3d0] sm:$0xf] %vm4987, %v4655
  %5233 = vst.msk [vmem:[%s3 + $0x3d4] sm:$0xf] %vm4987, %v4656
  %5234 = vst.msk [vmem:[%s3 + $0x3d8] sm:$0xf] %vm4987, %v4657
  %5235 = vst.msk [vmem:[%s3 + $0x3dc] sm:$0xf] %vm4987, %v4658
  %5236 = vst.msk [vmem:[%s3 + $0x3e0] sm:$0xf] %vm4987, %v4659
  %5237 = vst.msk [vmem:[%s3 + $0x3e4] sm:$0xf] %vm4987, %v4660
  %5238 = vst.msk [vmem:[%s3 + $0x3e8] sm:$0xf] %vm4987, %v4661
  %5239 = vst.msk [vmem:[%s3 + $0x3ec] sm:$0xf] %vm4987, %v4662
  %5240 = vst.msk [vmem:[%s3 + $0x3f0] sm:$0xf] %vm4987, %v4663
  %5241 = vst.msk [vmem:[%s3 + $0x3f4] sm:$0xf] %vm4987, %v4664
  %5242 = vst.msk [vmem:[%s3 + $0x3f8] sm:$0xf] %vm4987, %v4665
  %5243 = vst.msk [vmem:[%s3 + $0x3fc] sm:$0xf] %vm4987, %v4666
  %5244 = vst.msk [vmem:[%s3 + $0x400] sm:$0xf] %vm4987, %v4667
  %5245 = vst.msk [vmem:[%s3 + $0x404] sm:$0xf] %vm4987, %v4668
  %5246 = vst.msk [vmem:[%s3 + $0x408] sm:$0xf] %vm4987, %v4669
  %5247 = vst.msk [vmem:[%s3 + $0x40c] sm:$0xf] %vm4987, %v4670
  %5248 = vst.msk [vmem:[%s3 + $0x410] sm:$0xf] %vm4987, %v4671
  %5249 = vst.msk [vmem:[%s3 + $0x414] sm:$0xf] %vm4987, %v4672
  %5250 = vst.msk [vmem:[%s3 + $0x418] sm:$0xf] %vm4987, %v4673
  %5251 = vst.msk [vmem:[%s3 + $0x41c] sm:$0xf] %vm4987, %v4674
  %5252 = vst.msk [vmem:[%s3 + $0x420] sm:$0xf] %vm4987, %v4675
  %5253 = vst.msk [vmem:[%s3 + $0x424] sm:$0xf] %vm4987, %v4676
  %5254 = vst.msk [vmem:[%s3 + $0x428] sm:$0xf] %vm4987, %v4677
  %5255 = vst.msk [vmem:[%s3 + $0x42c] sm:$0xf] %vm4987, %v4678
  %5256 = vst.msk [vmem:[%s3 + $0x430] sm:$0xf] %vm4987, %v4679
  %5257 = vst.msk [vmem:[%s3 + $0x434] sm:$0xf] %vm4987, %v4680
  %5258 = vst.msk [vmem:[%s3 + $0x438] sm:$0xf] %vm4987, %v4681
  %5259 = vst.msk [vmem:[%s3 + $0x43c] sm:$0xf] %vm4987, %v4682
  %5260 = vst.msk [vmem:[%s3 + $0x440] sm:$0xf] %vm4987, %v4683
  %5261 = vst.msk [vmem:[%s3 + $0x444] sm:$0xf] %vm4987, %v4684
  %5262 = vst.msk [vmem:[%s3 + $0x448] sm:$0xf] %vm4987, %v4685
  %5263 = vst.msk [vmem:[%s3 + $0x44c] sm:$0xf] %vm4987, %v4686
  %5264 = vst.msk [vmem:[%s3 + $0x450] sm:$0xf] %vm4987, %v4687
  %5265 = vst.msk [vmem:[%s3 + $0x454] sm:$0xf] %vm4987, %v4688
  %5266 = vst.msk [vmem:[%s3 + $0x458] sm:$0xf] %vm4987, %v4689
  %5267 = vst.msk [vmem:[%s3 + $0x45c] sm:$0xf] %vm4987, %v4690
  %5268 = vst.msk [vmem:[%s3 + $0x460] sm:$0xf] %vm4987, %v4691
  %5269 = vst.msk [vmem:[%s3 + $0x464] sm:$0xf] %vm4987, %v4692
  %5270 = vst.msk [vmem:[%s3 + $0x468] sm:$0xf] %vm4987, %v4693
  %5271 = vst.msk [vmem:[%s3 + $0x46c] sm:$0xf] %vm4987, %v4694
  %5272 = vst.msk [vmem:[%s3 + $0x470] sm:$0xf] %vm4987, %v4695
  %5273 = vst.msk [vmem:[%s3 + $0x474] sm:$0xf] %vm4987, %v4696
  %5274 = vst.msk [vmem:[%s3 + $0x478] sm:$0xf] %vm4987, %v4697
  %5275 = vst.msk [vmem:[%s3 + $0x47c] sm:$0xf] %vm4987, %v4698
  %5276 = vst.msk [vmem:[%s3 + $0x480] sm:$0xf] %vm4987, %v4699
  %5277 = vst.msk [vmem:[%s3 + $0x484] sm:$0xf] %vm4987, %v4700
  %5278 = vst.msk [vmem:[%s3 + $0x488] sm:$0xf] %vm4987, %v4701
  %5279 = vst.msk [vmem:[%s3 + $0x48c] sm:$0xf] %vm4987, %v4702
  %5280 = vst.msk [vmem:[%s3 + $0x490] sm:$0xf] %vm4987, %v4703
  %5281 = vst.msk [vmem:[%s3 + $0x494] sm:$0xf] %vm4987, %v4704
  %5282 = vst.msk [vmem:[%s3 + $0x498] sm:$0xf] %vm4987, %v4705
  %5283 = vst.msk [vmem:[%s3 + $0x49c] sm:$0xf] %vm4987, %v4706
  %5284 = vst.msk [vmem:[%s3 + $0x4a0] sm:$0xf] %vm4987, %v4707
  %5285 = vst.msk [vmem:[%s3 + $0x4a4] sm:$0xf] %vm4987, %v4708
  %5286 = vst.msk [vmem:[%s3 + $0x4a8] sm:$0xf] %vm4987, %v4709
  %5287 = vst.msk [vmem:[%s3 + $0x4ac] sm:$0xf] %vm4987, %v4710
  %5288 = vst.msk [vmem:[%s3 + $0x4b0] sm:$0xf] %vm4987, %v4711
  %5289 = vst.msk [vmem:[%s3 + $0x4b4] sm:$0xf] %vm4987, %v4712
  %5290 = vst.msk [vmem:[%s3 + $0x4b8] sm:$0xf] %vm4987, %v4713
  %5291 = vst.msk [vmem:[%s3 + $0x4bc] sm:$0xf] %vm4987, %v4714
  %5292 = vst.msk [vmem:[%s3 + $0x4c0] sm:$0xf] %vm4987, %v4715
  %5293 = vst.msk [vmem:[%s3 + $0x4c4] sm:$0xf] %vm4987, %v4716
  %5294 = vst.msk [vmem:[%s3 + $0x4c8] sm:$0xf] %vm4987, %v4717
  %5295 = vst.msk [vmem:[%s3 + $0x4cc] sm:$0xf] %vm4987, %v4718
  %5296 = vst.msk [vmem:[%s3 + $0x4d0] sm:$0xf] %vm4987, %v4719
  %5297 = vst.msk [vmem:[%s3 + $0x4d4] sm:$0xf] %vm4987, %v4720
  %5298 = vst.msk [vmem:[%s3 + $0x4d8] sm:$0xf] %vm4987, %v4721
  %5299 = vst.msk [vmem:[%s3 + $0x4dc] sm:$0xf] %vm4987, %v4722
  %5300 = vst.msk [vmem:[%s3 + $0x4e0] sm:$0xf] %vm4987, %v4723
  %5301 = vst.msk [vmem:[%s3 + $0x4e4] sm:$0xf] %vm4987, %v4724
  %5302 = vst.msk [vmem:[%s3 + $0x4e8] sm:$0xf] %vm4987, %v4725
  %5303 = vst.msk [vmem:[%s3 + $0x4ec] sm:$0xf] %vm4987, %v4726
  %5304 = vst.msk [vmem:[%s3 + $0x4f0] sm:$0xf] %vm4987, %v4727
  %5305 = vst.msk [vmem:[%s3 + $0x4f4] sm:$0xf] %vm4987, %v4728
  %5306 = vst.msk [vmem:[%s3 + $0x4f8] sm:$0xf] %vm4987, %v4729
  %5307 = vst.msk [vmem:[%s3 + $0x4fc] sm:$0xf] %vm4987, %v4730
  %5308 = vst.msk [vmem:[%s3 + $0x500] sm:$0xf] %vm4987, %v4731
  %5309 = vst.msk [vmem:[%s3 + $0x504] sm:$0xf] %vm4987, %v4732
  %5310 = vst.msk [vmem:[%s3 + $0x508] sm:$0xf] %vm4987, %v4733
  %5311 = vst.msk [vmem:[%s3 + $0x50c] sm:$0xf] %vm4987, %v4734
  %5312 = vst.msk [vmem:[%s3 + $0x510] sm:$0xf] %vm4987, %v4735
  %5313 = vst.msk [vmem:[%s3 + $0x514] sm:$0xf] %vm4987, %v4736
  %5314 = vst.msk [vmem:[%s3 + $0x518] sm:$0xf] %vm4987, %v4737
  %5315 = vst.msk [vmem:[%s3 + $0x51c] sm:$0xf] %vm4987, %v4738
  %5316 = vst.msk [vmem:[%s3 + $0x520] sm:$0xf] %vm4987, %v4739
  %5317 = vst.msk [vmem:[%s3 + $0x524] sm:$0xf] %vm4987, %v4740
  %5318 = vst.msk [vmem:[%s3 + $0x528] sm:$0xf] %vm4987, %v4741
  %5319 = vst.msk [vmem:[%s3 + $0x52c] sm:$0xf] %vm4987, %v4742
  %5320 = vst.msk [vmem:[%s3 + $0x530] sm:$0xf] %vm4987, %v4743
  %5321 = vst.msk [vmem:[%s3 + $0x534] sm:$0xf] %vm4987, %v4744
  %5322 = vst.msk [vmem:[%s3 + $0x538] sm:$0xf] %vm4987, %v4745
  %5323 = vst.msk [vmem:[%s3 + $0x53c] sm:$0xf] %vm4987, %v4746
  %5324 = vst.msk [vmem:[%s3 + $0x540] sm:$0xf] %vm4987, %v4747
  %5325 = vst.msk [vmem:[%s3 + $0x544] sm:$0xf] %vm4987, %v4748
  %5326 = vst.msk [vmem:[%s3 + $0x548] sm:$0xf] %vm4987, %v4749
  %5327 = vst.msk [vmem:[%s3 + $0x54c] sm:$0xf] %vm4987, %v4750
  %5328 = vst.msk [vmem:[%s3 + $0x550] sm:$0xf] %vm4987, %v4751
  %5329 = vst.msk [vmem:[%s3 + $0x554] sm:$0xf] %vm4987, %v4752
  %5330 = vst.msk [vmem:[%s3 + $0x558] sm:$0xf] %vm4987, %v4753
  %5331 = vst.msk [vmem:[%s3 + $0x55c] sm:$0xf] %vm4987, %v4754
  %5332 = vst.msk [vmem:[%s3 + $0x560] sm:$0xf] %vm4987, %v4755
  %5333 = vst.msk [vmem:[%s3 + $0x564] sm:$0xf] %vm4987, %v4756
  %5334 = vst.msk [vmem:[%s3 + $0x568] sm:$0xf] %vm4987, %v4757
  %5335 = vst.msk [vmem:[%s3 + $0x56c] sm:$0xf] %vm4987, %v4758
  %5336 = vst.msk [vmem:[%s3 + $0x570] sm:$0xf] %vm4987, %v4759
  %5337 = vst.msk [vmem:[%s3 + $0x574] sm:$0xf] %vm4987, %v4760
  %5338 = vst.msk [vmem:[%s3 + $0x578] sm:$0xf] %vm4987, %v4761
  %5339 = vst.msk [vmem:[%s3 + $0x57c] sm:$0xf] %vm4987, %v4762
  %5340 = vst.msk [vmem:[%s3 + $0x580] sm:$0xf] %vm4987, %v4763
  %5341 = vst.msk [vmem:[%s3 + $0x584] sm:$0xf] %vm4987, %v4764
  %5342 = vst.msk [vmem:[%s3 + $0x588] sm:$0xf] %vm4987, %v4765
  %5343 = vst.msk [vmem:[%s3 + $0x58c] sm:$0xf] %vm4987, %v4766
  %5344 = vst.msk [vmem:[%s3 + $0x590] sm:$0xf] %vm4987, %v4767
  %5345 = vst.msk [vmem:[%s3 + $0x594] sm:$0xf] %vm4987, %v4768
  %5346 = vst.msk [vmem:[%s3 + $0x598] sm:$0xf] %vm4987, %v4769
  %5347 = vst.msk [vmem:[%s3 + $0x59c] sm:$0xf] %vm4987, %v4770
  %5348 = vst.msk [vmem:[%s3 + $0x5a0] sm:$0xf] %vm4987, %v4771
  %5349 = vst.msk [vmem:[%s3 + $0x5a4] sm:$0xf] %vm4987, %v4772
  %5350 = vst.msk [vmem:[%s3 + $0x5a8] sm:$0xf] %vm4987, %v4773
  %5351 = vst.msk [vmem:[%s3 + $0x5ac] sm:$0xf] %vm4987, %v4774
  %5352 = vst.msk [vmem:[%s3 + $0x5b0] sm:$0xf] %vm4987, %v4775
  %5353 = vst.msk [vmem:[%s3 + $0x5b4] sm:$0xf] %vm4987, %v4776
  %5354 = vst.msk [vmem:[%s3 + $0x5b8] sm:$0xf] %vm4987, %v4777
  %5355 = vst.msk [vmem:[%s3 + $0x5bc] sm:$0xf] %vm4987, %v4778
  %5356 = vst.msk [vmem:[%s3 + $0x5c0] sm:$0xf] %vm4987, %v4779
  %5357 = vst.msk [vmem:[%s3 + $0x5c4] sm:$0xf] %vm4987, %v4780
  %5358 = vst.msk [vmem:[%s3 + $0x5c8] sm:$0xf] %vm4987, %v4781
  %5359 = vst.msk [vmem:[%s3 + $0x5cc] sm:$0xf] %vm4987, %v4782
  %5360 = vst.msk [vmem:[%s3 + $0x5d0] sm:$0xf] %vm4987, %v4783
  %5361 = vst.msk [vmem:[%s3 + $0x5d4] sm:$0xf] %vm4987, %v4784
  %5362 = vst.msk [vmem:[%s3 + $0x5d8] sm:$0xf] %vm4987, %v4785
  %5363 = vst.msk [vmem:[%s3 + $0x5dc] sm:$0xf] %vm4987, %v4786
  %5364 = vst.msk [vmem:[%s3 + $0x5e0] sm:$0xf] %vm4987, %v4787
  %5365 = vst.msk [vmem:[%s3 + $0x5e4] sm:$0xf] %vm4987, %v4788
  %5366 = vst.msk [vmem:[%s3 + $0x5e8] sm:$0xf] %vm4987, %v4789
  %5367 = vst.msk [vmem:[%s3 + $0x5ec] sm:$0xf] %vm4987, %v4790
  %5368 = vst.msk [vmem:[%s3 + $0x5f0] sm:$0xf] %vm4987, %v4791
  %5369 = vst.msk [vmem:[%s3 + $0x5f4] sm:$0xf] %vm4987, %v4792
  %5370 = vst.msk [vmem:[%s3 + $0x5f8] sm:$0xf] %vm4987, %v4793
  %5371 = vst.msk [vmem:[%s3 + $0x5fc] sm:$0xf] %vm4987, %v4794
  %5372 = vst.msk [vmem:[%s3 + $0x600] sm:$0xf] %vm4987, %v4795
  %5373 = vst.msk [vmem:[%s3 + $0x604] sm:$0xf] %vm4987, %v4796
  %5374 = vst.msk [vmem:[%s3 + $0x608] sm:$0xf] %vm4987, %v4797
  %5375 = vst.msk [vmem:[%s3 + $0x60c] sm:$0xf] %vm4987, %v4798
  %5376 = vst.msk [vmem:[%s3 + $0x610] sm:$0xf] %vm4987, %v4799
  %5377 = vst.msk [vmem:[%s3 + $0x614] sm:$0xf] %vm4987, %v4800
  %5378 = vst.msk [vmem:[%s3 + $0x618] sm:$0xf] %vm4987, %v4801
  %5379 = vst.msk [vmem:[%s3 + $0x61c] sm:$0xf] %vm4987, %v4802
  %5380 = vst.msk [vmem:[%s3 + $0x620] sm:$0xf] %vm4987, %v4803
  %5381 = vst.msk [vmem:[%s3 + $0x624] sm:$0xf] %vm4987, %v4804
  %5382 = vst.msk [vmem:[%s3 + $0x628] sm:$0xf] %vm4987, %v4805
  %5383 = vst.msk [vmem:[%s3 + $0x62c] sm:$0xf] %vm4987, %v4806
  %5384 = vst.msk [vmem:[%s3 + $0x630] sm:$0xf] %vm4987, %v4807
  %5385 = vst.msk [vmem:[%s3 + $0x634] sm:$0xf] %vm4987, %v4808
  %5386 = vst.msk [vmem:[%s3 + $0x638] sm:$0xf] %vm4987, %v4809
  %5387 = vst.msk [vmem:[%s3 + $0x63c] sm:$0xf] %vm4987, %v4810
  %5388 = vst.msk [vmem:[%s3 + $0x640] sm:$0xf] %vm4987, %v4811
  %5389 = vst.msk [vmem:[%s3 + $0x644] sm:$0xf] %vm4987, %v4812
  %5390 = vst.msk [vmem:[%s3 + $0x648] sm:$0xf] %vm4987, %v4813
  %5391 = vst.msk [vmem:[%s3 + $0x64c] sm:$0xf] %vm4987, %v4814
  %5392 = vst.msk [vmem:[%s3 + $0x650] sm:$0xf] %vm4987, %v4815
  %5393 = vst.msk [vmem:[%s3 + $0x654] sm:$0xf] %vm4987, %v4816
  %5394 = vst.msk [vmem:[%s3 + $0x658] sm:$0xf] %vm4987, %v4817
  %5395 = vst.msk [vmem:[%s3 + $0x65c] sm:$0xf] %vm4987, %v4818
  %5396 = vst.msk [vmem:[%s3 + $0x660] sm:$0xf] %vm4987, %v4819
  %5397 = vst.msk [vmem:[%s3 + $0x664] sm:$0xf] %vm4987, %v4820
  %5398 = vst.msk [vmem:[%s3 + $0x668] sm:$0xf] %vm4987, %v4821
  %5399 = vst.msk [vmem:[%s3 + $0x66c] sm:$0xf] %vm4987, %v4822
  %5400 = vst.msk [vmem:[%s3 + $0x670] sm:$0xf] %vm4987, %v4823
  %5401 = vst.msk [vmem:[%s3 + $0x674] sm:$0xf] %vm4987, %v4824
  %5402 = vst.msk [vmem:[%s3 + $0x678] sm:$0xf] %vm4987, %v4825
  %5403 = vst.msk [vmem:[%s3 + $0x67c] sm:$0xf] %vm4987, %v4826
  %5404 = vst.msk [vmem:[%s3 + $0x680] sm:$0xf] %vm4987, %v4827
  %5405 = vst.msk [vmem:[%s3 + $0x684] sm:$0xf] %vm4987, %v4828
  %5406 = vst.msk [vmem:[%s3 + $0x688] sm:$0xf] %vm4987, %v4829
  %5407 = vst.msk [vmem:[%s3 + $0x68c] sm:$0xf] %vm4987, %v4830
  %5408 = vst.msk [vmem:[%s3 + $0x690] sm:$0xf] %vm4987, %v4831
  %5409 = vst.msk [vmem:[%s3 + $0x694] sm:$0xf] %vm4987, %v4832
  %5410 = vst.msk [vmem:[%s3 + $0x698] sm:$0xf] %vm4987, %v4833
  %5411 = vst.msk [vmem:[%s3 + $0x69c] sm:$0xf] %vm4987, %v4834
  %5412 = vst.msk [vmem:[%s3 + $0x6a0] sm:$0xf] %vm4987, %v4835
  %5413 = vst.msk [vmem:[%s3 + $0x6a4] sm:$0xf] %vm4987, %v4836
  %5414 = vst.msk [vmem:[%s3 + $0x6a8] sm:$0xf] %vm4987, %v4837
  %5415 = vst.msk [vmem:[%s3 + $0x6ac] sm:$0xf] %vm4987, %v4838
  %5416 = vst.msk [vmem:[%s3 + $0x6b0] sm:$0xf] %vm4987, %v4839
  %5417 = vst.msk [vmem:[%s3 + $0x6b4] sm:$0xf] %vm4987, %v4840
  %5418 = vst.msk [vmem:[%s3 + $0x6b8] sm:$0xf] %vm4987, %v4841
  %5419 = vst.msk [vmem:[%s3 + $0x6bc] sm:$0xf] %vm4987, %v4842
  %5420 = vst.msk [vmem:[%s3 + $0x6c0] sm:$0xf] %vm4987, %v4843
  %5421 = vst.msk [vmem:[%s3 + $0x6c4] sm:$0xf] %vm4987, %v4844
  %5422 = vst.msk [vmem:[%s3 + $0x6c8] sm:$0xf] %vm4987, %v4845
  %5423 = vst.msk [vmem:[%s3 + $0x6cc] sm:$0xf] %vm4987, %v4846
  %5424 = vst.msk [vmem:[%s3 + $0x6d0] sm:$0xf] %vm4987, %v4847
  %5425 = vst.msk [vmem:[%s3 + $0x6d4] sm:$0xf] %vm4987, %v4848
  %5426 = vst.msk [vmem:[%s3 + $0x6d8] sm:$0xf] %vm4987, %v4849
  %5427 = vst.msk [vmem:[%s3 + $0x6dc] sm:$0xf] %vm4987, %v4850
  %5428 = vst.msk [vmem:[%s3 + $0x6e0] sm:$0xf] %vm4987, %v4851
  %5429 = vst.msk [vmem:[%s3 + $0x6e4] sm:$0xf] %vm4987, %v4852
  %5430 = vst.msk [vmem:[%s3 + $0x6e8] sm:$0xf] %vm4987, %v4853
  %5431 = vst.msk [vmem:[%s3 + $0x6ec] sm:$0xf] %vm4987, %v4854
  %5432 = vst.msk [vmem:[%s3 + $0x6f0] sm:$0xf] %vm4987, %v4855
  %5433 = vst.msk [vmem:[%s3 + $0x6f4] sm:$0xf] %vm4987, %v4856
  %5434 = vst.msk [vmem:[%s3 + $0x6f8] sm:$0xf] %vm4987, %v4857
  %5435 = vst.msk [vmem:[%s3 + $0x6fc] sm:$0xf] %vm4987, %v4858
  %5436 = vst.msk [vmem:[%s3 + $0x700] sm:$0xf] %vm4987, %v4859
  %5437 = vst.msk [vmem:[%s3 + $0x704] sm:$0xf] %vm4987, %v4860
  %5438 = vst.msk [vmem:[%s3 + $0x708] sm:$0xf] %vm4987, %v4861
  %5439 = vst.msk [vmem:[%s3 + $0x70c] sm:$0xf] %vm4987, %v4862
  %5440 = vst.msk [vmem:[%s3 + $0x710] sm:$0xf] %vm4987, %v4863
  %5441 = vst.msk [vmem:[%s3 + $0x714] sm:$0xf] %vm4987, %v4864
  %5442 = vst.msk [vmem:[%s3 + $0x718] sm:$0xf] %vm4987, %v4865
  %5443 = vst.msk [vmem:[%s3 + $0x71c] sm:$0xf] %vm4987, %v4866
  %5444 = vst.msk [vmem:[%s3 + $0x720] sm:$0xf] %vm4987, %v4867
  %5445 = vst.msk [vmem:[%s3 + $0x724] sm:$0xf] %vm4987, %v4868
  %5446 = vst.msk [vmem:[%s3 + $0x728] sm:$0xf] %vm4987, %v4869
  %5447 = vst.msk [vmem:[%s3 + $0x72c] sm:$0xf] %vm4987, %v4870
  %5448 = vst.msk [vmem:[%s3 + $0x730] sm:$0xf] %vm4987, %v4871
  %5449 = vst.msk [vmem:[%s3 + $0x734] sm:$0xf] %vm4987, %v4872
  %5450 = vst.msk [vmem:[%s3 + $0x738] sm:$0xf] %vm4987, %v4873
  %5451 = vst.msk [vmem:[%s3 + $0x73c] sm:$0xf] %vm4987, %v4874
  %5452 = vst.msk [vmem:[%s3 + $0x740] sm:$0xf] %vm4987, %v4875
  %5453 = vst.msk [vmem:[%s3 + $0x744] sm:$0xf] %vm4987, %v4876
  %5454 = vst.msk [vmem:[%s3 + $0x748] sm:$0xf] %vm4987, %v4877
  %5455 = vst.msk [vmem:[%s3 + $0x74c] sm:$0xf] %vm4987, %v4878
  %5456 = vst.msk [vmem:[%s3 + $0x750] sm:$0xf] %vm4987, %v4879
  %5457 = vst.msk [vmem:[%s3 + $0x754] sm:$0xf] %vm4987, %v4880
  %5458 = vst.msk [vmem:[%s3 + $0x758] sm:$0xf] %vm4987, %v4881
  %5459 = vst.msk [vmem:[%s3 + $0x75c] sm:$0xf] %vm4987, %v4882
  %5460 = vst.msk [vmem:[%s3 + $0x760] sm:$0xf] %vm4987, %v4883
  %5461 = vst.msk [vmem:[%s3 + $0x764] sm:$0xf] %vm4987, %v4884
  %5462 = vst.msk [vmem:[%s3 + $0x768] sm:$0xf] %vm4987, %v4885
  %5463 = vst.msk [vmem:[%s3 + $0x76c] sm:$0xf] %vm4987, %v4886
  %5464 = vst.msk [vmem:[%s3 + $0x770] sm:$0xf] %vm4987, %v4887
  %5465 = vst.msk [vmem:[%s3 + $0x774] sm:$0xf] %vm4987, %v4888
  %5466 = vst.msk [vmem:[%s3 + $0x778] sm:$0xf] %vm4987, %v4889
  %5467 = vst.msk [vmem:[%s3 + $0x77c] sm:$0xf] %vm4987, %v4890
  %5468 = vst.msk [vmem:[%s3 + $0x780] sm:$0xf] %vm4987, %v4891
  %5469 = vst.msk [vmem:[%s3 + $0x784] sm:$0xf] %vm4987, %v4892
  %5470 = vst.msk [vmem:[%s3 + $0x788] sm:$0xf] %vm4987, %v4893
  %5471 = vst.msk [vmem:[%s3 + $0x78c] sm:$0xf] %vm4987, %v4894
  %5472 = vst.msk [vmem:[%s3 + $0x790] sm:$0xf] %vm4987, %v4895
  %5473 = vst.msk [vmem:[%s3 + $0x794] sm:$0xf] %vm4987, %v4896
  %5474 = vst.msk [vmem:[%s3 + $0x798] sm:$0xf] %vm4987, %v4897
  %5475 = vst.msk [vmem:[%s3 + $0x79c] sm:$0xf] %vm4987, %v4898
  %5476 = vst.msk [vmem:[%s3 + $0x7a0] sm:$0xf] %vm4987, %v4899
  %5477 = vst.msk [vmem:[%s3 + $0x7a4] sm:$0xf] %vm4987, %v4900
  %5478 = vst.msk [vmem:[%s3 + $0x7a8] sm:$0xf] %vm4987, %v4901
  %5479 = vst.msk [vmem:[%s3 + $0x7ac] sm:$0xf] %vm4987, %v4902
  %5480 = vst.msk [vmem:[%s3 + $0x7b0] sm:$0xf] %vm4987, %v4903
  %5481 = vst.msk [vmem:[%s3 + $0x7b4] sm:$0xf] %vm4987, %v4904
  %5482 = vst.msk [vmem:[%s3 + $0x7b8] sm:$0xf] %vm4987, %v4905
  %5483 = vst.msk [vmem:[%s3 + $0x7bc] sm:$0xf] %vm4987, %v4906
  %5484 = vst.msk [vmem:[%s3 + $0x7c0] sm:$0xf] %vm4987, %v4907
  %5485 = vst.msk [vmem:[%s3 + $0x7c4] sm:$0xf] %vm4987, %v4908
  %5486 = vst.msk [vmem:[%s3 + $0x7c8] sm:$0xf] %vm4987, %v4909
  %5487 = vst.msk [vmem:[%s3 + $0x7cc] sm:$0xf] %vm4987, %v4910
  %5488 = vst.msk [vmem:[%s3 + $0x7d0] sm:$0xf] %vm4987, %v4911
  %5489 = vst.msk [vmem:[%s3 + $0x7d4] sm:$0xf] %vm4987, %v4912
  %5490 = vst.msk [vmem:[%s3 + $0x7d8] sm:$0xf] %vm4987, %v4913
  %5491 = vst.msk [vmem:[%s3 + $0x7dc] sm:$0xf] %vm4987, %v4914
  %5492 = vst.msk [vmem:[%s3 + $0x7e0] sm:$0xf] %vm4987, %v4915
  %5493 = vst.msk [vmem:[%s3 + $0x7e4] sm:$0xf] %vm4987, %v4916
  %5494 = vst.msk [vmem:[%s3 + $0x7e8] sm:$0xf] %vm4987, %v4917
  %5495 = vst.msk [vmem:[%s3 + $0x7ec] sm:$0xf] %vm4987, %v4918
  %5496 = vst.msk [vmem:[%s3 + $0x7f0] sm:$0xf] %vm4987, %v4919
  %5497 = vst.msk [vmem:[%s3 + $0x7f4] sm:$0xf] %vm4987, %v4920
  %5498 = vst.msk [vmem:[%s3 + $0x7f8] sm:$0xf] %vm4987, %v4921
  %5499 = vst.msk [vmem:[%s3 + $0x7fc] sm:$0xf] %vm4987, %v4922
  %5500 = vst.msk [vmem:[%s3 + $0x800] sm:$0xf] %vm4987, %v4923
  %5501 = vst.msk [vmem:[%s3 + $0x804] sm:$0xf] %vm4987, %v4924
  %5502 = vst.msk [vmem:[%s3 + $0x808] sm:$0xf] %vm4987, %v4925
  %5503 = vst.msk [vmem:[%s3 + $0x80c] sm:$0xf] %vm4987, %v4926
  %5504 = vst.msk [vmem:[%s3 + $0x810] sm:$0xf] %vm4987, %v4927
  %5505 = vst.msk [vmem:[%s3 + $0x814] sm:$0xf] %vm4987, %v4928
  %5506 = vst.msk [vmem:[%s3 + $0x818] sm:$0xf] %vm4987, %v4929
  %5507 = vst.msk [vmem:[%s3 + $0x81c] sm:$0xf] %vm4987, %v4930
  %5508 = vst.msk [vmem:[%s3 + $0x820] sm:$0xf] %vm4987, %v4931
  %5509 = vst.msk [vmem:[%s3 + $0x824] sm:$0xf] %vm4987, %v4932
  %5510 = vst.msk [vmem:[%s3 + $0x828] sm:$0xf] %vm4987, %v4933
  %5511 = vst.msk [vmem:[%s3 + $0x82c] sm:$0xf] %vm4987, %v4934
  %5512 = vst.msk [vmem:[%s3 + $0x830] sm:$0xf] %vm4987, %v4935
  %5513 = vst.msk [vmem:[%s3 + $0x834] sm:$0xf] %vm4987, %v4936
  %5514 = vst.msk [vmem:[%s3 + $0x838] sm:$0xf] %vm4987, %v4937
  %5515 = vst.msk [vmem:[%s3 + $0x83c] sm:$0xf] %vm4987, %v4938
  %5516 = vst.msk [vmem:[%s3 + $0x840] sm:$0xf] %vm4987, %v4939
  %5517 = vst.msk [vmem:[%s3 + $0x844] sm:$0xf] %vm4987, %v4940
  %5518 = vst.msk [vmem:[%s3 + $0x848] sm:$0xf] %vm4987, %v4941
  %5519 = vst.msk [vmem:[%s3 + $0x84c] sm:$0xf] %vm4987, %v4942
  %5520 = vst.msk [vmem:[%s3 + $0x850] sm:$0xf] %vm4987, %v4943
  %5521 = vst.msk [vmem:[%s3 + $0x854] sm:$0xf] %vm4987, %v4944
  %5522 = vst.msk [vmem:[%s3 + $0x858] sm:$0xf] %vm4987, %v4945
  %5523 = vst.msk [vmem:[%s3 + $0x85c] sm:$0xf] %vm4987, %v4946
  %5524 = vst.msk [vmem:[%s3 + $0x860] sm:$0xf] %vm4987, %v4947
  %5525 = vst.msk [vmem:[%s3 + $0x864] sm:$0xf] %vm4987, %v4948
  %5526 = vst.msk [vmem:[%s3 + $0x868] sm:$0xf] %vm4987, %v4949
  %5527 = vst.msk [vmem:[%s3 + $0x86c] sm:$0xf] %vm4987, %v4950
  %5528 = vst.msk [vmem:[%s3 + $0x870] sm:$0xf] %vm4987, %v4951
  %5529 = vst.msk [vmem:[%s3 + $0x874] sm:$0xf] %vm4987, %v4952
  %5530 = vst.msk [vmem:[%s3 + $0x878] sm:$0xf] %vm4987, %v4953
  %5531 = vst.msk [vmem:[%s3 + $0x87c] sm:$0xf] %vm4987, %v4954
  %5532 = vst.msk [vmem:[%s3 + $0x880] sm:$0xf] %vm4987, %v4955
  %5533 = vst.msk [vmem:[%s3 + $0x884] sm:$0xf] %vm4987, %v4956
  %5534 = vst.msk [vmem:[%s3 + $0x888] sm:$0xf] %vm4987, %v4957
  %5535 = vst.msk [vmem:[%s3 + $0x88c] sm:$0xf] %vm4987, %v4958
  %5536 = vst.msk [vmem:[%s3 + $0x890] sm:$0xf] %vm4987, %v4959
  %5537 = vst.msk [vmem:[%s3 + $0x894] sm:$0xf] %vm4987, %v4960
  %5538 = vst.msk [vmem:[%s3 + $0x898] sm:$0xf] %vm4987, %v4961
  %5539 = vst.msk [vmem:[%s3 + $0x89c] sm:$0xf] %vm4987, %v4962
  %5540 = vst.msk [vmem:[%s3 + $0x8a0] sm:$0xf] %vm4987, %v4963
  %5541 = vst.msk [vmem:[%s3 + $0x8a4] sm:$0xf] %vm4987, %v4964
  %5542 = vst.msk [vmem:[%s3 + $0x8a8] sm:$0xf] %vm4987, %v4965
  %5543 = vst.msk [vmem:[%s3 + $0x8ac] sm:$0xf] %vm4987, %v4966
  %5544 = vst.msk [vmem:[%s3 + $0x8b0] sm:$0xf] %vm4987, %v4967
  %5545 = vst.msk [vmem:[%s3 + $0x8b4] sm:$0xf] %vm4987, %v4968
  %5546 = vst.msk [vmem:[%s3 + $0x8b8] sm:$0xf] %vm4987, %v4969
  %5547 = vst.msk [vmem:[%s3 + $0x8bc] sm:$0xf] %vm4987, %v4970
  %5548 = vst.msk [vmem:[%s3 + $0x8c0] sm:$0xf] %vm4987, %v4971
  %5549 = vst.msk [vmem:[%s3 + $0x8c4] sm:$0xf] %vm4987, %v4972
  %5550 = vst.msk [vmem:[%s3 + $0x8c8] sm:$0xf] %vm4987, %v4973
  %5551 = vst.msk [vmem:[%s3 + $0x8cc] sm:$0xf] %vm4987, %v4974
  %5552 = vst.msk [vmem:[%s3 + $0x8d0] sm:$0xf] %vm4987, %v4975
  %5553 = vst.msk [vmem:[%s3 + $0x8d4] sm:$0xf] %vm4987, %v4976
  %5554 = vst.msk [vmem:[%s3 + $0x8d8] sm:$0xf] %vm4987, %v4977
  %5555 = vst.msk [vmem:[%s3 + $0x8dc] sm:$0xf] %vm4987, %v4978
  %5556 = vst.msk [vmem:[%s3 + $0x8e0] sm:$0xf] %vm4987, %v4979
  %5557 = vst.msk [vmem:[%s3 + $0x8e4] sm:$0xf] %vm4987, %v4980
  %5558 = vst.msk [vmem:[%s3 + $0x8e8] sm:$0xf] %vm4987, %v4981
  %5559 = vst.msk [vmem:[%s3 + $0x8ec] sm:$0xf] %vm4987, %v4982
  %5560 = vst.msk [vmem:[%s3 + $0x8f0] sm:$0xf] %vm4987, %v4983
  %5561 = vst.msk [vmem:[%s3 + $0x8f4] sm:$0xf] %vm4987, %v4984
  %5562 = vst.msk [vmem:[%s3 + $0x8f8] sm:$0xf] %vm4987, %v4985
  %5563 = vst.msk [vmem:[%s3 + $0x8fc] sm:$0xf] %vm4987, %v4986
  // Predicated region
  $region14: #{vae_encoder_forward.3} parent=0 // pred_check
    _
  $region15: #{vae_encoder_forward.3} parent=0 // pred_check_branch
    %5565 = sbr.rel (0) target = $region17
  $region16: #{vae_encoder_forward.3} parent=0 // pred_region
    _
  $region17: #{vae_encoder_forward.3} parent=0 // pred_fallthru
    _
  // Predicated region
  $region18: #{vae_encoder_forward.3} parent=0 // pred_check
    _
  $region19: #{vae_encoder_forward.3} parent=0 // pred_check_branch
    %5567 = sbr.rel (0) target = $region21
  $region20: #{vae_encoder_forward.3} parent=0 // pred_region
    _
  $region21: #{vae_encoder_forward.3} parent=0 // pred_fallthru
    _

// kernel: vae_encoder_forward.4
$region0: #{vae_encoder_forward.4}
  #allocation0 [shape = 'u32[]', space=smem, size = 0x4, offset = 0x4, fixed_abs, tag = 'smem constant byte address 0x4 - core index']
  #allocation1 [shape = 'u32[72,128]{1,0:T(1,128)}', space=vmem, size = 0x9000, scoped, tag = 'internal scratch']
  %s0 = inlined_call_operand.vmem [shape: bf16[1152,512], index: 0, kind: input, shape index: {}]
  %s1 = inlined_call_operand.vmem [shape: bf16[512,64], index: 1, kind: input, shape index: {}]
  %s2 = inlined_call_operand.vmem [shape: f32[1,64], index: 2, kind: input, shape index: {}]
  %s3 = inlined_call_operand.vmem [shape: bf16[1152,64], index: 3, kind: output, shape index: {}]
  %s4 = sld [smem:[#allocation0]]
  $region22: #{vae_encoder_forward.4} parent=0
    _
  %s6 = ssub.s32 1, %s4
  %s7 = scalar_select 0, %s6, %s4
  // Predicated region
  $region2: #{vae_encoder_forward.4} parent=0 // pred_check
    _
  $region3: #{vae_encoder_forward.4} parent=0 // pred_check_branch
    %9 = sbr.rel (0) target = $region5
  $region4: #{vae_encoder_forward.4} parent=0 // pred_region
    _
  $region5: #{vae_encoder_forward.4} parent=0 // pred_fallthru
    _
  // Predicated region
  $region6: #{vae_encoder_forward.4} parent=0 // pred_check
    _
  $region7: #{vae_encoder_forward.4} parent=0 // pred_check_branch
    %11 = sbr.rel (0) target = $region9
  $region8: #{vae_encoder_forward.4} parent=0 // pred_region
    _
  $region9: #{vae_encoder_forward.4} parent=0 // pred_fallthru
    _
  // Predicated region
  $region10: #{vae_encoder_forward.4} parent=0 // pred_check
    _
  $region11: #{vae_encoder_forward.4} parent=0 // pred_check_branch
    %13 = sbr.rel (0) target = $region13
  $region12: #{vae_encoder_forward.4} parent=0 // pred_region
    _
  $region13: #{vae_encoder_forward.4} parent=0 // pred_fallthru
    _
  %v14 = vld [vmem:[%s0] sm:$0xff]
  %v15 = vld [vmem:[%s0 + $0x8] sm:$0xff]
  %v16 = vld [vmem:[%s0 + $0x10] sm:$0xff]
  %v17 = vld [vmem:[%s0 + $0x18] sm:$0xff]
  %v18 = vld [vmem:[%s0 + $0x20] sm:$0xff]
  %v19 = vld [vmem:[%s0 + $0x28] sm:$0xff]
  %v20 = vld [vmem:[%s0 + $0x30] sm:$0xff]
  %v21 = vld [vmem:[%s0 + $0x38] sm:$0xff]
  %v22 = vld [vmem:[%s0 + $0x40] sm:$0xff]
  %v23 = vld [vmem:[%s0 + $0x48] sm:$0xff]
  %v24 = vld [vmem:[%s0 + $0x50] sm:$0xff]
  %v25 = vld [vmem:[%s0 + $0x58] sm:$0xff]
  %v26 = vld [vmem:[%s0 + $0x60] sm:$0xff]
  %v27 = vld [vmem:[%s0 + $0x68] sm:$0xff]
  %v28 = vld [vmem:[%s0 + $0x70] sm:$0xff]
  %v29 = vld [vmem:[%s0 + $0x78] sm:$0xff]
  %v30 = vld [vmem:[%s0 + $0x80] sm:$0xff]
  %v31 = vld [vmem:[%s0 + $0x88] sm:$0xff]
  %v32 = vld [vmem:[%s0 + $0x90] sm:$0xff]
  %v33 = vld [vmem:[%s0 + $0x98] sm:$0xff]
  %v34 = vld [vmem:[%s0 + $0xa0] sm:$0xff]
  %v35 = vld [vmem:[%s0 + $0xa8] sm:$0xff]
  %v36 = vld [vmem:[%s0 + $0xb0] sm:$0xff]
  %v37 = vld [vmem:[%s0 + $0xb8] sm:$0xff]
  %v38 = vld [vmem:[%s0 + $0xc0] sm:$0xff]
  %v39 = vld [vmem:[%s0 + $0xc8] sm:$0xff]
  %v40 = vld [vmem:[%s0 + $0xd0] sm:$0xff]
  %v41 = vld [vmem:[%s0 + $0xd8] sm:$0xff]
  %v42 = vld [vmem:[%s0 + $0xe0] sm:$0xff]
  %v43 = vld [vmem:[%s0 + $0xe8] sm:$0xff]
  %v44 = vld [vmem:[%s0 + $0xf0] sm:$0xff]
  %v45 = vld [vmem:[%s0 + $0xf8] sm:$0xff]
  %v46 = vld [vmem:[%s0 + $0x100] sm:$0xff]
  %v47 = vld [vmem:[%s0 + $0x108] sm:$0xff]
  %v48 = vld [vmem:[%s0 + $0x110] sm:$0xff]
  %v49 = vld [vmem:[%s0 + $0x118] sm:$0xff]
  %v50 = vld [vmem:[%s0 + $0x120] sm:$0xff]
  %v51 = vld [vmem:[%s0 + $0x128] sm:$0xff]
  %v52 = vld [vmem:[%s0 + $0x130] sm:$0xff]
  %v53 = vld [vmem:[%s0 + $0x138] sm:$0xff]
  %v54 = vld [vmem:[%s0 + $0x140] sm:$0xff]
  %v55 = vld [vmem:[%s0 + $0x148] sm:$0xff]
  %v56 = vld [vmem:[%s0 + $0x150] sm:$0xff]
  %v57 = vld [vmem:[%s0 + $0x158] sm:$0xff]
  %v58 = vld [vmem:[%s0 + $0x160] sm:$0xff]
  %v59 = vld [vmem:[%s0 + $0x168] sm:$0xff]
  %v60 = vld [vmem:[%s0 + $0x170] sm:$0xff]
  %v61 = vld [vmem:[%s0 + $0x178] sm:$0xff]
  %v62 = vld [vmem:[%s0 + $0x180] sm:$0xff]
  %v63 = vld [vmem:[%s0 + $0x188] sm:$0xff]
  %v64 = vld [vmem:[%s0 + $0x190] sm:$0xff]
  %v65 = vld [vmem:[%s0 + $0x198] sm:$0xff]
  %v66 = vld [vmem:[%s0 + $0x1a0] sm:$0xff]
  %v67 = vld [vmem:[%s0 + $0x1a8] sm:$0xff]
  %v68 = vld [vmem:[%s0 + $0x1b0] sm:$0xff]
  %v69 = vld [vmem:[%s0 + $0x1b8] sm:$0xff]
  %v70 = vld [vmem:[%s0 + $0x1c0] sm:$0xff]
  %v71 = vld [vmem:[%s0 + $0x1c8] sm:$0xff]
  %v72 = vld [vmem:[%s0 + $0x1d0] sm:$0xff]
  %v73 = vld [vmem:[%s0 + $0x1d8] sm:$0xff]
  %v74 = vld [vmem:[%s0 + $0x1e0] sm:$0xff]
  %v75 = vld [vmem:[%s0 + $0x1e8] sm:$0xff]
  %v76 = vld [vmem:[%s0 + $0x1f0] sm:$0xff]
  %v77 = vld [vmem:[%s0 + $0x1f8] sm:$0xff]
  %v78 = vld [vmem:[%s0 + $0x200] sm:$0xff]
  %v79 = vld [vmem:[%s0 + $0x208] sm:$0xff]
  %v80 = vld [vmem:[%s0 + $0x210] sm:$0xff]
  %v81 = vld [vmem:[%s0 + $0x218] sm:$0xff]
  %v82 = vld [vmem:[%s0 + $0x220] sm:$0xff]
  %v83 = vld [vmem:[%s0 + $0x228] sm:$0xff]
  %v84 = vld [vmem:[%s0 + $0x230] sm:$0xff]
  %v85 = vld [vmem:[%s0 + $0x238] sm:$0xff]
  %v86 = vld [vmem:[%s0 + $0x240] sm:$0xff]
  %v87 = vld [vmem:[%s0 + $0x248] sm:$0xff]
  %v88 = vld [vmem:[%s0 + $0x250] sm:$0xff]
  %v89 = vld [vmem:[%s0 + $0x258] sm:$0xff]
  %v90 = vld [vmem:[%s0 + $0x260] sm:$0xff]
  %v91 = vld [vmem:[%s0 + $0x268] sm:$0xff]
  %v92 = vld [vmem:[%s0 + $0x270] sm:$0xff]
  %v93 = vld [vmem:[%s0 + $0x278] sm:$0xff]
  %v94 = vld [vmem:[%s0 + $0x280] sm:$0xff]
  %v95 = vld [vmem:[%s0 + $0x288] sm:$0xff]
  %v96 = vld [vmem:[%s0 + $0x290] sm:$0xff]
  %v97 = vld [vmem:[%s0 + $0x298] sm:$0xff]
  %v98 = vld [vmem:[%s0 + $0x2a0] sm:$0xff]
  %v99 = vld [vmem:[%s0 + $0x2a8] sm:$0xff]
  %v100 = vld [vmem:[%s0 + $0x2b0] sm:$0xff]
  %v101 = vld [vmem:[%s0 + $0x2b8] sm:$0xff]
  %v102 = vld [vmem:[%s0 + $0x2c0] sm:$0xff]
  %v103 = vld [vmem:[%s0 + $0x2c8] sm:$0xff]
  %v104 = vld [vmem:[%s0 + $0x2d0] sm:$0xff]
  %v105 = vld [vmem:[%s0 + $0x2d8] sm:$0xff]
  %v106 = vld [vmem:[%s0 + $0x2e0] sm:$0xff]
  %v107 = vld [vmem:[%s0 + $0x2e8] sm:$0xff]
  %v108 = vld [vmem:[%s0 + $0x2f0] sm:$0xff]
  %v109 = vld [vmem:[%s0 + $0x2f8] sm:$0xff]
  %v110 = vld [vmem:[%s0 + $0x300] sm:$0xff]
  %v111 = vld [vmem:[%s0 + $0x308] sm:$0xff]
  %v112 = vld [vmem:[%s0 + $0x310] sm:$0xff]
  %v113 = vld [vmem:[%s0 + $0x318] sm:$0xff]
  %v114 = vld [vmem:[%s0 + $0x320] sm:$0xff]
  %v115 = vld [vmem:[%s0 + $0x328] sm:$0xff]
  %v116 = vld [vmem:[%s0 + $0x330] sm:$0xff]
  %v117 = vld [vmem:[%s0 + $0x338] sm:$0xff]
  %v118 = vld [vmem:[%s0 + $0x340] sm:$0xff]
  %v119 = vld [vmem:[%s0 + $0x348] sm:$0xff]
  %v120 = vld [vmem:[%s0 + $0x350] sm:$0xff]
  %v121 = vld [vmem:[%s0 + $0x358] sm:$0xff]
  %v122 = vld [vmem:[%s0 + $0x360] sm:$0xff]
  %v123 = vld [vmem:[%s0 + $0x368] sm:$0xff]
  %v124 = vld [vmem:[%s0 + $0x370] sm:$0xff]
  %v125 = vld [vmem:[%s0 + $0x378] sm:$0xff]
  %v126 = vld [vmem:[%s0 + $0x380] sm:$0xff]
  %v127 = vld [vmem:[%s0 + $0x388] sm:$0xff]
  %v128 = vld [vmem:[%s0 + $0x390] sm:$0xff]
  %v129 = vld [vmem:[%s0 + $0x398] sm:$0xff]
  %v130 = vld [vmem:[%s0 + $0x3a0] sm:$0xff]
  %v131 = vld [vmem:[%s0 + $0x3a8] sm:$0xff]
  %v132 = vld [vmem:[%s0 + $0x3b0] sm:$0xff]
  %v133 = vld [vmem:[%s0 + $0x3b8] sm:$0xff]
  %v134 = vld [vmem:[%s0 + $0x3c0] sm:$0xff]
  %v135 = vld [vmem:[%s0 + $0x3c8] sm:$0xff]
  %v136 = vld [vmem:[%s0 + $0x3d0] sm:$0xff]
  %v137 = vld [vmem:[%s0 + $0x3d8] sm:$0xff]
  %v138 = vld [vmem:[%s0 + $0x3e0] sm:$0xff]
  %v139 = vld [vmem:[%s0 + $0x3e8] sm:$0xff]
  %v140 = vld [vmem:[%s0 + $0x3f0] sm:$0xff]
  %v141 = vld [vmem:[%s0 + $0x3f8] sm:$0xff]
  %v142 = vld [vmem:[%s0 + $0x400] sm:$0xff]
  %v143 = vld [vmem:[%s0 + $0x408] sm:$0xff]
  %v144 = vld [vmem:[%s0 + $0x410] sm:$0xff]
  %v145 = vld [vmem:[%s0 + $0x418] sm:$0xff]
  %v146 = vld [vmem:[%s0 + $0x420] sm:$0xff]
  %v147 = vld [vmem:[%s0 + $0x428] sm:$0xff]
  %v148 = vld [vmem:[%s0 + $0x430] sm:$0xff]
  %v149 = vld [vmem:[%s0 + $0x438] sm:$0xff]
  %v150 = vld [vmem:[%s0 + $0x440] sm:$0xff]
  %v151 = vld [vmem:[%s0 + $0x448] sm:$0xff]
  %v152 = vld [vmem:[%s0 + $0x450] sm:$0xff]
  %v153 = vld [vmem:[%s0 + $0x458] sm:$0xff]
  %v154 = vld [vmem:[%s0 + $0x460] sm:$0xff]
  %v155 = vld [vmem:[%s0 + $0x468] sm:$0xff]
  %v156 = vld [vmem:[%s0 + $0x470] sm:$0xff]
  %v157 = vld [vmem:[%s0 + $0x478] sm:$0xff]
  %v158 = vld [vmem:[%s0 + $0x480] sm:$0xff]
  %v159 = vld [vmem:[%s0 + $0x488] sm:$0xff]
  %v160 = vld [vmem:[%s0 + $0x490] sm:$0xff]
  %v161 = vld [vmem:[%s0 + $0x498] sm:$0xff]
  %v162 = vld [vmem:[%s0 + $0x4a0] sm:$0xff]
  %v163 = vld [vmem:[%s0 + $0x4a8] sm:$0xff]
  %v164 = vld [vmem:[%s0 + $0x4b0] sm:$0xff]
  %v165 = vld [vmem:[%s0 + $0x4b8] sm:$0xff]
  %v166 = vld [vmem:[%s0 + $0x4c0] sm:$0xff]
  %v167 = vld [vmem:[%s0 + $0x4c8] sm:$0xff]
  %v168 = vld [vmem:[%s0 + $0x4d0] sm:$0xff]
  %v169 = vld [vmem:[%s0 + $0x4d8] sm:$0xff]
  %v170 = vld [vmem:[%s0 + $0x4e0] sm:$0xff]
  %v171 = vld [vmem:[%s0 + $0x4e8] sm:$0xff]
  %v172 = vld [vmem:[%s0 + $0x4f0] sm:$0xff]
  %v173 = vld [vmem:[%s0 + $0x4f8] sm:$0xff]
  %v174 = vld [vmem:[%s0 + $0x500] sm:$0xff]
  %v175 = vld [vmem:[%s0 + $0x508] sm:$0xff]
  %v176 = vld [vmem:[%s0 + $0x510] sm:$0xff]
  %v177 = vld [vmem:[%s0 + $0x518] sm:$0xff]
  %v178 = vld [vmem:[%s0 + $0x520] sm:$0xff]
  %v179 = vld [vmem:[%s0 + $0x528] sm:$0xff]
  %v180 = vld [vmem:[%s0 + $0x530] sm:$0xff]
  %v181 = vld [vmem:[%s0 + $0x538] sm:$0xff]
  %v182 = vld [vmem:[%s0 + $0x540] sm:$0xff]
  %v183 = vld [vmem:[%s0 + $0x548] sm:$0xff]
  %v184 = vld [vmem:[%s0 + $0x550] sm:$0xff]
  %v185 = vld [vmem:[%s0 + $0x558] sm:$0xff]
  %v186 = vld [vmem:[%s0 + $0x560] sm:$0xff]
  %v187 = vld [vmem:[%s0 + $0x568] sm:$0xff]
  %v188 = vld [vmem:[%s0 + $0x570] sm:$0xff]
  %v189 = vld [vmem:[%s0 + $0x578] sm:$0xff]
  %v190 = vld [vmem:[%s0 + $0x580] sm:$0xff]
  %v191 = vld [vmem:[%s0 + $0x588] sm:$0xff]
  %v192 = vld [vmem:[%s0 + $0x590] sm:$0xff]
  %v193 = vld [vmem:[%s0 + $0x598] sm:$0xff]
  %v194 = vld [vmem:[%s0 + $0x5a0] sm:$0xff]
  %v195 = vld [vmem:[%s0 + $0x5a8] sm:$0xff]
  %v196 = vld [vmem:[%s0 + $0x5b0] sm:$0xff]
  %v197 = vld [vmem:[%s0 + $0x5b8] sm:$0xff]
  %v198 = vld [vmem:[%s0 + $0x5c0] sm:$0xff]
  %v199 = vld [vmem:[%s0 + $0x5c8] sm:$0xff]
  %v200 = vld [vmem:[%s0 + $0x5d0] sm:$0xff]
  %v201 = vld [vmem:[%s0 + $0x5d8] sm:$0xff]
  %v202 = vld [vmem:[%s0 + $0x5e0] sm:$0xff]
  %v203 = vld [vmem:[%s0 + $0x5e8] sm:$0xff]
  %v204 = vld [vmem:[%s0 + $0x5f0] sm:$0xff]
  %v205 = vld [vmem:[%s0 + $0x5f8] sm:$0xff]
  %v206 = vld [vmem:[%s0 + $0x600] sm:$0xff]
  %v207 = vld [vmem:[%s0 + $0x608] sm:$0xff]
  %v208 = vld [vmem:[%s0 + $0x610] sm:$0xff]
  %v209 = vld [vmem:[%s0 + $0x618] sm:$0xff]
  %v210 = vld [vmem:[%s0 + $0x620] sm:$0xff]
  %v211 = vld [vmem:[%s0 + $0x628] sm:$0xff]
  %v212 = vld [vmem:[%s0 + $0x630] sm:$0xff]
  %v213 = vld [vmem:[%s0 + $0x638] sm:$0xff]
  %v214 = vld [vmem:[%s0 + $0x640] sm:$0xff]
  %v215 = vld [vmem:[%s0 + $0x648] sm:$0xff]
  %v216 = vld [vmem:[%s0 + $0x650] sm:$0xff]
  %v217 = vld [vmem:[%s0 + $0x658] sm:$0xff]
  %v218 = vld [vmem:[%s0 + $0x660] sm:$0xff]
  %v219 = vld [vmem:[%s0 + $0x668] sm:$0xff]
  %v220 = vld [vmem:[%s0 + $0x670] sm:$0xff]
  %v221 = vld [vmem:[%s0 + $0x678] sm:$0xff]
  %v222 = vld [vmem:[%s0 + $0x680] sm:$0xff]
  %v223 = vld [vmem:[%s0 + $0x688] sm:$0xff]
  %v224 = vld [vmem:[%s0 + $0x690] sm:$0xff]
  %v225 = vld [vmem:[%s0 + $0x698] sm:$0xff]
  %v226 = vld [vmem:[%s0 + $0x6a0] sm:$0xff]
  %v227 = vld [vmem:[%s0 + $0x6a8] sm:$0xff]
  %v228 = vld [vmem:[%s0 + $0x6b0] sm:$0xff]
  %v229 = vld [vmem:[%s0 + $0x6b8] sm:$0xff]
  %v230 = vld [vmem:[%s0 + $0x6c0] sm:$0xff]
  %v231 = vld [vmem:[%s0 + $0x6c8] sm:$0xff]
  %v232 = vld [vmem:[%s0 + $0x6d0] sm:$0xff]
  %v233 = vld [vmem:[%s0 + $0x6d8] sm:$0xff]
  %v234 = vld [vmem:[%s0 + $0x6e0] sm:$0xff]
  %v235 = vld [vmem:[%s0 + $0x6e8] sm:$0xff]
  %v236 = vld [vmem:[%s0 + $0x6f0] sm:$0xff]
  %v237 = vld [vmem:[%s0 + $0x6f8] sm:$0xff]
  %v238 = vld [vmem:[%s0 + $0x700] sm:$0xff]
  %v239 = vld [vmem:[%s0 + $0x708] sm:$0xff]
  %v240 = vld [vmem:[%s0 + $0x710] sm:$0xff]
  %v241 = vld [vmem:[%s0 + $0x718] sm:$0xff]
  %v242 = vld [vmem:[%s0 + $0x720] sm:$0xff]
  %v243 = vld [vmem:[%s0 + $0x728] sm:$0xff]
  %v244 = vld [vmem:[%s0 + $0x730] sm:$0xff]
  %v245 = vld [vmem:[%s0 + $0x738] sm:$0xff]
  %v246 = vld [vmem:[%s0 + $0x740] sm:$0xff]
  %v247 = vld [vmem:[%s0 + $0x748] sm:$0xff]
  %v248 = vld [vmem:[%s0 + $0x750] sm:$0xff]
  %v249 = vld [vmem:[%s0 + $0x758] sm:$0xff]
  %v250 = vld [vmem:[%s0 + $0x760] sm:$0xff]
  %v251 = vld [vmem:[%s0 + $0x768] sm:$0xff]
  %v252 = vld [vmem:[%s0 + $0x770] sm:$0xff]
  %v253 = vld [vmem:[%s0 + $0x778] sm:$0xff]
  %v254 = vld [vmem:[%s0 + $0x780] sm:$0xff]
  %v255 = vld [vmem:[%s0 + $0x788] sm:$0xff]
  %v256 = vld [vmem:[%s0 + $0x790] sm:$0xff]
  %v257 = vld [vmem:[%s0 + $0x798] sm:$0xff]
  %v258 = vld [vmem:[%s0 + $0x7a0] sm:$0xff]
  %v259 = vld [vmem:[%s0 + $0x7a8] sm:$0xff]
  %v260 = vld [vmem:[%s0 + $0x7b0] sm:$0xff]
  %v261 = vld [vmem:[%s0 + $0x7b8] sm:$0xff]
  %v262 = vld [vmem:[%s0 + $0x7c0] sm:$0xff]
  %v263 = vld [vmem:[%s0 + $0x7c8] sm:$0xff]
  %v264 = vld [vmem:[%s0 + $0x7d0] sm:$0xff]
  %v265 = vld [vmem:[%s0 + $0x7d8] sm:$0xff]
  %v266 = vld [vmem:[%s0 + $0x7e0] sm:$0xff]
  %v267 = vld [vmem:[%s0 + $0x7e8] sm:$0xff]
  %v268 = vld [vmem:[%s0 + $0x7f0] sm:$0xff]
  %v269 = vld [vmem:[%s0 + $0x7f8] sm:$0xff]
  %v270 = vld [vmem:[%s0 + $0x800] sm:$0xff]
  %v271 = vld [vmem:[%s0 + $0x808] sm:$0xff]
  %v272 = vld [vmem:[%s0 + $0x810] sm:$0xff]
  %v273 = vld [vmem:[%s0 + $0x818] sm:$0xff]
  %v274 = vld [vmem:[%s0 + $0x820] sm:$0xff]
  %v275 = vld [vmem:[%s0 + $0x828] sm:$0xff]
  %v276 = vld [vmem:[%s0 + $0x830] sm:$0xff]
  %v277 = vld [vmem:[%s0 + $0x838] sm:$0xff]
  %v278 = vld [vmem:[%s0 + $0x840] sm:$0xff]
  %v279 = vld [vmem:[%s0 + $0x848] sm:$0xff]
  %v280 = vld [vmem:[%s0 + $0x850] sm:$0xff]
  %v281 = vld [vmem:[%s0 + $0x858] sm:$0xff]
  %v282 = vld [vmem:[%s0 + $0x860] sm:$0xff]
  %v283 = vld [vmem:[%s0 + $0x868] sm:$0xff]
  %v284 = vld [vmem:[%s0 + $0x870] sm:$0xff]
  %v285 = vld [vmem:[%s0 + $0x878] sm:$0xff]
  %v286 = vld [vmem:[%s0 + $0x880] sm:$0xff]
  %v287 = vld [vmem:[%s0 + $0x888] sm:$0xff]
  %v288 = vld [vmem:[%s0 + $0x890] sm:$0xff]
  %v289 = vld [vmem:[%s0 + $0x898] sm:$0xff]
  %v290 = vld [vmem:[%s0 + $0x8a0] sm:$0xff]
  %v291 = vld [vmem:[%s0 + $0x8a8] sm:$0xff]
  %v292 = vld [vmem:[%s0 + $0x8b0] sm:$0xff]
  %v293 = vld [vmem:[%s0 + $0x8b8] sm:$0xff]
  %v294 = vld [vmem:[%s0 + $0x8c0] sm:$0xff]
  %v295 = vld [vmem:[%s0 + $0x8c8] sm:$0xff]
  %v296 = vld [vmem:[%s0 + $0x8d0] sm:$0xff]
  %v297 = vld [vmem:[%s0 + $0x8d8] sm:$0xff]
  %v298 = vld [vmem:[%s0 + $0x8e0] sm:$0xff]
  %v299 = vld [vmem:[%s0 + $0x8e8] sm:$0xff]
  %v300 = vld [vmem:[%s0 + $0x8f0] sm:$0xff]
  %v301 = vld [vmem:[%s0 + $0x8f8] sm:$0xff]
  %v302 = vld [vmem:[%s1] sm:$0xf]
  %v303 = vld [vmem:[%s1 + $0x4] sm:$0xf]
  %v304 = vld [vmem:[%s1 + $0x8] sm:$0xf]
  %v305 = vld [vmem:[%s1 + $0xc] sm:$0xf]
  %v306 = vld [vmem:[%s1 + $0x10] sm:$0xf]
  %v307 = vld [vmem:[%s1 + $0x14] sm:$0xf]
  %v308 = vld [vmem:[%s1 + $0x18] sm:$0xf]
  %v309 = vld [vmem:[%s1 + $0x1c] sm:$0xf]
  %v310 = vld [vmem:[%s1 + $0x20] sm:$0xf]
  %v311 = vld [vmem:[%s1 + $0x24] sm:$0xf]
  %v312 = vld [vmem:[%s1 + $0x28] sm:$0xf]
  %v313 = vld [vmem:[%s1 + $0x2c] sm:$0xf]
  %v314 = vld [vmem:[%s1 + $0x30] sm:$0xf]
  %v315 = vld [vmem:[%s1 + $0x34] sm:$0xf]
  %v316 = vld [vmem:[%s1 + $0x38] sm:$0xf]
  %v317 = vld [vmem:[%s1 + $0x3c] sm:$0xf]
  %v318 = vld [vmem:[%s1 + $0x40] sm:$0xf]
  %v319 = vld [vmem:[%s1 + $0x44] sm:$0xf]
  %v320 = vld [vmem:[%s1 + $0x48] sm:$0xf]
  %v321 = vld [vmem:[%s1 + $0x4c] sm:$0xf]
  %v322 = vld [vmem:[%s1 + $0x50] sm:$0xf]
  %v323 = vld [vmem:[%s1 + $0x54] sm:$0xf]
  %v324 = vld [vmem:[%s1 + $0x58] sm:$0xf]
  %v325 = vld [vmem:[%s1 + $0x5c] sm:$0xf]
  %v326 = vld [vmem:[%s1 + $0x60] sm:$0xf]
  %v327 = vld [vmem:[%s1 + $0x64] sm:$0xf]
  %v328 = vld [vmem:[%s1 + $0x68] sm:$0xf]
  %v329 = vld [vmem:[%s1 + $0x6c] sm:$0xf]
  %v330 = vld [vmem:[%s1 + $0x70] sm:$0xf]
  %v331 = vld [vmem:[%s1 + $0x74] sm:$0xf]
  %v332 = vld [vmem:[%s1 + $0x78] sm:$0xf]
  %v333 = vld [vmem:[%s1 + $0x7c] sm:$0xf]
  %v334 = vld [vmem:[%s1 + $0x80] sm:$0xf]
  %v335 = vld [vmem:[%s1 + $0x84] sm:$0xf]
  %v336 = vld [vmem:[%s1 + $0x88] sm:$0xf]
  %v337 = vld [vmem:[%s1 + $0x8c] sm:$0xf]
  %v338 = vld [vmem:[%s1 + $0x90] sm:$0xf]
  %v339 = vld [vmem:[%s1 + $0x94] sm:$0xf]
  %v340 = vld [vmem:[%s1 + $0x98] sm:$0xf]
  %v341 = vld [vmem:[%s1 + $0x9c] sm:$0xf]
  %v342 = vld [vmem:[%s1 + $0xa0] sm:$0xf]
  %v343 = vld [vmem:[%s1 + $0xa4] sm:$0xf]
  %v344 = vld [vmem:[%s1 + $0xa8] sm:$0xf]
  %v345 = vld [vmem:[%s1 + $0xac] sm:$0xf]
  %v346 = vld [vmem:[%s1 + $0xb0] sm:$0xf]
  %v347 = vld [vmem:[%s1 + $0xb4] sm:$0xf]
  %v348 = vld [vmem:[%s1 + $0xb8] sm:$0xf]
  %v349 = vld [vmem:[%s1 + $0xbc] sm:$0xf]
  %v350 = vld [vmem:[%s1 + $0xc0] sm:$0xf]
  %v351 = vld [vmem:[%s1 + $0xc4] sm:$0xf]
  %v352 = vld [vmem:[%s1 + $0xc8] sm:$0xf]
  %v353 = vld [vmem:[%s1 + $0xcc] sm:$0xf]
  %v354 = vld [vmem:[%s1 + $0xd0] sm:$0xf]
  %v355 = vld [vmem:[%s1 + $0xd4] sm:$0xf]
  %v356 = vld [vmem:[%s1 + $0xd8] sm:$0xf]
  %v357 = vld [vmem:[%s1 + $0xdc] sm:$0xf]
  %v358 = vld [vmem:[%s1 + $0xe0] sm:$0xf]
  %v359 = vld [vmem:[%s1 + $0xe4] sm:$0xf]
  %v360 = vld [vmem:[%s1 + $0xe8] sm:$0xf]
  %v361 = vld [vmem:[%s1 + $0xec] sm:$0xf]
  %v362 = vld [vmem:[%s1 + $0xf0] sm:$0xf]
  %v363 = vld [vmem:[%s1 + $0xf4] sm:$0xf]
  %v364 = vld [vmem:[%s1 + $0xf8] sm:$0xf]
  %v365 = vld [vmem:[%s1 + $0xfc] sm:$0xf]
  %v366 = vld [vmem:[%s2] sm:$0x1]
  %v368 = vperm.slane %v366, 0
  %v658 = vunpack.c.l.b16 %v14
  %v659 = vunpack.c.h.b16 %v14
  %v660 = vunpack.c.l.b16 %v15
  %v661 = vunpack.c.h.b16 %v15
  %v662 = vunpack.c.l.b16 %v16
  %v663 = vunpack.c.h.b16 %v16
  %v664 = vunpack.c.l.b16 %v17
  %v665 = vunpack.c.h.b16 %v17
  %v666 = vunpack.c.l.b16 %v18
  %v667 = vunpack.c.h.b16 %v18
  %v668 = vunpack.c.l.b16 %v19
  %v669 = vunpack.c.h.b16 %v19
  %v670 = vunpack.c.l.b16 %v20
  %v671 = vunpack.c.h.b16 %v20
  %v672 = vunpack.c.l.b16 %v21
  %v673 = vunpack.c.h.b16 %v21
  %v674 = vunpack.c.l.b16 %v22
  %v675 = vunpack.c.h.b16 %v22
  %v676 = vunpack.c.l.b16 %v23
  %v677 = vunpack.c.h.b16 %v23
  %v678 = vunpack.c.l.b16 %v24
  %v679 = vunpack.c.h.b16 %v24
  %v680 = vunpack.c.l.b16 %v25
  %v681 = vunpack.c.h.b16 %v25
  %v682 = vunpack.c.l.b16 %v26
  %v683 = vunpack.c.h.b16 %v26
  %v684 = vunpack.c.l.b16 %v27
  %v685 = vunpack.c.h.b16 %v27
  %v686 = vunpack.c.l.b16 %v28
  %v687 = vunpack.c.h.b16 %v28
  %v688 = vunpack.c.l.b16 %v29
  %v689 = vunpack.c.h.b16 %v29
  %v690 = vunpack.c.l.b16 %v30
  %v691 = vunpack.c.h.b16 %v30
  %v692 = vunpack.c.l.b16 %v31
  %v693 = vunpack.c.h.b16 %v31
  %v694 = vunpack.c.l.b16 %v32
  %v695 = vunpack.c.h.b16 %v32
  %v696 = vunpack.c.l.b16 %v33
  %v697 = vunpack.c.h.b16 %v33
  %v698 = vunpack.c.l.b16 %v34
  %v699 = vunpack.c.h.b16 %v34
  %v700 = vunpack.c.l.b16 %v35
  %v701 = vunpack.c.h.b16 %v35
  %v702 = vunpack.c.l.b16 %v36
  %v703 = vunpack.c.h.b16 %v36
  %v704 = vunpack.c.l.b16 %v37
  %v705 = vunpack.c.h.b16 %v37
  %v706 = vunpack.c.l.b16 %v38
  %v707 = vunpack.c.h.b16 %v38
  %v708 = vunpack.c.l.b16 %v39
  %v709 = vunpack.c.h.b16 %v39
  %v710 = vunpack.c.l.b16 %v40
  %v711 = vunpack.c.h.b16 %v40
  %v712 = vunpack.c.l.b16 %v41
  %v713 = vunpack.c.h.b16 %v41
  %v714 = vunpack.c.l.b16 %v42
  %v715 = vunpack.c.h.b16 %v42
  %v716 = vunpack.c.l.b16 %v43
  %v717 = vunpack.c.h.b16 %v43
  %v718 = vunpack.c.l.b16 %v44
  %v719 = vunpack.c.h.b16 %v44
  %v720 = vunpack.c.l.b16 %v45
  %v721 = vunpack.c.h.b16 %v45
  %v722 = vunpack.c.l.b16 %v46
  %v723 = vunpack.c.h.b16 %v46
  %v724 = vunpack.c.l.b16 %v47
  %v725 = vunpack.c.h.b16 %v47
  %v726 = vunpack.c.l.b16 %v48
  %v727 = vunpack.c.h.b16 %v48
  %v728 = vunpack.c.l.b16 %v49
  %v729 = vunpack.c.h.b16 %v49
  %v730 = vunpack.c.l.b16 %v50
  %v731 = vunpack.c.h.b16 %v50
  %v732 = vunpack.c.l.b16 %v51
  %v733 = vunpack.c.h.b16 %v51
  %v734 = vunpack.c.l.b16 %v52
  %v735 = vunpack.c.h.b16 %v52
  %v736 = vunpack.c.l.b16 %v53
  %v737 = vunpack.c.h.b16 %v53
  %v738 = vunpack.c.l.b16 %v54
  %v739 = vunpack.c.h.b16 %v54
  %v740 = vunpack.c.l.b16 %v55
  %v741 = vunpack.c.h.b16 %v55
  %v742 = vunpack.c.l.b16 %v56
  %v743 = vunpack.c.h.b16 %v56
  %v744 = vunpack.c.l.b16 %v57
  %v745 = vunpack.c.h.b16 %v57
  %v746 = vunpack.c.l.b16 %v58
  %v747 = vunpack.c.h.b16 %v58
  %v748 = vunpack.c.l.b16 %v59
  %v749 = vunpack.c.h.b16 %v59
  %v750 = vunpack.c.l.b16 %v60
  %v751 = vunpack.c.h.b16 %v60
  %v752 = vunpack.c.l.b16 %v61
  %v753 = vunpack.c.h.b16 %v61
  %v754 = vunpack.c.l.b16 %v62
  %v755 = vunpack.c.h.b16 %v62
  %v756 = vunpack.c.l.b16 %v63
  %v757 = vunpack.c.h.b16 %v63
  %v758 = vunpack.c.l.b16 %v64
  %v759 = vunpack.c.h.b16 %v64
  %v760 = vunpack.c.l.b16 %v65
  %v761 = vunpack.c.h.b16 %v65
  %v762 = vunpack.c.l.b16 %v66
  %v763 = vunpack.c.h.b16 %v66
  %v764 = vunpack.c.l.b16 %v67
  %v765 = vunpack.c.h.b16 %v67
  %v766 = vunpack.c.l.b16 %v68
  %v767 = vunpack.c.h.b16 %v68
  %v768 = vunpack.c.l.b16 %v69
  %v769 = vunpack.c.h.b16 %v69
  %v770 = vunpack.c.l.b16 %v70
  %v771 = vunpack.c.h.b16 %v70
  %v772 = vunpack.c.l.b16 %v71
  %v773 = vunpack.c.h.b16 %v71
  %v774 = vunpack.c.l.b16 %v72
  %v775 = vunpack.c.h.b16 %v72
  %v776 = vunpack.c.l.b16 %v73
  %v777 = vunpack.c.h.b16 %v73
  %v778 = vunpack.c.l.b16 %v74
  %v779 = vunpack.c.h.b16 %v74
  %v780 = vunpack.c.l.b16 %v75
  %v781 = vunpack.c.h.b16 %v75
  %v782 = vunpack.c.l.b16 %v76
  %v783 = vunpack.c.h.b16 %v76
  %v784 = vunpack.c.l.b16 %v77
  %v785 = vunpack.c.h.b16 %v77
  %v786 = vunpack.c.l.b16 %v78
  %v787 = vunpack.c.h.b16 %v78
  %v788 = vunpack.c.l.b16 %v79
  %v789 = vunpack.c.h.b16 %v79
  %v790 = vunpack.c.l.b16 %v80
  %v791 = vunpack.c.h.b16 %v80
  %v792 = vunpack.c.l.b16 %v81
  %v793 = vunpack.c.h.b16 %v81
  %v794 = vunpack.c.l.b16 %v82
  %v795 = vunpack.c.h.b16 %v82
  %v796 = vunpack.c.l.b16 %v83
  %v797 = vunpack.c.h.b16 %v83
  %v798 = vunpack.c.l.b16 %v84
  %v799 = vunpack.c.h.b16 %v84
  %v800 = vunpack.c.l.b16 %v85
  %v801 = vunpack.c.h.b16 %v85
  %v802 = vunpack.c.l.b16 %v86
  %v803 = vunpack.c.h.b16 %v86
  %v804 = vunpack.c.l.b16 %v87
  %v805 = vunpack.c.h.b16 %v87
  %v806 = vunpack.c.l.b16 %v88
  %v807 = vunpack.c.h.b16 %v88
  %v808 = vunpack.c.l.b16 %v89
  %v809 = vunpack.c.h.b16 %v89
  %v810 = vunpack.c.l.b16 %v90
  %v811 = vunpack.c.h.b16 %v90
  %v812 = vunpack.c.l.b16 %v91
  %v813 = vunpack.c.h.b16 %v91
  %v814 = vunpack.c.l.b16 %v92
  %v815 = vunpack.c.h.b16 %v92
  %v816 = vunpack.c.l.b16 %v93
  %v817 = vunpack.c.h.b16 %v93
  %v818 = vunpack.c.l.b16 %v94
  %v819 = vunpack.c.h.b16 %v94
  %v820 = vunpack.c.l.b16 %v95
  %v821 = vunpack.c.h.b16 %v95
  %v822 = vunpack.c.l.b16 %v96
  %v823 = vunpack.c.h.b16 %v96
  %v824 = vunpack.c.l.b16 %v97
  %v825 = vunpack.c.h.b16 %v97
  %v826 = vunpack.c.l.b16 %v98
  %v827 = vunpack.c.h.b16 %v98
  %v828 = vunpack.c.l.b16 %v99
  %v829 = vunpack.c.h.b16 %v99
  %v830 = vunpack.c.l.b16 %v100
  %v831 = vunpack.c.h.b16 %v100
  %v832 = vunpack.c.l.b16 %v101
  %v833 = vunpack.c.h.b16 %v101
  %v834 = vunpack.c.l.b16 %v102
  %v835 = vunpack.c.h.b16 %v102
  %v836 = vunpack.c.l.b16 %v103
  %v837 = vunpack.c.h.b16 %v103
  %v838 = vunpack.c.l.b16 %v104
  %v839 = vunpack.c.h.b16 %v104
  %v840 = vunpack.c.l.b16 %v105
  %v841 = vunpack.c.h.b16 %v105
  %v842 = vunpack.c.l.b16 %v106
  %v843 = vunpack.c.h.b16 %v106
  %v844 = vunpack.c.l.b16 %v107
  %v845 = vunpack.c.h.b16 %v107
  %v846 = vunpack.c.l.b16 %v108
  %v847 = vunpack.c.h.b16 %v108
  %v848 = vunpack.c.l.b16 %v109
  %v849 = vunpack.c.h.b16 %v109
  %v850 = vunpack.c.l.b16 %v110
  %v851 = vunpack.c.h.b16 %v110
  %v852 = vunpack.c.l.b16 %v111
  %v853 = vunpack.c.h.b16 %v111
  %v854 = vunpack.c.l.b16 %v112
  %v855 = vunpack.c.h.b16 %v112
  %v856 = vunpack.c.l.b16 %v113
  %v857 = vunpack.c.h.b16 %v113
  %v858 = vunpack.c.l.b16 %v114
  %v859 = vunpack.c.h.b16 %v114
  %v860 = vunpack.c.l.b16 %v115
  %v861 = vunpack.c.h.b16 %v115
  %v862 = vunpack.c.l.b16 %v116
  %v863 = vunpack.c.h.b16 %v116
  %v864 = vunpack.c.l.b16 %v117
  %v865 = vunpack.c.h.b16 %v117
  %v866 = vunpack.c.l.b16 %v118
  %v867 = vunpack.c.h.b16 %v118
  %v868 = vunpack.c.l.b16 %v119
  %v869 = vunpack.c.h.b16 %v119
  %v870 = vunpack.c.l.b16 %v120
  %v871 = vunpack.c.h.b16 %v120
  %v872 = vunpack.c.l.b16 %v121
  %v873 = vunpack.c.h.b16 %v121
  %v874 = vunpack.c.l.b16 %v122
  %v875 = vunpack.c.h.b16 %v122
  %v876 = vunpack.c.l.b16 %v123
  %v877 = vunpack.c.h.b16 %v123
  %v878 = vunpack.c.l.b16 %v124
  %v879 = vunpack.c.h.b16 %v124
  %v880 = vunpack.c.l.b16 %v125
  %v881 = vunpack.c.h.b16 %v125
  %v882 = vunpack.c.l.b16 %v126
  %v883 = vunpack.c.h.b16 %v126
  %v884 = vunpack.c.l.b16 %v127
  %v885 = vunpack.c.h.b16 %v127
  %v886 = vunpack.c.l.b16 %v128
  %v887 = vunpack.c.h.b16 %v128
  %v888 = vunpack.c.l.b16 %v129
  %v889 = vunpack.c.h.b16 %v129
  %v890 = vunpack.c.l.b16 %v130
  %v891 = vunpack.c.h.b16 %v130
  %v892 = vunpack.c.l.b16 %v131
  %v893 = vunpack.c.h.b16 %v131
  %v894 = vunpack.c.l.b16 %v132
  %v895 = vunpack.c.h.b16 %v132
  %v896 = vunpack.c.l.b16 %v133
  %v897 = vunpack.c.h.b16 %v133
  %v898 = vunpack.c.l.b16 %v134
  %v899 = vunpack.c.h.b16 %v134
  %v900 = vunpack.c.l.b16 %v135
  %v901 = vunpack.c.h.b16 %v135
  %v902 = vunpack.c.l.b16 %v136
  %v903 = vunpack.c.h.b16 %v136
  %v904 = vunpack.c.l.b16 %v137
  %v905 = vunpack.c.h.b16 %v137
  %v906 = vunpack.c.l.b16 %v138
  %v907 = vunpack.c.h.b16 %v138
  %v908 = vunpack.c.l.b16 %v139
  %v909 = vunpack.c.h.b16 %v139
  %v910 = vunpack.c.l.b16 %v140
  %v911 = vunpack.c.h.b16 %v140
  %v912 = vunpack.c.l.b16 %v141
  %v913 = vunpack.c.h.b16 %v141
  %v914 = vunpack.c.l.b16 %v142
  %v915 = vunpack.c.h.b16 %v142
  %v916 = vunpack.c.l.b16 %v143
  %v917 = vunpack.c.h.b16 %v143
  %v918 = vunpack.c.l.b16 %v144
  %v919 = vunpack.c.h.b16 %v144
  %v920 = vunpack.c.l.b16 %v145
  %v921 = vunpack.c.h.b16 %v145
  %v922 = vunpack.c.l.b16 %v146
  %v923 = vunpack.c.h.b16 %v146
  %v924 = vunpack.c.l.b16 %v147
  %v925 = vunpack.c.h.b16 %v147
  %v926 = vunpack.c.l.b16 %v148
  %v927 = vunpack.c.h.b16 %v148
  %v928 = vunpack.c.l.b16 %v149
  %v929 = vunpack.c.h.b16 %v149
  %v930 = vunpack.c.l.b16 %v150
  %v931 = vunpack.c.h.b16 %v150
  %v932 = vunpack.c.l.b16 %v151
  %v933 = vunpack.c.h.b16 %v151
  %v934 = vunpack.c.l.b16 %v152
  %v935 = vunpack.c.h.b16 %v152
  %v936 = vunpack.c.l.b16 %v153
  %v937 = vunpack.c.h.b16 %v153
  %v938 = vunpack.c.l.b16 %v154
  %v939 = vunpack.c.h.b16 %v154
  %v940 = vunpack.c.l.b16 %v155
  %v941 = vunpack.c.h.b16 %v155
  %v942 = vunpack.c.l.b16 %v156
  %v943 = vunpack.c.h.b16 %v156
  %v944 = vunpack.c.l.b16 %v157
  %v945 = vunpack.c.h.b16 %v157
  %v946 = vunpack.c.l.b16 %v158
  %v947 = vunpack.c.h.b16 %v158
  %v948 = vunpack.c.l.b16 %v159
  %v949 = vunpack.c.h.b16 %v159
  %v950 = vunpack.c.l.b16 %v160
  %v951 = vunpack.c.h.b16 %v160
  %v952 = vunpack.c.l.b16 %v161
  %v953 = vunpack.c.h.b16 %v161
  %v954 = vunpack.c.l.b16 %v162
  %v955 = vunpack.c.h.b16 %v162
  %v956 = vunpack.c.l.b16 %v163
  %v957 = vunpack.c.h.b16 %v163
  %v958 = vunpack.c.l.b16 %v164
  %v959 = vunpack.c.h.b16 %v164
  %v960 = vunpack.c.l.b16 %v165
  %v961 = vunpack.c.h.b16 %v165
  %v962 = vunpack.c.l.b16 %v166
  %v963 = vunpack.c.h.b16 %v166
  %v964 = vunpack.c.l.b16 %v167
  %v965 = vunpack.c.h.b16 %v167
  %v966 = vunpack.c.l.b16 %v168
  %v967 = vunpack.c.h.b16 %v168
  %v968 = vunpack.c.l.b16 %v169
  %v969 = vunpack.c.h.b16 %v169
  %v970 = vunpack.c.l.b16 %v170
  %v971 = vunpack.c.h.b16 %v170
  %v972 = vunpack.c.l.b16 %v171
  %v973 = vunpack.c.h.b16 %v171
  %v974 = vunpack.c.l.b16 %v172
  %v975 = vunpack.c.h.b16 %v172
  %v976 = vunpack.c.l.b16 %v173
  %v977 = vunpack.c.h.b16 %v173
  %v978 = vunpack.c.l.b16 %v174
  %v979 = vunpack.c.h.b16 %v174
  %v980 = vunpack.c.l.b16 %v175
  %v981 = vunpack.c.h.b16 %v175
  %v982 = vunpack.c.l.b16 %v176
  %v983 = vunpack.c.h.b16 %v176
  %v984 = vunpack.c.l.b16 %v177
  %v985 = vunpack.c.h.b16 %v177
  %v986 = vunpack.c.l.b16 %v178
  %v987 = vunpack.c.h.b16 %v178
  %v988 = vunpack.c.l.b16 %v179
  %v989 = vunpack.c.h.b16 %v179
  %v990 = vunpack.c.l.b16 %v180
  %v991 = vunpack.c.h.b16 %v180
  %v992 = vunpack.c.l.b16 %v181
  %v993 = vunpack.c.h.b16 %v181
  %v994 = vunpack.c.l.b16 %v182
  %v995 = vunpack.c.h.b16 %v182
  %v996 = vunpack.c.l.b16 %v183
  %v997 = vunpack.c.h.b16 %v183
  %v998 = vunpack.c.l.b16 %v184
  %v999 = vunpack.c.h.b16 %v184
  %v1000 = vunpack.c.l.b16 %v185
  %v1001 = vunpack.c.h.b16 %v185
  %v1002 = vunpack.c.l.b16 %v186
  %v1003 = vunpack.c.h.b16 %v186
  %v1004 = vunpack.c.l.b16 %v187
  %v1005 = vunpack.c.h.b16 %v187
  %v1006 = vunpack.c.l.b16 %v188
  %v1007 = vunpack.c.h.b16 %v188
  %v1008 = vunpack.c.l.b16 %v189
  %v1009 = vunpack.c.h.b16 %v189
  %v1010 = vunpack.c.l.b16 %v190
  %v1011 = vunpack.c.h.b16 %v190
  %v1012 = vunpack.c.l.b16 %v191
  %v1013 = vunpack.c.h.b16 %v191
  %v1014 = vunpack.c.l.b16 %v192
  %v1015 = vunpack.c.h.b16 %v192
  %v1016 = vunpack.c.l.b16 %v193
  %v1017 = vunpack.c.h.b16 %v193
  %v1018 = vunpack.c.l.b16 %v194
  %v1019 = vunpack.c.h.b16 %v194
  %v1020 = vunpack.c.l.b16 %v195
  %v1021 = vunpack.c.h.b16 %v195
  %v1022 = vunpack.c.l.b16 %v196
  %v1023 = vunpack.c.h.b16 %v196
  %v1024 = vunpack.c.l.b16 %v197
  %v1025 = vunpack.c.h.b16 %v197
  %v1026 = vunpack.c.l.b16 %v198
  %v1027 = vunpack.c.h.b16 %v198
  %v1028 = vunpack.c.l.b16 %v199
  %v1029 = vunpack.c.h.b16 %v199
  %v1030 = vunpack.c.l.b16 %v200
  %v1031 = vunpack.c.h.b16 %v200
  %v1032 = vunpack.c.l.b16 %v201
  %v1033 = vunpack.c.h.b16 %v201
  %v1034 = vunpack.c.l.b16 %v202
  %v1035 = vunpack.c.h.b16 %v202
  %v1036 = vunpack.c.l.b16 %v203
  %v1037 = vunpack.c.h.b16 %v203
  %v1038 = vunpack.c.l.b16 %v204
  %v1039 = vunpack.c.h.b16 %v204
  %v1040 = vunpack.c.l.b16 %v205
  %v1041 = vunpack.c.h.b16 %v205
  %v1042 = vunpack.c.l.b16 %v206
  %v1043 = vunpack.c.h.b16 %v206
  %v1044 = vunpack.c.l.b16 %v207
  %v1045 = vunpack.c.h.b16 %v207
  %v1046 = vunpack.c.l.b16 %v208
  %v1047 = vunpack.c.h.b16 %v208
  %v1048 = vunpack.c.l.b16 %v209
  %v1049 = vunpack.c.h.b16 %v209
  %v1050 = vunpack.c.l.b16 %v210
  %v1051 = vunpack.c.h.b16 %v210
  %v1052 = vunpack.c.l.b16 %v211
  %v1053 = vunpack.c.h.b16 %v211
  %v1054 = vunpack.c.l.b16 %v212
  %v1055 = vunpack.c.h.b16 %v212
  %v1056 = vunpack.c.l.b16 %v213
  %v1057 = vunpack.c.h.b16 %v213
  %v1058 = vunpack.c.l.b16 %v214
  %v1059 = vunpack.c.h.b16 %v214
  %v1060 = vunpack.c.l.b16 %v215
  %v1061 = vunpack.c.h.b16 %v215
  %v1062 = vunpack.c.l.b16 %v216
  %v1063 = vunpack.c.h.b16 %v216
  %v1064 = vunpack.c.l.b16 %v217
  %v1065 = vunpack.c.h.b16 %v217
  %v1066 = vunpack.c.l.b16 %v218
  %v1067 = vunpack.c.h.b16 %v218
  %v1068 = vunpack.c.l.b16 %v219
  %v1069 = vunpack.c.h.b16 %v219
  %v1070 = vunpack.c.l.b16 %v220
  %v1071 = vunpack.c.h.b16 %v220
  %v1072 = vunpack.c.l.b16 %v221
  %v1073 = vunpack.c.h.b16 %v221
  %v1074 = vunpack.c.l.b16 %v222
  %v1075 = vunpack.c.h.b16 %v222
  %v1076 = vunpack.c.l.b16 %v223
  %v1077 = vunpack.c.h.b16 %v223
  %v1078 = vunpack.c.l.b16 %v224
  %v1079 = vunpack.c.h.b16 %v224
  %v1080 = vunpack.c.l.b16 %v225
  %v1081 = vunpack.c.h.b16 %v225
  %v1082 = vunpack.c.l.b16 %v226
  %v1083 = vunpack.c.h.b16 %v226
  %v1084 = vunpack.c.l.b16 %v227
  %v1085 = vunpack.c.h.b16 %v227
  %v1086 = vunpack.c.l.b16 %v228
  %v1087 = vunpack.c.h.b16 %v228
  %v1088 = vunpack.c.l.b16 %v229
  %v1089 = vunpack.c.h.b16 %v229
  %v1090 = vunpack.c.l.b16 %v230
  %v1091 = vunpack.c.h.b16 %v230
  %v1092 = vunpack.c.l.b16 %v231
  %v1093 = vunpack.c.h.b16 %v231
  %v1094 = vunpack.c.l.b16 %v232
  %v1095 = vunpack.c.h.b16 %v232
  %v1096 = vunpack.c.l.b16 %v233
  %v1097 = vunpack.c.h.b16 %v233
  %v1098 = vunpack.c.l.b16 %v234
  %v1099 = vunpack.c.h.b16 %v234
  %v1100 = vunpack.c.l.b16 %v235
  %v1101 = vunpack.c.h.b16 %v235
  %v1102 = vunpack.c.l.b16 %v236
  %v1103 = vunpack.c.h.b16 %v236
  %v1104 = vunpack.c.l.b16 %v237
  %v1105 = vunpack.c.h.b16 %v237
  %v1106 = vunpack.c.l.b16 %v238
  %v1107 = vunpack.c.h.b16 %v238
  %v1108 = vunpack.c.l.b16 %v239
  %v1109 = vunpack.c.h.b16 %v239
  %v1110 = vunpack.c.l.b16 %v240
  %v1111 = vunpack.c.h.b16 %v240
  %v1112 = vunpack.c.l.b16 %v241
  %v1113 = vunpack.c.h.b16 %v241
  %v1114 = vunpack.c.l.b16 %v242
  %v1115 = vunpack.c.h.b16 %v242
  %v1116 = vunpack.c.l.b16 %v243
  %v1117 = vunpack.c.h.b16 %v243
  %v1118 = vunpack.c.l.b16 %v244
  %v1119 = vunpack.c.h.b16 %v244
  %v1120 = vunpack.c.l.b16 %v245
  %v1121 = vunpack.c.h.b16 %v245
  %v1122 = vunpack.c.l.b16 %v246
  %v1123 = vunpack.c.h.b16 %v246
  %v1124 = vunpack.c.l.b16 %v247
  %v1125 = vunpack.c.h.b16 %v247
  %v1126 = vunpack.c.l.b16 %v248
  %v1127 = vunpack.c.h.b16 %v248
  %v1128 = vunpack.c.l.b16 %v249
  %v1129 = vunpack.c.h.b16 %v249
  %v1130 = vunpack.c.l.b16 %v250
  %v1131 = vunpack.c.h.b16 %v250
  %v1132 = vunpack.c.l.b16 %v251
  %v1133 = vunpack.c.h.b16 %v251
  %v1134 = vunpack.c.l.b16 %v252
  %v1135 = vunpack.c.h.b16 %v252
  %v1136 = vunpack.c.l.b16 %v253
  %v1137 = vunpack.c.h.b16 %v253
  %v1138 = vunpack.c.l.b16 %v254
  %v1139 = vunpack.c.h.b16 %v254
  %v1140 = vunpack.c.l.b16 %v255
  %v1141 = vunpack.c.h.b16 %v255
  %v1142 = vunpack.c.l.b16 %v256
  %v1143 = vunpack.c.h.b16 %v256
  %v1144 = vunpack.c.l.b16 %v257
  %v1145 = vunpack.c.h.b16 %v257
  %v1146 = vunpack.c.l.b16 %v258
  %v1147 = vunpack.c.h.b16 %v258
  %v1148 = vunpack.c.l.b16 %v259
  %v1149 = vunpack.c.h.b16 %v259
  %v1150 = vunpack.c.l.b16 %v260
  %v1151 = vunpack.c.h.b16 %v260
  %v1152 = vunpack.c.l.b16 %v261
  %v1153 = vunpack.c.h.b16 %v261
  %v1154 = vunpack.c.l.b16 %v262
  %v1155 = vunpack.c.h.b16 %v262
  %v1156 = vunpack.c.l.b16 %v263
  %v1157 = vunpack.c.h.b16 %v263
  %v1158 = vunpack.c.l.b16 %v264
  %v1159 = vunpack.c.h.b16 %v264
  %v1160 = vunpack.c.l.b16 %v265
  %v1161 = vunpack.c.h.b16 %v265
  %v1162 = vunpack.c.l.b16 %v266
  %v1163 = vunpack.c.h.b16 %v266
  %v1164 = vunpack.c.l.b16 %v267
  %v1165 = vunpack.c.h.b16 %v267
  %v1166 = vunpack.c.l.b16 %v268
  %v1167 = vunpack.c.h.b16 %v268
  %v1168 = vunpack.c.l.b16 %v269
  %v1169 = vunpack.c.h.b16 %v269
  %v1170 = vunpack.c.l.b16 %v270
  %v1171 = vunpack.c.h.b16 %v270
  %v1172 = vunpack.c.l.b16 %v271
  %v1173 = vunpack.c.h.b16 %v271
  %v1174 = vunpack.c.l.b16 %v272
  %v1175 = vunpack.c.h.b16 %v272
  %v1176 = vunpack.c.l.b16 %v273
  %v1177 = vunpack.c.h.b16 %v273
  %v1178 = vunpack.c.l.b16 %v274
  %v1179 = vunpack.c.h.b16 %v274
  %v1180 = vunpack.c.l.b16 %v275
  %v1181 = vunpack.c.h.b16 %v275
  %v1182 = vunpack.c.l.b16 %v276
  %v1183 = vunpack.c.h.b16 %v276
  %v1184 = vunpack.c.l.b16 %v277
  %v1185 = vunpack.c.h.b16 %v277
  %v1186 = vunpack.c.l.b16 %v278
  %v1187 = vunpack.c.h.b16 %v278
  %v1188 = vunpack.c.l.b16 %v279
  %v1189 = vunpack.c.h.b16 %v279
  %v1190 = vunpack.c.l.b16 %v280
  %v1191 = vunpack.c.h.b16 %v280
  %v1192 = vunpack.c.l.b16 %v281
  %v1193 = vunpack.c.h.b16 %v281
  %v1194 = vunpack.c.l.b16 %v282
  %v1195 = vunpack.c.h.b16 %v282
  %v1196 = vunpack.c.l.b16 %v283
  %v1197 = vunpack.c.h.b16 %v283
  %v1198 = vunpack.c.l.b16 %v284
  %v1199 = vunpack.c.h.b16 %v284
  %v1200 = vunpack.c.l.b16 %v285
  %v1201 = vunpack.c.h.b16 %v285
  %v1202 = vunpack.c.l.b16 %v286
  %v1203 = vunpack.c.h.b16 %v286
  %v1204 = vunpack.c.l.b16 %v287
  %v1205 = vunpack.c.h.b16 %v287
  %v1206 = vunpack.c.l.b16 %v288
  %v1207 = vunpack.c.h.b16 %v288
  %v1208 = vunpack.c.l.b16 %v289
  %v1209 = vunpack.c.h.b16 %v289
  %v1210 = vunpack.c.l.b16 %v290
  %v1211 = vunpack.c.h.b16 %v290
  %v1212 = vunpack.c.l.b16 %v291
  %v1213 = vunpack.c.h.b16 %v291
  %v1214 = vunpack.c.l.b16 %v292
  %v1215 = vunpack.c.h.b16 %v292
  %v1216 = vunpack.c.l.b16 %v293
  %v1217 = vunpack.c.h.b16 %v293
  %v1218 = vunpack.c.l.b16 %v294
  %v1219 = vunpack.c.h.b16 %v294
  %v1220 = vunpack.c.l.b16 %v295
  %v1221 = vunpack.c.h.b16 %v295
  %v1222 = vunpack.c.l.b16 %v296
  %v1223 = vunpack.c.h.b16 %v296
  %v1224 = vunpack.c.l.b16 %v297
  %v1225 = vunpack.c.h.b16 %v297
  %v1226 = vunpack.c.l.b16 %v298
  %v1227 = vunpack.c.h.b16 %v298
  %v1228 = vunpack.c.l.b16 %v299
  %v1229 = vunpack.c.h.b16 %v299
  %v1230 = vunpack.c.l.b16 %v300
  %v1231 = vunpack.c.h.b16 %v300
  %v1232 = vunpack.c.l.b16 %v301
  %v1233 = vunpack.c.h.b16 %v301
  %v1234 = vpack.c.b16 %v662, %v658
  %v1235 = vpack.c.b16 %v663, %v659
  %v1236 = vpack.c.b16 %v664, %v660
  %v1237 = vpack.c.b16 %v665, %v661
  %v1238 = vpack.c.b16 %v670, %v666
  %v1239 = vpack.c.b16 %v671, %v667
  %v1240 = vpack.c.b16 %v672, %v668
  %v1241 = vpack.c.b16 %v673, %v669
  %v1242 = vpack.c.b16 %v678, %v674
  %v1243 = vpack.c.b16 %v679, %v675
  %v1244 = vpack.c.b16 %v680, %v676
  %v1245 = vpack.c.b16 %v681, %v677
  %v1246 = vpack.c.b16 %v686, %v682
  %v1247 = vpack.c.b16 %v687, %v683
  %v1248 = vpack.c.b16 %v688, %v684
  %v1249 = vpack.c.b16 %v689, %v685
  %v1250 = vpack.c.b16 %v694, %v690
  %v1251 = vpack.c.b16 %v695, %v691
  %v1252 = vpack.c.b16 %v696, %v692
  %v1253 = vpack.c.b16 %v697, %v693
  %v1254 = vpack.c.b16 %v702, %v698
  %v1255 = vpack.c.b16 %v703, %v699
  %v1256 = vpack.c.b16 %v704, %v700
  %v1257 = vpack.c.b16 %v705, %v701
  %v1258 = vpack.c.b16 %v710, %v706
  %v1259 = vpack.c.b16 %v711, %v707
  %v1260 = vpack.c.b16 %v712, %v708
  %v1261 = vpack.c.b16 %v713, %v709
  %v1262 = vpack.c.b16 %v718, %v714
  %v1263 = vpack.c.b16 %v719, %v715
  %v1264 = vpack.c.b16 %v720, %v716
  %v1265 = vpack.c.b16 %v721, %v717
  %v1266 = vpack.c.b16 %v726, %v722
  %v1267 = vpack.c.b16 %v727, %v723
  %v1268 = vpack.c.b16 %v728, %v724
  %v1269 = vpack.c.b16 %v729, %v725
  %v1270 = vpack.c.b16 %v734, %v730
  %v1271 = vpack.c.b16 %v735, %v731
  %v1272 = vpack.c.b16 %v736, %v732
  %v1273 = vpack.c.b16 %v737, %v733
  %v1274 = vpack.c.b16 %v742, %v738
  %v1275 = vpack.c.b16 %v743, %v739
  %v1276 = vpack.c.b16 %v744, %v740
  %v1277 = vpack.c.b16 %v745, %v741
  %v1278 = vpack.c.b16 %v750, %v746
  %v1279 = vpack.c.b16 %v751, %v747
  %v1280 = vpack.c.b16 %v752, %v748
  %v1281 = vpack.c.b16 %v753, %v749
  %v1282 = vpack.c.b16 %v758, %v754
  %v1283 = vpack.c.b16 %v759, %v755
  %v1284 = vpack.c.b16 %v760, %v756
  %v1285 = vpack.c.b16 %v761, %v757
  %v1286 = vpack.c.b16 %v766, %v762
  %v1287 = vpack.c.b16 %v767, %v763
  %v1288 = vpack.c.b16 %v768, %v764
  %v1289 = vpack.c.b16 %v769, %v765
  %v1290 = vpack.c.b16 %v774, %v770
  %v1291 = vpack.c.b16 %v775, %v771
  %v1292 = vpack.c.b16 %v776, %v772
  %v1293 = vpack.c.b16 %v777, %v773
  %v1294 = vpack.c.b16 %v782, %v778
  %v1295 = vpack.c.b16 %v783, %v779
  %v1296 = vpack.c.b16 %v784, %v780
  %v1297 = vpack.c.b16 %v785, %v781
  %v1298 = vpack.c.b16 %v790, %v786
  %v1299 = vpack.c.b16 %v791, %v787
  %v1300 = vpack.c.b16 %v792, %v788
  %v1301 = vpack.c.b16 %v793, %v789
  %v1302 = vpack.c.b16 %v798, %v794
  %v1303 = vpack.c.b16 %v799, %v795
  %v1304 = vpack.c.b16 %v800, %v796
  %v1305 = vpack.c.b16 %v801, %v797
  %v1306 = vpack.c.b16 %v806, %v802
  %v1307 = vpack.c.b16 %v807, %v803
  %v1308 = vpack.c.b16 %v808, %v804
  %v1309 = vpack.c.b16 %v809, %v805
  %v1310 = vpack.c.b16 %v814, %v810
  %v1311 = vpack.c.b16 %v815, %v811
  %v1312 = vpack.c.b16 %v816, %v812
  %v1313 = vpack.c.b16 %v817, %v813
  %v1314 = vpack.c.b16 %v822, %v818
  %v1315 = vpack.c.b16 %v823, %v819
  %v1316 = vpack.c.b16 %v824, %v820
  %v1317 = vpack.c.b16 %v825, %v821
  %v1318 = vpack.c.b16 %v830, %v826
  %v1319 = vpack.c.b16 %v831, %v827
  %v1320 = vpack.c.b16 %v832, %v828
  %v1321 = vpack.c.b16 %v833, %v829
  %v1322 = vpack.c.b16 %v838, %v834
  %v1323 = vpack.c.b16 %v839, %v835
  %v1324 = vpack.c.b16 %v840, %v836
  %v1325 = vpack.c.b16 %v841, %v837
  %v1326 = vpack.c.b16 %v846, %v842
  %v1327 = vpack.c.b16 %v847, %v843
  %v1328 = vpack.c.b16 %v848, %v844
  %v1329 = vpack.c.b16 %v849, %v845
  %v1330 = vpack.c.b16 %v854, %v850
  %v1331 = vpack.c.b16 %v855, %v851
  %v1332 = vpack.c.b16 %v856, %v852
  %v1333 = vpack.c.b16 %v857, %v853
  %v1334 = vpack.c.b16 %v862, %v858
  %v1335 = vpack.c.b16 %v863, %v859
  %v1336 = vpack.c.b16 %v864, %v860
  %v1337 = vpack.c.b16 %v865, %v861
  %v1338 = vpack.c.b16 %v870, %v866
  %v1339 = vpack.c.b16 %v871, %v867
  %v1340 = vpack.c.b16 %v872, %v868
  %v1341 = vpack.c.b16 %v873, %v869
  %v1342 = vpack.c.b16 %v878, %v874
  %v1343 = vpack.c.b16 %v879, %v875
  %v1344 = vpack.c.b16 %v880, %v876
  %v1345 = vpack.c.b16 %v881, %v877
  %v1346 = vpack.c.b16 %v886, %v882
  %v1347 = vpack.c.b16 %v887, %v883
  %v1348 = vpack.c.b16 %v888, %v884
  %v1349 = vpack.c.b16 %v889, %v885
  %v1350 = vpack.c.b16 %v894, %v890
  %v1351 = vpack.c.b16 %v895, %v891
  %v1352 = vpack.c.b16 %v896, %v892
  %v1353 = vpack.c.b16 %v897, %v893
  %v1354 = vpack.c.b16 %v902, %v898
  %v1355 = vpack.c.b16 %v903, %v899
  %v1356 = vpack.c.b16 %v904, %v900
  %v1357 = vpack.c.b16 %v905, %v901
  %v1358 = vpack.c.b16 %v910, %v906
  %v1359 = vpack.c.b16 %v911, %v907
  %v1360 = vpack.c.b16 %v912, %v908
  %v1361 = vpack.c.b16 %v913, %v909
  %v1362 = vpack.c.b16 %v918, %v914
  %v1363 = vpack.c.b16 %v919, %v915
  %v1364 = vpack.c.b16 %v920, %v916
  %v1365 = vpack.c.b16 %v921, %v917
  %v1366 = vpack.c.b16 %v926, %v922
  %v1367 = vpack.c.b16 %v927, %v923
  %v1368 = vpack.c.b16 %v928, %v924
  %v1369 = vpack.c.b16 %v929, %v925
  %v1370 = vpack.c.b16 %v934, %v930
  %v1371 = vpack.c.b16 %v935, %v931
  %v1372 = vpack.c.b16 %v936, %v932
  %v1373 = vpack.c.b16 %v937, %v933
  %v1374 = vpack.c.b16 %v942, %v938
  %v1375 = vpack.c.b16 %v943, %v939
  %v1376 = vpack.c.b16 %v944, %v940
  %v1377 = vpack.c.b16 %v945, %v941
  %v1378 = vpack.c.b16 %v950, %v946
  %v1379 = vpack.c.b16 %v951, %v947
  %v1380 = vpack.c.b16 %v952, %v948
  %v1381 = vpack.c.b16 %v953, %v949
  %v1382 = vpack.c.b16 %v958, %v954
  %v1383 = vpack.c.b16 %v959, %v955
  %v1384 = vpack.c.b16 %v960, %v956
  %v1385 = vpack.c.b16 %v961, %v957
  %v1386 = vpack.c.b16 %v966, %v962
  %v1387 = vpack.c.b16 %v967, %v963
  %v1388 = vpack.c.b16 %v968, %v964
  %v1389 = vpack.c.b16 %v969, %v965
  %v1390 = vpack.c.b16 %v974, %v970
  %v1391 = vpack.c.b16 %v975, %v971
  %v1392 = vpack.c.b16 %v976, %v972
  %v1393 = vpack.c.b16 %v977, %v973
  %v1394 = vpack.c.b16 %v982, %v978
  %v1395 = vpack.c.b16 %v983, %v979
  %v1396 = vpack.c.b16 %v984, %v980
  %v1397 = vpack.c.b16 %v985, %v981
  %v1398 = vpack.c.b16 %v990, %v986
  %v1399 = vpack.c.b16 %v991, %v987
  %v1400 = vpack.c.b16 %v992, %v988
  %v1401 = vpack.c.b16 %v993, %v989
  %v1402 = vpack.c.b16 %v998, %v994
  %v1403 = vpack.c.b16 %v999, %v995
  %v1404 = vpack.c.b16 %v1000, %v996
  %v1405 = vpack.c.b16 %v1001, %v997
  %v1406 = vpack.c.b16 %v1006, %v1002
  %v1407 = vpack.c.b16 %v1007, %v1003
  %v1408 = vpack.c.b16 %v1008, %v1004
  %v1409 = vpack.c.b16 %v1009, %v1005
  %v1410 = vpack.c.b16 %v1014, %v1010
  %v1411 = vpack.c.b16 %v1015, %v1011
  %v1412 = vpack.c.b16 %v1016, %v1012
  %v1413 = vpack.c.b16 %v1017, %v1013
  %v1414 = vpack.c.b16 %v1022, %v1018
  %v1415 = vpack.c.b16 %v1023, %v1019
  %v1416 = vpack.c.b16 %v1024, %v1020
  %v1417 = vpack.c.b16 %v1025, %v1021
  %v1418 = vpack.c.b16 %v1030, %v1026
  %v1419 = vpack.c.b16 %v1031, %v1027
  %v1420 = vpack.c.b16 %v1032, %v1028
  %v1421 = vpack.c.b16 %v1033, %v1029
  %v1422 = vpack.c.b16 %v1038, %v1034
  %v1423 = vpack.c.b16 %v1039, %v1035
  %v1424 = vpack.c.b16 %v1040, %v1036
  %v1425 = vpack.c.b16 %v1041, %v1037
  %v1426 = vpack.c.b16 %v1046, %v1042
  %v1427 = vpack.c.b16 %v1047, %v1043
  %v1428 = vpack.c.b16 %v1048, %v1044
  %v1429 = vpack.c.b16 %v1049, %v1045
  %v1430 = vpack.c.b16 %v1054, %v1050
  %v1431 = vpack.c.b16 %v1055, %v1051
  %v1432 = vpack.c.b16 %v1056, %v1052
  %v1433 = vpack.c.b16 %v1057, %v1053
  %v1434 = vpack.c.b16 %v1062, %v1058
  %v1435 = vpack.c.b16 %v1063, %v1059
  %v1436 = vpack.c.b16 %v1064, %v1060
  %v1437 = vpack.c.b16 %v1065, %v1061
  %v1438 = vpack.c.b16 %v1070, %v1066
  %v1439 = vpack.c.b16 %v1071, %v1067
  %v1440 = vpack.c.b16 %v1072, %v1068
  %v1441 = vpack.c.b16 %v1073, %v1069
  %v1442 = vpack.c.b16 %v1078, %v1074
  %v1443 = vpack.c.b16 %v1079, %v1075
  %v1444 = vpack.c.b16 %v1080, %v1076
  %v1445 = vpack.c.b16 %v1081, %v1077
  %v1446 = vpack.c.b16 %v1086, %v1082
  %v1447 = vpack.c.b16 %v1087, %v1083
  %v1448 = vpack.c.b16 %v1088, %v1084
  %v1449 = vpack.c.b16 %v1089, %v1085
  %v1450 = vpack.c.b16 %v1094, %v1090
  %v1451 = vpack.c.b16 %v1095, %v1091
  %v1452 = vpack.c.b16 %v1096, %v1092
  %v1453 = vpack.c.b16 %v1097, %v1093
  %v1454 = vpack.c.b16 %v1102, %v1098
  %v1455 = vpack.c.b16 %v1103, %v1099
  %v1456 = vpack.c.b16 %v1104, %v1100
  %v1457 = vpack.c.b16 %v1105, %v1101
  %v1458 = vpack.c.b16 %v1110, %v1106
  %v1459 = vpack.c.b16 %v1111, %v1107
  %v1460 = vpack.c.b16 %v1112, %v1108
  %v1461 = vpack.c.b16 %v1113, %v1109
  %v1462 = vpack.c.b16 %v1118, %v1114
  %v1463 = vpack.c.b16 %v1119, %v1115
  %v1464 = vpack.c.b16 %v1120, %v1116
  %v1465 = vpack.c.b16 %v1121, %v1117
  %v1466 = vpack.c.b16 %v1126, %v1122
  %v1467 = vpack.c.b16 %v1127, %v1123
  %v1468 = vpack.c.b16 %v1128, %v1124
  %v1469 = vpack.c.b16 %v1129, %v1125
  %v1470 = vpack.c.b16 %v1134, %v1130
  %v1471 = vpack.c.b16 %v1135, %v1131
  %v1472 = vpack.c.b16 %v1136, %v1132
  %v1473 = vpack.c.b16 %v1137, %v1133
  %v1474 = vpack.c.b16 %v1142, %v1138
  %v1475 = vpack.c.b16 %v1143, %v1139
  %v1476 = vpack.c.b16 %v1144, %v1140
  %v1477 = vpack.c.b16 %v1145, %v1141
  %v1478 = vpack.c.b16 %v1150, %v1146
  %v1479 = vpack.c.b16 %v1151, %v1147
  %v1480 = vpack.c.b16 %v1152, %v1148
  %v1481 = vpack.c.b16 %v1153, %v1149
  %v1482 = vpack.c.b16 %v1158, %v1154
  %v1483 = vpack.c.b16 %v1159, %v1155
  %v1484 = vpack.c.b16 %v1160, %v1156
  %v1485 = vpack.c.b16 %v1161, %v1157
  %v1486 = vpack.c.b16 %v1166, %v1162
  %v1487 = vpack.c.b16 %v1167, %v1163
  %v1488 = vpack.c.b16 %v1168, %v1164
  %v1489 = vpack.c.b16 %v1169, %v1165
  %v1490 = vpack.c.b16 %v1174, %v1170
  %v1491 = vpack.c.b16 %v1175, %v1171
  %v1492 = vpack.c.b16 %v1176, %v1172
  %v1493 = vpack.c.b16 %v1177, %v1173
  %v1494 = vpack.c.b16 %v1182, %v1178
  %v1495 = vpack.c.b16 %v1183, %v1179
  %v1496 = vpack.c.b16 %v1184, %v1180
  %v1497 = vpack.c.b16 %v1185, %v1181
  %v1498 = vpack.c.b16 %v1190, %v1186
  %v1499 = vpack.c.b16 %v1191, %v1187
  %v1500 = vpack.c.b16 %v1192, %v1188
  %v1501 = vpack.c.b16 %v1193, %v1189
  %v1502 = vpack.c.b16 %v1198, %v1194
  %v1503 = vpack.c.b16 %v1199, %v1195
  %v1504 = vpack.c.b16 %v1200, %v1196
  %v1505 = vpack.c.b16 %v1201, %v1197
  %v1506 = vpack.c.b16 %v1206, %v1202
  %v1507 = vpack.c.b16 %v1207, %v1203
  %v1508 = vpack.c.b16 %v1208, %v1204
  %v1509 = vpack.c.b16 %v1209, %v1205
  %v1510 = vpack.c.b16 %v1214, %v1210
  %v1511 = vpack.c.b16 %v1215, %v1211
  %v1512 = vpack.c.b16 %v1216, %v1212
  %v1513 = vpack.c.b16 %v1217, %v1213
  %v1514 = vpack.c.b16 %v1222, %v1218
  %v1515 = vpack.c.b16 %v1223, %v1219
  %v1516 = vpack.c.b16 %v1224, %v1220
  %v1517 = vpack.c.b16 %v1225, %v1221
  %v1518 = vpack.c.b16 %v1230, %v1226
  %v1519 = vpack.c.b16 %v1231, %v1227
  %v1520 = vpack.c.b16 %v1232, %v1228
  %v1521 = vpack.c.b16 %v1233, %v1229
  %v1874 = vunpack.c.l.b16 %v302
  %v1875 = vunpack.c.l.b16 %v303
  %v1876 = vunpack.c.l.b16 %v304
  %v1877 = vunpack.c.l.b16 %v305
  %v1878 = vunpack.c.l.b16 %v306
  %v1879 = vunpack.c.l.b16 %v307
  %v1880 = vunpack.c.l.b16 %v308
  %v1881 = vunpack.c.l.b16 %v309
  %v1882 = vunpack.c.l.b16 %v310
  %v1883 = vunpack.c.l.b16 %v311
  %v1884 = vunpack.c.l.b16 %v312
  %v1885 = vunpack.c.l.b16 %v313
  %v1886 = vunpack.c.l.b16 %v314
  %v1887 = vunpack.c.l.b16 %v315
  %v1888 = vunpack.c.l.b16 %v316
  %v1889 = vunpack.c.l.b16 %v317
  %v1890 = vunpack.c.l.b16 %v318
  %v1891 = vunpack.c.l.b16 %v319
  %v1892 = vunpack.c.l.b16 %v320
  %v1893 = vunpack.c.l.b16 %v321
  %v1894 = vunpack.c.l.b16 %v322
  %v1895 = vunpack.c.l.b16 %v323
  %v1896 = vunpack.c.l.b16 %v324
  %v1897 = vunpack.c.l.b16 %v325
  %v1898 = vunpack.c.l.b16 %v326
  %v1899 = vunpack.c.l.b16 %v327
  %v1900 = vunpack.c.l.b16 %v328
  %v1901 = vunpack.c.l.b16 %v329
  %v1902 = vunpack.c.l.b16 %v330
  %v1903 = vunpack.c.l.b16 %v331
  %v1904 = vunpack.c.l.b16 %v332
  %v1905 = vunpack.c.l.b16 %v333
  %v1906 = vunpack.c.l.b16 %v334
  %v1907 = vunpack.c.l.b16 %v335
  %v1908 = vunpack.c.l.b16 %v336
  %v1909 = vunpack.c.l.b16 %v337
  %v1910 = vunpack.c.l.b16 %v338
  %v1911 = vunpack.c.l.b16 %v339
  %v1912 = vunpack.c.l.b16 %v340
  %v1913 = vunpack.c.l.b16 %v341
  %v1914 = vunpack.c.l.b16 %v342
  %v1915 = vunpack.c.l.b16 %v343
  %v1916 = vunpack.c.l.b16 %v344
  %v1917 = vunpack.c.l.b16 %v345
  %v1918 = vunpack.c.l.b16 %v346
  %v1919 = vunpack.c.l.b16 %v347
  %v1920 = vunpack.c.l.b16 %v348
  %v1921 = vunpack.c.l.b16 %v349
  %v1922 = vunpack.c.l.b16 %v350
  %v1923 = vunpack.c.l.b16 %v351
  %v1924 = vunpack.c.l.b16 %v352
  %v1925 = vunpack.c.l.b16 %v353
  %v1926 = vunpack.c.l.b16 %v354
  %v1927 = vunpack.c.l.b16 %v355
  %v1928 = vunpack.c.l.b16 %v356
  %v1929 = vunpack.c.l.b16 %v357
  %v1930 = vunpack.c.l.b16 %v358
  %v1931 = vunpack.c.l.b16 %v359
  %v1932 = vunpack.c.l.b16 %v360
  %v1933 = vunpack.c.l.b16 %v361
  %v1934 = vunpack.c.l.b16 %v362
  %v1935 = vunpack.c.l.b16 %v363
  %v1936 = vunpack.c.l.b16 %v364
  %v1937 = vunpack.c.l.b16 %v365
  %v1938 = vpack.c.b16 %v1875, %v1874
  %v1939 = vpack.c.b16 %v1877, %v1876
  %v1940 = vpack.c.b16 %v1879, %v1878
  %v1941 = vpack.c.b16 %v1881, %v1880
  %v1942 = vpack.c.b16 %v1883, %v1882
  %v1943 = vpack.c.b16 %v1885, %v1884
  %v1944 = vpack.c.b16 %v1887, %v1886
  %v1945 = vpack.c.b16 %v1889, %v1888
  %v1946 = vpack.c.b16 %v1891, %v1890
  %v1947 = vpack.c.b16 %v1893, %v1892
  %v1948 = vpack.c.b16 %v1895, %v1894
  %v1949 = vpack.c.b16 %v1897, %v1896
  %v1950 = vpack.c.b16 %v1899, %v1898
  %v1951 = vpack.c.b16 %v1901, %v1900
  %v1952 = vpack.c.b16 %v1903, %v1902
  %v1953 = vpack.c.b16 %v1905, %v1904
  %v1954 = vpack.c.b16 %v1907, %v1906
  %v1955 = vpack.c.b16 %v1909, %v1908
  %v1956 = vpack.c.b16 %v1911, %v1910
  %v1957 = vpack.c.b16 %v1913, %v1912
  %v1958 = vpack.c.b16 %v1915, %v1914
  %v1959 = vpack.c.b16 %v1917, %v1916
  %v1960 = vpack.c.b16 %v1919, %v1918
  %v1961 = vpack.c.b16 %v1921, %v1920
  %v1962 = vpack.c.b16 %v1923, %v1922
  %v1963 = vpack.c.b16 %v1925, %v1924
  %v1964 = vpack.c.b16 %v1927, %v1926
  %v1965 = vpack.c.b16 %v1929, %v1928
  %v1966 = vpack.c.b16 %v1931, %v1930
  %v1967 = vpack.c.b16 %v1933, %v1932
  %v1968 = vpack.c.b16 %v1935, %v1934
  %v1969 = vpack.c.b16 %v1937, %v1936
  %2002 = vmatpush.bf16.msra.mxu0 %v1945
  %2003 = vmatpush.bf16.msra.mxu0 %v1944
  %2004 = vmatpush.bf16.msra.mxu0 %v1943
  %2005 = vmatpush.bf16.msra.mxu0 %v1942
  %2006 = vmatpush.bf16.msra.mxu0 %v1941
  %2007 = vmatpush.bf16.msra.mxu0 %v1940
  %2008 = vmatpush.bf16.msra.mxu0 %v1939
  %2009 = vmatpush.bf16.msra.mxu0 %v1938
  %2010 = vmatmul.bf16.gmra.mxu0 %v1234
  %v2011 = vpop.f32.mrf.mxu0
  %v2012 = vadd.f32 %v368, %v2011
  %v2013 = vpop.f32.mrf.mxu0
  %v2014 = vadd.f32 %v368, %v2013
  %2015 = vmatmul.bf16.gmra.mxu0 %v1238
  %v2016 = vpop.f32.mrf.mxu0
  %v2017 = vadd.f32 %v368, %v2016
  %v2018 = vpop.f32.mrf.mxu0
  %v2019 = vadd.f32 %v368, %v2018
  %2020 = vmatmul.bf16.gmra.mxu0 %v1242
  %v2021 = vpop.f32.mrf.mxu0
  %v2022 = vadd.f32 %v368, %v2021
  %v2023 = vpop.f32.mrf.mxu0
  %v2024 = vadd.f32 %v368, %v2023
  %2025 = vmatmul.bf16.gmra.mxu0 %v1246
  %v2026 = vpop.f32.mrf.mxu0
  %v2027 = vadd.f32 %v368, %v2026
  %v2028 = vpop.f32.mrf.mxu0
  %v2029 = vadd.f32 %v368, %v2028
  %2030 = vmatmul.bf16.gmra.mxu0 %v1250
  %v2031 = vpop.f32.mrf.mxu0
  %v2032 = vadd.f32 %v368, %v2031
  %v2033 = vpop.f32.mrf.mxu0
  %v2034 = vadd.f32 %v368, %v2033
  %2035 = vmatmul.bf16.gmra.mxu0 %v1254
  %v2036 = vpop.f32.mrf.mxu0
  %v2037 = vadd.f32 %v368, %v2036
  %v2038 = vpop.f32.mrf.mxu0
  %v2039 = vadd.f32 %v368, %v2038
  %2040 = vmatmul.bf16.gmra.mxu0 %v1258
  %v2041 = vpop.f32.mrf.mxu0
  %v2042 = vadd.f32 %v368, %v2041
  %v2043 = vpop.f32.mrf.mxu0
  %v2044 = vadd.f32 %v368, %v2043
  %2045 = vmatmul.bf16.gmra.mxu0 %v1262
  %v2046 = vpop.f32.mrf.mxu0
  %v2047 = vadd.f32 %v368, %v2046
  %v2048 = vpop.f32.mrf.mxu0
  %v2049 = vadd.f32 %v368, %v2048
  %2050 = vmatmul.bf16.gmra.mxu0 %v1266
  %v2051 = vpop.f32.mrf.mxu0
  %v2052 = vadd.f32 %v368, %v2051
  %v2053 = vpop.f32.mrf.mxu0
  %v2054 = vadd.f32 %v368, %v2053
  %2055 = vmatmul.bf16.gmra.mxu0 %v1270
  %v2056 = vpop.f32.mrf.mxu0
  %v2057 = vadd.f32 %v368, %v2056
  %v2058 = vpop.f32.mrf.mxu0
  %v2059 = vadd.f32 %v368, %v2058
  %2060 = vmatmul.bf16.gmra.mxu0 %v1274
  %v2061 = vpop.f32.mrf.mxu0
  %v2062 = vadd.f32 %v368, %v2061
  %v2063 = vpop.f32.mrf.mxu0
  %v2064 = vadd.f32 %v368, %v2063
  %2065 = vmatmul.bf16.gmra.mxu0 %v1278
  %v2066 = vpop.f32.mrf.mxu0
  %v2067 = vadd.f32 %v368, %v2066
  %v2068 = vpop.f32.mrf.mxu0
  %v2069 = vadd.f32 %v368, %v2068
  %2070 = vmatmul.bf16.gmra.mxu0 %v1282
  %v2071 = vpop.f32.mrf.mxu0
  %v2072 = vadd.f32 %v368, %v2071
  %v2073 = vpop.f32.mrf.mxu0
  %v2074 = vadd.f32 %v368, %v2073
  %2075 = vmatmul.bf16.gmra.mxu0 %v1286
  %v2076 = vpop.f32.mrf.mxu0
  %v2077 = vadd.f32 %v368, %v2076
  %v2078 = vpop.f32.mrf.mxu0
  %v2079 = vadd.f32 %v368, %v2078
  %2080 = vmatmul.bf16.gmra.mxu0 %v1290
  %v2081 = vpop.f32.mrf.mxu0
  %v2082 = vadd.f32 %v368, %v2081
  %v2083 = vpop.f32.mrf.mxu0
  %v2084 = vadd.f32 %v368, %v2083
  %2085 = vmatmul.bf16.gmra.mxu0 %v1294
  %v2086 = vpop.f32.mrf.mxu0
  %v2087 = vadd.f32 %v368, %v2086
  %v2088 = vpop.f32.mrf.mxu0
  %v2089 = vadd.f32 %v368, %v2088
  %2090 = vmatmul.bf16.gmra.mxu0 %v1298
  %v2091 = vpop.f32.mrf.mxu0
  %v2092 = vadd.f32 %v368, %v2091
  %v2093 = vpop.f32.mrf.mxu0
  %v2094 = vadd.f32 %v368, %v2093
  %2095 = vmatmul.bf16.gmra.mxu0 %v1302
  %v2096 = vpop.f32.mrf.mxu0
  %v2097 = vadd.f32 %v368, %v2096
  %v2098 = vpop.f32.mrf.mxu0
  %v2099 = vadd.f32 %v368, %v2098
  %2100 = vmatmul.bf16.gmra.mxu0 %v1306
  %v2101 = vpop.f32.mrf.mxu0
  %v2102 = vadd.f32 %v368, %v2101
  %v2103 = vpop.f32.mrf.mxu0
  %v2104 = vadd.f32 %v368, %v2103
  %2105 = vmatmul.bf16.gmra.mxu0 %v1310
  %v2106 = vpop.f32.mrf.mxu0
  %v2107 = vadd.f32 %v368, %v2106
  %v2108 = vpop.f32.mrf.mxu0
  %v2109 = vadd.f32 %v368, %v2108
  %2110 = vmatmul.bf16.gmra.mxu0 %v1314
  %v2111 = vpop.f32.mrf.mxu0
  %v2112 = vadd.f32 %v368, %v2111
  %v2113 = vpop.f32.mrf.mxu0
  %v2114 = vadd.f32 %v368, %v2113
  %2115 = vmatmul.bf16.gmra.mxu0 %v1318
  %v2116 = vpop.f32.mrf.mxu0
  %v2117 = vadd.f32 %v368, %v2116
  %v2118 = vpop.f32.mrf.mxu0
  %v2119 = vadd.f32 %v368, %v2118
  %2120 = vmatmul.bf16.gmra.mxu0 %v1322
  %v2121 = vpop.f32.mrf.mxu0
  %v2122 = vadd.f32 %v368, %v2121
  %v2123 = vpop.f32.mrf.mxu0
  %v2124 = vadd.f32 %v368, %v2123
  %2125 = vmatmul.bf16.gmra.mxu0 %v1326
  %v2126 = vpop.f32.mrf.mxu0
  %v2127 = vadd.f32 %v368, %v2126
  %v2128 = vpop.f32.mrf.mxu0
  %v2129 = vadd.f32 %v368, %v2128
  %2130 = vmatmul.bf16.gmra.mxu0 %v1330
  %v2131 = vpop.f32.mrf.mxu0
  %v2132 = vadd.f32 %v368, %v2131
  %v2133 = vpop.f32.mrf.mxu0
  %v2134 = vadd.f32 %v368, %v2133
  %2135 = vmatmul.bf16.gmra.mxu0 %v1334
  %v2136 = vpop.f32.mrf.mxu0
  %v2137 = vadd.f32 %v368, %v2136
  %v2138 = vpop.f32.mrf.mxu0
  %v2139 = vadd.f32 %v368, %v2138
  %2140 = vmatmul.bf16.gmra.mxu0 %v1338
  %v2141 = vpop.f32.mrf.mxu0
  %v2142 = vadd.f32 %v368, %v2141
  %v2143 = vpop.f32.mrf.mxu0
  %v2144 = vadd.f32 %v368, %v2143
  %2145 = vmatmul.bf16.gmra.mxu0 %v1342
  %v2146 = vpop.f32.mrf.mxu0
  %v2147 = vadd.f32 %v368, %v2146
  %v2148 = vpop.f32.mrf.mxu0
  %v2149 = vadd.f32 %v368, %v2148
  %2150 = vmatmul.bf16.gmra.mxu0 %v1346
  %v2151 = vpop.f32.mrf.mxu0
  %v2152 = vadd.f32 %v368, %v2151
  %v2153 = vpop.f32.mrf.mxu0
  %v2154 = vadd.f32 %v368, %v2153
  %2155 = vmatmul.bf16.gmra.mxu0 %v1350
  %v2156 = vpop.f32.mrf.mxu0
  %v2157 = vadd.f32 %v368, %v2156
  %v2158 = vpop.f32.mrf.mxu0
  %v2159 = vadd.f32 %v368, %v2158
  %2160 = vmatmul.bf16.gmra.mxu0 %v1354
  %v2161 = vpop.f32.mrf.mxu0
  %v2162 = vadd.f32 %v368, %v2161
  %v2163 = vpop.f32.mrf.mxu0
  %v2164 = vadd.f32 %v368, %v2163
  %2165 = vmatmul.bf16.gmra.mxu0 %v1358
  %v2166 = vpop.f32.mrf.mxu0
  %v2167 = vadd.f32 %v368, %v2166
  %v2168 = vpop.f32.mrf.mxu0
  %v2169 = vadd.f32 %v368, %v2168
  %2170 = vmatmul.bf16.gmra.mxu0 %v1362
  %v2171 = vpop.f32.mrf.mxu0
  %v2172 = vadd.f32 %v368, %v2171
  %v2173 = vpop.f32.mrf.mxu0
  %v2174 = vadd.f32 %v368, %v2173
  %2175 = vmatmul.bf16.gmra.mxu0 %v1366
  %v2176 = vpop.f32.mrf.mxu0
  %v2177 = vadd.f32 %v368, %v2176
  %v2178 = vpop.f32.mrf.mxu0
  %v2179 = vadd.f32 %v368, %v2178
  %2180 = vmatmul.bf16.gmra.mxu0 %v1370
  %v2181 = vpop.f32.mrf.mxu0
  %v2182 = vadd.f32 %v368, %v2181
  %v2183 = vpop.f32.mrf.mxu0
  %v2184 = vadd.f32 %v368, %v2183
  %2185 = vmatmul.bf16.gmra.mxu0 %v1374
  %v2186 = vpop.f32.mrf.mxu0
  %v2187 = vadd.f32 %v368, %v2186
  %v2188 = vpop.f32.mrf.mxu0
  %v2189 = vadd.f32 %v368, %v2188
  %2190 = vmatmul.bf16.gmra.mxu0 %v1378
  %v2191 = vpop.f32.mrf.mxu0
  %v2192 = vadd.f32 %v368, %v2191
  %v2193 = vpop.f32.mrf.mxu0
  %v2194 = vadd.f32 %v368, %v2193
  %2195 = vmatmul.bf16.gmra.mxu0 %v1382
  %v2196 = vpop.f32.mrf.mxu0
  %v2197 = vadd.f32 %v368, %v2196
  %v2198 = vpop.f32.mrf.mxu0
  %v2199 = vadd.f32 %v368, %v2198
  %2200 = vmatmul.bf16.gmra.mxu0 %v1386
  %v2201 = vpop.f32.mrf.mxu0
  %v2202 = vadd.f32 %v368, %v2201
  %v2203 = vpop.f32.mrf.mxu0
  %v2204 = vadd.f32 %v368, %v2203
  %2205 = vmatmul.bf16.gmra.mxu0 %v1390
  %v2206 = vpop.f32.mrf.mxu0
  %v2207 = vadd.f32 %v368, %v2206
  %v2208 = vpop.f32.mrf.mxu0
  %v2209 = vadd.f32 %v368, %v2208
  %2210 = vmatmul.bf16.gmra.mxu0 %v1394
  %v2211 = vpop.f32.mrf.mxu0
  %v2212 = vadd.f32 %v368, %v2211
  %v2213 = vpop.f32.mrf.mxu0
  %v2214 = vadd.f32 %v368, %v2213
  %2215 = vmatmul.bf16.gmra.mxu0 %v1398
  %v2216 = vpop.f32.mrf.mxu0
  %v2217 = vadd.f32 %v368, %v2216
  %v2218 = vpop.f32.mrf.mxu0
  %v2219 = vadd.f32 %v368, %v2218
  %2220 = vmatmul.bf16.gmra.mxu0 %v1402
  %v2221 = vpop.f32.mrf.mxu0
  %v2222 = vadd.f32 %v368, %v2221
  %v2223 = vpop.f32.mrf.mxu0
  %v2224 = vadd.f32 %v368, %v2223
  %2225 = vmatmul.bf16.gmra.mxu0 %v1406
  %v2226 = vpop.f32.mrf.mxu0
  %v2227 = vadd.f32 %v368, %v2226
  %v2228 = vpop.f32.mrf.mxu0
  %v2229 = vadd.f32 %v368, %v2228
  %2230 = vmatmul.bf16.gmra.mxu0 %v1410
  %v2231 = vpop.f32.mrf.mxu0
  %v2232 = vadd.f32 %v368, %v2231
  %v2233 = vpop.f32.mrf.mxu0
  %v2234 = vadd.f32 %v368, %v2233
  %2235 = vmatmul.bf16.gmra.mxu0 %v1414
  %v2236 = vpop.f32.mrf.mxu0
  %v2237 = vadd.f32 %v368, %v2236
  %v2238 = vpop.f32.mrf.mxu0
  %v2239 = vadd.f32 %v368, %v2238
  %2240 = vmatmul.bf16.gmra.mxu0 %v1418
  %v2241 = vpop.f32.mrf.mxu0
  %v2242 = vadd.f32 %v368, %v2241
  %v2243 = vpop.f32.mrf.mxu0
  %v2244 = vadd.f32 %v368, %v2243
  %2245 = vmatmul.bf16.gmra.mxu0 %v1422
  %v2246 = vpop.f32.mrf.mxu0
  %v2247 = vadd.f32 %v368, %v2246
  %v2248 = vpop.f32.mrf.mxu0
  %v2249 = vadd.f32 %v368, %v2248
  %2250 = vmatmul.bf16.gmra.mxu0 %v1426
  %v2251 = vpop.f32.mrf.mxu0
  %v2252 = vadd.f32 %v368, %v2251
  %v2253 = vpop.f32.mrf.mxu0
  %v2254 = vadd.f32 %v368, %v2253
  %2255 = vmatmul.bf16.gmra.mxu0 %v1430
  %v2256 = vpop.f32.mrf.mxu0
  %v2257 = vadd.f32 %v368, %v2256
  %v2258 = vpop.f32.mrf.mxu0
  %v2259 = vadd.f32 %v368, %v2258
  %2260 = vmatmul.bf16.gmra.mxu0 %v1434
  %v2261 = vpop.f32.mrf.mxu0
  %v2262 = vadd.f32 %v368, %v2261
  %v2263 = vpop.f32.mrf.mxu0
  %v2264 = vadd.f32 %v368, %v2263
  %2265 = vmatmul.bf16.gmra.mxu0 %v1438
  %v2266 = vpop.f32.mrf.mxu0
  %v2267 = vadd.f32 %v368, %v2266
  %v2268 = vpop.f32.mrf.mxu0
  %v2269 = vadd.f32 %v368, %v2268
  %2270 = vmatmul.bf16.gmra.mxu0 %v1442
  %v2271 = vpop.f32.mrf.mxu0
  %v2272 = vadd.f32 %v368, %v2271
  %v2273 = vpop.f32.mrf.mxu0
  %v2274 = vadd.f32 %v368, %v2273
  %2275 = vmatmul.bf16.gmra.mxu0 %v1446
  %v2276 = vpop.f32.mrf.mxu0
  %v2277 = vadd.f32 %v368, %v2276
  %v2278 = vpop.f32.mrf.mxu0
  %v2279 = vadd.f32 %v368, %v2278
  %2280 = vmatmul.bf16.gmra.mxu0 %v1450
  %v2281 = vpop.f32.mrf.mxu0
  %v2282 = vadd.f32 %v368, %v2281
  %v2283 = vpop.f32.mrf.mxu0
  %v2284 = vadd.f32 %v368, %v2283
  %2285 = vmatmul.bf16.gmra.mxu0 %v1454
  %v2286 = vpop.f32.mrf.mxu0
  %v2287 = vadd.f32 %v368, %v2286
  %v2288 = vpop.f32.mrf.mxu0
  %v2289 = vadd.f32 %v368, %v2288
  %2290 = vmatmul.bf16.gmra.mxu0 %v1458
  %v2291 = vpop.f32.mrf.mxu0
  %v2292 = vadd.f32 %v368, %v2291
  %v2293 = vpop.f32.mrf.mxu0
  %v2294 = vadd.f32 %v368, %v2293
  %2295 = vmatmul.bf16.gmra.mxu0 %v1462
  %v2296 = vpop.f32.mrf.mxu0
  %v2297 = vadd.f32 %v368, %v2296
  %v2298 = vpop.f32.mrf.mxu0
  %v2299 = vadd.f32 %v368, %v2298
  %2300 = vmatmul.bf16.gmra.mxu0 %v1466
  %v2301 = vpop.f32.mrf.mxu0
  %v2302 = vadd.f32 %v368, %v2301
  %v2303 = vpop.f32.mrf.mxu0
  %v2304 = vadd.f32 %v368, %v2303
  %2305 = vmatmul.bf16.gmra.mxu0 %v1470
  %v2306 = vpop.f32.mrf.mxu0
  %v2307 = vadd.f32 %v368, %v2306
  %v2308 = vpop.f32.mrf.mxu0
  %v2309 = vadd.f32 %v368, %v2308
  %2310 = vmatmul.bf16.gmra.mxu0 %v1474
  %v2311 = vpop.f32.mrf.mxu0
  %v2312 = vadd.f32 %v368, %v2311
  %v2313 = vpop.f32.mrf.mxu0
  %v2314 = vadd.f32 %v368, %v2313
  %2315 = vmatmul.bf16.gmra.mxu0 %v1478
  %v2316 = vpop.f32.mrf.mxu0
  %v2317 = vadd.f32 %v368, %v2316
  %v2318 = vpop.f32.mrf.mxu0
  %v2319 = vadd.f32 %v368, %v2318
  %2320 = vmatmul.bf16.gmra.mxu0 %v1482
  %v2321 = vpop.f32.mrf.mxu0
  %v2322 = vadd.f32 %v368, %v2321
  %v2323 = vpop.f32.mrf.mxu0
  %v2324 = vadd.f32 %v368, %v2323
  %2325 = vmatmul.bf16.gmra.mxu0 %v1486
  %v2326 = vpop.f32.mrf.mxu0
  %v2327 = vadd.f32 %v368, %v2326
  %v2328 = vpop.f32.mrf.mxu0
  %v2329 = vadd.f32 %v368, %v2328
  %2330 = vmatmul.bf16.gmra.mxu0 %v1490
  %v2331 = vpop.f32.mrf.mxu0
  %v2332 = vadd.f32 %v368, %v2331
  %v2333 = vpop.f32.mrf.mxu0
  %v2334 = vadd.f32 %v368, %v2333
  %2335 = vmatmul.bf16.gmra.mxu0 %v1494
  %v2336 = vpop.f32.mrf.mxu0
  %v2337 = vadd.f32 %v368, %v2336
  %v2338 = vpop.f32.mrf.mxu0
  %v2339 = vadd.f32 %v368, %v2338
  %2340 = vmatmul.bf16.gmra.mxu0 %v1498
  %v2341 = vpop.f32.mrf.mxu0
  %v2342 = vadd.f32 %v368, %v2341
  %v2343 = vpop.f32.mrf.mxu0
  %v2344 = vadd.f32 %v368, %v2343
  %2345 = vmatmul.bf16.gmra.mxu0 %v1502
  %v2346 = vpop.f32.mrf.mxu0
  %v2347 = vadd.f32 %v368, %v2346
  %v2348 = vpop.f32.mrf.mxu0
  %v2349 = vadd.f32 %v368, %v2348
  %2350 = vmatmul.bf16.gmra.mxu0 %v1506
  %v2351 = vpop.f32.mrf.mxu0
  %v2352 = vadd.f32 %v368, %v2351
  %v2353 = vpop.f32.mrf.mxu0
  %v2354 = vadd.f32 %v368, %v2353
  %2355 = vmatmul.bf16.gmra.mxu0 %v1510
  %v2356 = vpop.f32.mrf.mxu0
  %v2357 = vadd.f32 %v368, %v2356
  %v2358 = vpop.f32.mrf.mxu0
  %v2359 = vadd.f32 %v368, %v2358
  %2360 = vmatmul.bf16.gmra.mxu0 %v1514
  %v2361 = vpop.f32.mrf.mxu0
  %v2362 = vadd.f32 %v368, %v2361
  %v2363 = vpop.f32.mrf.mxu0
  %v2364 = vadd.f32 %v368, %v2363
  %2365 = vmatmul.bf16.gmra.mxu0 %v1518
  %v2366 = vpop.f32.mrf.mxu0
  %v2367 = vadd.f32 %v368, %v2366
  %v2368 = vpop.f32.mrf.mxu0
  %v2369 = vadd.f32 %v368, %v2368
  %2370 = vdwg.mxu0
  %2371 = vmatpush.bf16.msra.mxu0 %v1953
  %2372 = vmatpush.bf16.msra.mxu0 %v1952
  %2373 = vmatpush.bf16.msra.mxu0 %v1951
  %2374 = vmatpush.bf16.msra.mxu0 %v1950
  %2375 = vmatpush.bf16.msra.mxu0 %v1949
  %2376 = vmatpush.bf16.msra.mxu0 %v1948
  %2377 = vmatpush.bf16.msra.mxu0 %v1947
  %2378 = vmatpush.bf16.msra.mxu0 %v1946
  %2379 = vmatmul.bf16.gmra.mxu0 %v1235
  %v2380 = vpop.f32.mrf.mxu0
  %v2381 = vadd.f32 %v2012, %v2380
  %v2382 = vpop.f32.mrf.mxu0
  %v2383 = vadd.f32 %v2014, %v2382
  %2384 = vmatmul.bf16.gmra.mxu0 %v1239
  %v2385 = vpop.f32.mrf.mxu0
  %v2386 = vadd.f32 %v2017, %v2385
  %v2387 = vpop.f32.mrf.mxu0
  %v2388 = vadd.f32 %v2019, %v2387
  %2389 = vmatmul.bf16.gmra.mxu0 %v1243
  %v2390 = vpop.f32.mrf.mxu0
  %v2391 = vadd.f32 %v2022, %v2390
  %v2392 = vpop.f32.mrf.mxu0
  %v2393 = vadd.f32 %v2024, %v2392
  %2394 = vmatmul.bf16.gmra.mxu0 %v1247
  %v2395 = vpop.f32.mrf.mxu0
  %v2396 = vadd.f32 %v2027, %v2395
  %v2397 = vpop.f32.mrf.mxu0
  %v2398 = vadd.f32 %v2029, %v2397
  %2399 = vmatmul.bf16.gmra.mxu0 %v1251
  %v2400 = vpop.f32.mrf.mxu0
  %v2401 = vadd.f32 %v2032, %v2400
  %v2402 = vpop.f32.mrf.mxu0
  %v2403 = vadd.f32 %v2034, %v2402
  %2404 = vmatmul.bf16.gmra.mxu0 %v1255
  %v2405 = vpop.f32.mrf.mxu0
  %v2406 = vadd.f32 %v2037, %v2405
  %v2407 = vpop.f32.mrf.mxu0
  %v2408 = vadd.f32 %v2039, %v2407
  %2409 = vmatmul.bf16.gmra.mxu0 %v1259
  %v2410 = vpop.f32.mrf.mxu0
  %v2411 = vadd.f32 %v2042, %v2410
  %v2412 = vpop.f32.mrf.mxu0
  %v2413 = vadd.f32 %v2044, %v2412
  %2414 = vmatmul.bf16.gmra.mxu0 %v1263
  %v2415 = vpop.f32.mrf.mxu0
  %v2416 = vadd.f32 %v2047, %v2415
  %v2417 = vpop.f32.mrf.mxu0
  %v2418 = vadd.f32 %v2049, %v2417
  %2419 = vmatmul.bf16.gmra.mxu0 %v1267
  %v2420 = vpop.f32.mrf.mxu0
  %v2421 = vadd.f32 %v2052, %v2420
  %v2422 = vpop.f32.mrf.mxu0
  %v2423 = vadd.f32 %v2054, %v2422
  %2424 = vmatmul.bf16.gmra.mxu0 %v1271
  %v2425 = vpop.f32.mrf.mxu0
  %v2426 = vadd.f32 %v2057, %v2425
  %v2427 = vpop.f32.mrf.mxu0
  %v2428 = vadd.f32 %v2059, %v2427
  %2429 = vmatmul.bf16.gmra.mxu0 %v1275
  %v2430 = vpop.f32.mrf.mxu0
  %v2431 = vadd.f32 %v2062, %v2430
  %v2432 = vpop.f32.mrf.mxu0
  %v2433 = vadd.f32 %v2064, %v2432
  %2434 = vmatmul.bf16.gmra.mxu0 %v1279
  %v2435 = vpop.f32.mrf.mxu0
  %v2436 = vadd.f32 %v2067, %v2435
  %v2437 = vpop.f32.mrf.mxu0
  %v2438 = vadd.f32 %v2069, %v2437
  %2439 = vmatmul.bf16.gmra.mxu0 %v1283
  %v2440 = vpop.f32.mrf.mxu0
  %v2441 = vadd.f32 %v2072, %v2440
  %v2442 = vpop.f32.mrf.mxu0
  %v2443 = vadd.f32 %v2074, %v2442
  %2444 = vmatmul.bf16.gmra.mxu0 %v1287
  %v2445 = vpop.f32.mrf.mxu0
  %v2446 = vadd.f32 %v2077, %v2445
  %v2447 = vpop.f32.mrf.mxu0
  %v2448 = vadd.f32 %v2079, %v2447
  %2449 = vmatmul.bf16.gmra.mxu0 %v1291
  %v2450 = vpop.f32.mrf.mxu0
  %v2451 = vadd.f32 %v2082, %v2450
  %v2452 = vpop.f32.mrf.mxu0
  %v2453 = vadd.f32 %v2084, %v2452
  %2454 = vmatmul.bf16.gmra.mxu0 %v1295
  %v2455 = vpop.f32.mrf.mxu0
  %v2456 = vadd.f32 %v2087, %v2455
  %v2457 = vpop.f32.mrf.mxu0
  %v2458 = vadd.f32 %v2089, %v2457
  %2459 = vmatmul.bf16.gmra.mxu0 %v1299
  %v2460 = vpop.f32.mrf.mxu0
  %v2461 = vadd.f32 %v2092, %v2460
  %v2462 = vpop.f32.mrf.mxu0
  %v2463 = vadd.f32 %v2094, %v2462
  %2464 = vmatmul.bf16.gmra.mxu0 %v1303
  %v2465 = vpop.f32.mrf.mxu0
  %v2466 = vadd.f32 %v2097, %v2465
  %v2467 = vpop.f32.mrf.mxu0
  %v2468 = vadd.f32 %v2099, %v2467
  %2469 = vmatmul.bf16.gmra.mxu0 %v1307
  %v2470 = vpop.f32.mrf.mxu0
  %v2471 = vadd.f32 %v2102, %v2470
  %v2472 = vpop.f32.mrf.mxu0
  %v2473 = vadd.f32 %v2104, %v2472
  %2474 = vmatmul.bf16.gmra.mxu0 %v1311
  %v2475 = vpop.f32.mrf.mxu0
  %v2476 = vadd.f32 %v2107, %v2475
  %v2477 = vpop.f32.mrf.mxu0
  %v2478 = vadd.f32 %v2109, %v2477
  %2479 = vmatmul.bf16.gmra.mxu0 %v1315
  %v2480 = vpop.f32.mrf.mxu0
  %v2481 = vadd.f32 %v2112, %v2480
  %v2482 = vpop.f32.mrf.mxu0
  %v2483 = vadd.f32 %v2114, %v2482
  %2484 = vmatmul.bf16.gmra.mxu0 %v1319
  %v2485 = vpop.f32.mrf.mxu0
  %v2486 = vadd.f32 %v2117, %v2485
  %v2487 = vpop.f32.mrf.mxu0
  %v2488 = vadd.f32 %v2119, %v2487
  %2489 = vmatmul.bf16.gmra.mxu0 %v1323
  %v2490 = vpop.f32.mrf.mxu0
  %v2491 = vadd.f32 %v2122, %v2490
  %v2492 = vpop.f32.mrf.mxu0
  %v2493 = vadd.f32 %v2124, %v2492
  %2494 = vmatmul.bf16.gmra.mxu0 %v1327
  %v2495 = vpop.f32.mrf.mxu0
  %v2496 = vadd.f32 %v2127, %v2495
  %v2497 = vpop.f32.mrf.mxu0
  %v2498 = vadd.f32 %v2129, %v2497
  %2499 = vmatmul.bf16.gmra.mxu0 %v1331
  %v2500 = vpop.f32.mrf.mxu0
  %v2501 = vadd.f32 %v2132, %v2500
  %v2502 = vpop.f32.mrf.mxu0
  %v2503 = vadd.f32 %v2134, %v2502
  %2504 = vmatmul.bf16.gmra.mxu0 %v1335
  %v2505 = vpop.f32.mrf.mxu0
  %v2506 = vadd.f32 %v2137, %v2505
  %v2507 = vpop.f32.mrf.mxu0
  %v2508 = vadd.f32 %v2139, %v2507
  %2509 = vmatmul.bf16.gmra.mxu0 %v1339
  %v2510 = vpop.f32.mrf.mxu0
  %v2511 = vadd.f32 %v2142, %v2510
  %v2512 = vpop.f32.mrf.mxu0
  %v2513 = vadd.f32 %v2144, %v2512
  %2514 = vmatmul.bf16.gmra.mxu0 %v1343
  %v2515 = vpop.f32.mrf.mxu0
  %v2516 = vadd.f32 %v2147, %v2515
  %v2517 = vpop.f32.mrf.mxu0
  %v2518 = vadd.f32 %v2149, %v2517
  %2519 = vmatmul.bf16.gmra.mxu0 %v1347
  %v2520 = vpop.f32.mrf.mxu0
  %v2521 = vadd.f32 %v2152, %v2520
  %v2522 = vpop.f32.mrf.mxu0
  %v2523 = vadd.f32 %v2154, %v2522
  %2524 = vmatmul.bf16.gmra.mxu0 %v1351
  %v2525 = vpop.f32.mrf.mxu0
  %v2526 = vadd.f32 %v2157, %v2525
  %v2527 = vpop.f32.mrf.mxu0
  %v2528 = vadd.f32 %v2159, %v2527
  %2529 = vmatmul.bf16.gmra.mxu0 %v1355
  %v2530 = vpop.f32.mrf.mxu0
  %v2531 = vadd.f32 %v2162, %v2530
  %v2532 = vpop.f32.mrf.mxu0
  %v2533 = vadd.f32 %v2164, %v2532
  %2534 = vmatmul.bf16.gmra.mxu0 %v1359
  %v2535 = vpop.f32.mrf.mxu0
  %v2536 = vadd.f32 %v2167, %v2535
  %v2537 = vpop.f32.mrf.mxu0
  %v2538 = vadd.f32 %v2169, %v2537
  %2539 = vmatmul.bf16.gmra.mxu0 %v1363
  %v2540 = vpop.f32.mrf.mxu0
  %v2541 = vadd.f32 %v2172, %v2540
  %v2542 = vpop.f32.mrf.mxu0
  %v2543 = vadd.f32 %v2174, %v2542
  %2544 = vmatmul.bf16.gmra.mxu0 %v1367
  %v2545 = vpop.f32.mrf.mxu0
  %v2546 = vadd.f32 %v2177, %v2545
  %v2547 = vpop.f32.mrf.mxu0
  %v2548 = vadd.f32 %v2179, %v2547
  %2549 = vmatmul.bf16.gmra.mxu0 %v1371
  %v2550 = vpop.f32.mrf.mxu0
  %v2551 = vadd.f32 %v2182, %v2550
  %v2552 = vpop.f32.mrf.mxu0
  %v2553 = vadd.f32 %v2184, %v2552
  %2554 = vmatmul.bf16.gmra.mxu0 %v1375
  %v2555 = vpop.f32.mrf.mxu0
  %v2556 = vadd.f32 %v2187, %v2555
  %v2557 = vpop.f32.mrf.mxu0
  %v2558 = vadd.f32 %v2189, %v2557
  %2559 = vmatmul.bf16.gmra.mxu0 %v1379
  %v2560 = vpop.f32.mrf.mxu0
  %v2561 = vadd.f32 %v2192, %v2560
  %v2562 = vpop.f32.mrf.mxu0
  %v2563 = vadd.f32 %v2194, %v2562
  %2564 = vmatmul.bf16.gmra.mxu0 %v1383
  %v2565 = vpop.f32.mrf.mxu0
  %v2566 = vadd.f32 %v2197, %v2565
  %v2567 = vpop.f32.mrf.mxu0
  %v2568 = vadd.f32 %v2199, %v2567
  %2569 = vmatmul.bf16.gmra.mxu0 %v1387
  %v2570 = vpop.f32.mrf.mxu0
  %v2571 = vadd.f32 %v2202, %v2570
  %v2572 = vpop.f32.mrf.mxu0
  %v2573 = vadd.f32 %v2204, %v2572
  %2574 = vmatmul.bf16.gmra.mxu0 %v1391
  %v2575 = vpop.f32.mrf.mxu0
  %v2576 = vadd.f32 %v2207, %v2575
  %v2577 = vpop.f32.mrf.mxu0
  %v2578 = vadd.f32 %v2209, %v2577
  %2579 = vmatmul.bf16.gmra.mxu0 %v1395
  %v2580 = vpop.f32.mrf.mxu0
  %v2581 = vadd.f32 %v2212, %v2580
  %v2582 = vpop.f32.mrf.mxu0
  %v2583 = vadd.f32 %v2214, %v2582
  %2584 = vmatmul.bf16.gmra.mxu0 %v1399
  %v2585 = vpop.f32.mrf.mxu0
  %v2586 = vadd.f32 %v2217, %v2585
  %v2587 = vpop.f32.mrf.mxu0
  %v2588 = vadd.f32 %v2219, %v2587
  %2589 = vmatmul.bf16.gmra.mxu0 %v1403
  %v2590 = vpop.f32.mrf.mxu0
  %v2591 = vadd.f32 %v2222, %v2590
  %v2592 = vpop.f32.mrf.mxu0
  %v2593 = vadd.f32 %v2224, %v2592
  %2594 = vmatmul.bf16.gmra.mxu0 %v1407
  %v2595 = vpop.f32.mrf.mxu0
  %v2596 = vadd.f32 %v2227, %v2595
  %v2597 = vpop.f32.mrf.mxu0
  %v2598 = vadd.f32 %v2229, %v2597
  %2599 = vmatmul.bf16.gmra.mxu0 %v1411
  %v2600 = vpop.f32.mrf.mxu0
  %v2601 = vadd.f32 %v2232, %v2600
  %v2602 = vpop.f32.mrf.mxu0
  %v2603 = vadd.f32 %v2234, %v2602
  %2604 = vmatmul.bf16.gmra.mxu0 %v1415
  %v2605 = vpop.f32.mrf.mxu0
  %v2606 = vadd.f32 %v2237, %v2605
  %v2607 = vpop.f32.mrf.mxu0
  %v2608 = vadd.f32 %v2239, %v2607
  %2609 = vmatmul.bf16.gmra.mxu0 %v1419
  %v2610 = vpop.f32.mrf.mxu0
  %v2611 = vadd.f32 %v2242, %v2610
  %v2612 = vpop.f32.mrf.mxu0
  %v2613 = vadd.f32 %v2244, %v2612
  %2614 = vmatmul.bf16.gmra.mxu0 %v1423
  %v2615 = vpop.f32.mrf.mxu0
  %v2616 = vadd.f32 %v2247, %v2615
  %v2617 = vpop.f32.mrf.mxu0
  %v2618 = vadd.f32 %v2249, %v2617
  %2619 = vmatmul.bf16.gmra.mxu0 %v1427
  %v2620 = vpop.f32.mrf.mxu0
  %v2621 = vadd.f32 %v2252, %v2620
  %v2622 = vpop.f32.mrf.mxu0
  %v2623 = vadd.f32 %v2254, %v2622
  %2624 = vmatmul.bf16.gmra.mxu0 %v1431
  %v2625 = vpop.f32.mrf.mxu0
  %v2626 = vadd.f32 %v2257, %v2625
  %v2627 = vpop.f32.mrf.mxu0
  %v2628 = vadd.f32 %v2259, %v2627
  %2629 = vmatmul.bf16.gmra.mxu0 %v1435
  %v2630 = vpop.f32.mrf.mxu0
  %v2631 = vadd.f32 %v2262, %v2630
  %v2632 = vpop.f32.mrf.mxu0
  %v2633 = vadd.f32 %v2264, %v2632
  %2634 = vmatmul.bf16.gmra.mxu0 %v1439
  %v2635 = vpop.f32.mrf.mxu0
  %v2636 = vadd.f32 %v2267, %v2635
  %v2637 = vpop.f32.mrf.mxu0
  %v2638 = vadd.f32 %v2269, %v2637
  %2639 = vmatmul.bf16.gmra.mxu0 %v1443
  %v2640 = vpop.f32.mrf.mxu0
  %v2641 = vadd.f32 %v2272, %v2640
  %v2642 = vpop.f32.mrf.mxu0
  %v2643 = vadd.f32 %v2274, %v2642
  %2644 = vmatmul.bf16.gmra.mxu0 %v1447
  %v2645 = vpop.f32.mrf.mxu0
  %v2646 = vadd.f32 %v2277, %v2645
  %v2647 = vpop.f32.mrf.mxu0
  %v2648 = vadd.f32 %v2279, %v2647
  %2649 = vmatmul.bf16.gmra.mxu0 %v1451
  %v2650 = vpop.f32.mrf.mxu0
  %v2651 = vadd.f32 %v2282, %v2650
  %v2652 = vpop.f32.mrf.mxu0
  %v2653 = vadd.f32 %v2284, %v2652
  %2654 = vmatmul.bf16.gmra.mxu0 %v1455
  %v2655 = vpop.f32.mrf.mxu0
  %v2656 = vadd.f32 %v2287, %v2655
  %v2657 = vpop.f32.mrf.mxu0
  %v2658 = vadd.f32 %v2289, %v2657
  %2659 = vmatmul.bf16.gmra.mxu0 %v1459
  %v2660 = vpop.f32.mrf.mxu0
  %v2661 = vadd.f32 %v2292, %v2660
  %v2662 = vpop.f32.mrf.mxu0
  %v2663 = vadd.f32 %v2294, %v2662
  %2664 = vmatmul.bf16.gmra.mxu0 %v1463
  %v2665 = vpop.f32.mrf.mxu0
  %v2666 = vadd.f32 %v2297, %v2665
  %v2667 = vpop.f32.mrf.mxu0
  %v2668 = vadd.f32 %v2299, %v2667
  %2669 = vmatmul.bf16.gmra.mxu0 %v1467
  %v2670 = vpop.f32.mrf.mxu0
  %v2671 = vadd.f32 %v2302, %v2670
  %v2672 = vpop.f32.mrf.mxu0
  %v2673 = vadd.f32 %v2304, %v2672
  %2674 = vmatmul.bf16.gmra.mxu0 %v1471
  %v2675 = vpop.f32.mrf.mxu0
  %v2676 = vadd.f32 %v2307, %v2675
  %v2677 = vpop.f32.mrf.mxu0
  %v2678 = vadd.f32 %v2309, %v2677
  %2679 = vmatmul.bf16.gmra.mxu0 %v1475
  %v2680 = vpop.f32.mrf.mxu0
  %v2681 = vadd.f32 %v2312, %v2680
  %v2682 = vpop.f32.mrf.mxu0
  %v2683 = vadd.f32 %v2314, %v2682
  %2684 = vmatmul.bf16.gmra.mxu0 %v1479
  %v2685 = vpop.f32.mrf.mxu0
  %v2686 = vadd.f32 %v2317, %v2685
  %v2687 = vpop.f32.mrf.mxu0
  %v2688 = vadd.f32 %v2319, %v2687
  %2689 = vmatmul.bf16.gmra.mxu0 %v1483
  %v2690 = vpop.f32.mrf.mxu0
  %v2691 = vadd.f32 %v2322, %v2690
  %v2692 = vpop.f32.mrf.mxu0
  %v2693 = vadd.f32 %v2324, %v2692
  %2694 = vmatmul.bf16.gmra.mxu0 %v1487
  %v2695 = vpop.f32.mrf.mxu0
  %v2696 = vadd.f32 %v2327, %v2695
  %v2697 = vpop.f32.mrf.mxu0
  %v2698 = vadd.f32 %v2329, %v2697
  %2699 = vmatmul.bf16.gmra.mxu0 %v1491
  %v2700 = vpop.f32.mrf.mxu0
  %v2701 = vadd.f32 %v2332, %v2700
  %v2702 = vpop.f32.mrf.mxu0
  %v2703 = vadd.f32 %v2334, %v2702
  %2704 = vmatmul.bf16.gmra.mxu0 %v1495
  %v2705 = vpop.f32.mrf.mxu0
  %v2706 = vadd.f32 %v2337, %v2705
  %v2707 = vpop.f32.mrf.mxu0
  %v2708 = vadd.f32 %v2339, %v2707
  %2709 = vmatmul.bf16.gmra.mxu0 %v1499
  %v2710 = vpop.f32.mrf.mxu0
  %v2711 = vadd.f32 %v2342, %v2710
  %v2712 = vpop.f32.mrf.mxu0
  %v2713 = vadd.f32 %v2344, %v2712
  %2714 = vmatmul.bf16.gmra.mxu0 %v1503
  %v2715 = vpop.f32.mrf.mxu0
  %v2716 = vadd.f32 %v2347, %v2715
  %v2717 = vpop.f32.mrf.mxu0
  %v2718 = vadd.f32 %v2349, %v2717
  %2719 = vmatmul.bf16.gmra.mxu0 %v1507
  %v2720 = vpop.f32.mrf.mxu0
  %v2721 = vadd.f32 %v2352, %v2720
  %v2722 = vpop.f32.mrf.mxu0
  %v2723 = vadd.f32 %v2354, %v2722
  %2724 = vmatmul.bf16.gmra.mxu0 %v1511
  %v2725 = vpop.f32.mrf.mxu0
  %v2726 = vadd.f32 %v2357, %v2725
  %v2727 = vpop.f32.mrf.mxu0
  %v2728 = vadd.f32 %v2359, %v2727
  %2729 = vmatmul.bf16.gmra.mxu0 %v1515
  %v2730 = vpop.f32.mrf.mxu0
  %v2731 = vadd.f32 %v2362, %v2730
  %v2732 = vpop.f32.mrf.mxu0
  %v2733 = vadd.f32 %v2364, %v2732
  %2734 = vmatmul.bf16.gmra.mxu0 %v1519
  %v2735 = vpop.f32.mrf.mxu0
  %v2736 = vadd.f32 %v2367, %v2735
  %v2737 = vpop.f32.mrf.mxu0
  %v2738 = vadd.f32 %v2369, %v2737
  %2739 = vdwg.mxu0
  %2740 = vmatpush.bf16.msra.mxu0 %v1961
  %2741 = vmatpush.bf16.msra.mxu0 %v1960
  %2742 = vmatpush.bf16.msra.mxu0 %v1959
  %2743 = vmatpush.bf16.msra.mxu0 %v1958
  %2744 = vmatpush.bf16.msra.mxu0 %v1957
  %2745 = vmatpush.bf16.msra.mxu0 %v1956
  %2746 = vmatpush.bf16.msra.mxu0 %v1955
  %2747 = vmatpush.bf16.msra.mxu0 %v1954
  %2748 = vmatmul.bf16.gmra.mxu0 %v1236
  %v2749 = vpop.f32.mrf.mxu0
  %v2750 = vadd.f32 %v2381, %v2749
  %v2751 = vpop.f32.mrf.mxu0
  %v2752 = vadd.f32 %v2383, %v2751
  %2753 = vmatmul.bf16.gmra.mxu0 %v1240
  %v2754 = vpop.f32.mrf.mxu0
  %v2755 = vadd.f32 %v2386, %v2754
  %v2756 = vpop.f32.mrf.mxu0
  %v2757 = vadd.f32 %v2388, %v2756
  %2758 = vmatmul.bf16.gmra.mxu0 %v1244
  %v2759 = vpop.f32.mrf.mxu0
  %v2760 = vadd.f32 %v2391, %v2759
  %v2761 = vpop.f32.mrf.mxu0
  %v2762 = vadd.f32 %v2393, %v2761
  %2763 = vmatmul.bf16.gmra.mxu0 %v1248
  %v2764 = vpop.f32.mrf.mxu0
  %v2765 = vadd.f32 %v2396, %v2764
  %v2766 = vpop.f32.mrf.mxu0
  %v2767 = vadd.f32 %v2398, %v2766
  %2768 = vmatmul.bf16.gmra.mxu0 %v1252
  %v2769 = vpop.f32.mrf.mxu0
  %v2770 = vadd.f32 %v2401, %v2769
  %v2771 = vpop.f32.mrf.mxu0
  %v2772 = vadd.f32 %v2403, %v2771
  %2773 = vmatmul.bf16.gmra.mxu0 %v1256
  %v2774 = vpop.f32.mrf.mxu0
  %v2775 = vadd.f32 %v2406, %v2774
  %v2776 = vpop.f32.mrf.mxu0
  %v2777 = vadd.f32 %v2408, %v2776
  %2778 = vmatmul.bf16.gmra.mxu0 %v1260
  %v2779 = vpop.f32.mrf.mxu0
  %v2780 = vadd.f32 %v2411, %v2779
  %v2781 = vpop.f32.mrf.mxu0
  %v2782 = vadd.f32 %v2413, %v2781
  %2783 = vmatmul.bf16.gmra.mxu0 %v1264
  %v2784 = vpop.f32.mrf.mxu0
  %v2785 = vadd.f32 %v2416, %v2784
  %v2786 = vpop.f32.mrf.mxu0
  %v2787 = vadd.f32 %v2418, %v2786
  %2788 = vmatmul.bf16.gmra.mxu0 %v1268
  %v2789 = vpop.f32.mrf.mxu0
  %v2790 = vadd.f32 %v2421, %v2789
  %v2791 = vpop.f32.mrf.mxu0
  %v2792 = vadd.f32 %v2423, %v2791
  %2793 = vmatmul.bf16.gmra.mxu0 %v1272
  %v2794 = vpop.f32.mrf.mxu0
  %v2795 = vadd.f32 %v2426, %v2794
  %v2796 = vpop.f32.mrf.mxu0
  %v2797 = vadd.f32 %v2428, %v2796
  %2798 = vmatmul.bf16.gmra.mxu0 %v1276
  %v2799 = vpop.f32.mrf.mxu0
  %v2800 = vadd.f32 %v2431, %v2799
  %v2801 = vpop.f32.mrf.mxu0
  %v2802 = vadd.f32 %v2433, %v2801
  %2803 = vmatmul.bf16.gmra.mxu0 %v1280
  %v2804 = vpop.f32.mrf.mxu0
  %v2805 = vadd.f32 %v2436, %v2804
  %v2806 = vpop.f32.mrf.mxu0
  %v2807 = vadd.f32 %v2438, %v2806
  %2808 = vmatmul.bf16.gmra.mxu0 %v1284
  %v2809 = vpop.f32.mrf.mxu0
  %v2810 = vadd.f32 %v2441, %v2809
  %v2811 = vpop.f32.mrf.mxu0
  %v2812 = vadd.f32 %v2443, %v2811
  %2813 = vmatmul.bf16.gmra.mxu0 %v1288
  %v2814 = vpop.f32.mrf.mxu0
  %v2815 = vadd.f32 %v2446, %v2814
  %v2816 = vpop.f32.mrf.mxu0
  %v2817 = vadd.f32 %v2448, %v2816
  %2818 = vmatmul.bf16.gmra.mxu0 %v1292
  %v2819 = vpop.f32.mrf.mxu0
  %v2820 = vadd.f32 %v2451, %v2819
  %v2821 = vpop.f32.mrf.mxu0
  %v2822 = vadd.f32 %v2453, %v2821
  %2823 = vmatmul.bf16.gmra.mxu0 %v1296
  %v2824 = vpop.f32.mrf.mxu0
  %v2825 = vadd.f32 %v2456, %v2824
  %v2826 = vpop.f32.mrf.mxu0
  %v2827 = vadd.f32 %v2458, %v2826
  %2828 = vmatmul.bf16.gmra.mxu0 %v1300
  %v2829 = vpop.f32.mrf.mxu0
  %v2830 = vadd.f32 %v2461, %v2829
  %v2831 = vpop.f32.mrf.mxu0
  %v2832 = vadd.f32 %v2463, %v2831
  %2833 = vmatmul.bf16.gmra.mxu0 %v1304
  %v2834 = vpop.f32.mrf.mxu0
  %v2835 = vadd.f32 %v2466, %v2834
  %v2836 = vpop.f32.mrf.mxu0
  %v2837 = vadd.f32 %v2468, %v2836
  %2838 = vmatmul.bf16.gmra.mxu0 %v1308
  %v2839 = vpop.f32.mrf.mxu0
  %v2840 = vadd.f32 %v2471, %v2839
  %v2841 = vpop.f32.mrf.mxu0
  %v2842 = vadd.f32 %v2473, %v2841
  %2843 = vmatmul.bf16.gmra.mxu0 %v1312
  %v2844 = vpop.f32.mrf.mxu0
  %v2845 = vadd.f32 %v2476, %v2844
  %v2846 = vpop.f32.mrf.mxu0
  %v2847 = vadd.f32 %v2478, %v2846
  %2848 = vmatmul.bf16.gmra.mxu0 %v1316
  %v2849 = vpop.f32.mrf.mxu0
  %v2850 = vadd.f32 %v2481, %v2849
  %v2851 = vpop.f32.mrf.mxu0
  %v2852 = vadd.f32 %v2483, %v2851
  %2853 = vmatmul.bf16.gmra.mxu0 %v1320
  %v2854 = vpop.f32.mrf.mxu0
  %v2855 = vadd.f32 %v2486, %v2854
  %v2856 = vpop.f32.mrf.mxu0
  %v2857 = vadd.f32 %v2488, %v2856
  %2858 = vmatmul.bf16.gmra.mxu0 %v1324
  %v2859 = vpop.f32.mrf.mxu0
  %v2860 = vadd.f32 %v2491, %v2859
  %v2861 = vpop.f32.mrf.mxu0
  %v2862 = vadd.f32 %v2493, %v2861
  %2863 = vmatmul.bf16.gmra.mxu0 %v1328
  %v2864 = vpop.f32.mrf.mxu0
  %v2865 = vadd.f32 %v2496, %v2864
  %v2866 = vpop.f32.mrf.mxu0
  %v2867 = vadd.f32 %v2498, %v2866
  %2868 = vmatmul.bf16.gmra.mxu0 %v1332
  %v2869 = vpop.f32.mrf.mxu0
  %v2870 = vadd.f32 %v2501, %v2869
  %v2871 = vpop.f32.mrf.mxu0
  %v2872 = vadd.f32 %v2503, %v2871
  %2873 = vmatmul.bf16.gmra.mxu0 %v1336
  %v2874 = vpop.f32.mrf.mxu0
  %v2875 = vadd.f32 %v2506, %v2874
  %v2876 = vpop.f32.mrf.mxu0
  %v2877 = vadd.f32 %v2508, %v2876
  %2878 = vmatmul.bf16.gmra.mxu0 %v1340
  %v2879 = vpop.f32.mrf.mxu0
  %v2880 = vadd.f32 %v2511, %v2879
  %v2881 = vpop.f32.mrf.mxu0
  %v2882 = vadd.f32 %v2513, %v2881
  %2883 = vmatmul.bf16.gmra.mxu0 %v1344
  %v2884 = vpop.f32.mrf.mxu0
  %v2885 = vadd.f32 %v2516, %v2884
  %v2886 = vpop.f32.mrf.mxu0
  %v2887 = vadd.f32 %v2518, %v2886
  %2888 = vmatmul.bf16.gmra.mxu0 %v1348
  %v2889 = vpop.f32.mrf.mxu0
  %v2890 = vadd.f32 %v2521, %v2889
  %v2891 = vpop.f32.mrf.mxu0
  %v2892 = vadd.f32 %v2523, %v2891
  %2893 = vmatmul.bf16.gmra.mxu0 %v1352
  %v2894 = vpop.f32.mrf.mxu0
  %v2895 = vadd.f32 %v2526, %v2894
  %v2896 = vpop.f32.mrf.mxu0
  %v2897 = vadd.f32 %v2528, %v2896
  %2898 = vmatmul.bf16.gmra.mxu0 %v1356
  %v2899 = vpop.f32.mrf.mxu0
  %v2900 = vadd.f32 %v2531, %v2899
  %v2901 = vpop.f32.mrf.mxu0
  %v2902 = vadd.f32 %v2533, %v2901
  %2903 = vmatmul.bf16.gmra.mxu0 %v1360
  %v2904 = vpop.f32.mrf.mxu0
  %v2905 = vadd.f32 %v2536, %v2904
  %v2906 = vpop.f32.mrf.mxu0
  %v2907 = vadd.f32 %v2538, %v2906
  %2908 = vmatmul.bf16.gmra.mxu0 %v1364
  %v2909 = vpop.f32.mrf.mxu0
  %v2910 = vadd.f32 %v2541, %v2909
  %v2911 = vpop.f32.mrf.mxu0
  %v2912 = vadd.f32 %v2543, %v2911
  %2913 = vmatmul.bf16.gmra.mxu0 %v1368
  %v2914 = vpop.f32.mrf.mxu0
  %v2915 = vadd.f32 %v2546, %v2914
  %v2916 = vpop.f32.mrf.mxu0
  %v2917 = vadd.f32 %v2548, %v2916
  %2918 = vmatmul.bf16.gmra.mxu0 %v1372
  %v2919 = vpop.f32.mrf.mxu0
  %v2920 = vadd.f32 %v2551, %v2919
  %v2921 = vpop.f32.mrf.mxu0
  %v2922 = vadd.f32 %v2553, %v2921
  %2923 = vmatmul.bf16.gmra.mxu0 %v1376
  %v2924 = vpop.f32.mrf.mxu0
  %v2925 = vadd.f32 %v2556, %v2924
  %v2926 = vpop.f32.mrf.mxu0
  %v2927 = vadd.f32 %v2558, %v2926
  %2928 = vmatmul.bf16.gmra.mxu0 %v1380
  %v2929 = vpop.f32.mrf.mxu0
  %v2930 = vadd.f32 %v2561, %v2929
  %v2931 = vpop.f32.mrf.mxu0
  %v2932 = vadd.f32 %v2563, %v2931
  %2933 = vmatmul.bf16.gmra.mxu0 %v1384
  %v2934 = vpop.f32.mrf.mxu0
  %v2935 = vadd.f32 %v2566, %v2934
  %v2936 = vpop.f32.mrf.mxu0
  %v2937 = vadd.f32 %v2568, %v2936
  %2938 = vmatmul.bf16.gmra.mxu0 %v1388
  %v2939 = vpop.f32.mrf.mxu0
  %v2940 = vadd.f32 %v2571, %v2939
  %v2941 = vpop.f32.mrf.mxu0
  %v2942 = vadd.f32 %v2573, %v2941
  %2943 = vmatmul.bf16.gmra.mxu0 %v1392
  %v2944 = vpop.f32.mrf.mxu0
  %v2945 = vadd.f32 %v2576, %v2944
  %v2946 = vpop.f32.mrf.mxu0
  %v2947 = vadd.f32 %v2578, %v2946
  %2948 = vmatmul.bf16.gmra.mxu0 %v1396
  %v2949 = vpop.f32.mrf.mxu0
  %v2950 = vadd.f32 %v2581, %v2949
  %v2951 = vpop.f32.mrf.mxu0
  %v2952 = vadd.f32 %v2583, %v2951
  %2953 = vmatmul.bf16.gmra.mxu0 %v1400
  %v2954 = vpop.f32.mrf.mxu0
  %v2955 = vadd.f32 %v2586, %v2954
  %v2956 = vpop.f32.mrf.mxu0
  %v2957 = vadd.f32 %v2588, %v2956
  %2958 = vmatmul.bf16.gmra.mxu0 %v1404
  %v2959 = vpop.f32.mrf.mxu0
  %v2960 = vadd.f32 %v2591, %v2959
  %v2961 = vpop.f32.mrf.mxu0
  %v2962 = vadd.f32 %v2593, %v2961
  %2963 = vmatmul.bf16.gmra.mxu0 %v1408
  %v2964 = vpop.f32.mrf.mxu0
  %v2965 = vadd.f32 %v2596, %v2964
  %v2966 = vpop.f32.mrf.mxu0
  %v2967 = vadd.f32 %v2598, %v2966
  %2968 = vmatmul.bf16.gmra.mxu0 %v1412
  %v2969 = vpop.f32.mrf.mxu0
  %v2970 = vadd.f32 %v2601, %v2969
  %v2971 = vpop.f32.mrf.mxu0
  %v2972 = vadd.f32 %v2603, %v2971
  %2973 = vmatmul.bf16.gmra.mxu0 %v1416
  %v2974 = vpop.f32.mrf.mxu0
  %v2975 = vadd.f32 %v2606, %v2974
  %v2976 = vpop.f32.mrf.mxu0
  %v2977 = vadd.f32 %v2608, %v2976
  %2978 = vmatmul.bf16.gmra.mxu0 %v1420
  %v2979 = vpop.f32.mrf.mxu0
  %v2980 = vadd.f32 %v2611, %v2979
  %v2981 = vpop.f32.mrf.mxu0
  %v2982 = vadd.f32 %v2613, %v2981
  %2983 = vmatmul.bf16.gmra.mxu0 %v1424
  %v2984 = vpop.f32.mrf.mxu0
  %v2985 = vadd.f32 %v2616, %v2984
  %v2986 = vpop.f32.mrf.mxu0
  %v2987 = vadd.f32 %v2618, %v2986
  %2988 = vmatmul.bf16.gmra.mxu0 %v1428
  %v2989 = vpop.f32.mrf.mxu0
  %v2990 = vadd.f32 %v2621, %v2989
  %v2991 = vpop.f32.mrf.mxu0
  %v2992 = vadd.f32 %v2623, %v2991
  %2993 = vmatmul.bf16.gmra.mxu0 %v1432
  %v2994 = vpop.f32.mrf.mxu0
  %v2995 = vadd.f32 %v2626, %v2994
  %v2996 = vpop.f32.mrf.mxu0
  %v2997 = vadd.f32 %v2628, %v2996
  %2998 = vmatmul.bf16.gmra.mxu0 %v1436
  %v2999 = vpop.f32.mrf.mxu0
  %v3000 = vadd.f32 %v2631, %v2999
  %v3001 = vpop.f32.mrf.mxu0
  %v3002 = vadd.f32 %v2633, %v3001
  %3003 = vmatmul.bf16.gmra.mxu0 %v1440
  %v3004 = vpop.f32.mrf.mxu0
  %v3005 = vadd.f32 %v2636, %v3004
  %v3006 = vpop.f32.mrf.mxu0
  %v3007 = vadd.f32 %v2638, %v3006
  %3008 = vmatmul.bf16.gmra.mxu0 %v1444
  %v3009 = vpop.f32.mrf.mxu0
  %v3010 = vadd.f32 %v2641, %v3009
  %v3011 = vpop.f32.mrf.mxu0
  %v3012 = vadd.f32 %v2643, %v3011
  %3013 = vmatmul.bf16.gmra.mxu0 %v1448
  %v3014 = vpop.f32.mrf.mxu0
  %v3015 = vadd.f32 %v2646, %v3014
  %v3016 = vpop.f32.mrf.mxu0
  %v3017 = vadd.f32 %v2648, %v3016
  %3018 = vmatmul.bf16.gmra.mxu0 %v1452
  %v3019 = vpop.f32.mrf.mxu0
  %v3020 = vadd.f32 %v2651, %v3019
  %v3021 = vpop.f32.mrf.mxu0
  %v3022 = vadd.f32 %v2653, %v3021
  %3023 = vmatmul.bf16.gmra.mxu0 %v1456
  %v3024 = vpop.f32.mrf.mxu0
  %v3025 = vadd.f32 %v2656, %v3024
  %v3026 = vpop.f32.mrf.mxu0
  %v3027 = vadd.f32 %v2658, %v3026
  %3028 = vmatmul.bf16.gmra.mxu0 %v1460
  %v3029 = vpop.f32.mrf.mxu0
  %v3030 = vadd.f32 %v2661, %v3029
  %v3031 = vpop.f32.mrf.mxu0
  %v3032 = vadd.f32 %v2663, %v3031
  %3033 = vmatmul.bf16.gmra.mxu0 %v1464
  %v3034 = vpop.f32.mrf.mxu0
  %v3035 = vadd.f32 %v2666, %v3034
  %v3036 = vpop.f32.mrf.mxu0
  %v3037 = vadd.f32 %v2668, %v3036
  %3038 = vmatmul.bf16.gmra.mxu0 %v1468
  %v3039 = vpop.f32.mrf.mxu0
  %v3040 = vadd.f32 %v2671, %v3039
  %v3041 = vpop.f32.mrf.mxu0
  %v3042 = vadd.f32 %v2673, %v3041
  %3043 = vmatmul.bf16.gmra.mxu0 %v1472
  %v3044 = vpop.f32.mrf.mxu0
  %v3045 = vadd.f32 %v2676, %v3044
  %v3046 = vpop.f32.mrf.mxu0
  %v3047 = vadd.f32 %v2678, %v3046
  %3048 = vmatmul.bf16.gmra.mxu0 %v1476
  %v3049 = vpop.f32.mrf.mxu0
  %v3050 = vadd.f32 %v2681, %v3049
  %v3051 = vpop.f32.mrf.mxu0
  %v3052 = vadd.f32 %v2683, %v3051
  %3053 = vmatmul.bf16.gmra.mxu0 %v1480
  %v3054 = vpop.f32.mrf.mxu0
  %v3055 = vadd.f32 %v2686, %v3054
  %v3056 = vpop.f32.mrf.mxu0
  %v3057 = vadd.f32 %v2688, %v3056
  %3058 = vmatmul.bf16.gmra.mxu0 %v1484
  %v3059 = vpop.f32.mrf.mxu0
  %v3060 = vadd.f32 %v2691, %v3059
  %v3061 = vpop.f32.mrf.mxu0
  %v3062 = vadd.f32 %v2693, %v3061
  %3063 = vmatmul.bf16.gmra.mxu0 %v1488
  %v3064 = vpop.f32.mrf.mxu0
  %v3065 = vadd.f32 %v2696, %v3064
  %v3066 = vpop.f32.mrf.mxu0
  %v3067 = vadd.f32 %v2698, %v3066
  %3068 = vmatmul.bf16.gmra.mxu0 %v1492
  %v3069 = vpop.f32.mrf.mxu0
  %v3070 = vadd.f32 %v2701, %v3069
  %v3071 = vpop.f32.mrf.mxu0
  %v3072 = vadd.f32 %v2703, %v3071
  %3073 = vmatmul.bf16.gmra.mxu0 %v1496
  %v3074 = vpop.f32.mrf.mxu0
  %v3075 = vadd.f32 %v2706, %v3074
  %v3076 = vpop.f32.mrf.mxu0
  %v3077 = vadd.f32 %v2708, %v3076
  %3078 = vmatmul.bf16.gmra.mxu0 %v1500
  %v3079 = vpop.f32.mrf.mxu0
  %v3080 = vadd.f32 %v2711, %v3079
  %v3081 = vpop.f32.mrf.mxu0
  %v3082 = vadd.f32 %v2713, %v3081
  %3083 = vmatmul.bf16.gmra.mxu0 %v1504
  %v3084 = vpop.f32.mrf.mxu0
  %v3085 = vadd.f32 %v2716, %v3084
  %v3086 = vpop.f32.mrf.mxu0
  %v3087 = vadd.f32 %v2718, %v3086
  %3088 = vmatmul.bf16.gmra.mxu0 %v1508
  %v3089 = vpop.f32.mrf.mxu0
  %v3090 = vadd.f32 %v2721, %v3089
  %v3091 = vpop.f32.mrf.mxu0
  %v3092 = vadd.f32 %v2723, %v3091
  %3093 = vmatmul.bf16.gmra.mxu0 %v1512
  %v3094 = vpop.f32.mrf.mxu0
  %v3095 = vadd.f32 %v2726, %v3094
  %v3096 = vpop.f32.mrf.mxu0
  %v3097 = vadd.f32 %v2728, %v3096
  %3098 = vmatmul.bf16.gmra.mxu0 %v1516
  %v3099 = vpop.f32.mrf.mxu0
  %v3100 = vadd.f32 %v2731, %v3099
  %v3101 = vpop.f32.mrf.mxu0
  %v3102 = vadd.f32 %v2733, %v3101
  %3103 = vmatmul.bf16.gmra.mxu0 %v1520
  %v3104 = vpop.f32.mrf.mxu0
  %v3105 = vadd.f32 %v2736, %v3104
  %v3106 = vpop.f32.mrf.mxu0
  %v3107 = vadd.f32 %v2738, %v3106
  %3108 = vdwg.mxu0
  %3109 = vmatpush.bf16.msra.mxu0 %v1969
  %3110 = vmatpush.bf16.msra.mxu0 %v1968
  %3111 = vmatpush.bf16.msra.mxu0 %v1967
  %3112 = vmatpush.bf16.msra.mxu0 %v1966
  %3113 = vmatpush.bf16.msra.mxu0 %v1965
  %3114 = vmatpush.bf16.msra.mxu0 %v1964
  %3115 = vmatpush.bf16.msra.mxu0 %v1963
  %3116 = vmatpush.bf16.msra.mxu0 %v1962
  %3117 = vmatmul.bf16.gmra.mxu0 %v1237
  %v3118 = vpop.f32.mrf.mxu0
  %v3119 = vadd.f32 %v2750, %v3118
  %v3120 = vpop.f32.mrf.mxu0
  %v3121 = vadd.f32 %v2752, %v3120
  %3122 = vmatmul.bf16.gmra.mxu0 %v1241
  %v3123 = vpop.f32.mrf.mxu0
  %v3124 = vadd.f32 %v2755, %v3123
  %v3125 = vpop.f32.mrf.mxu0
  %v3126 = vadd.f32 %v2757, %v3125
  %3127 = vmatmul.bf16.gmra.mxu0 %v1245
  %v3128 = vpop.f32.mrf.mxu0
  %v3129 = vadd.f32 %v2760, %v3128
  %v3130 = vpop.f32.mrf.mxu0
  %v3131 = vadd.f32 %v2762, %v3130
  %3132 = vmatmul.bf16.gmra.mxu0 %v1249
  %v3133 = vpop.f32.mrf.mxu0
  %v3134 = vadd.f32 %v2765, %v3133
  %v3135 = vpop.f32.mrf.mxu0
  %v3136 = vadd.f32 %v2767, %v3135
  %3137 = vmatmul.bf16.gmra.mxu0 %v1253
  %v3138 = vpop.f32.mrf.mxu0
  %v3139 = vadd.f32 %v2770, %v3138
  %v3140 = vpop.f32.mrf.mxu0
  %v3141 = vadd.f32 %v2772, %v3140
  %3142 = vmatmul.bf16.gmra.mxu0 %v1257
  %v3143 = vpop.f32.mrf.mxu0
  %v3144 = vadd.f32 %v2775, %v3143
  %v3145 = vpop.f32.mrf.mxu0
  %v3146 = vadd.f32 %v2777, %v3145
  %3147 = vmatmul.bf16.gmra.mxu0 %v1261
  %v3148 = vpop.f32.mrf.mxu0
  %v3149 = vadd.f32 %v2780, %v3148
  %v3150 = vpop.f32.mrf.mxu0
  %v3151 = vadd.f32 %v2782, %v3150
  %3152 = vmatmul.bf16.gmra.mxu0 %v1265
  %v3153 = vpop.f32.mrf.mxu0
  %v3154 = vadd.f32 %v2785, %v3153
  %v3155 = vpop.f32.mrf.mxu0
  %v3156 = vadd.f32 %v2787, %v3155
  %3157 = vmatmul.bf16.gmra.mxu0 %v1269
  %v3158 = vpop.f32.mrf.mxu0
  %v3159 = vadd.f32 %v2790, %v3158
  %v3160 = vpop.f32.mrf.mxu0
  %v3161 = vadd.f32 %v2792, %v3160
  %3162 = vmatmul.bf16.gmra.mxu0 %v1273
  %v3163 = vpop.f32.mrf.mxu0
  %v3164 = vadd.f32 %v2795, %v3163
  %v3165 = vpop.f32.mrf.mxu0
  %v3166 = vadd.f32 %v2797, %v3165
  %3167 = vmatmul.bf16.gmra.mxu0 %v1277
  %v3168 = vpop.f32.mrf.mxu0
  %v3169 = vadd.f32 %v2800, %v3168
  %v3170 = vpop.f32.mrf.mxu0
  %v3171 = vadd.f32 %v2802, %v3170
  %3172 = vmatmul.bf16.gmra.mxu0 %v1281
  %v3173 = vpop.f32.mrf.mxu0
  %v3174 = vadd.f32 %v2805, %v3173
  %v3175 = vpop.f32.mrf.mxu0
  %v3176 = vadd.f32 %v2807, %v3175
  %3177 = vmatmul.bf16.gmra.mxu0 %v1285
  %v3178 = vpop.f32.mrf.mxu0
  %v3179 = vadd.f32 %v2810, %v3178
  %v3180 = vpop.f32.mrf.mxu0
  %v3181 = vadd.f32 %v2812, %v3180
  %3182 = vmatmul.bf16.gmra.mxu0 %v1289
  %v3183 = vpop.f32.mrf.mxu0
  %v3184 = vadd.f32 %v2815, %v3183
  %v3185 = vpop.f32.mrf.mxu0
  %v3186 = vadd.f32 %v2817, %v3185
  %3187 = vmatmul.bf16.gmra.mxu0 %v1293
  %v3188 = vpop.f32.mrf.mxu0
  %v3189 = vadd.f32 %v2820, %v3188
  %v3190 = vpop.f32.mrf.mxu0
  %v3191 = vadd.f32 %v2822, %v3190
  %3192 = vmatmul.bf16.gmra.mxu0 %v1297
  %v3193 = vpop.f32.mrf.mxu0
  %v3194 = vadd.f32 %v2825, %v3193
  %v3195 = vpop.f32.mrf.mxu0
  %v3196 = vadd.f32 %v2827, %v3195
  %3197 = vmatmul.bf16.gmra.mxu0 %v1301
  %v3198 = vpop.f32.mrf.mxu0
  %v3199 = vadd.f32 %v2830, %v3198
  %v3200 = vpop.f32.mrf.mxu0
  %v3201 = vadd.f32 %v2832, %v3200
  %3202 = vmatmul.bf16.gmra.mxu0 %v1305
  %v3203 = vpop.f32.mrf.mxu0
  %v3204 = vadd.f32 %v2835, %v3203
  %v3205 = vpop.f32.mrf.mxu0
  %v3206 = vadd.f32 %v2837, %v3205
  %3207 = vmatmul.bf16.gmra.mxu0 %v1309
  %v3208 = vpop.f32.mrf.mxu0
  %v3209 = vadd.f32 %v2840, %v3208
  %v3210 = vpop.f32.mrf.mxu0
  %v3211 = vadd.f32 %v2842, %v3210
  %3212 = vmatmul.bf16.gmra.mxu0 %v1313
  %v3213 = vpop.f32.mrf.mxu0
  %v3214 = vadd.f32 %v2845, %v3213
  %v3215 = vpop.f32.mrf.mxu0
  %v3216 = vadd.f32 %v2847, %v3215
  %3217 = vmatmul.bf16.gmra.mxu0 %v1317
  %v3218 = vpop.f32.mrf.mxu0
  %v3219 = vadd.f32 %v2850, %v3218
  %v3220 = vpop.f32.mrf.mxu0
  %v3221 = vadd.f32 %v2852, %v3220
  %3222 = vmatmul.bf16.gmra.mxu0 %v1321
  %v3223 = vpop.f32.mrf.mxu0
  %v3224 = vadd.f32 %v2855, %v3223
  %v3225 = vpop.f32.mrf.mxu0
  %v3226 = vadd.f32 %v2857, %v3225
  %3227 = vmatmul.bf16.gmra.mxu0 %v1325
  %v3228 = vpop.f32.mrf.mxu0
  %v3229 = vadd.f32 %v2860, %v3228
  %v3230 = vpop.f32.mrf.mxu0
  %v3231 = vadd.f32 %v2862, %v3230
  %3232 = vmatmul.bf16.gmra.mxu0 %v1329
  %v3233 = vpop.f32.mrf.mxu0
  %v3234 = vadd.f32 %v2865, %v3233
  %v3235 = vpop.f32.mrf.mxu0
  %v3236 = vadd.f32 %v2867, %v3235
  %3237 = vmatmul.bf16.gmra.mxu0 %v1333
  %v3238 = vpop.f32.mrf.mxu0
  %v3239 = vadd.f32 %v2870, %v3238
  %v3240 = vpop.f32.mrf.mxu0
  %v3241 = vadd.f32 %v2872, %v3240
  %3242 = vmatmul.bf16.gmra.mxu0 %v1337
  %v3243 = vpop.f32.mrf.mxu0
  %v3244 = vadd.f32 %v2875, %v3243
  %v3245 = vpop.f32.mrf.mxu0
  %v3246 = vadd.f32 %v2877, %v3245
  %3247 = vmatmul.bf16.gmra.mxu0 %v1341
  %v3248 = vpop.f32.mrf.mxu0
  %v3249 = vadd.f32 %v2880, %v3248
  %v3250 = vpop.f32.mrf.mxu0
  %v3251 = vadd.f32 %v2882, %v3250
  %3252 = vmatmul.bf16.gmra.mxu0 %v1345
  %v3253 = vpop.f32.mrf.mxu0
  %v3254 = vadd.f32 %v2885, %v3253
  %v3255 = vpop.f32.mrf.mxu0
  %v3256 = vadd.f32 %v2887, %v3255
  %3257 = vmatmul.bf16.gmra.mxu0 %v1349
  %v3258 = vpop.f32.mrf.mxu0
  %v3259 = vadd.f32 %v2890, %v3258
  %v3260 = vpop.f32.mrf.mxu0
  %v3261 = vadd.f32 %v2892, %v3260
  %3262 = vmatmul.bf16.gmra.mxu0 %v1353
  %v3263 = vpop.f32.mrf.mxu0
  %v3264 = vadd.f32 %v2895, %v3263
  %v3265 = vpop.f32.mrf.mxu0
  %v3266 = vadd.f32 %v2897, %v3265
  %3267 = vmatmul.bf16.gmra.mxu0 %v1357
  %v3268 = vpop.f32.mrf.mxu0
  %v3269 = vadd.f32 %v2900, %v3268
  %v3270 = vpop.f32.mrf.mxu0
  %v3271 = vadd.f32 %v2902, %v3270
  %3272 = vmatmul.bf16.gmra.mxu0 %v1361
  %v3273 = vpop.f32.mrf.mxu0
  %v3274 = vadd.f32 %v2905, %v3273
  %v3275 = vpop.f32.mrf.mxu0
  %v3276 = vadd.f32 %v2907, %v3275
  %3277 = vmatmul.bf16.gmra.mxu0 %v1365
  %v3278 = vpop.f32.mrf.mxu0
  %v3279 = vadd.f32 %v2910, %v3278
  %v3280 = vpop.f32.mrf.mxu0
  %v3281 = vadd.f32 %v2912, %v3280
  %3282 = vmatmul.bf16.gmra.mxu0 %v1369
  %v3283 = vpop.f32.mrf.mxu0
  %v3284 = vadd.f32 %v2915, %v3283
  %v3285 = vpop.f32.mrf.mxu0
  %v3286 = vadd.f32 %v2917, %v3285
  %3287 = vmatmul.bf16.gmra.mxu0 %v1373
  %v3288 = vpop.f32.mrf.mxu0
  %v3289 = vadd.f32 %v2920, %v3288
  %v3290 = vpop.f32.mrf.mxu0
  %v3291 = vadd.f32 %v2922, %v3290
  %3292 = vmatmul.bf16.gmra.mxu0 %v1377
  %v3293 = vpop.f32.mrf.mxu0
  %v3294 = vadd.f32 %v2925, %v3293
  %v3295 = vpop.f32.mrf.mxu0
  %v3296 = vadd.f32 %v2927, %v3295
  %3297 = vmatmul.bf16.gmra.mxu0 %v1381
  %v3298 = vpop.f32.mrf.mxu0
  %v3299 = vadd.f32 %v2930, %v3298
  %v3300 = vpop.f32.mrf.mxu0
  %v3301 = vadd.f32 %v2932, %v3300
  %3302 = vmatmul.bf16.gmra.mxu0 %v1385
  %v3303 = vpop.f32.mrf.mxu0
  %v3304 = vadd.f32 %v2935, %v3303
  %v3305 = vpop.f32.mrf.mxu0
  %v3306 = vadd.f32 %v2937, %v3305
  %3307 = vmatmul.bf16.gmra.mxu0 %v1389
  %v3308 = vpop.f32.mrf.mxu0
  %v3309 = vadd.f32 %v2940, %v3308
  %v3310 = vpop.f32.mrf.mxu0
  %v3311 = vadd.f32 %v2942, %v3310
  %3312 = vmatmul.bf16.gmra.mxu0 %v1393
  %v3313 = vpop.f32.mrf.mxu0
  %v3314 = vadd.f32 %v2945, %v3313
  %v3315 = vpop.f32.mrf.mxu0
  %v3316 = vadd.f32 %v2947, %v3315
  %3317 = vmatmul.bf16.gmra.mxu0 %v1397
  %v3318 = vpop.f32.mrf.mxu0
  %v3319 = vadd.f32 %v2950, %v3318
  %v3320 = vpop.f32.mrf.mxu0
  %v3321 = vadd.f32 %v2952, %v3320
  %3322 = vmatmul.bf16.gmra.mxu0 %v1401
  %v3323 = vpop.f32.mrf.mxu0
  %v3324 = vadd.f32 %v2955, %v3323
  %v3325 = vpop.f32.mrf.mxu0
  %v3326 = vadd.f32 %v2957, %v3325
  %3327 = vmatmul.bf16.gmra.mxu0 %v1405
  %v3328 = vpop.f32.mrf.mxu0
  %v3329 = vadd.f32 %v2960, %v3328
  %v3330 = vpop.f32.mrf.mxu0
  %v3331 = vadd.f32 %v2962, %v3330
  %3332 = vmatmul.bf16.gmra.mxu0 %v1409
  %v3333 = vpop.f32.mrf.mxu0
  %v3334 = vadd.f32 %v2965, %v3333
  %v3335 = vpop.f32.mrf.mxu0
  %v3336 = vadd.f32 %v2967, %v3335
  %3337 = vmatmul.bf16.gmra.mxu0 %v1413
  %v3338 = vpop.f32.mrf.mxu0
  %v3339 = vadd.f32 %v2970, %v3338
  %v3340 = vpop.f32.mrf.mxu0
  %v3341 = vadd.f32 %v2972, %v3340
  %3342 = vmatmul.bf16.gmra.mxu0 %v1417
  %v3343 = vpop.f32.mrf.mxu0
  %v3344 = vadd.f32 %v2975, %v3343
  %v3345 = vpop.f32.mrf.mxu0
  %v3346 = vadd.f32 %v2977, %v3345
  %3347 = vmatmul.bf16.gmra.mxu0 %v1421
  %v3348 = vpop.f32.mrf.mxu0
  %v3349 = vadd.f32 %v2980, %v3348
  %v3350 = vpop.f32.mrf.mxu0
  %v3351 = vadd.f32 %v2982, %v3350
  %3352 = vmatmul.bf16.gmra.mxu0 %v1425
  %v3353 = vpop.f32.mrf.mxu0
  %v3354 = vadd.f32 %v2985, %v3353
  %v3355 = vpop.f32.mrf.mxu0
  %v3356 = vadd.f32 %v2987, %v3355
  %3357 = vmatmul.bf16.gmra.mxu0 %v1429
  %v3358 = vpop.f32.mrf.mxu0
  %v3359 = vadd.f32 %v2990, %v3358
  %v3360 = vpop.f32.mrf.mxu0
  %v3361 = vadd.f32 %v2992, %v3360
  %3362 = vmatmul.bf16.gmra.mxu0 %v1433
  %v3363 = vpop.f32.mrf.mxu0
  %v3364 = vadd.f32 %v2995, %v3363
  %v3365 = vpop.f32.mrf.mxu0
  %v3366 = vadd.f32 %v2997, %v3365
  %3367 = vmatmul.bf16.gmra.mxu0 %v1437
  %v3368 = vpop.f32.mrf.mxu0
  %v3369 = vadd.f32 %v3000, %v3368
  %v3370 = vpop.f32.mrf.mxu0
  %v3371 = vadd.f32 %v3002, %v3370
  %3372 = vmatmul.bf16.gmra.mxu0 %v1441
  %v3373 = vpop.f32.mrf.mxu0
  %v3374 = vadd.f32 %v3005, %v3373
  %v3375 = vpop.f32.mrf.mxu0
  %v3376 = vadd.f32 %v3007, %v3375
  %3377 = vmatmul.bf16.gmra.mxu0 %v1445
  %v3378 = vpop.f32.mrf.mxu0
  %v3379 = vadd.f32 %v3010, %v3378
  %v3380 = vpop.f32.mrf.mxu0
  %v3381 = vadd.f32 %v3012, %v3380
  %3382 = vmatmul.bf16.gmra.mxu0 %v1449
  %v3383 = vpop.f32.mrf.mxu0
  %v3384 = vadd.f32 %v3015, %v3383
  %v3385 = vpop.f32.mrf.mxu0
  %v3386 = vadd.f32 %v3017, %v3385
  %3387 = vmatmul.bf16.gmra.mxu0 %v1453
  %v3388 = vpop.f32.mrf.mxu0
  %v3389 = vadd.f32 %v3020, %v3388
  %v3390 = vpop.f32.mrf.mxu0
  %v3391 = vadd.f32 %v3022, %v3390
  %3392 = vmatmul.bf16.gmra.mxu0 %v1457
  %v3393 = vpop.f32.mrf.mxu0
  %v3394 = vadd.f32 %v3025, %v3393
  %v3395 = vpop.f32.mrf.mxu0
  %v3396 = vadd.f32 %v3027, %v3395
  %3397 = vmatmul.bf16.gmra.mxu0 %v1461
  %v3398 = vpop.f32.mrf.mxu0
  %v3399 = vadd.f32 %v3030, %v3398
  %v3400 = vpop.f32.mrf.mxu0
  %v3401 = vadd.f32 %v3032, %v3400
  %3402 = vmatmul.bf16.gmra.mxu0 %v1465
  %v3403 = vpop.f32.mrf.mxu0
  %v3404 = vadd.f32 %v3035, %v3403
  %v3405 = vpop.f32.mrf.mxu0
  %v3406 = vadd.f32 %v3037, %v3405
  %3407 = vmatmul.bf16.gmra.mxu0 %v1469
  %v3408 = vpop.f32.mrf.mxu0
  %v3409 = vadd.f32 %v3040, %v3408
  %v3410 = vpop.f32.mrf.mxu0
  %v3411 = vadd.f32 %v3042, %v3410
  %3412 = vmatmul.bf16.gmra.mxu0 %v1473
  %v3413 = vpop.f32.mrf.mxu0
  %v3414 = vadd.f32 %v3045, %v3413
  %v3415 = vpop.f32.mrf.mxu0
  %v3416 = vadd.f32 %v3047, %v3415
  %3417 = vmatmul.bf16.gmra.mxu0 %v1477
  %v3418 = vpop.f32.mrf.mxu0
  %v3419 = vadd.f32 %v3050, %v3418
  %v3420 = vpop.f32.mrf.mxu0
  %v3421 = vadd.f32 %v3052, %v3420
  %3422 = vmatmul.bf16.gmra.mxu0 %v1481
  %v3423 = vpop.f32.mrf.mxu0
  %v3424 = vadd.f32 %v3055, %v3423
  %v3425 = vpop.f32.mrf.mxu0
  %v3426 = vadd.f32 %v3057, %v3425
  %3427 = vmatmul.bf16.gmra.mxu0 %v1485
  %v3428 = vpop.f32.mrf.mxu0
  %v3429 = vadd.f32 %v3060, %v3428
  %v3430 = vpop.f32.mrf.mxu0
  %v3431 = vadd.f32 %v3062, %v3430
  %3432 = vmatmul.bf16.gmra.mxu0 %v1489
  %v3433 = vpop.f32.mrf.mxu0
  %v3434 = vadd.f32 %v3065, %v3433
  %v3435 = vpop.f32.mrf.mxu0
  %v3436 = vadd.f32 %v3067, %v3435
  %3437 = vmatmul.bf16.gmra.mxu0 %v1493
  %v3438 = vpop.f32.mrf.mxu0
  %v3439 = vadd.f32 %v3070, %v3438
  %v3440 = vpop.f32.mrf.mxu0
  %v3441 = vadd.f32 %v3072, %v3440
  %3442 = vmatmul.bf16.gmra.mxu0 %v1497
  %v3443 = vpop.f32.mrf.mxu0
  %v3444 = vadd.f32 %v3075, %v3443
  %v3445 = vpop.f32.mrf.mxu0
  %v3446 = vadd.f32 %v3077, %v3445
  %3447 = vmatmul.bf16.gmra.mxu0 %v1501
  %v3448 = vpop.f32.mrf.mxu0
  %v3449 = vadd.f32 %v3080, %v3448
  %v3450 = vpop.f32.mrf.mxu0
  %v3451 = vadd.f32 %v3082, %v3450
  %3452 = vmatmul.bf16.gmra.mxu0 %v1505
  %v3453 = vpop.f32.mrf.mxu0
  %v3454 = vadd.f32 %v3085, %v3453
  %v3455 = vpop.f32.mrf.mxu0
  %v3456 = vadd.f32 %v3087, %v3455
  %3457 = vmatmul.bf16.gmra.mxu0 %v1509
  %v3458 = vpop.f32.mrf.mxu0
  %v3459 = vadd.f32 %v3090, %v3458
  %v3460 = vpop.f32.mrf.mxu0
  %v3461 = vadd.f32 %v3092, %v3460
  %3462 = vmatmul.bf16.gmra.mxu0 %v1513
  %v3463 = vpop.f32.mrf.mxu0
  %v3464 = vadd.f32 %v3095, %v3463
  %v3465 = vpop.f32.mrf.mxu0
  %v3466 = vadd.f32 %v3097, %v3465
  %3467 = vmatmul.bf16.gmra.mxu0 %v1517
  %v3468 = vpop.f32.mrf.mxu0
  %v3469 = vadd.f32 %v3100, %v3468
  %v3470 = vpop.f32.mrf.mxu0
  %v3471 = vadd.f32 %v3102, %v3470
  %3472 = vmatmul.bf16.gmra.mxu0 %v1521
  %v3473 = vpop.f32.mrf.mxu0
  %v3474 = vadd.f32 %v3105, %v3473
  %v3475 = vpop.f32.mrf.mxu0
  %v3476 = vadd.f32 %v3107, %v3475
  %3477 = vdwg.mxu0
  %v3478 = vmax.f32 %v3119, 0.0
  %v3479 = vmax.f32 %v3121, 0.0
  %v3480 = vmax.f32 %v3124, 0.0
  %v3481 = vmax.f32 %v3126, 0.0
  %v3482 = vmax.f32 %v3129, 0.0
  %v3483 = vmax.f32 %v3131, 0.0
  %v3484 = vmax.f32 %v3134, 0.0
  %v3485 = vmax.f32 %v3136, 0.0
  %v3486 = vmax.f32 %v3139, 0.0
  %v3487 = vmax.f32 %v3141, 0.0
  %v3488 = vmax.f32 %v3144, 0.0
  %v3489 = vmax.f32 %v3146, 0.0
  %v3490 = vmax.f32 %v3149, 0.0
  %v3491 = vmax.f32 %v3151, 0.0
  %v3492 = vmax.f32 %v3154, 0.0
  %v3493 = vmax.f32 %v3156, 0.0
  %v3494 = vmax.f32 %v3159, 0.0
  %v3495 = vmax.f32 %v3161, 0.0
  %v3496 = vmax.f32 %v3164, 0.0
  %v3497 = vmax.f32 %v3166, 0.0
  %v3498 = vmax.f32 %v3169, 0.0
  %v3499 = vmax.f32 %v3171, 0.0
  %v3500 = vmax.f32 %v3174, 0.0
  %v3501 = vmax.f32 %v3176, 0.0
  %v3502 = vmax.f32 %v3179, 0.0
  %v3503 = vmax.f32 %v3181, 0.0
  %v3504 = vmax.f32 %v3184, 0.0
  %v3505 = vmax.f32 %v3186, 0.0
  %v3506 = vmax.f32 %v3189, 0.0
  %v3507 = vmax.f32 %v3191, 0.0
  %v3508 = vmax.f32 %v3194, 0.0
  %v3509 = vmax.f32 %v3196, 0.0
  %v3510 = vmax.f32 %v3199, 0.0
  %v3511 = vmax.f32 %v3201, 0.0
  %v3512 = vmax.f32 %v3204, 0.0
  %v3513 = vmax.f32 %v3206, 0.0
  %v3514 = vmax.f32 %v3209, 0.0
  %v3515 = vmax.f32 %v3211, 0.0
  %v3516 = vmax.f32 %v3214, 0.0
  %v3517 = vmax.f32 %v3216, 0.0
  %v3518 = vmax.f32 %v3219, 0.0
  %v3519 = vmax.f32 %v3221, 0.0
  %v3520 = vmax.f32 %v3224, 0.0
  %v3521 = vmax.f32 %v3226, 0.0
  %v3522 = vmax.f32 %v3229, 0.0
  %v3523 = vmax.f32 %v3231, 0.0
  %v3524 = vmax.f32 %v3234, 0.0
  %v3525 = vmax.f32 %v3236, 0.0
  %v3526 = vmax.f32 %v3239, 0.0
  %v3527 = vmax.f32 %v3241, 0.0
  %v3528 = vmax.f32 %v3244, 0.0
  %v3529 = vmax.f32 %v3246, 0.0
  %v3530 = vmax.f32 %v3249, 0.0
  %v3531 = vmax.f32 %v3251, 0.0
  %v3532 = vmax.f32 %v3254, 0.0
  %v3533 = vmax.f32 %v3256, 0.0
  %v3534 = vmax.f32 %v3259, 0.0
  %v3535 = vmax.f32 %v3261, 0.0
  %v3536 = vmax.f32 %v3264, 0.0
  %v3537 = vmax.f32 %v3266, 0.0
  %v3538 = vmax.f32 %v3269, 0.0
  %v3539 = vmax.f32 %v3271, 0.0
  %v3540 = vmax.f32 %v3274, 0.0
  %v3541 = vmax.f32 %v3276, 0.0
  %v3542 = vmax.f32 %v3279, 0.0
  %v3543 = vmax.f32 %v3281, 0.0
  %v3544 = vmax.f32 %v3284, 0.0
  %v3545 = vmax.f32 %v3286, 0.0
  %v3546 = vmax.f32 %v3289, 0.0
  %v3547 = vmax.f32 %v3291, 0.0
  %v3548 = vmax.f32 %v3294, 0.0
  %v3549 = vmax.f32 %v3296, 0.0
  %v3550 = vmax.f32 %v3299, 0.0
  %v3551 = vmax.f32 %v3301, 0.0
  %v3552 = vmax.f32 %v3304, 0.0
  %v3553 = vmax.f32 %v3306, 0.0
  %v3554 = vmax.f32 %v3309, 0.0
  %v3555 = vmax.f32 %v3311, 0.0
  %v3556 = vmax.f32 %v3314, 0.0
  %v3557 = vmax.f32 %v3316, 0.0
  %v3558 = vmax.f32 %v3319, 0.0
  %v3559 = vmax.f32 %v3321, 0.0
  %v3560 = vmax.f32 %v3324, 0.0
  %v3561 = vmax.f32 %v3326, 0.0
  %v3562 = vmax.f32 %v3329, 0.0
  %v3563 = vmax.f32 %v3331, 0.0
  %v3564 = vmax.f32 %v3334, 0.0
  %v3565 = vmax.f32 %v3336, 0.0
  %v3566 = vmax.f32 %v3339, 0.0
  %v3567 = vmax.f32 %v3341, 0.0
  %v3568 = vmax.f32 %v3344, 0.0
  %v3569 = vmax.f32 %v3346, 0.0
  %v3570 = vmax.f32 %v3349, 0.0
  %v3571 = vmax.f32 %v3351, 0.0
  %v3572 = vmax.f32 %v3354, 0.0
  %v3573 = vmax.f32 %v3356, 0.0
  %v3574 = vmax.f32 %v3359, 0.0
  %v3575 = vmax.f32 %v3361, 0.0
  %v3576 = vmax.f32 %v3364, 0.0
  %v3577 = vmax.f32 %v3366, 0.0
  %v3578 = vmax.f32 %v3369, 0.0
  %v3579 = vmax.f32 %v3371, 0.0
  %v3580 = vmax.f32 %v3374, 0.0
  %v3581 = vmax.f32 %v3376, 0.0
  %v3582 = vmax.f32 %v3379, 0.0
  %v3583 = vmax.f32 %v3381, 0.0
  %v3584 = vmax.f32 %v3384, 0.0
  %v3585 = vmax.f32 %v3386, 0.0
  %v3586 = vmax.f32 %v3389, 0.0
  %v3587 = vmax.f32 %v3391, 0.0
  %v3588 = vmax.f32 %v3394, 0.0
  %v3589 = vmax.f32 %v3396, 0.0
  %v3590 = vmax.f32 %v3399, 0.0
  %v3591 = vmax.f32 %v3401, 0.0
  %v3592 = vmax.f32 %v3404, 0.0
  %v3593 = vmax.f32 %v3406, 0.0
  %v3594 = vmax.f32 %v3409, 0.0
  %v3595 = vmax.f32 %v3411, 0.0
  %v3596 = vmax.f32 %v3414, 0.0
  %v3597 = vmax.f32 %v3416, 0.0
  %v3598 = vmax.f32 %v3419, 0.0
  %v3599 = vmax.f32 %v3421, 0.0
  %v3600 = vmax.f32 %v3424, 0.0
  %v3601 = vmax.f32 %v3426, 0.0
  %v3602 = vmax.f32 %v3429, 0.0
  %v3603 = vmax.f32 %v3431, 0.0
  %v3604 = vmax.f32 %v3434, 0.0
  %v3605 = vmax.f32 %v3436, 0.0
  %v3606 = vmax.f32 %v3439, 0.0
  %v3607 = vmax.f32 %v3441, 0.0
  %v3608 = vmax.f32 %v3444, 0.0
  %v3609 = vmax.f32 %v3446, 0.0
  %v3610 = vmax.f32 %v3449, 0.0
  %v3611 = vmax.f32 %v3451, 0.0
  %v3612 = vmax.f32 %v3454, 0.0
  %v3613 = vmax.f32 %v3456, 0.0
  %v3614 = vmax.f32 %v3459, 0.0
  %v3615 = vmax.f32 %v3461, 0.0
  %v3616 = vmax.f32 %v3464, 0.0
  %v3617 = vmax.f32 %v3466, 0.0
  %v3618 = vmax.f32 %v3469, 0.0
  %v3619 = vmax.f32 %v3471, 0.0
  %v3620 = vmax.f32 %v3474, 0.0
  %v3621 = vmax.f32 %v3476, 0.0
  %v3622 = vpack.c.bf16 %v3478, %v3478
  %v3623 = vpack.c.bf16 %v3479, %v3479
  %v3624 = vpack.c.bf16 %v3480, %v3480
  %v3625 = vpack.c.bf16 %v3481, %v3481
  %v3626 = vpack.c.bf16 %v3482, %v3482
  %v3627 = vpack.c.bf16 %v3483, %v3483
  %v3628 = vpack.c.bf16 %v3484, %v3484
  %v3629 = vpack.c.bf16 %v3485, %v3485
  %v3630 = vpack.c.bf16 %v3486, %v3486
  %v3631 = vpack.c.bf16 %v3487, %v3487
  %v3632 = vpack.c.bf16 %v3488, %v3488
  %v3633 = vpack.c.bf16 %v3489, %v3489
  %v3634 = vpack.c.bf16 %v3490, %v3490
  %v3635 = vpack.c.bf16 %v3491, %v3491
  %v3636 = vpack.c.bf16 %v3492, %v3492
  %v3637 = vpack.c.bf16 %v3493, %v3493
  %v3638 = vpack.c.bf16 %v3494, %v3494
  %v3639 = vpack.c.bf16 %v3495, %v3495
  %v3640 = vpack.c.bf16 %v3496, %v3496
  %v3641 = vpack.c.bf16 %v3497, %v3497
  %v3642 = vpack.c.bf16 %v3498, %v3498
  %v3643 = vpack.c.bf16 %v3499, %v3499
  %v3644 = vpack.c.bf16 %v3500, %v3500
  %v3645 = vpack.c.bf16 %v3501, %v3501
  %v3646 = vpack.c.bf16 %v3502, %v3502
  %v3647 = vpack.c.bf16 %v3503, %v3503
  %v3648 = vpack.c.bf16 %v3504, %v3504
  %v3649 = vpack.c.bf16 %v3505, %v3505
  %v3650 = vpack.c.bf16 %v3506, %v3506
  %v3651 = vpack.c.bf16 %v3507, %v3507
  %v3652 = vpack.c.bf16 %v3508, %v3508
  %v3653 = vpack.c.bf16 %v3509, %v3509
  %v3654 = vpack.c.bf16 %v3510, %v3510
  %v3655 = vpack.c.bf16 %v3511, %v3511
  %v3656 = vpack.c.bf16 %v3512, %v3512
  %v3657 = vpack.c.bf16 %v3513, %v3513
  %v3658 = vpack.c.bf16 %v3514, %v3514
  %v3659 = vpack.c.bf16 %v3515, %v3515
  %v3660 = vpack.c.bf16 %v3516, %v3516
  %v3661 = vpack.c.bf16 %v3517, %v3517
  %v3662 = vpack.c.bf16 %v3518, %v3518
  %v3663 = vpack.c.bf16 %v3519, %v3519
  %v3664 = vpack.c.bf16 %v3520, %v3520
  %v3665 = vpack.c.bf16 %v3521, %v3521
  %v3666 = vpack.c.bf16 %v3522, %v3522
  %v3667 = vpack.c.bf16 %v3523, %v3523
  %v3668 = vpack.c.bf16 %v3524, %v3524
  %v3669 = vpack.c.bf16 %v3525, %v3525
  %v3670 = vpack.c.bf16 %v3526, %v3526
  %v3671 = vpack.c.bf16 %v3527, %v3527
  %v3672 = vpack.c.bf16 %v3528, %v3528
  %v3673 = vpack.c.bf16 %v3529, %v3529
  %v3674 = vpack.c.bf16 %v3530, %v3530
  %v3675 = vpack.c.bf16 %v3531, %v3531
  %v3676 = vpack.c.bf16 %v3532, %v3532
  %v3677 = vpack.c.bf16 %v3533, %v3533
  %v3678 = vpack.c.bf16 %v3534, %v3534
  %v3679 = vpack.c.bf16 %v3535, %v3535
  %v3680 = vpack.c.bf16 %v3536, %v3536
  %v3681 = vpack.c.bf16 %v3537, %v3537
  %v3682 = vpack.c.bf16 %v3538, %v3538
  %v3683 = vpack.c.bf16 %v3539, %v3539
  %v3684 = vpack.c.bf16 %v3540, %v3540
  %v3685 = vpack.c.bf16 %v3541, %v3541
  %v3686 = vpack.c.bf16 %v3542, %v3542
  %v3687 = vpack.c.bf16 %v3543, %v3543
  %v3688 = vpack.c.bf16 %v3544, %v3544
  %v3689 = vpack.c.bf16 %v3545, %v3545
  %v3690 = vpack.c.bf16 %v3546, %v3546
  %v3691 = vpack.c.bf16 %v3547, %v3547
  %v3692 = vpack.c.bf16 %v3548, %v3548
  %v3693 = vpack.c.bf16 %v3549, %v3549
  %v3694 = vpack.c.bf16 %v3550, %v3550
  %v3695 = vpack.c.bf16 %v3551, %v3551
  %v3696 = vpack.c.bf16 %v3552, %v3552
  %v3697 = vpack.c.bf16 %v3553, %v3553
  %v3698 = vpack.c.bf16 %v3554, %v3554
  %v3699 = vpack.c.bf16 %v3555, %v3555
  %v3700 = vpack.c.bf16 %v3556, %v3556
  %v3701 = vpack.c.bf16 %v3557, %v3557
  %v3702 = vpack.c.bf16 %v3558, %v3558
  %v3703 = vpack.c.bf16 %v3559, %v3559
  %v3704 = vpack.c.bf16 %v3560, %v3560
  %v3705 = vpack.c.bf16 %v3561, %v3561
  %v3706 = vpack.c.bf16 %v3562, %v3562
  %v3707 = vpack.c.bf16 %v3563, %v3563
  %v3708 = vpack.c.bf16 %v3564, %v3564
  %v3709 = vpack.c.bf16 %v3565, %v3565
  %v3710 = vpack.c.bf16 %v3566, %v3566
  %v3711 = vpack.c.bf16 %v3567, %v3567
  %v3712 = vpack.c.bf16 %v3568, %v3568
  %v3713 = vpack.c.bf16 %v3569, %v3569
  %v3714 = vpack.c.bf16 %v3570, %v3570
  %v3715 = vpack.c.bf16 %v3571, %v3571
  %v3716 = vpack.c.bf16 %v3572, %v3572
  %v3717 = vpack.c.bf16 %v3573, %v3573
  %v3718 = vpack.c.bf16 %v3574, %v3574
  %v3719 = vpack.c.bf16 %v3575, %v3575
  %v3720 = vpack.c.bf16 %v3576, %v3576
  %v3721 = vpack.c.bf16 %v3577, %v3577
  %v3722 = vpack.c.bf16 %v3578, %v3578
  %v3723 = vpack.c.bf16 %v3579, %v3579
  %v3724 = vpack.c.bf16 %v3580, %v3580
  %v3725 = vpack.c.bf16 %v3581, %v3581
  %v3726 = vpack.c.bf16 %v3582, %v3582
  %v3727 = vpack.c.bf16 %v3583, %v3583
  %v3728 = vpack.c.bf16 %v3584, %v3584
  %v3729 = vpack.c.bf16 %v3585, %v3585
  %v3730 = vpack.c.bf16 %v3586, %v3586
  %v3731 = vpack.c.bf16 %v3587, %v3587
  %v3732 = vpack.c.bf16 %v3588, %v3588
  %v3733 = vpack.c.bf16 %v3589, %v3589
  %v3734 = vpack.c.bf16 %v3590, %v3590
  %v3735 = vpack.c.bf16 %v3591, %v3591
  %v3736 = vpack.c.bf16 %v3592, %v3592
  %v3737 = vpack.c.bf16 %v3593, %v3593
  %v3738 = vpack.c.bf16 %v3594, %v3594
  %v3739 = vpack.c.bf16 %v3595, %v3595
  %v3740 = vpack.c.bf16 %v3596, %v3596
  %v3741 = vpack.c.bf16 %v3597, %v3597
  %v3742 = vpack.c.bf16 %v3598, %v3598
  %v3743 = vpack.c.bf16 %v3599, %v3599
  %v3744 = vpack.c.bf16 %v3600, %v3600
  %v3745 = vpack.c.bf16 %v3601, %v3601
  %v3746 = vpack.c.bf16 %v3602, %v3602
  %v3747 = vpack.c.bf16 %v3603, %v3603
  %v3748 = vpack.c.bf16 %v3604, %v3604
  %v3749 = vpack.c.bf16 %v3605, %v3605
  %v3750 = vpack.c.bf16 %v3606, %v3606
  %v3751 = vpack.c.bf16 %v3607, %v3607
  %v3752 = vpack.c.bf16 %v3608, %v3608
  %v3753 = vpack.c.bf16 %v3609, %v3609
  %v3754 = vpack.c.bf16 %v3610, %v3610
  %v3755 = vpack.c.bf16 %v3611, %v3611
  %v3756 = vpack.c.bf16 %v3612, %v3612
  %v3757 = vpack.c.bf16 %v3613, %v3613
  %v3758 = vpack.c.bf16 %v3614, %v3614
  %v3759 = vpack.c.bf16 %v3615, %v3615
  %v3760 = vpack.c.bf16 %v3616, %v3616
  %v3761 = vpack.c.bf16 %v3617, %v3617
  %v3762 = vpack.c.bf16 %v3618, %v3618
  %v3763 = vpack.c.bf16 %v3619, %v3619
  %v3764 = vpack.c.bf16 %v3620, %v3620
  %v3765 = vpack.c.bf16 %v3621, %v3621
  %vm3766 = vcmask 519168
  %3767 = vst.msk [vmem:[%s3] sm:$0xf] %vm3766, %v3622
  %3768 = vst.msk [vmem:[%s3 + $0x4] sm:$0xf] %vm3766, %v3623
  %3769 = vst.msk [vmem:[%s3 + $0x8] sm:$0xf] %vm3766, %v3624
  %3770 = vst.msk [vmem:[%s3 + $0xc] sm:$0xf] %vm3766, %v3625
  %3771 = vst.msk [vmem:[%s3 + $0x10] sm:$0xf] %vm3766, %v3626
  %3772 = vst.msk [vmem:[%s3 + $0x14] sm:$0xf] %vm3766, %v3627
  %3773 = vst.msk [vmem:[%s3 + $0x18] sm:$0xf] %vm3766, %v3628
  %3774 = vst.msk [vmem:[%s3 + $0x1c] sm:$0xf] %vm3766, %v3629
  %3775 = vst.msk [vmem:[%s3 + $0x20] sm:$0xf] %vm3766, %v3630
  %3776 = vst.msk [vmem:[%s3 + $0x24] sm:$0xf] %vm3766, %v3631
  %3777 = vst.msk [vmem:[%s3 + $0x28] sm:$0xf] %vm3766, %v3632
  %3778 = vst.msk [vmem:[%s3 + $0x2c] sm:$0xf] %vm3766, %v3633
  %3779 = vst.msk [vmem:[%s3 + $0x30] sm:$0xf] %vm3766, %v3634
  %3780 = vst.msk [vmem:[%s3 + $0x34] sm:$0xf] %vm3766, %v3635
  %3781 = vst.msk [vmem:[%s3 + $0x38] sm:$0xf] %vm3766, %v3636
  %3782 = vst.msk [vmem:[%s3 + $0x3c] sm:$0xf] %vm3766, %v3637
  %3783 = vst.msk [vmem:[%s3 + $0x40] sm:$0xf] %vm3766, %v3638
  %3784 = vst.msk [vmem:[%s3 + $0x44] sm:$0xf] %vm3766, %v3639
  %3785 = vst.msk [vmem:[%s3 + $0x48] sm:$0xf] %vm3766, %v3640
  %3786 = vst.msk [vmem:[%s3 + $0x4c] sm:$0xf] %vm3766, %v3641
  %3787 = vst.msk [vmem:[%s3 + $0x50] sm:$0xf] %vm3766, %v3642
  %3788 = vst.msk [vmem:[%s3 + $0x54] sm:$0xf] %vm3766, %v3643
  %3789 = vst.msk [vmem:[%s3 + $0x58] sm:$0xf] %vm3766, %v3644
  %3790 = vst.msk [vmem:[%s3 + $0x5c] sm:$0xf] %vm3766, %v3645
  %3791 = vst.msk [vmem:[%s3 + $0x60] sm:$0xf] %vm3766, %v3646
  %3792 = vst.msk [vmem:[%s3 + $0x64] sm:$0xf] %vm3766, %v3647
  %3793 = vst.msk [vmem:[%s3 + $0x68] sm:$0xf] %vm3766, %v3648
  %3794 = vst.msk [vmem:[%s3 + $0x6c] sm:$0xf] %vm3766, %v3649
  %3795 = vst.msk [vmem:[%s3 + $0x70] sm:$0xf] %vm3766, %v3650
  %3796 = vst.msk [vmem:[%s3 + $0x74] sm:$0xf] %vm3766, %v3651
  %3797 = vst.msk [vmem:[%s3 + $0x78] sm:$0xf] %vm3766, %v3652
  %3798 = vst.msk [vmem:[%s3 + $0x7c] sm:$0xf] %vm3766, %v3653
  %3799 = vst.msk [vmem:[%s3 + $0x80] sm:$0xf] %vm3766, %v3654
  %3800 = vst.msk [vmem:[%s3 + $0x84] sm:$0xf] %vm3766, %v3655
  %3801 = vst.msk [vmem:[%s3 + $0x88] sm:$0xf] %vm3766, %v3656
  %3802 = vst.msk [vmem:[%s3 + $0x8c] sm:$0xf] %vm3766, %v3657
  %3803 = vst.msk [vmem:[%s3 + $0x90] sm:$0xf] %vm3766, %v3658
  %3804 = vst.msk [vmem:[%s3 + $0x94] sm:$0xf] %vm3766, %v3659
  %3805 = vst.msk [vmem:[%s3 + $0x98] sm:$0xf] %vm3766, %v3660
  %3806 = vst.msk [vmem:[%s3 + $0x9c] sm:$0xf] %vm3766, %v3661
  %3807 = vst.msk [vmem:[%s3 + $0xa0] sm:$0xf] %vm3766, %v3662
  %3808 = vst.msk [vmem:[%s3 + $0xa4] sm:$0xf] %vm3766, %v3663
  %3809 = vst.msk [vmem:[%s3 + $0xa8] sm:$0xf] %vm3766, %v3664
  %3810 = vst.msk [vmem:[%s3 + $0xac] sm:$0xf] %vm3766, %v3665
  %3811 = vst.msk [vmem:[%s3 + $0xb0] sm:$0xf] %vm3766, %v3666
  %3812 = vst.msk [vmem:[%s3 + $0xb4] sm:$0xf] %vm3766, %v3667
  %3813 = vst.msk [vmem:[%s3 + $0xb8] sm:$0xf] %vm3766, %v3668
  %3814 = vst.msk [vmem:[%s3 + $0xbc] sm:$0xf] %vm3766, %v3669
  %3815 = vst.msk [vmem:[%s3 + $0xc0] sm:$0xf] %vm3766, %v3670
  %3816 = vst.msk [vmem:[%s3 + $0xc4] sm:$0xf] %vm3766, %v3671
  %3817 = vst.msk [vmem:[%s3 + $0xc8] sm:$0xf] %vm3766, %v3672
  %3818 = vst.msk [vmem:[%s3 + $0xcc] sm:$0xf] %vm3766, %v3673
  %3819 = vst.msk [vmem:[%s3 + $0xd0] sm:$0xf] %vm3766, %v3674
  %3820 = vst.msk [vmem:[%s3 + $0xd4] sm:$0xf] %vm3766, %v3675
  %3821 = vst.msk [vmem:[%s3 + $0xd8] sm:$0xf] %vm3766, %v3676
  %3822 = vst.msk [vmem:[%s3 + $0xdc] sm:$0xf] %vm3766, %v3677
  %3823 = vst.msk [vmem:[%s3 + $0xe0] sm:$0xf] %vm3766, %v3678
  %3824 = vst.msk [vmem:[%s3 + $0xe4] sm:$0xf] %vm3766, %v3679
  %3825 = vst.msk [vmem:[%s3 + $0xe8] sm:$0xf] %vm3766, %v3680
  %3826 = vst.msk [vmem:[%s3 + $0xec] sm:$0xf] %vm3766, %v3681
  %3827 = vst.msk [vmem:[%s3 + $0xf0] sm:$0xf] %vm3766, %v3682
  %3828 = vst.msk [vmem:[%s3 + $0xf4] sm:$0xf] %vm3766, %v3683
  %3829 = vst.msk [vmem:[%s3 + $0xf8] sm:$0xf] %vm3766, %v3684
  %3830 = vst.msk [vmem:[%s3 + $0xfc] sm:$0xf] %vm3766, %v3685
  %3831 = vst.msk [vmem:[%s3 + $0x100] sm:$0xf] %vm3766, %v3686
  %3832 = vst.msk [vmem:[%s3 + $0x104] sm:$0xf] %vm3766, %v3687
  %3833 = vst.msk [vmem:[%s3 + $0x108] sm:$0xf] %vm3766, %v3688
  %3834 = vst.msk [vmem:[%s3 + $0x10c] sm:$0xf] %vm3766, %v3689
  %3835 = vst.msk [vmem:[%s3 + $0x110] sm:$0xf] %vm3766, %v3690
  %3836 = vst.msk [vmem:[%s3 + $0x114] sm:$0xf] %vm3766, %v3691
  %3837 = vst.msk [vmem:[%s3 + $0x118] sm:$0xf] %vm3766, %v3692
  %3838 = vst.msk [vmem:[%s3 + $0x11c] sm:$0xf] %vm3766, %v3693
  %3839 = vst.msk [vmem:[%s3 + $0x120] sm:$0xf] %vm3766, %v3694
  %3840 = vst.msk [vmem:[%s3 + $0x124] sm:$0xf] %vm3766, %v3695
  %3841 = vst.msk [vmem:[%s3 + $0x128] sm:$0xf] %vm3766, %v3696
  %3842 = vst.msk [vmem:[%s3 + $0x12c] sm:$0xf] %vm3766, %v3697
  %3843 = vst.msk [vmem:[%s3 + $0x130] sm:$0xf] %vm3766, %v3698
  %3844 = vst.msk [vmem:[%s3 + $0x134] sm:$0xf] %vm3766, %v3699
  %3845 = vst.msk [vmem:[%s3 + $0x138] sm:$0xf] %vm3766, %v3700
  %3846 = vst.msk [vmem:[%s3 + $0x13c] sm:$0xf] %vm3766, %v3701
  %3847 = vst.msk [vmem:[%s3 + $0x140] sm:$0xf] %vm3766, %v3702
  %3848 = vst.msk [vmem:[%s3 + $0x144] sm:$0xf] %vm3766, %v3703
  %3849 = vst.msk [vmem:[%s3 + $0x148] sm:$0xf] %vm3766, %v3704
  %3850 = vst.msk [vmem:[%s3 + $0x14c] sm:$0xf] %vm3766, %v3705
  %3851 = vst.msk [vmem:[%s3 + $0x150] sm:$0xf] %vm3766, %v3706
  %3852 = vst.msk [vmem:[%s3 + $0x154] sm:$0xf] %vm3766, %v3707
  %3853 = vst.msk [vmem:[%s3 + $0x158] sm:$0xf] %vm3766, %v3708
  %3854 = vst.msk [vmem:[%s3 + $0x15c] sm:$0xf] %vm3766, %v3709
  %3855 = vst.msk [vmem:[%s3 + $0x160] sm:$0xf] %vm3766, %v3710
  %3856 = vst.msk [vmem:[%s3 + $0x164] sm:$0xf] %vm3766, %v3711
  %3857 = vst.msk [vmem:[%s3 + $0x168] sm:$0xf] %vm3766, %v3712
  %3858 = vst.msk [vmem:[%s3 + $0x16c] sm:$0xf] %vm3766, %v3713
  %3859 = vst.msk [vmem:[%s3 + $0x170] sm:$0xf] %vm3766, %v3714
  %3860 = vst.msk [vmem:[%s3 + $0x174] sm:$0xf] %vm3766, %v3715
  %3861 = vst.msk [vmem:[%s3 + $0x178] sm:$0xf] %vm3766, %v3716
  %3862 = vst.msk [vmem:[%s3 + $0x17c] sm:$0xf] %vm3766, %v3717
  %3863 = vst.msk [vmem:[%s3 + $0x180] sm:$0xf] %vm3766, %v3718
  %3864 = vst.msk [vmem:[%s3 + $0x184] sm:$0xf] %vm3766, %v3719
  %3865 = vst.msk [vmem:[%s3 + $0x188] sm:$0xf] %vm3766, %v3720
  %3866 = vst.msk [vmem:[%s3 + $0x18c] sm:$0xf] %vm3766, %v3721
  %3867 = vst.msk [vmem:[%s3 + $0x190] sm:$0xf] %vm3766, %v3722
  %3868 = vst.msk [vmem:[%s3 + $0x194] sm:$0xf] %vm3766, %v3723
  %3869 = vst.msk [vmem:[%s3 + $0x198] sm:$0xf] %vm3766, %v3724
  %3870 = vst.msk [vmem:[%s3 + $0x19c] sm:$0xf] %vm3766, %v3725
  %3871 = vst.msk [vmem:[%s3 + $0x1a0] sm:$0xf] %vm3766, %v3726
  %3872 = vst.msk [vmem:[%s3 + $0x1a4] sm:$0xf] %vm3766, %v3727
  %3873 = vst.msk [vmem:[%s3 + $0x1a8] sm:$0xf] %vm3766, %v3728
  %3874 = vst.msk [vmem:[%s3 + $0x1ac] sm:$0xf] %vm3766, %v3729
  %3875 = vst.msk [vmem:[%s3 + $0x1b0] sm:$0xf] %vm3766, %v3730
  %3876 = vst.msk [vmem:[%s3 + $0x1b4] sm:$0xf] %vm3766, %v3731
  %3877 = vst.msk [vmem:[%s3 + $0x1b8] sm:$0xf] %vm3766, %v3732
  %3878 = vst.msk [vmem:[%s3 + $0x1bc] sm:$0xf] %vm3766, %v3733
  %3879 = vst.msk [vmem:[%s3 + $0x1c0] sm:$0xf] %vm3766, %v3734
  %3880 = vst.msk [vmem:[%s3 + $0x1c4] sm:$0xf] %vm3766, %v3735
  %3881 = vst.msk [vmem:[%s3 + $0x1c8] sm:$0xf] %vm3766, %v3736
  %3882 = vst.msk [vmem:[%s3 + $0x1cc] sm:$0xf] %vm3766, %v3737
  %3883 = vst.msk [vmem:[%s3 + $0x1d0] sm:$0xf] %vm3766, %v3738
  %3884 = vst.msk [vmem:[%s3 + $0x1d4] sm:$0xf] %vm3766, %v3739
  %3885 = vst.msk [vmem:[%s3 + $0x1d8] sm:$0xf] %vm3766, %v3740
  %3886 = vst.msk [vmem:[%s3 + $0x1dc] sm:$0xf] %vm3766, %v3741
  %3887 = vst.msk [vmem:[%s3 + $0x1e0] sm:$0xf] %vm3766, %v3742
  %3888 = vst.msk [vmem:[%s3 + $0x1e4] sm:$0xf] %vm3766, %v3743
  %3889 = vst.msk [vmem:[%s3 + $0x1e8] sm:$0xf] %vm3766, %v3744
  %3890 = vst.msk [vmem:[%s3 + $0x1ec] sm:$0xf] %vm3766, %v3745
  %3891 = vst.msk [vmem:[%s3 + $0x1f0] sm:$0xf] %vm3766, %v3746
  %3892 = vst.msk [vmem:[%s3 + $0x1f4] sm:$0xf] %vm3766, %v3747
  %3893 = vst.msk [vmem:[%s3 + $0x1f8] sm:$0xf] %vm3766, %v3748
  %3894 = vst.msk [vmem:[%s3 + $0x1fc] sm:$0xf] %vm3766, %v3749
  %3895 = vst.msk [vmem:[%s3 + $0x200] sm:$0xf] %vm3766, %v3750
  %3896 = vst.msk [vmem:[%s3 + $0x204] sm:$0xf] %vm3766, %v3751
  %3897 = vst.msk [vmem:[%s3 + $0x208] sm:$0xf] %vm3766, %v3752
  %3898 = vst.msk [vmem:[%s3 + $0x20c] sm:$0xf] %vm3766, %v3753
  %3899 = vst.msk [vmem:[%s3 + $0x210] sm:$0xf] %vm3766, %v3754
  %3900 = vst.msk [vmem:[%s3 + $0x214] sm:$0xf] %vm3766, %v3755
  %3901 = vst.msk [vmem:[%s3 + $0x218] sm:$0xf] %vm3766, %v3756
  %3902 = vst.msk [vmem:[%s3 + $0x21c] sm:$0xf] %vm3766, %v3757
  %3903 = vst.msk [vmem:[%s3 + $0x220] sm:$0xf] %vm3766, %v3758
  %3904 = vst.msk [vmem:[%s3 + $0x224] sm:$0xf] %vm3766, %v3759
  %3905 = vst.msk [vmem:[%s3 + $0x228] sm:$0xf] %vm3766, %v3760
  %3906 = vst.msk [vmem:[%s3 + $0x22c] sm:$0xf] %vm3766, %v3761
  %3907 = vst.msk [vmem:[%s3 + $0x230] sm:$0xf] %vm3766, %v3762
  %3908 = vst.msk [vmem:[%s3 + $0x234] sm:$0xf] %vm3766, %v3763
  %3909 = vst.msk [vmem:[%s3 + $0x238] sm:$0xf] %vm3766, %v3764
  %3910 = vst.msk [vmem:[%s3 + $0x23c] sm:$0xf] %vm3766, %v3765
  // Predicated region
  $region14: #{vae_encoder_forward.4} parent=0 // pred_check
    _
  $region15: #{vae_encoder_forward.4} parent=0 // pred_check_branch
    %3912 = sbr.rel (0) target = $region17
  $region16: #{vae_encoder_forward.4} parent=0 // pred_region
    _
  $region17: #{vae_encoder_forward.4} parent=0 // pred_fallthru
    _
  // Predicated region
  $region18: #{vae_encoder_forward.4} parent=0 // pred_check
    _
  $region19: #{vae_encoder_forward.4} parent=0 // pred_check_branch
    %3914 = sbr.rel (0) target = $region21
  $region20: #{vae_encoder_forward.4} parent=0 // pred_region
    _
  $region21: #{vae_encoder_forward.4} parent=0 // pred_fallthru
    _

// kernel: vae_encoder_forward.5
$region0: #{vae_encoder_forward.5}
  #allocation0 [shape = 'u32[]', space=smem, size = 0x4, offset = 0x4, fixed_abs, tag = 'smem constant byte address 0x4 - core index']
  #allocation1 [shape = 'u32[72,128]{1,0:T(1,128)}', space=vmem, size = 0x9000, scoped, tag = 'internal scratch']
  %s0 = inlined_call_operand.vmem [shape: bf16[2,4096], index: 0, kind: input, shape index: {}]
  %s1 = inlined_call_operand.vmem [shape: bf16[4096,16], index: 1, kind: input, shape index: {}]
  %s2 = inlined_call_operand.vmem [shape: f32[1,16], index: 2, kind: input, shape index: {}]
  %s3 = inlined_call_operand.vmem [shape: f32[2,16], index: 3, kind: output, shape index: {}]
  %s4 = sld [smem:[#allocation0]]
  $region22: #{vae_encoder_forward.5} parent=0
    _
  %s6 = ssub.s32 1, %s4
  %s7 = scalar_select 0, %s6, %s4
  // Predicated region
  $region2: #{vae_encoder_forward.5} parent=0 // pred_check
    _
  $region3: #{vae_encoder_forward.5} parent=0 // pred_check_branch
    %9 = sbr.rel (0) target = $region5
  $region4: #{vae_encoder_forward.5} parent=0 // pred_region
    _
  $region5: #{vae_encoder_forward.5} parent=0 // pred_fallthru
    _
  // Predicated region
  $region6: #{vae_encoder_forward.5} parent=0 // pred_check
    _
  $region7: #{vae_encoder_forward.5} parent=0 // pred_check_branch
    %11 = sbr.rel (0) target = $region9
  $region8: #{vae_encoder_forward.5} parent=0 // pred_region
    _
  $region9: #{vae_encoder_forward.5} parent=0 // pred_fallthru
    _
  // Predicated region
  $region10: #{vae_encoder_forward.5} parent=0 // pred_check
    _
  $region11: #{vae_encoder_forward.5} parent=0 // pred_check_branch
    %13 = sbr.rel (0) target = $region13
  $region12: #{vae_encoder_forward.5} parent=0 // pred_region
    _
  $region13: #{vae_encoder_forward.5} parent=0 // pred_fallthru
    _
  %v14 = vld [vmem:[%s0] sm:$0xff]
  %v15 = vld [vmem:[%s0 + $0x8] sm:$0xff]
  %v16 = vld [vmem:[%s0 + $0x10] sm:$0xff]
  %v17 = vld [vmem:[%s0 + $0x18] sm:$0xff]
  %v18 = vld [vmem:[%s1] sm:$0xf]
  %v19 = vld [vmem:[%s1 + $0x4] sm:$0xf]
  %v20 = vld [vmem:[%s1 + $0x8] sm:$0xf]
  %v21 = vld [vmem:[%s1 + $0xc] sm:$0xf]
  %v22 = vld [vmem:[%s1 + $0x10] sm:$0xf]
  %v23 = vld [vmem:[%s1 + $0x14] sm:$0xf]
  %v24 = vld [vmem:[%s1 + $0x18] sm:$0xf]
  %v25 = vld [vmem:[%s1 + $0x1c] sm:$0xf]
  %v26 = vld [vmem:[%s1 + $0x20] sm:$0xf]
  %v27 = vld [vmem:[%s1 + $0x24] sm:$0xf]
  %v28 = vld [vmem:[%s1 + $0x28] sm:$0xf]
  %v29 = vld [vmem:[%s1 + $0x2c] sm:$0xf]
  %v30 = vld [vmem:[%s1 + $0x30] sm:$0xf]
  %v31 = vld [vmem:[%s1 + $0x34] sm:$0xf]
  %v32 = vld [vmem:[%s1 + $0x38] sm:$0xf]
  %v33 = vld [vmem:[%s1 + $0x3c] sm:$0xf]
  %v34 = vld [vmem:[%s1 + $0x40] sm:$0xf]
  %v35 = vld [vmem:[%s1 + $0x44] sm:$0xf]
  %v36 = vld [vmem:[%s1 + $0x48] sm:$0xf]
  %v37 = vld [vmem:[%s1 + $0x4c] sm:$0xf]
  %v38 = vld [vmem:[%s1 + $0x50] sm:$0xf]
  %v39 = vld [vmem:[%s1 + $0x54] sm:$0xf]
  %v40 = vld [vmem:[%s1 + $0x58] sm:$0xf]
  %v41 = vld [vmem:[%s1 + $0x5c] sm:$0xf]
  %v42 = vld [vmem:[%s1 + $0x60] sm:$0xf]
  %v43 = vld [vmem:[%s1 + $0x64] sm:$0xf]
  %v44 = vld [vmem:[%s1 + $0x68] sm:$0xf]
  %v45 = vld [vmem:[%s1 + $0x6c] sm:$0xf]
  %v46 = vld [vmem:[%s1 + $0x70] sm:$0xf]
  %v47 = vld [vmem:[%s1 + $0x74] sm:$0xf]
  %v48 = vld [vmem:[%s1 + $0x78] sm:$0xf]
  %v49 = vld [vmem:[%s1 + $0x7c] sm:$0xf]
  %v50 = vld [vmem:[%s1 + $0x80] sm:$0xf]
  %v51 = vld [vmem:[%s1 + $0x84] sm:$0xf]
  %v52 = vld [vmem:[%s1 + $0x88] sm:$0xf]
  %v53 = vld [vmem:[%s1 + $0x8c] sm:$0xf]
  %v54 = vld [vmem:[%s1 + $0x90] sm:$0xf]
  %v55 = vld [vmem:[%s1 + $0x94] sm:$0xf]
  %v56 = vld [vmem:[%s1 + $0x98] sm:$0xf]
  %v57 = vld [vmem:[%s1 + $0x9c] sm:$0xf]
  %v58 = vld [vmem:[%s1 + $0xa0] sm:$0xf]
  %v59 = vld [vmem:[%s1 + $0xa4] sm:$0xf]
  %v60 = vld [vmem:[%s1 + $0xa8] sm:$0xf]
  %v61 = vld [vmem:[%s1 + $0xac] sm:$0xf]
  %v62 = vld [vmem:[%s1 + $0xb0] sm:$0xf]
  %v63 = vld [vmem:[%s1 + $0xb4] sm:$0xf]
  %v64 = vld [vmem:[%s1 + $0xb8] sm:$0xf]
  %v65 = vld [vmem:[%s1 + $0xbc] sm:$0xf]
  %v66 = vld [vmem:[%s1 + $0xc0] sm:$0xf]
  %v67 = vld [vmem:[%s1 + $0xc4] sm:$0xf]
  %v68 = vld [vmem:[%s1 + $0xc8] sm:$0xf]
  %v69 = vld [vmem:[%s1 + $0xcc] sm:$0xf]
  %v70 = vld [vmem:[%s1 + $0xd0] sm:$0xf]
  %v71 = vld [vmem:[%s1 + $0xd4] sm:$0xf]
  %v72 = vld [vmem:[%s1 + $0xd8] sm:$0xf]
  %v73 = vld [vmem:[%s1 + $0xdc] sm:$0xf]
  %v74 = vld [vmem:[%s1 + $0xe0] sm:$0xf]
  %v75 = vld [vmem:[%s1 + $0xe4] sm:$0xf]
  %v76 = vld [vmem:[%s1 + $0xe8] sm:$0xf]
  %v77 = vld [vmem:[%s1 + $0xec] sm:$0xf]
  %v78 = vld [vmem:[%s1 + $0xf0] sm:$0xf]
  %v79 = vld [vmem:[%s1 + $0xf4] sm:$0xf]
  %v80 = vld [vmem:[%s1 + $0xf8] sm:$0xf]
  %v81 = vld [vmem:[%s1 + $0xfc] sm:$0xf]
  %v82 = vld [vmem:[%s1 + $0x100] sm:$0xf]
  %v83 = vld [vmem:[%s1 + $0x104] sm:$0xf]
  %v84 = vld [vmem:[%s1 + $0x108] sm:$0xf]
  %v85 = vld [vmem:[%s1 + $0x10c] sm:$0xf]
  %v86 = vld [vmem:[%s1 + $0x110] sm:$0xf]
  %v87 = vld [vmem:[%s1 + $0x114] sm:$0xf]
  %v88 = vld [vmem:[%s1 + $0x118] sm:$0xf]
  %v89 = vld [vmem:[%s1 + $0x11c] sm:$0xf]
  %v90 = vld [vmem:[%s1 + $0x120] sm:$0xf]
  %v91 = vld [vmem:[%s1 + $0x124] sm:$0xf]
  %v92 = vld [vmem:[%s1 + $0x128] sm:$0xf]
  %v93 = vld [vmem:[%s1 + $0x12c] sm:$0xf]
  %v94 = vld [vmem:[%s1 + $0x130] sm:$0xf]
  %v95 = vld [vmem:[%s1 + $0x134] sm:$0xf]
  %v96 = vld [vmem:[%s1 + $0x138] sm:$0xf]
  %v97 = vld [vmem:[%s1 + $0x13c] sm:$0xf]
  %v98 = vld [vmem:[%s1 + $0x140] sm:$0xf]
  %v99 = vld [vmem:[%s1 + $0x144] sm:$0xf]
  %v100 = vld [vmem:[%s1 + $0x148] sm:$0xf]
  %v101 = vld [vmem:[%s1 + $0x14c] sm:$0xf]
  %v102 = vld [vmem:[%s1 + $0x150] sm:$0xf]
  %v103 = vld [vmem:[%s1 + $0x154] sm:$0xf]
  %v104 = vld [vmem:[%s1 + $0x158] sm:$0xf]
  %v105 = vld [vmem:[%s1 + $0x15c] sm:$0xf]
  %v106 = vld [vmem:[%s1 + $0x160] sm:$0xf]
  %v107 = vld [vmem:[%s1 + $0x164] sm:$0xf]
  %v108 = vld [vmem:[%s1 + $0x168] sm:$0xf]
  %v109 = vld [vmem:[%s1 + $0x16c] sm:$0xf]
  %v110 = vld [vmem:[%s1 + $0x170] sm:$0xf]
  %v111 = vld [vmem:[%s1 + $0x174] sm:$0xf]
  %v112 = vld [vmem:[%s1 + $0x178] sm:$0xf]
  %v113 = vld [vmem:[%s1 + $0x17c] sm:$0xf]
  %v114 = vld [vmem:[%s1 + $0x180] sm:$0xf]
  %v115 = vld [vmem:[%s1 + $0x184] sm:$0xf]
  %v116 = vld [vmem:[%s1 + $0x188] sm:$0xf]
  %v117 = vld [vmem:[%s1 + $0x18c] sm:$0xf]
  %v118 = vld [vmem:[%s1 + $0x190] sm:$0xf]
  %v119 = vld [vmem:[%s1 + $0x194] sm:$0xf]
  %v120 = vld [vmem:[%s1 + $0x198] sm:$0xf]
  %v121 = vld [vmem:[%s1 + $0x19c] sm:$0xf]
  %v122 = vld [vmem:[%s1 + $0x1a0] sm:$0xf]
  %v123 = vld [vmem:[%s1 + $0x1a4] sm:$0xf]
  %v124 = vld [vmem:[%s1 + $0x1a8] sm:$0xf]
  %v125 = vld [vmem:[%s1 + $0x1ac] sm:$0xf]
  %v126 = vld [vmem:[%s1 + $0x1b0] sm:$0xf]
  %v127 = vld [vmem:[%s1 + $0x1b4] sm:$0xf]
  %v128 = vld [vmem:[%s1 + $0x1b8] sm:$0xf]
  %v129 = vld [vmem:[%s1 + $0x1bc] sm:$0xf]
  %v130 = vld [vmem:[%s1 + $0x1c0] sm:$0xf]
  %v131 = vld [vmem:[%s1 + $0x1c4] sm:$0xf]
  %v132 = vld [vmem:[%s1 + $0x1c8] sm:$0xf]
  %v133 = vld [vmem:[%s1 + $0x1cc] sm:$0xf]
  %v134 = vld [vmem:[%s1 + $0x1d0] sm:$0xf]
  %v135 = vld [vmem:[%s1 + $0x1d4] sm:$0xf]
  %v136 = vld [vmem:[%s1 + $0x1d8] sm:$0xf]
  %v137 = vld [vmem:[%s1 + $0x1dc] sm:$0xf]
  %v138 = vld [vmem:[%s1 + $0x1e0] sm:$0xf]
  %v139 = vld [vmem:[%s1 + $0x1e4] sm:$0xf]
  %v140 = vld [vmem:[%s1 + $0x1e8] sm:$0xf]
  %v141 = vld [vmem:[%s1 + $0x1ec] sm:$0xf]
  %v142 = vld [vmem:[%s1 + $0x1f0] sm:$0xf]
  %v143 = vld [vmem:[%s1 + $0x1f4] sm:$0xf]
  %v144 = vld [vmem:[%s1 + $0x1f8] sm:$0xf]
  %v145 = vld [vmem:[%s1 + $0x1fc] sm:$0xf]
  %v146 = vld [vmem:[%s1 + $0x200] sm:$0xf]
  %v147 = vld [vmem:[%s1 + $0x204] sm:$0xf]
  %v148 = vld [vmem:[%s1 + $0x208] sm:$0xf]
  %v149 = vld [vmem:[%s1 + $0x20c] sm:$0xf]
  %v150 = vld [vmem:[%s1 + $0x210] sm:$0xf]
  %v151 = vld [vmem:[%s1 + $0x214] sm:$0xf]
  %v152 = vld [vmem:[%s1 + $0x218] sm:$0xf]
  %v153 = vld [vmem:[%s1 + $0x21c] sm:$0xf]
  %v154 = vld [vmem:[%s1 + $0x220] sm:$0xf]
  %v155 = vld [vmem:[%s1 + $0x224] sm:$0xf]
  %v156 = vld [vmem:[%s1 + $0x228] sm:$0xf]
  %v157 = vld [vmem:[%s1 + $0x22c] sm:$0xf]
  %v158 = vld [vmem:[%s1 + $0x230] sm:$0xf]
  %v159 = vld [vmem:[%s1 + $0x234] sm:$0xf]
  %v160 = vld [vmem:[%s1 + $0x238] sm:$0xf]
  %v161 = vld [vmem:[%s1 + $0x23c] sm:$0xf]
  %v162 = vld [vmem:[%s1 + $0x240] sm:$0xf]
  %v163 = vld [vmem:[%s1 + $0x244] sm:$0xf]
  %v164 = vld [vmem:[%s1 + $0x248] sm:$0xf]
  %v165 = vld [vmem:[%s1 + $0x24c] sm:$0xf]
  %v166 = vld [vmem:[%s1 + $0x250] sm:$0xf]
  %v167 = vld [vmem:[%s1 + $0x254] sm:$0xf]
  %v168 = vld [vmem:[%s1 + $0x258] sm:$0xf]
  %v169 = vld [vmem:[%s1 + $0x25c] sm:$0xf]
  %v170 = vld [vmem:[%s1 + $0x260] sm:$0xf]
  %v171 = vld [vmem:[%s1 + $0x264] sm:$0xf]
  %v172 = vld [vmem:[%s1 + $0x268] sm:$0xf]
  %v173 = vld [vmem:[%s1 + $0x26c] sm:$0xf]
  %v174 = vld [vmem:[%s1 + $0x270] sm:$0xf]
  %v175 = vld [vmem:[%s1 + $0x274] sm:$0xf]
  %v176 = vld [vmem:[%s1 + $0x278] sm:$0xf]
  %v177 = vld [vmem:[%s1 + $0x27c] sm:$0xf]
  %v178 = vld [vmem:[%s1 + $0x280] sm:$0xf]
  %v179 = vld [vmem:[%s1 + $0x284] sm:$0xf]
  %v180 = vld [vmem:[%s1 + $0x288] sm:$0xf]
  %v181 = vld [vmem:[%s1 + $0x28c] sm:$0xf]
  %v182 = vld [vmem:[%s1 + $0x290] sm:$0xf]
  %v183 = vld [vmem:[%s1 + $0x294] sm:$0xf]
  %v184 = vld [vmem:[%s1 + $0x298] sm:$0xf]
  %v185 = vld [vmem:[%s1 + $0x29c] sm:$0xf]
  %v186 = vld [vmem:[%s1 + $0x2a0] sm:$0xf]
  %v187 = vld [vmem:[%s1 + $0x2a4] sm:$0xf]
  %v188 = vld [vmem:[%s1 + $0x2a8] sm:$0xf]
  %v189 = vld [vmem:[%s1 + $0x2ac] sm:$0xf]
  %v190 = vld [vmem:[%s1 + $0x2b0] sm:$0xf]
  %v191 = vld [vmem:[%s1 + $0x2b4] sm:$0xf]
  %v192 = vld [vmem:[%s1 + $0x2b8] sm:$0xf]
  %v193 = vld [vmem:[%s1 + $0x2bc] sm:$0xf]
  %v194 = vld [vmem:[%s1 + $0x2c0] sm:$0xf]
  %v195 = vld [vmem:[%s1 + $0x2c4] sm:$0xf]
  %v196 = vld [vmem:[%s1 + $0x2c8] sm:$0xf]
  %v197 = vld [vmem:[%s1 + $0x2cc] sm:$0xf]
  %v198 = vld [vmem:[%s1 + $0x2d0] sm:$0xf]
  %v199 = vld [vmem:[%s1 + $0x2d4] sm:$0xf]
  %v200 = vld [vmem:[%s1 + $0x2d8] sm:$0xf]
  %v201 = vld [vmem:[%s1 + $0x2dc] sm:$0xf]
  %v202 = vld [vmem:[%s1 + $0x2e0] sm:$0xf]
  %v203 = vld [vmem:[%s1 + $0x2e4] sm:$0xf]
  %v204 = vld [vmem:[%s1 + $0x2e8] sm:$0xf]
  %v205 = vld [vmem:[%s1 + $0x2ec] sm:$0xf]
  %v206 = vld [vmem:[%s1 + $0x2f0] sm:$0xf]
  %v207 = vld [vmem:[%s1 + $0x2f4] sm:$0xf]
  %v208 = vld [vmem:[%s1 + $0x2f8] sm:$0xf]
  %v209 = vld [vmem:[%s1 + $0x2fc] sm:$0xf]
  %v210 = vld [vmem:[%s1 + $0x300] sm:$0xf]
  %v211 = vld [vmem:[%s1 + $0x304] sm:$0xf]
  %v212 = vld [vmem:[%s1 + $0x308] sm:$0xf]
  %v213 = vld [vmem:[%s1 + $0x30c] sm:$0xf]
  %v214 = vld [vmem:[%s1 + $0x310] sm:$0xf]
  %v215 = vld [vmem:[%s1 + $0x314] sm:$0xf]
  %v216 = vld [vmem:[%s1 + $0x318] sm:$0xf]
  %v217 = vld [vmem:[%s1 + $0x31c] sm:$0xf]
  %v218 = vld [vmem:[%s1 + $0x320] sm:$0xf]
  %v219 = vld [vmem:[%s1 + $0x324] sm:$0xf]
  %v220 = vld [vmem:[%s1 + $0x328] sm:$0xf]
  %v221 = vld [vmem:[%s1 + $0x32c] sm:$0xf]
  %v222 = vld [vmem:[%s1 + $0x330] sm:$0xf]
  %v223 = vld [vmem:[%s1 + $0x334] sm:$0xf]
  %v224 = vld [vmem:[%s1 + $0x338] sm:$0xf]
  %v225 = vld [vmem:[%s1 + $0x33c] sm:$0xf]
  %v226 = vld [vmem:[%s1 + $0x340] sm:$0xf]
  %v227 = vld [vmem:[%s1 + $0x344] sm:$0xf]
  %v228 = vld [vmem:[%s1 + $0x348] sm:$0xf]
  %v229 = vld [vmem:[%s1 + $0x34c] sm:$0xf]
  %v230 = vld [vmem:[%s1 + $0x350] sm:$0xf]
  %v231 = vld [vmem:[%s1 + $0x354] sm:$0xf]
  %v232 = vld [vmem:[%s1 + $0x358] sm:$0xf]
  %v233 = vld [vmem:[%s1 + $0x35c] sm:$0xf]
  %v234 = vld [vmem:[%s1 + $0x360] sm:$0xf]
  %v235 = vld [vmem:[%s1 + $0x364] sm:$0xf]
  %v236 = vld [vmem:[%s1 + $0x368] sm:$0xf]
  %v237 = vld [vmem:[%s1 + $0x36c] sm:$0xf]
  %v238 = vld [vmem:[%s1 + $0x370] sm:$0xf]
  %v239 = vld [vmem:[%s1 + $0x374] sm:$0xf]
  %v240 = vld [vmem:[%s1 + $0x378] sm:$0xf]
  %v241 = vld [vmem:[%s1 + $0x37c] sm:$0xf]
  %v242 = vld [vmem:[%s1 + $0x380] sm:$0xf]
  %v243 = vld [vmem:[%s1 + $0x384] sm:$0xf]
  %v244 = vld [vmem:[%s1 + $0x388] sm:$0xf]
  %v245 = vld [vmem:[%s1 + $0x38c] sm:$0xf]
  %v246 = vld [vmem:[%s1 + $0x390] sm:$0xf]
  %v247 = vld [vmem:[%s1 + $0x394] sm:$0xf]
  %v248 = vld [vmem:[%s1 + $0x398] sm:$0xf]
  %v249 = vld [vmem:[%s1 + $0x39c] sm:$0xf]
  %v250 = vld [vmem:[%s1 + $0x3a0] sm:$0xf]
  %v251 = vld [vmem:[%s1 + $0x3a4] sm:$0xf]
  %v252 = vld [vmem:[%s1 + $0x3a8] sm:$0xf]
  %v253 = vld [vmem:[%s1 + $0x3ac] sm:$0xf]
  %v254 = vld [vmem:[%s1 + $0x3b0] sm:$0xf]
  %v255 = vld [vmem:[%s1 + $0x3b4] sm:$0xf]
  %v256 = vld [vmem:[%s1 + $0x3b8] sm:$0xf]
  %v257 = vld [vmem:[%s1 + $0x3bc] sm:$0xf]
  %v258 = vld [vmem:[%s1 + $0x3c0] sm:$0xf]
  %v259 = vld [vmem:[%s1 + $0x3c4] sm:$0xf]
  %v260 = vld [vmem:[%s1 + $0x3c8] sm:$0xf]
  %v261 = vld [vmem:[%s1 + $0x3cc] sm:$0xf]
  %v262 = vld [vmem:[%s1 + $0x3d0] sm:$0xf]
  %v263 = vld [vmem:[%s1 + $0x3d4] sm:$0xf]
  %v264 = vld [vmem:[%s1 + $0x3d8] sm:$0xf]
  %v265 = vld [vmem:[%s1 + $0x3dc] sm:$0xf]
  %v266 = vld [vmem:[%s1 + $0x3e0] sm:$0xf]
  %v267 = vld [vmem:[%s1 + $0x3e4] sm:$0xf]
  %v268 = vld [vmem:[%s1 + $0x3e8] sm:$0xf]
  %v269 = vld [vmem:[%s1 + $0x3ec] sm:$0xf]
  %v270 = vld [vmem:[%s1 + $0x3f0] sm:$0xf]
  %v271 = vld [vmem:[%s1 + $0x3f4] sm:$0xf]
  %v272 = vld [vmem:[%s1 + $0x3f8] sm:$0xf]
  %v273 = vld [vmem:[%s1 + $0x3fc] sm:$0xf]
  %v274 = vld [vmem:[%s1 + $0x400] sm:$0xf]
  %v275 = vld [vmem:[%s1 + $0x404] sm:$0xf]
  %v276 = vld [vmem:[%s1 + $0x408] sm:$0xf]
  %v277 = vld [vmem:[%s1 + $0x40c] sm:$0xf]
  %v278 = vld [vmem:[%s1 + $0x410] sm:$0xf]
  %v279 = vld [vmem:[%s1 + $0x414] sm:$0xf]
  %v280 = vld [vmem:[%s1 + $0x418] sm:$0xf]
  %v281 = vld [vmem:[%s1 + $0x41c] sm:$0xf]
  %v282 = vld [vmem:[%s1 + $0x420] sm:$0xf]
  %v283 = vld [vmem:[%s1 + $0x424] sm:$0xf]
  %v284 = vld [vmem:[%s1 + $0x428] sm:$0xf]
  %v285 = vld [vmem:[%s1 + $0x42c] sm:$0xf]
  %v286 = vld [vmem:[%s1 + $0x430] sm:$0xf]
  %v287 = vld [vmem:[%s1 + $0x434] sm:$0xf]
  %v288 = vld [vmem:[%s1 + $0x438] sm:$0xf]
  %v289 = vld [vmem:[%s1 + $0x43c] sm:$0xf]
  %v290 = vld [vmem:[%s1 + $0x440] sm:$0xf]
  %v291 = vld [vmem:[%s1 + $0x444] sm:$0xf]
  %v292 = vld [vmem:[%s1 + $0x448] sm:$0xf]
  %v293 = vld [vmem:[%s1 + $0x44c] sm:$0xf]
  %v294 = vld [vmem:[%s1 + $0x450] sm:$0xf]
  %v295 = vld [vmem:[%s1 + $0x454] sm:$0xf]
  %v296 = vld [vmem:[%s1 + $0x458] sm:$0xf]
  %v297 = vld [vmem:[%s1 + $0x45c] sm:$0xf]
  %v298 = vld [vmem:[%s1 + $0x460] sm:$0xf]
  %v299 = vld [vmem:[%s1 + $0x464] sm:$0xf]
  %v300 = vld [vmem:[%s1 + $0x468] sm:$0xf]
  %v301 = vld [vmem:[%s1 + $0x46c] sm:$0xf]
  %v302 = vld [vmem:[%s1 + $0x470] sm:$0xf]
  %v303 = vld [vmem:[%s1 + $0x474] sm:$0xf]
  %v304 = vld [vmem:[%s1 + $0x478] sm:$0xf]
  %v305 = vld [vmem:[%s1 + $0x47c] sm:$0xf]
  %v306 = vld [vmem:[%s1 + $0x480] sm:$0xf]
  %v307 = vld [vmem:[%s1 + $0x484] sm:$0xf]
  %v308 = vld [vmem:[%s1 + $0x488] sm:$0xf]
  %v309 = vld [vmem:[%s1 + $0x48c] sm:$0xf]
  %v310 = vld [vmem:[%s1 + $0x490] sm:$0xf]
  %v311 = vld [vmem:[%s1 + $0x494] sm:$0xf]
  %v312 = vld [vmem:[%s1 + $0x498] sm:$0xf]
  %v313 = vld [vmem:[%s1 + $0x49c] sm:$0xf]
  %v314 = vld [vmem:[%s1 + $0x4a0] sm:$0xf]
  %v315 = vld [vmem:[%s1 + $0x4a4] sm:$0xf]
  %v316 = vld [vmem:[%s1 + $0x4a8] sm:$0xf]
  %v317 = vld [vmem:[%s1 + $0x4ac] sm:$0xf]
  %v318 = vld [vmem:[%s1 + $0x4b0] sm:$0xf]
  %v319 = vld [vmem:[%s1 + $0x4b4] sm:$0xf]
  %v320 = vld [vmem:[%s1 + $0x4b8] sm:$0xf]
  %v321 = vld [vmem:[%s1 + $0x4bc] sm:$0xf]
  %v322 = vld [vmem:[%s1 + $0x4c0] sm:$0xf]
  %v323 = vld [vmem:[%s1 + $0x4c4] sm:$0xf]
  %v324 = vld [vmem:[%s1 + $0x4c8] sm:$0xf]
  %v325 = vld [vmem:[%s1 + $0x4cc] sm:$0xf]
  %v326 = vld [vmem:[%s1 + $0x4d0] sm:$0xf]
  %v327 = vld [vmem:[%s1 + $0x4d4] sm:$0xf]
  %v328 = vld [vmem:[%s1 + $0x4d8] sm:$0xf]
  %v329 = vld [vmem:[%s1 + $0x4dc] sm:$0xf]
  %v330 = vld [vmem:[%s1 + $0x4e0] sm:$0xf]
  %v331 = vld [vmem:[%s1 + $0x4e4] sm:$0xf]
  %v332 = vld [vmem:[%s1 + $0x4e8] sm:$0xf]
  %v333 = vld [vmem:[%s1 + $0x4ec] sm:$0xf]
  %v334 = vld [vmem:[%s1 + $0x4f0] sm:$0xf]
  %v335 = vld [vmem:[%s1 + $0x4f4] sm:$0xf]
  %v336 = vld [vmem:[%s1 + $0x4f8] sm:$0xf]
  %v337 = vld [vmem:[%s1 + $0x4fc] sm:$0xf]
  %v338 = vld [vmem:[%s1 + $0x500] sm:$0xf]
  %v339 = vld [vmem:[%s1 + $0x504] sm:$0xf]
  %v340 = vld [vmem:[%s1 + $0x508] sm:$0xf]
  %v341 = vld [vmem:[%s1 + $0x50c] sm:$0xf]
  %v342 = vld [vmem:[%s1 + $0x510] sm:$0xf]
  %v343 = vld [vmem:[%s1 + $0x514] sm:$0xf]
  %v344 = vld [vmem:[%s1 + $0x518] sm:$0xf]
  %v345 = vld [vmem:[%s1 + $0x51c] sm:$0xf]
  %v346 = vld [vmem:[%s1 + $0x520] sm:$0xf]
  %v347 = vld [vmem:[%s1 + $0x524] sm:$0xf]
  %v348 = vld [vmem:[%s1 + $0x528] sm:$0xf]
  %v349 = vld [vmem:[%s1 + $0x52c] sm:$0xf]
  %v350 = vld [vmem:[%s1 + $0x530] sm:$0xf]
  %v351 = vld [vmem:[%s1 + $0x534] sm:$0xf]
  %v352 = vld [vmem:[%s1 + $0x538] sm:$0xf]
  %v353 = vld [vmem:[%s1 + $0x53c] sm:$0xf]
  %v354 = vld [vmem:[%s1 + $0x540] sm:$0xf]
  %v355 = vld [vmem:[%s1 + $0x544] sm:$0xf]
  %v356 = vld [vmem:[%s1 + $0x548] sm:$0xf]
  %v357 = vld [vmem:[%s1 + $0x54c] sm:$0xf]
  %v358 = vld [vmem:[%s1 + $0x550] sm:$0xf]
  %v359 = vld [vmem:[%s1 + $0x554] sm:$0xf]
  %v360 = vld [vmem:[%s1 + $0x558] sm:$0xf]
  %v361 = vld [vmem:[%s1 + $0x55c] sm:$0xf]
  %v362 = vld [vmem:[%s1 + $0x560] sm:$0xf]
  %v363 = vld [vmem:[%s1 + $0x564] sm:$0xf]
  %v364 = vld [vmem:[%s1 + $0x568] sm:$0xf]
  %v365 = vld [vmem:[%s1 + $0x56c] sm:$0xf]
  %v366 = vld [vmem:[%s1 + $0x570] sm:$0xf]
  %v367 = vld [vmem:[%s1 + $0x574] sm:$0xf]
  %v368 = vld [vmem:[%s1 + $0x578] sm:$0xf]
  %v369 = vld [vmem:[%s1 + $0x57c] sm:$0xf]
  %v370 = vld [vmem:[%s1 + $0x580] sm:$0xf]
  %v371 = vld [vmem:[%s1 + $0x584] sm:$0xf]
  %v372 = vld [vmem:[%s1 + $0x588] sm:$0xf]
  %v373 = vld [vmem:[%s1 + $0x58c] sm:$0xf]
  %v374 = vld [vmem:[%s1 + $0x590] sm:$0xf]
  %v375 = vld [vmem:[%s1 + $0x594] sm:$0xf]
  %v376 = vld [vmem:[%s1 + $0x598] sm:$0xf]
  %v377 = vld [vmem:[%s1 + $0x59c] sm:$0xf]
  %v378 = vld [vmem:[%s1 + $0x5a0] sm:$0xf]
  %v379 = vld [vmem:[%s1 + $0x5a4] sm:$0xf]
  %v380 = vld [vmem:[%s1 + $0x5a8] sm:$0xf]
  %v381 = vld [vmem:[%s1 + $0x5ac] sm:$0xf]
  %v382 = vld [vmem:[%s1 + $0x5b0] sm:$0xf]
  %v383 = vld [vmem:[%s1 + $0x5b4] sm:$0xf]
  %v384 = vld [vmem:[%s1 + $0x5b8] sm:$0xf]
  %v385 = vld [vmem:[%s1 + $0x5bc] sm:$0xf]
  %v386 = vld [vmem:[%s1 + $0x5c0] sm:$0xf]
  %v387 = vld [vmem:[%s1 + $0x5c4] sm:$0xf]
  %v388 = vld [vmem:[%s1 + $0x5c8] sm:$0xf]
  %v389 = vld [vmem:[%s1 + $0x5cc] sm:$0xf]
  %v390 = vld [vmem:[%s1 + $0x5d0] sm:$0xf]
  %v391 = vld [vmem:[%s1 + $0x5d4] sm:$0xf]
  %v392 = vld [vmem:[%s1 + $0x5d8] sm:$0xf]
  %v393 = vld [vmem:[%s1 + $0x5dc] sm:$0xf]
  %v394 = vld [vmem:[%s1 + $0x5e0] sm:$0xf]
  %v395 = vld [vmem:[%s1 + $0x5e4] sm:$0xf]
  %v396 = vld [vmem:[%s1 + $0x5e8] sm:$0xf]
  %v397 = vld [vmem:[%s1 + $0x5ec] sm:$0xf]
  %v398 = vld [vmem:[%s1 + $0x5f0] sm:$0xf]
  %v399 = vld [vmem:[%s1 + $0x5f4] sm:$0xf]
  %v400 = vld [vmem:[%s1 + $0x5f8] sm:$0xf]
  %v401 = vld [vmem:[%s1 + $0x5fc] sm:$0xf]
  %v402 = vld [vmem:[%s1 + $0x600] sm:$0xf]
  %v403 = vld [vmem:[%s1 + $0x604] sm:$0xf]
  %v404 = vld [vmem:[%s1 + $0x608] sm:$0xf]
  %v405 = vld [vmem:[%s1 + $0x60c] sm:$0xf]
  %v406 = vld [vmem:[%s1 + $0x610] sm:$0xf]
  %v407 = vld [vmem:[%s1 + $0x614] sm:$0xf]
  %v408 = vld [vmem:[%s1 + $0x618] sm:$0xf]
  %v409 = vld [vmem:[%s1 + $0x61c] sm:$0xf]
  %v410 = vld [vmem:[%s1 + $0x620] sm:$0xf]
  %v411 = vld [vmem:[%s1 + $0x624] sm:$0xf]
  %v412 = vld [vmem:[%s1 + $0x628] sm:$0xf]
  %v413 = vld [vmem:[%s1 + $0x62c] sm:$0xf]
  %v414 = vld [vmem:[%s1 + $0x630] sm:$0xf]
  %v415 = vld [vmem:[%s1 + $0x634] sm:$0xf]
  %v416 = vld [vmem:[%s1 + $0x638] sm:$0xf]
  %v417 = vld [vmem:[%s1 + $0x63c] sm:$0xf]
  %v418 = vld [vmem:[%s1 + $0x640] sm:$0xf]
  %v419 = vld [vmem:[%s1 + $0x644] sm:$0xf]
  %v420 = vld [vmem:[%s1 + $0x648] sm:$0xf]
  %v421 = vld [vmem:[%s1 + $0x64c] sm:$0xf]
  %v422 = vld [vmem:[%s1 + $0x650] sm:$0xf]
  %v423 = vld [vmem:[%s1 + $0x654] sm:$0xf]
  %v424 = vld [vmem:[%s1 + $0x658] sm:$0xf]
  %v425 = vld [vmem:[%s1 + $0x65c] sm:$0xf]
  %v426 = vld [vmem:[%s1 + $0x660] sm:$0xf]
  %v427 = vld [vmem:[%s1 + $0x664] sm:$0xf]
  %v428 = vld [vmem:[%s1 + $0x668] sm:$0xf]
  %v429 = vld [vmem:[%s1 + $0x66c] sm:$0xf]
  %v430 = vld [vmem:[%s1 + $0x670] sm:$0xf]
  %v431 = vld [vmem:[%s1 + $0x674] sm:$0xf]
  %v432 = vld [vmem:[%s1 + $0x678] sm:$0xf]
  %v433 = vld [vmem:[%s1 + $0x67c] sm:$0xf]
  %v434 = vld [vmem:[%s1 + $0x680] sm:$0xf]
  %v435 = vld [vmem:[%s1 + $0x684] sm:$0xf]
  %v436 = vld [vmem:[%s1 + $0x688] sm:$0xf]
  %v437 = vld [vmem:[%s1 + $0x68c] sm:$0xf]
  %v438 = vld [vmem:[%s1 + $0x690] sm:$0xf]
  %v439 = vld [vmem:[%s1 + $0x694] sm:$0xf]
  %v440 = vld [vmem:[%s1 + $0x698] sm:$0xf]
  %v441 = vld [vmem:[%s1 + $0x69c] sm:$0xf]
  %v442 = vld [vmem:[%s1 + $0x6a0] sm:$0xf]
  %v443 = vld [vmem:[%s1 + $0x6a4] sm:$0xf]
  %v444 = vld [vmem:[%s1 + $0x6a8] sm:$0xf]
  %v445 = vld [vmem:[%s1 + $0x6ac] sm:$0xf]
  %v446 = vld [vmem:[%s1 + $0x6b0] sm:$0xf]
  %v447 = vld [vmem:[%s1 + $0x6b4] sm:$0xf]
  %v448 = vld [vmem:[%s1 + $0x6b8] sm:$0xf]
  %v449 = vld [vmem:[%s1 + $0x6bc] sm:$0xf]
  %v450 = vld [vmem:[%s1 + $0x6c0] sm:$0xf]
  %v451 = vld [vmem:[%s1 + $0x6c4] sm:$0xf]
  %v452 = vld [vmem:[%s1 + $0x6c8] sm:$0xf]
  %v453 = vld [vmem:[%s1 + $0x6cc] sm:$0xf]
  %v454 = vld [vmem:[%s1 + $0x6d0] sm:$0xf]
  %v455 = vld [vmem:[%s1 + $0x6d4] sm:$0xf]
  %v456 = vld [vmem:[%s1 + $0x6d8] sm:$0xf]
  %v457 = vld [vmem:[%s1 + $0x6dc] sm:$0xf]
  %v458 = vld [vmem:[%s1 + $0x6e0] sm:$0xf]
  %v459 = vld [vmem:[%s1 + $0x6e4] sm:$0xf]
  %v460 = vld [vmem:[%s1 + $0x6e8] sm:$0xf]
  %v461 = vld [vmem:[%s1 + $0x6ec] sm:$0xf]
  %v462 = vld [vmem:[%s1 + $0x6f0] sm:$0xf]
  %v463 = vld [vmem:[%s1 + $0x6f4] sm:$0xf]
  %v464 = vld [vmem:[%s1 + $0x6f8] sm:$0xf]
  %v465 = vld [vmem:[%s1 + $0x6fc] sm:$0xf]
  %v466 = vld [vmem:[%s1 + $0x700] sm:$0xf]
  %v467 = vld [vmem:[%s1 + $0x704] sm:$0xf]
  %v468 = vld [vmem:[%s1 + $0x708] sm:$0xf]
  %v469 = vld [vmem:[%s1 + $0x70c] sm:$0xf]
  %v470 = vld [vmem:[%s1 + $0x710] sm:$0xf]
  %v471 = vld [vmem:[%s1 + $0x714] sm:$0xf]
  %v472 = vld [vmem:[%s1 + $0x718] sm:$0xf]
  %v473 = vld [vmem:[%s1 + $0x71c] sm:$0xf]
  %v474 = vld [vmem:[%s1 + $0x720] sm:$0xf]
  %v475 = vld [vmem:[%s1 + $0x724] sm:$0xf]
  %v476 = vld [vmem:[%s1 + $0x728] sm:$0xf]
  %v477 = vld [vmem:[%s1 + $0x72c] sm:$0xf]
  %v478 = vld [vmem:[%s1 + $0x730] sm:$0xf]
  %v479 = vld [vmem:[%s1 + $0x734] sm:$0xf]
  %v480 = vld [vmem:[%s1 + $0x738] sm:$0xf]
  %v481 = vld [vmem:[%s1 + $0x73c] sm:$0xf]
  %v482 = vld [vmem:[%s1 + $0x740] sm:$0xf]
  %v483 = vld [vmem:[%s1 + $0x744] sm:$0xf]
  %v484 = vld [vmem:[%s1 + $0x748] sm:$0xf]
  %v485 = vld [vmem:[%s1 + $0x74c] sm:$0xf]
  %v486 = vld [vmem:[%s1 + $0x750] sm:$0xf]
  %v487 = vld [vmem:[%s1 + $0x754] sm:$0xf]
  %v488 = vld [vmem:[%s1 + $0x758] sm:$0xf]
  %v489 = vld [vmem:[%s1 + $0x75c] sm:$0xf]
  %v490 = vld [vmem:[%s1 + $0x760] sm:$0xf]
  %v491 = vld [vmem:[%s1 + $0x764] sm:$0xf]
  %v492 = vld [vmem:[%s1 + $0x768] sm:$0xf]
  %v493 = vld [vmem:[%s1 + $0x76c] sm:$0xf]
  %v494 = vld [vmem:[%s1 + $0x770] sm:$0xf]
  %v495 = vld [vmem:[%s1 + $0x774] sm:$0xf]
  %v496 = vld [vmem:[%s1 + $0x778] sm:$0xf]
  %v497 = vld [vmem:[%s1 + $0x77c] sm:$0xf]
  %v498 = vld [vmem:[%s1 + $0x780] sm:$0xf]
  %v499 = vld [vmem:[%s1 + $0x784] sm:$0xf]
  %v500 = vld [vmem:[%s1 + $0x788] sm:$0xf]
  %v501 = vld [vmem:[%s1 + $0x78c] sm:$0xf]
  %v502 = vld [vmem:[%s1 + $0x790] sm:$0xf]
  %v503 = vld [vmem:[%s1 + $0x794] sm:$0xf]
  %v504 = vld [vmem:[%s1 + $0x798] sm:$0xf]
  %v505 = vld [vmem:[%s1 + $0x79c] sm:$0xf]
  %v506 = vld [vmem:[%s1 + $0x7a0] sm:$0xf]
  %v507 = vld [vmem:[%s1 + $0x7a4] sm:$0xf]
  %v508 = vld [vmem:[%s1 + $0x7a8] sm:$0xf]
  %v509 = vld [vmem:[%s1 + $0x7ac] sm:$0xf]
  %v510 = vld [vmem:[%s1 + $0x7b0] sm:$0xf]
  %v511 = vld [vmem:[%s1 + $0x7b4] sm:$0xf]
  %v512 = vld [vmem:[%s1 + $0x7b8] sm:$0xf]
  %v513 = vld [vmem:[%s1 + $0x7bc] sm:$0xf]
  %v514 = vld [vmem:[%s1 + $0x7c0] sm:$0xf]
  %v515 = vld [vmem:[%s1 + $0x7c4] sm:$0xf]
  %v516 = vld [vmem:[%s1 + $0x7c8] sm:$0xf]
  %v517 = vld [vmem:[%s1 + $0x7cc] sm:$0xf]
  %v518 = vld [vmem:[%s1 + $0x7d0] sm:$0xf]
  %v519 = vld [vmem:[%s1 + $0x7d4] sm:$0xf]
  %v520 = vld [vmem:[%s1 + $0x7d8] sm:$0xf]
  %v521 = vld [vmem:[%s1 + $0x7dc] sm:$0xf]
  %v522 = vld [vmem:[%s1 + $0x7e0] sm:$0xf]
  %v523 = vld [vmem:[%s1 + $0x7e4] sm:$0xf]
  %v524 = vld [vmem:[%s1 + $0x7e8] sm:$0xf]
  %v525 = vld [vmem:[%s1 + $0x7ec] sm:$0xf]
  %v526 = vld [vmem:[%s1 + $0x7f0] sm:$0xf]
  %v527 = vld [vmem:[%s1 + $0x7f4] sm:$0xf]
  %v528 = vld [vmem:[%s1 + $0x7f8] sm:$0xf]
  %v529 = vld [vmem:[%s1 + $0x7fc] sm:$0xf]
  %v530 = vld [vmem:[%s2] sm:$0x1]
  %v532 = vperm.slane %v530, 0
  %535 = vst [vmem:[#allocation1] ss:$9 sm:$0xff] %v14
  %v536 = vld [vmem:[#allocation1] sm:$0xff]
  %v537 = vld [vmem:[#allocation1 + $0x9] sm:$0xff]
  %v538 = vld [vmem:[#allocation1 + $0x12] sm:$0xff]
  %v539 = vld [vmem:[#allocation1 + $0x1b] sm:$0xff]
  %v540 = vld [vmem:[#allocation1 + $0x24] sm:$0xff]
  %v541 = vld [vmem:[#allocation1 + $0x2d] sm:$0xff]
  %v542 = vld [vmem:[#allocation1 + $0x36] sm:$0xff]
  %v543 = vld [vmem:[#allocation1 + $0x3f] sm:$0xff]
  %545 = vst [vmem:[#allocation1] ss:$9 sm:$0xff] %v15
  %v546 = vld [vmem:[#allocation1] sm:$0xff]
  %v547 = vld [vmem:[#allocation1 + $0x9] sm:$0xff]
  %v548 = vld [vmem:[#allocation1 + $0x12] sm:$0xff]
  %v549 = vld [vmem:[#allocation1 + $0x1b] sm:$0xff]
  %v550 = vld [vmem:[#allocation1 + $0x24] sm:$0xff]
  %v551 = vld [vmem:[#allocation1 + $0x2d] sm:$0xff]
  %v552 = vld [vmem:[#allocation1 + $0x36] sm:$0xff]
  %v553 = vld [vmem:[#allocation1 + $0x3f] sm:$0xff]
  %555 = vst [vmem:[#allocation1] ss:$9 sm:$0xff] %v16
  %v556 = vld [vmem:[#allocation1] sm:$0xff]
  %v557 = vld [vmem:[#allocation1 + $0x9] sm:$0xff]
  %v558 = vld [vmem:[#allocation1 + $0x12] sm:$0xff]
  %v559 = vld [vmem:[#allocation1 + $0x1b] sm:$0xff]
  %v560 = vld [vmem:[#allocation1 + $0x24] sm:$0xff]
  %v561 = vld [vmem:[#allocation1 + $0x2d] sm:$0xff]
  %v562 = vld [vmem:[#allocation1 + $0x36] sm:$0xff]
  %v563 = vld [vmem:[#allocation1 + $0x3f] sm:$0xff]
  %565 = vst [vmem:[#allocation1] ss:$9 sm:$0xff] %v17
  %v566 = vld [vmem:[#allocation1] sm:$0xff]
  %v567 = vld [vmem:[#allocation1 + $0x9] sm:$0xff]
  %v568 = vld [vmem:[#allocation1 + $0x12] sm:$0xff]
  %v569 = vld [vmem:[#allocation1 + $0x1b] sm:$0xff]
  %v570 = vld [vmem:[#allocation1 + $0x24] sm:$0xff]
  %v571 = vld [vmem:[#allocation1 + $0x2d] sm:$0xff]
  %v572 = vld [vmem:[#allocation1 + $0x36] sm:$0xff]
  %v573 = vld [vmem:[#allocation1 + $0x3f] sm:$0xff]
  %v1118 = vunpack.c.l.b16 %v18
  %v1119 = vunpack.c.l.b16 %v19
  %v1120 = vunpack.c.l.b16 %v20
  %v1121 = vunpack.c.l.b16 %v21
  %v1122 = vunpack.c.l.b16 %v22
  %v1123 = vunpack.c.l.b16 %v23
  %v1124 = vunpack.c.l.b16 %v24
  %v1125 = vunpack.c.l.b16 %v25
  %v1126 = vunpack.c.l.b16 %v26
  %v1127 = vunpack.c.l.b16 %v27
  %v1128 = vunpack.c.l.b16 %v28
  %v1129 = vunpack.c.l.b16 %v29
  %v1130 = vunpack.c.l.b16 %v30
  %v1131 = vunpack.c.l.b16 %v31
  %v1132 = vunpack.c.l.b16 %v32
  %v1133 = vunpack.c.l.b16 %v33
  %v1134 = vunpack.c.l.b16 %v34
  %v1135 = vunpack.c.l.b16 %v35
  %v1136 = vunpack.c.l.b16 %v36
  %v1137 = vunpack.c.l.b16 %v37
  %v1138 = vunpack.c.l.b16 %v38
  %v1139 = vunpack.c.l.b16 %v39
  %v1140 = vunpack.c.l.b16 %v40
  %v1141 = vunpack.c.l.b16 %v41
  %v1142 = vunpack.c.l.b16 %v42
  %v1143 = vunpack.c.l.b16 %v43
  %v1144 = vunpack.c.l.b16 %v44
  %v1145 = vunpack.c.l.b16 %v45
  %v1146 = vunpack.c.l.b16 %v46
  %v1147 = vunpack.c.l.b16 %v47
  %v1148 = vunpack.c.l.b16 %v48
  %v1149 = vunpack.c.l.b16 %v49
  %v1150 = vunpack.c.l.b16 %v50
  %v1151 = vunpack.c.l.b16 %v51
  %v1152 = vunpack.c.l.b16 %v52
  %v1153 = vunpack.c.l.b16 %v53
  %v1154 = vunpack.c.l.b16 %v54
  %v1155 = vunpack.c.l.b16 %v55
  %v1156 = vunpack.c.l.b16 %v56
  %v1157 = vunpack.c.l.b16 %v57
  %v1158 = vunpack.c.l.b16 %v58
  %v1159 = vunpack.c.l.b16 %v59
  %v1160 = vunpack.c.l.b16 %v60
  %v1161 = vunpack.c.l.b16 %v61
  %v1162 = vunpack.c.l.b16 %v62
  %v1163 = vunpack.c.l.b16 %v63
  %v1164 = vunpack.c.l.b16 %v64
  %v1165 = vunpack.c.l.b16 %v65
  %v1166 = vunpack.c.l.b16 %v66
  %v1167 = vunpack.c.l.b16 %v67
  %v1168 = vunpack.c.l.b16 %v68
  %v1169 = vunpack.c.l.b16 %v69
  %v1170 = vunpack.c.l.b16 %v70
  %v1171 = vunpack.c.l.b16 %v71
  %v1172 = vunpack.c.l.b16 %v72
  %v1173 = vunpack.c.l.b16 %v73
  %v1174 = vunpack.c.l.b16 %v74
  %v1175 = vunpack.c.l.b16 %v75
  %v1176 = vunpack.c.l.b16 %v76
  %v1177 = vunpack.c.l.b16 %v77
  %v1178 = vunpack.c.l.b16 %v78
  %v1179 = vunpack.c.l.b16 %v79
  %v1180 = vunpack.c.l.b16 %v80
  %v1181 = vunpack.c.l.b16 %v81
  %v1182 = vunpack.c.l.b16 %v82
  %v1183 = vunpack.c.l.b16 %v83
  %v1184 = vunpack.c.l.b16 %v84
  %v1185 = vunpack.c.l.b16 %v85
  %v1186 = vunpack.c.l.b16 %v86
  %v1187 = vunpack.c.l.b16 %v87
  %v1188 = vunpack.c.l.b16 %v88
  %v1189 = vunpack.c.l.b16 %v89
  %v1190 = vunpack.c.l.b16 %v90
  %v1191 = vunpack.c.l.b16 %v91
  %v1192 = vunpack.c.l.b16 %v92
  %v1193 = vunpack.c.l.b16 %v93
  %v1194 = vunpack.c.l.b16 %v94
  %v1195 = vunpack.c.l.b16 %v95
  %v1196 = vunpack.c.l.b16 %v96
  %v1197 = vunpack.c.l.b16 %v97
  %v1198 = vunpack.c.l.b16 %v98
  %v1199 = vunpack.c.l.b16 %v99
  %v1200 = vunpack.c.l.b16 %v100
  %v1201 = vunpack.c.l.b16 %v101
  %v1202 = vunpack.c.l.b16 %v102
  %v1203 = vunpack.c.l.b16 %v103
  %v1204 = vunpack.c.l.b16 %v104
  %v1205 = vunpack.c.l.b16 %v105
  %v1206 = vunpack.c.l.b16 %v106
  %v1207 = vunpack.c.l.b16 %v107
  %v1208 = vunpack.c.l.b16 %v108
  %v1209 = vunpack.c.l.b16 %v109
  %v1210 = vunpack.c.l.b16 %v110
  %v1211 = vunpack.c.l.b16 %v111
  %v1212 = vunpack.c.l.b16 %v112
  %v1213 = vunpack.c.l.b16 %v113
  %v1214 = vunpack.c.l.b16 %v114
  %v1215 = vunpack.c.l.b16 %v115
  %v1216 = vunpack.c.l.b16 %v116
  %v1217 = vunpack.c.l.b16 %v117
  %v1218 = vunpack.c.l.b16 %v118
  %v1219 = vunpack.c.l.b16 %v119
  %v1220 = vunpack.c.l.b16 %v120
  %v1221 = vunpack.c.l.b16 %v121
  %v1222 = vunpack.c.l.b16 %v122
  %v1223 = vunpack.c.l.b16 %v123
  %v1224 = vunpack.c.l.b16 %v124
  %v1225 = vunpack.c.l.b16 %v125
  %v1226 = vunpack.c.l.b16 %v126
  %v1227 = vunpack.c.l.b16 %v127
  %v1228 = vunpack.c.l.b16 %v128
  %v1229 = vunpack.c.l.b16 %v129
  %v1230 = vunpack.c.l.b16 %v130
  %v1231 = vunpack.c.l.b16 %v131
  %v1232 = vunpack.c.l.b16 %v132
  %v1233 = vunpack.c.l.b16 %v133
  %v1234 = vunpack.c.l.b16 %v134
  %v1235 = vunpack.c.l.b16 %v135
  %v1236 = vunpack.c.l.b16 %v136
  %v1237 = vunpack.c.l.b16 %v137
  %v1238 = vunpack.c.l.b16 %v138
  %v1239 = vunpack.c.l.b16 %v139
  %v1240 = vunpack.c.l.b16 %v140
  %v1241 = vunpack.c.l.b16 %v141
  %v1242 = vunpack.c.l.b16 %v142
  %v1243 = vunpack.c.l.b16 %v143
  %v1244 = vunpack.c.l.b16 %v144
  %v1245 = vunpack.c.l.b16 %v145
  %v1246 = vunpack.c.l.b16 %v146
  %v1247 = vunpack.c.l.b16 %v147
  %v1248 = vunpack.c.l.b16 %v148
  %v1249 = vunpack.c.l.b16 %v149
  %v1250 = vunpack.c.l.b16 %v150
  %v1251 = vunpack.c.l.b16 %v151
  %v1252 = vunpack.c.l.b16 %v152
  %v1253 = vunpack.c.l.b16 %v153
  %v1254 = vunpack.c.l.b16 %v154
  %v1255 = vunpack.c.l.b16 %v155
  %v1256 = vunpack.c.l.b16 %v156
  %v1257 = vunpack.c.l.b16 %v157
  %v1258 = vunpack.c.l.b16 %v158
  %v1259 = vunpack.c.l.b16 %v159
  %v1260 = vunpack.c.l.b16 %v160
  %v1261 = vunpack.c.l.b16 %v161
  %v1262 = vunpack.c.l.b16 %v162
  %v1263 = vunpack.c.l.b16 %v163
  %v1264 = vunpack.c.l.b16 %v164
  %v1265 = vunpack.c.l.b16 %v165
  %v1266 = vunpack.c.l.b16 %v166
  %v1267 = vunpack.c.l.b16 %v167
  %v1268 = vunpack.c.l.b16 %v168
  %v1269 = vunpack.c.l.b16 %v169
  %v1270 = vunpack.c.l.b16 %v170
  %v1271 = vunpack.c.l.b16 %v171
  %v1272 = vunpack.c.l.b16 %v172
  %v1273 = vunpack.c.l.b16 %v173
  %v1274 = vunpack.c.l.b16 %v174
  %v1275 = vunpack.c.l.b16 %v175
  %v1276 = vunpack.c.l.b16 %v176
  %v1277 = vunpack.c.l.b16 %v177
  %v1278 = vunpack.c.l.b16 %v178
  %v1279 = vunpack.c.l.b16 %v179
  %v1280 = vunpack.c.l.b16 %v180
  %v1281 = vunpack.c.l.b16 %v181
  %v1282 = vunpack.c.l.b16 %v182
  %v1283 = vunpack.c.l.b16 %v183
  %v1284 = vunpack.c.l.b16 %v184
  %v1285 = vunpack.c.l.b16 %v185
  %v1286 = vunpack.c.l.b16 %v186
  %v1287 = vunpack.c.l.b16 %v187
  %v1288 = vunpack.c.l.b16 %v188
  %v1289 = vunpack.c.l.b16 %v189
  %v1290 = vunpack.c.l.b16 %v190
  %v1291 = vunpack.c.l.b16 %v191
  %v1292 = vunpack.c.l.b16 %v192
  %v1293 = vunpack.c.l.b16 %v193
  %v1294 = vunpack.c.l.b16 %v194
  %v1295 = vunpack.c.l.b16 %v195
  %v1296 = vunpack.c.l.b16 %v196
  %v1297 = vunpack.c.l.b16 %v197
  %v1298 = vunpack.c.l.b16 %v198
  %v1299 = vunpack.c.l.b16 %v199
  %v1300 = vunpack.c.l.b16 %v200
  %v1301 = vunpack.c.l.b16 %v201
  %v1302 = vunpack.c.l.b16 %v202
  %v1303 = vunpack.c.l.b16 %v203
  %v1304 = vunpack.c.l.b16 %v204
  %v1305 = vunpack.c.l.b16 %v205
  %v1306 = vunpack.c.l.b16 %v206
  %v1307 = vunpack.c.l.b16 %v207
  %v1308 = vunpack.c.l.b16 %v208
  %v1309 = vunpack.c.l.b16 %v209
  %v1310 = vunpack.c.l.b16 %v210
  %v1311 = vunpack.c.l.b16 %v211
  %v1312 = vunpack.c.l.b16 %v212
  %v1313 = vunpack.c.l.b16 %v213
  %v1314 = vunpack.c.l.b16 %v214
  %v1315 = vunpack.c.l.b16 %v215
  %v1316 = vunpack.c.l.b16 %v216
  %v1317 = vunpack.c.l.b16 %v217
  %v1318 = vunpack.c.l.b16 %v218
  %v1319 = vunpack.c.l.b16 %v219
  %v1320 = vunpack.c.l.b16 %v220
  %v1321 = vunpack.c.l.b16 %v221
  %v1322 = vunpack.c.l.b16 %v222
  %v1323 = vunpack.c.l.b16 %v223
  %v1324 = vunpack.c.l.b16 %v224
  %v1325 = vunpack.c.l.b16 %v225
  %v1326 = vunpack.c.l.b16 %v226
  %v1327 = vunpack.c.l.b16 %v227
  %v1328 = vunpack.c.l.b16 %v228
  %v1329 = vunpack.c.l.b16 %v229
  %v1330 = vunpack.c.l.b16 %v230
  %v1331 = vunpack.c.l.b16 %v231
  %v1332 = vunpack.c.l.b16 %v232
  %v1333 = vunpack.c.l.b16 %v233
  %v1334 = vunpack.c.l.b16 %v234
  %v1335 = vunpack.c.l.b16 %v235
  %v1336 = vunpack.c.l.b16 %v236
  %v1337 = vunpack.c.l.b16 %v237
  %v1338 = vunpack.c.l.b16 %v238
  %v1339 = vunpack.c.l.b16 %v239
  %v1340 = vunpack.c.l.b16 %v240
  %v1341 = vunpack.c.l.b16 %v241
  %v1342 = vunpack.c.l.b16 %v242
  %v1343 = vunpack.c.l.b16 %v243
  %v1344 = vunpack.c.l.b16 %v244
  %v1345 = vunpack.c.l.b16 %v245
  %v1346 = vunpack.c.l.b16 %v246
  %v1347 = vunpack.c.l.b16 %v247
  %v1348 = vunpack.c.l.b16 %v248
  %v1349 = vunpack.c.l.b16 %v249
  %v1350 = vunpack.c.l.b16 %v250
  %v1351 = vunpack.c.l.b16 %v251
  %v1352 = vunpack.c.l.b16 %v252
  %v1353 = vunpack.c.l.b16 %v253
  %v1354 = vunpack.c.l.b16 %v254
  %v1355 = vunpack.c.l.b16 %v255
  %v1356 = vunpack.c.l.b16 %v256
  %v1357 = vunpack.c.l.b16 %v257
  %v1358 = vunpack.c.l.b16 %v258
  %v1359 = vunpack.c.l.b16 %v259
  %v1360 = vunpack.c.l.b16 %v260
  %v1361 = vunpack.c.l.b16 %v261
  %v1362 = vunpack.c.l.b16 %v262
  %v1363 = vunpack.c.l.b16 %v263
  %v1364 = vunpack.c.l.b16 %v264
  %v1365 = vunpack.c.l.b16 %v265
  %v1366 = vunpack.c.l.b16 %v266
  %v1367 = vunpack.c.l.b16 %v267
  %v1368 = vunpack.c.l.b16 %v268
  %v1369 = vunpack.c.l.b16 %v269
  %v1370 = vunpack.c.l.b16 %v270
  %v1371 = vunpack.c.l.b16 %v271
  %v1372 = vunpack.c.l.b16 %v272
  %v1373 = vunpack.c.l.b16 %v273
  %v1374 = vunpack.c.l.b16 %v274
  %v1375 = vunpack.c.l.b16 %v275
  %v1376 = vunpack.c.l.b16 %v276
  %v1377 = vunpack.c.l.b16 %v277
  %v1378 = vunpack.c.l.b16 %v278
  %v1379 = vunpack.c.l.b16 %v279
  %v1380 = vunpack.c.l.b16 %v280
  %v1381 = vunpack.c.l.b16 %v281
  %v1382 = vunpack.c.l.b16 %v282
  %v1383 = vunpack.c.l.b16 %v283
  %v1384 = vunpack.c.l.b16 %v284
  %v1385 = vunpack.c.l.b16 %v285
  %v1386 = vunpack.c.l.b16 %v286
  %v1387 = vunpack.c.l.b16 %v287
  %v1388 = vunpack.c.l.b16 %v288
  %v1389 = vunpack.c.l.b16 %v289
  %v1390 = vunpack.c.l.b16 %v290
  %v1391 = vunpack.c.l.b16 %v291
  %v1392 = vunpack.c.l.b16 %v292
  %v1393 = vunpack.c.l.b16 %v293
  %v1394 = vunpack.c.l.b16 %v294
  %v1395 = vunpack.c.l.b16 %v295
  %v1396 = vunpack.c.l.b16 %v296
  %v1397 = vunpack.c.l.b16 %v297
  %v1398 = vunpack.c.l.b16 %v298
  %v1399 = vunpack.c.l.b16 %v299
  %v1400 = vunpack.c.l.b16 %v300
  %v1401 = vunpack.c.l.b16 %v301
  %v1402 = vunpack.c.l.b16 %v302
  %v1403 = vunpack.c.l.b16 %v303
  %v1404 = vunpack.c.l.b16 %v304
  %v1405 = vunpack.c.l.b16 %v305
  %v1406 = vunpack.c.l.b16 %v306
  %v1407 = vunpack.c.l.b16 %v307
  %v1408 = vunpack.c.l.b16 %v308
  %v1409 = vunpack.c.l.b16 %v309
  %v1410 = vunpack.c.l.b16 %v310
  %v1411 = vunpack.c.l.b16 %v311
  %v1412 = vunpack.c.l.b16 %v312
  %v1413 = vunpack.c.l.b16 %v313
  %v1414 = vunpack.c.l.b16 %v314
  %v1415 = vunpack.c.l.b16 %v315
  %v1416 = vunpack.c.l.b16 %v316
  %v1417 = vunpack.c.l.b16 %v317
  %v1418 = vunpack.c.l.b16 %v318
  %v1419 = vunpack.c.l.b16 %v319
  %v1420 = vunpack.c.l.b16 %v320
  %v1421 = vunpack.c.l.b16 %v321
  %v1422 = vunpack.c.l.b16 %v322
  %v1423 = vunpack.c.l.b16 %v323
  %v1424 = vunpack.c.l.b16 %v324
  %v1425 = vunpack.c.l.b16 %v325
  %v1426 = vunpack.c.l.b16 %v326
  %v1427 = vunpack.c.l.b16 %v327
  %v1428 = vunpack.c.l.b16 %v328
  %v1429 = vunpack.c.l.b16 %v329
  %v1430 = vunpack.c.l.b16 %v330
  %v1431 = vunpack.c.l.b16 %v331
  %v1432 = vunpack.c.l.b16 %v332
  %v1433 = vunpack.c.l.b16 %v333
  %v1434 = vunpack.c.l.b16 %v334
  %v1435 = vunpack.c.l.b16 %v335
  %v1436 = vunpack.c.l.b16 %v336
  %v1437 = vunpack.c.l.b16 %v337
  %v1438 = vunpack.c.l.b16 %v338
  %v1439 = vunpack.c.l.b16 %v339
  %v1440 = vunpack.c.l.b16 %v340
  %v1441 = vunpack.c.l.b16 %v341
  %v1442 = vunpack.c.l.b16 %v342
  %v1443 = vunpack.c.l.b16 %v343
  %v1444 = vunpack.c.l.b16 %v344
  %v1445 = vunpack.c.l.b16 %v345
  %v1446 = vunpack.c.l.b16 %v346
  %v1447 = vunpack.c.l.b16 %v347
  %v1448 = vunpack.c.l.b16 %v348
  %v1449 = vunpack.c.l.b16 %v349
  %v1450 = vunpack.c.l.b16 %v350
  %v1451 = vunpack.c.l.b16 %v351
  %v1452 = vunpack.c.l.b16 %v352
  %v1453 = vunpack.c.l.b16 %v353
  %v1454 = vunpack.c.l.b16 %v354
  %v1455 = vunpack.c.l.b16 %v355
  %v1456 = vunpack.c.l.b16 %v356
  %v1457 = vunpack.c.l.b16 %v357
  %v1458 = vunpack.c.l.b16 %v358
  %v1459 = vunpack.c.l.b16 %v359
  %v1460 = vunpack.c.l.b16 %v360
  %v1461 = vunpack.c.l.b16 %v361
  %v1462 = vunpack.c.l.b16 %v362
  %v1463 = vunpack.c.l.b16 %v363
  %v1464 = vunpack.c.l.b16 %v364
  %v1465 = vunpack.c.l.b16 %v365
  %v1466 = vunpack.c.l.b16 %v366
  %v1467 = vunpack.c.l.b16 %v367
  %v1468 = vunpack.c.l.b16 %v368
  %v1469 = vunpack.c.l.b16 %v369
  %v1470 = vunpack.c.l.b16 %v370
  %v1471 = vunpack.c.l.b16 %v371
  %v1472 = vunpack.c.l.b16 %v372
  %v1473 = vunpack.c.l.b16 %v373
  %v1474 = vunpack.c.l.b16 %v374
  %v1475 = vunpack.c.l.b16 %v375
  %v1476 = vunpack.c.l.b16 %v376
  %v1477 = vunpack.c.l.b16 %v377
  %v1478 = vunpack.c.l.b16 %v378
  %v1479 = vunpack.c.l.b16 %v379
  %v1480 = vunpack.c.l.b16 %v380
  %v1481 = vunpack.c.l.b16 %v381
  %v1482 = vunpack.c.l.b16 %v382
  %v1483 = vunpack.c.l.b16 %v383
  %v1484 = vunpack.c.l.b16 %v384
  %v1485 = vunpack.c.l.b16 %v385
  %v1486 = vunpack.c.l.b16 %v386
  %v1487 = vunpack.c.l.b16 %v387
  %v1488 = vunpack.c.l.b16 %v388
  %v1489 = vunpack.c.l.b16 %v389
  %v1490 = vunpack.c.l.b16 %v390
  %v1491 = vunpack.c.l.b16 %v391
  %v1492 = vunpack.c.l.b16 %v392
  %v1493 = vunpack.c.l.b16 %v393
  %v1494 = vunpack.c.l.b16 %v394
  %v1495 = vunpack.c.l.b16 %v395
  %v1496 = vunpack.c.l.b16 %v396
  %v1497 = vunpack.c.l.b16 %v397
  %v1498 = vunpack.c.l.b16 %v398
  %v1499 = vunpack.c.l.b16 %v399
  %v1500 = vunpack.c.l.b16 %v400
  %v1501 = vunpack.c.l.b16 %v401
  %v1502 = vunpack.c.l.b16 %v402
  %v1503 = vunpack.c.l.b16 %v403
  %v1504 = vunpack.c.l.b16 %v404
  %v1505 = vunpack.c.l.b16 %v405
  %v1506 = vunpack.c.l.b16 %v406
  %v1507 = vunpack.c.l.b16 %v407
  %v1508 = vunpack.c.l.b16 %v408
  %v1509 = vunpack.c.l.b16 %v409
  %v1510 = vunpack.c.l.b16 %v410
  %v1511 = vunpack.c.l.b16 %v411
  %v1512 = vunpack.c.l.b16 %v412
  %v1513 = vunpack.c.l.b16 %v413
  %v1514 = vunpack.c.l.b16 %v414
  %v1515 = vunpack.c.l.b16 %v415
  %v1516 = vunpack.c.l.b16 %v416
  %v1517 = vunpack.c.l.b16 %v417
  %v1518 = vunpack.c.l.b16 %v418
  %v1519 = vunpack.c.l.b16 %v419
  %v1520 = vunpack.c.l.b16 %v420
  %v1521 = vunpack.c.l.b16 %v421
  %v1522 = vunpack.c.l.b16 %v422
  %v1523 = vunpack.c.l.b16 %v423
  %v1524 = vunpack.c.l.b16 %v424
  %v1525 = vunpack.c.l.b16 %v425
  %v1526 = vunpack.c.l.b16 %v426
  %v1527 = vunpack.c.l.b16 %v427
  %v1528 = vunpack.c.l.b16 %v428
  %v1529 = vunpack.c.l.b16 %v429
  %v1530 = vunpack.c.l.b16 %v430
  %v1531 = vunpack.c.l.b16 %v431
  %v1532 = vunpack.c.l.b16 %v432
  %v1533 = vunpack.c.l.b16 %v433
  %v1534 = vunpack.c.l.b16 %v434
  %v1535 = vunpack.c.l.b16 %v435
  %v1536 = vunpack.c.l.b16 %v436
  %v1537 = vunpack.c.l.b16 %v437
  %v1538 = vunpack.c.l.b16 %v438
  %v1539 = vunpack.c.l.b16 %v439
  %v1540 = vunpack.c.l.b16 %v440
  %v1541 = vunpack.c.l.b16 %v441
  %v1542 = vunpack.c.l.b16 %v442
  %v1543 = vunpack.c.l.b16 %v443
  %v1544 = vunpack.c.l.b16 %v444
  %v1545 = vunpack.c.l.b16 %v445
  %v1546 = vunpack.c.l.b16 %v446
  %v1547 = vunpack.c.l.b16 %v447
  %v1548 = vunpack.c.l.b16 %v448
  %v1549 = vunpack.c.l.b16 %v449
  %v1550 = vunpack.c.l.b16 %v450
  %v1551 = vunpack.c.l.b16 %v451
  %v1552 = vunpack.c.l.b16 %v452
  %v1553 = vunpack.c.l.b16 %v453
  %v1554 = vunpack.c.l.b16 %v454
  %v1555 = vunpack.c.l.b16 %v455
  %v1556 = vunpack.c.l.b16 %v456
  %v1557 = vunpack.c.l.b16 %v457
  %v1558 = vunpack.c.l.b16 %v458
  %v1559 = vunpack.c.l.b16 %v459
  %v1560 = vunpack.c.l.b16 %v460
  %v1561 = vunpack.c.l.b16 %v461
  %v1562 = vunpack.c.l.b16 %v462
  %v1563 = vunpack.c.l.b16 %v463
  %v1564 = vunpack.c.l.b16 %v464
  %v1565 = vunpack.c.l.b16 %v465
  %v1566 = vunpack.c.l.b16 %v466
  %v1567 = vunpack.c.l.b16 %v467
  %v1568 = vunpack.c.l.b16 %v468
  %v1569 = vunpack.c.l.b16 %v469
  %v1570 = vunpack.c.l.b16 %v470
  %v1571 = vunpack.c.l.b16 %v471
  %v1572 = vunpack.c.l.b16 %v472
  %v1573 = vunpack.c.l.b16 %v473
  %v1574 = vunpack.c.l.b16 %v474
  %v1575 = vunpack.c.l.b16 %v475
  %v1576 = vunpack.c.l.b16 %v476
  %v1577 = vunpack.c.l.b16 %v477
  %v1578 = vunpack.c.l.b16 %v478
  %v1579 = vunpack.c.l.b16 %v479
  %v1580 = vunpack.c.l.b16 %v480
  %v1581 = vunpack.c.l.b16 %v481
  %v1582 = vunpack.c.l.b16 %v482
  %v1583 = vunpack.c.l.b16 %v483
  %v1584 = vunpack.c.l.b16 %v484
  %v1585 = vunpack.c.l.b16 %v485
  %v1586 = vunpack.c.l.b16 %v486
  %v1587 = vunpack.c.l.b16 %v487
  %v1588 = vunpack.c.l.b16 %v488
  %v1589 = vunpack.c.l.b16 %v489
  %v1590 = vunpack.c.l.b16 %v490
  %v1591 = vunpack.c.l.b16 %v491
  %v1592 = vunpack.c.l.b16 %v492
  %v1593 = vunpack.c.l.b16 %v493
  %v1594 = vunpack.c.l.b16 %v494
  %v1595 = vunpack.c.l.b16 %v495
  %v1596 = vunpack.c.l.b16 %v496
  %v1597 = vunpack.c.l.b16 %v497
  %v1598 = vunpack.c.l.b16 %v498
  %v1599 = vunpack.c.l.b16 %v499
  %v1600 = vunpack.c.l.b16 %v500
  %v1601 = vunpack.c.l.b16 %v501
  %v1602 = vunpack.c.l.b16 %v502
  %v1603 = vunpack.c.l.b16 %v503
  %v1604 = vunpack.c.l.b16 %v504
  %v1605 = vunpack.c.l.b16 %v505
  %v1606 = vunpack.c.l.b16 %v506
  %v1607 = vunpack.c.l.b16 %v507
  %v1608 = vunpack.c.l.b16 %v508
  %v1609 = vunpack.c.l.b16 %v509
  %v1610 = vunpack.c.l.b16 %v510
  %v1611 = vunpack.c.l.b16 %v511
  %v1612 = vunpack.c.l.b16 %v512
  %v1613 = vunpack.c.l.b16 %v513
  %v1614 = vunpack.c.l.b16 %v514
  %v1615 = vunpack.c.l.b16 %v515
  %v1616 = vunpack.c.l.b16 %v516
  %v1617 = vunpack.c.l.b16 %v517
  %v1618 = vunpack.c.l.b16 %v518
  %v1619 = vunpack.c.l.b16 %v519
  %v1620 = vunpack.c.l.b16 %v520
  %v1621 = vunpack.c.l.b16 %v521
  %v1622 = vunpack.c.l.b16 %v522
  %v1623 = vunpack.c.l.b16 %v523
  %v1624 = vunpack.c.l.b16 %v524
  %v1625 = vunpack.c.l.b16 %v525
  %v1626 = vunpack.c.l.b16 %v526
  %v1627 = vunpack.c.l.b16 %v527
  %v1628 = vunpack.c.l.b16 %v528
  %v1629 = vunpack.c.l.b16 %v529
  %v1630 = vpack.c.b16 %v1119, %v1118
  %v1631 = vpack.c.b16 %v1121, %v1120
  %v1632 = vpack.c.b16 %v1123, %v1122
  %v1633 = vpack.c.b16 %v1125, %v1124
  %v1634 = vpack.c.b16 %v1127, %v1126
  %v1635 = vpack.c.b16 %v1129, %v1128
  %v1636 = vpack.c.b16 %v1131, %v1130
  %v1637 = vpack.c.b16 %v1133, %v1132
  %v1638 = vpack.c.b16 %v1135, %v1134
  %v1639 = vpack.c.b16 %v1137, %v1136
  %v1640 = vpack.c.b16 %v1139, %v1138
  %v1641 = vpack.c.b16 %v1141, %v1140
  %v1642 = vpack.c.b16 %v1143, %v1142
  %v1643 = vpack.c.b16 %v1145, %v1144
  %v1644 = vpack.c.b16 %v1147, %v1146
  %v1645 = vpack.c.b16 %v1149, %v1148
  %v1646 = vpack.c.b16 %v1151, %v1150
  %v1647 = vpack.c.b16 %v1153, %v1152
  %v1648 = vpack.c.b16 %v1155, %v1154
  %v1649 = vpack.c.b16 %v1157, %v1156
  %v1650 = vpack.c.b16 %v1159, %v1158
  %v1651 = vpack.c.b16 %v1161, %v1160
  %v1652 = vpack.c.b16 %v1163, %v1162
  %v1653 = vpack.c.b16 %v1165, %v1164
  %v1654 = vpack.c.b16 %v1167, %v1166
  %v1655 = vpack.c.b16 %v1169, %v1168
  %v1656 = vpack.c.b16 %v1171, %v1170
  %v1657 = vpack.c.b16 %v1173, %v1172
  %v1658 = vpack.c.b16 %v1175, %v1174
  %v1659 = vpack.c.b16 %v1177, %v1176
  %v1660 = vpack.c.b16 %v1179, %v1178
  %v1661 = vpack.c.b16 %v1181, %v1180
  %v1662 = vpack.c.b16 %v1183, %v1182
  %v1663 = vpack.c.b16 %v1185, %v1184
  %v1664 = vpack.c.b16 %v1187, %v1186
  %v1665 = vpack.c.b16 %v1189, %v1188
  %v1666 = vpack.c.b16 %v1191, %v1190
  %v1667 = vpack.c.b16 %v1193, %v1192
  %v1668 = vpack.c.b16 %v1195, %v1194
  %v1669 = vpack.c.b16 %v1197, %v1196
  %v1670 = vpack.c.b16 %v1199, %v1198
  %v1671 = vpack.c.b16 %v1201, %v1200
  %v1672 = vpack.c.b16 %v1203, %v1202
  %v1673 = vpack.c.b16 %v1205, %v1204
  %v1674 = vpack.c.b16 %v1207, %v1206
  %v1675 = vpack.c.b16 %v1209, %v1208
  %v1676 = vpack.c.b16 %v1211, %v1210
  %v1677 = vpack.c.b16 %v1213, %v1212
  %v1678 = vpack.c.b16 %v1215, %v1214
  %v1679 = vpack.c.b16 %v1217, %v1216
  %v1680 = vpack.c.b16 %v1219, %v1218
  %v1681 = vpack.c.b16 %v1221, %v1220
  %v1682 = vpack.c.b16 %v1223, %v1222
  %v1683 = vpack.c.b16 %v1225, %v1224
  %v1684 = vpack.c.b16 %v1227, %v1226
  %v1685 = vpack.c.b16 %v1229, %v1228
  %v1686 = vpack.c.b16 %v1231, %v1230
  %v1687 = vpack.c.b16 %v1233, %v1232
  %v1688 = vpack.c.b16 %v1235, %v1234
  %v1689 = vpack.c.b16 %v1237, %v1236
  %v1690 = vpack.c.b16 %v1239, %v1238
  %v1691 = vpack.c.b16 %v1241, %v1240
  %v1692 = vpack.c.b16 %v1243, %v1242
  %v1693 = vpack.c.b16 %v1245, %v1244
  %v1694 = vpack.c.b16 %v1247, %v1246
  %v1695 = vpack.c.b16 %v1249, %v1248
  %v1696 = vpack.c.b16 %v1251, %v1250
  %v1697 = vpack.c.b16 %v1253, %v1252
  %v1698 = vpack.c.b16 %v1255, %v1254
  %v1699 = vpack.c.b16 %v1257, %v1256
  %v1700 = vpack.c.b16 %v1259, %v1258
  %v1701 = vpack.c.b16 %v1261, %v1260
  %v1702 = vpack.c.b16 %v1263, %v1262
  %v1703 = vpack.c.b16 %v1265, %v1264
  %v1704 = vpack.c.b16 %v1267, %v1266
  %v1705 = vpack.c.b16 %v1269, %v1268
  %v1706 = vpack.c.b16 %v1271, %v1270
  %v1707 = vpack.c.b16 %v1273, %v1272
  %v1708 = vpack.c.b16 %v1275, %v1274
  %v1709 = vpack.c.b16 %v1277, %v1276
  %v1710 = vpack.c.b16 %v1279, %v1278
  %v1711 = vpack.c.b16 %v1281, %v1280
  %v1712 = vpack.c.b16 %v1283, %v1282
  %v1713 = vpack.c.b16 %v1285, %v1284
  %v1714 = vpack.c.b16 %v1287, %v1286
  %v1715 = vpack.c.b16 %v1289, %v1288
  %v1716 = vpack.c.b16 %v1291, %v1290
  %v1717 = vpack.c.b16 %v1293, %v1292
  %v1718 = vpack.c.b16 %v1295, %v1294
  %v1719 = vpack.c.b16 %v1297, %v1296
  %v1720 = vpack.c.b16 %v1299, %v1298
  %v1721 = vpack.c.b16 %v1301, %v1300
  %v1722 = vpack.c.b16 %v1303, %v1302
  %v1723 = vpack.c.b16 %v1305, %v1304
  %v1724 = vpack.c.b16 %v1307, %v1306
  %v1725 = vpack.c.b16 %v1309, %v1308
  %v1726 = vpack.c.b16 %v1311, %v1310
  %v1727 = vpack.c.b16 %v1313, %v1312
  %v1728 = vpack.c.b16 %v1315, %v1314
  %v1729 = vpack.c.b16 %v1317, %v1316
  %v1730 = vpack.c.b16 %v1319, %v1318
  %v1731 = vpack.c.b16 %v1321, %v1320
  %v1732 = vpack.c.b16 %v1323, %v1322
  %v1733 = vpack.c.b16 %v1325, %v1324
  %v1734 = vpack.c.b16 %v1327, %v1326
  %v1735 = vpack.c.b16 %v1329, %v1328
  %v1736 = vpack.c.b16 %v1331, %v1330
  %v1737 = vpack.c.b16 %v1333, %v1332
  %v1738 = vpack.c.b16 %v1335, %v1334
  %v1739 = vpack.c.b16 %v1337, %v1336
  %v1740 = vpack.c.b16 %v1339, %v1338
  %v1741 = vpack.c.b16 %v1341, %v1340
  %v1742 = vpack.c.b16 %v1343, %v1342
  %v1743 = vpack.c.b16 %v1345, %v1344
  %v1744 = vpack.c.b16 %v1347, %v1346
  %v1745 = vpack.c.b16 %v1349, %v1348
  %v1746 = vpack.c.b16 %v1351, %v1350
  %v1747 = vpack.c.b16 %v1353, %v1352
  %v1748 = vpack.c.b16 %v1355, %v1354
  %v1749 = vpack.c.b16 %v1357, %v1356
  %v1750 = vpack.c.b16 %v1359, %v1358
  %v1751 = vpack.c.b16 %v1361, %v1360
  %v1752 = vpack.c.b16 %v1363, %v1362
  %v1753 = vpack.c.b16 %v1365, %v1364
  %v1754 = vpack.c.b16 %v1367, %v1366
  %v1755 = vpack.c.b16 %v1369, %v1368
  %v1756 = vpack.c.b16 %v1371, %v1370
  %v1757 = vpack.c.b16 %v1373, %v1372
  %v1758 = vpack.c.b16 %v1375, %v1374
  %v1759 = vpack.c.b16 %v1377, %v1376
  %v1760 = vpack.c.b16 %v1379, %v1378
  %v1761 = vpack.c.b16 %v1381, %v1380
  %v1762 = vpack.c.b16 %v1383, %v1382
  %v1763 = vpack.c.b16 %v1385, %v1384
  %v1764 = vpack.c.b16 %v1387, %v1386
  %v1765 = vpack.c.b16 %v1389, %v1388
  %v1766 = vpack.c.b16 %v1391, %v1390
  %v1767 = vpack.c.b16 %v1393, %v1392
  %v1768 = vpack.c.b16 %v1395, %v1394
  %v1769 = vpack.c.b16 %v1397, %v1396
  %v1770 = vpack.c.b16 %v1399, %v1398
  %v1771 = vpack.c.b16 %v1401, %v1400
  %v1772 = vpack.c.b16 %v1403, %v1402
  %v1773 = vpack.c.b16 %v1405, %v1404
  %v1774 = vpack.c.b16 %v1407, %v1406
  %v1775 = vpack.c.b16 %v1409, %v1408
  %v1776 = vpack.c.b16 %v1411, %v1410
  %v1777 = vpack.c.b16 %v1413, %v1412
  %v1778 = vpack.c.b16 %v1415, %v1414
  %v1779 = vpack.c.b16 %v1417, %v1416
  %v1780 = vpack.c.b16 %v1419, %v1418
  %v1781 = vpack.c.b16 %v1421, %v1420
  %v1782 = vpack.c.b16 %v1423, %v1422
  %v1783 = vpack.c.b16 %v1425, %v1424
  %v1784 = vpack.c.b16 %v1427, %v1426
  %v1785 = vpack.c.b16 %v1429, %v1428
  %v1786 = vpack.c.b16 %v1431, %v1430
  %v1787 = vpack.c.b16 %v1433, %v1432
  %v1788 = vpack.c.b16 %v1435, %v1434
  %v1789 = vpack.c.b16 %v1437, %v1436
  %v1790 = vpack.c.b16 %v1439, %v1438
  %v1791 = vpack.c.b16 %v1441, %v1440
  %v1792 = vpack.c.b16 %v1443, %v1442
  %v1793 = vpack.c.b16 %v1445, %v1444
  %v1794 = vpack.c.b16 %v1447, %v1446
  %v1795 = vpack.c.b16 %v1449, %v1448
  %v1796 = vpack.c.b16 %v1451, %v1450
  %v1797 = vpack.c.b16 %v1453, %v1452
  %v1798 = vpack.c.b16 %v1455, %v1454
  %v1799 = vpack.c.b16 %v1457, %v1456
  %v1800 = vpack.c.b16 %v1459, %v1458
  %v1801 = vpack.c.b16 %v1461, %v1460
  %v1802 = vpack.c.b16 %v1463, %v1462
  %v1803 = vpack.c.b16 %v1465, %v1464
  %v1804 = vpack.c.b16 %v1467, %v1466
  %v1805 = vpack.c.b16 %v1469, %v1468
  %v1806 = vpack.c.b16 %v1471, %v1470
  %v1807 = vpack.c.b16 %v1473, %v1472
  %v1808 = vpack.c.b16 %v1475, %v1474
  %v1809 = vpack.c.b16 %v1477, %v1476
  %v1810 = vpack.c.b16 %v1479, %v1478
  %v1811 = vpack.c.b16 %v1481, %v1480
  %v1812 = vpack.c.b16 %v1483, %v1482
  %v1813 = vpack.c.b16 %v1485, %v1484
  %v1814 = vpack.c.b16 %v1487, %v1486
  %v1815 = vpack.c.b16 %v1489, %v1488
  %v1816 = vpack.c.b16 %v1491, %v1490
  %v1817 = vpack.c.b16 %v1493, %v1492
  %v1818 = vpack.c.b16 %v1495, %v1494
  %v1819 = vpack.c.b16 %v1497, %v1496
  %v1820 = vpack.c.b16 %v1499, %v1498
  %v1821 = vpack.c.b16 %v1501, %v1500
  %v1822 = vpack.c.b16 %v1503, %v1502
  %v1823 = vpack.c.b16 %v1505, %v1504
  %v1824 = vpack.c.b16 %v1507, %v1506
  %v1825 = vpack.c.b16 %v1509, %v1508
  %v1826 = vpack.c.b16 %v1511, %v1510
  %v1827 = vpack.c.b16 %v1513, %v1512
  %v1828 = vpack.c.b16 %v1515, %v1514
  %v1829 = vpack.c.b16 %v1517, %v1516
  %v1830 = vpack.c.b16 %v1519, %v1518
  %v1831 = vpack.c.b16 %v1521, %v1520
  %v1832 = vpack.c.b16 %v1523, %v1522
  %v1833 = vpack.c.b16 %v1525, %v1524
  %v1834 = vpack.c.b16 %v1527, %v1526
  %v1835 = vpack.c.b16 %v1529, %v1528
  %v1836 = vpack.c.b16 %v1531, %v1530
  %v1837 = vpack.c.b16 %v1533, %v1532
  %v1838 = vpack.c.b16 %v1535, %v1534
  %v1839 = vpack.c.b16 %v1537, %v1536
  %v1840 = vpack.c.b16 %v1539, %v1538
  %v1841 = vpack.c.b16 %v1541, %v1540
  %v1842 = vpack.c.b16 %v1543, %v1542
  %v1843 = vpack.c.b16 %v1545, %v1544
  %v1844 = vpack.c.b16 %v1547, %v1546
  %v1845 = vpack.c.b16 %v1549, %v1548
  %v1846 = vpack.c.b16 %v1551, %v1550
  %v1847 = vpack.c.b16 %v1553, %v1552
  %v1848 = vpack.c.b16 %v1555, %v1554
  %v1849 = vpack.c.b16 %v1557, %v1556
  %v1850 = vpack.c.b16 %v1559, %v1558
  %v1851 = vpack.c.b16 %v1561, %v1560
  %v1852 = vpack.c.b16 %v1563, %v1562
  %v1853 = vpack.c.b16 %v1565, %v1564
  %v1854 = vpack.c.b16 %v1567, %v1566
  %v1855 = vpack.c.b16 %v1569, %v1568
  %v1856 = vpack.c.b16 %v1571, %v1570
  %v1857 = vpack.c.b16 %v1573, %v1572
  %v1858 = vpack.c.b16 %v1575, %v1574
  %v1859 = vpack.c.b16 %v1577, %v1576
  %v1860 = vpack.c.b16 %v1579, %v1578
  %v1861 = vpack.c.b16 %v1581, %v1580
  %v1862 = vpack.c.b16 %v1583, %v1582
  %v1863 = vpack.c.b16 %v1585, %v1584
  %v1864 = vpack.c.b16 %v1587, %v1586
  %v1865 = vpack.c.b16 %v1589, %v1588
  %v1866 = vpack.c.b16 %v1591, %v1590
  %v1867 = vpack.c.b16 %v1593, %v1592
  %v1868 = vpack.c.b16 %v1595, %v1594
  %v1869 = vpack.c.b16 %v1597, %v1596
  %v1870 = vpack.c.b16 %v1599, %v1598
  %v1871 = vpack.c.b16 %v1601, %v1600
  %v1872 = vpack.c.b16 %v1603, %v1602
  %v1873 = vpack.c.b16 %v1605, %v1604
  %v1874 = vpack.c.b16 %v1607, %v1606
  %v1875 = vpack.c.b16 %v1609, %v1608
  %v1876 = vpack.c.b16 %v1611, %v1610
  %v1877 = vpack.c.b16 %v1613, %v1612
  %v1878 = vpack.c.b16 %v1615, %v1614
  %v1879 = vpack.c.b16 %v1617, %v1616
  %v1880 = vpack.c.b16 %v1619, %v1618
  %v1881 = vpack.c.b16 %v1621, %v1620
  %v1882 = vpack.c.b16 %v1623, %v1622
  %v1883 = vpack.c.b16 %v1625, %v1624
  %v1884 = vpack.c.b16 %v1627, %v1626
  %v1885 = vpack.c.b16 %v1629, %v1628
  %2142 = vmatpush.bf16.msra.mxu0 %v1637
  %2143 = vmatpush.bf16.msra.mxu0 %v1636
  %2144 = vmatpush.bf16.msra.mxu0 %v1635
  %2145 = vmatpush.bf16.msra.mxu0 %v1634
  %2146 = vmatpush.bf16.msra.mxu0 %v1633
  %2147 = vmatpush.bf16.msra.mxu0 %v1632
  %2148 = vmatpush.bf16.msra.mxu0 %v1631
  %2149 = vmatpush.bf16.msra.mxu0 %v1630
  %2150 = vmatmul.bf16.gmra.mxu0 %v536
  %v2151 = vpop.f32.mrf.mxu0
  %v2152 = vadd.f32 %v532, %v2151
  %v2153 = vpop.f32.mrf.mxu0
  %2154 = vdwg.mxu0
  %2155 = vmatpush.bf16.msra.mxu0 %v1645
  %2156 = vmatpush.bf16.msra.mxu0 %v1644
  %2157 = vmatpush.bf16.msra.mxu0 %v1643
  %2158 = vmatpush.bf16.msra.mxu0 %v1642
  %2159 = vmatpush.bf16.msra.mxu0 %v1641
  %2160 = vmatpush.bf16.msra.mxu0 %v1640
  %2161 = vmatpush.bf16.msra.mxu0 %v1639
  %2162 = vmatpush.bf16.msra.mxu0 %v1638
  %2163 = vmatmul.bf16.gmra.mxu0 %v537
  %v2164 = vpop.f32.mrf.mxu0
  %v2165 = vadd.f32 %v2152, %v2164
  %v2166 = vpop.f32.mrf.mxu0
  %2167 = vdwg.mxu0
  %2168 = vmatpush.bf16.msra.mxu0 %v1653
  %2169 = vmatpush.bf16.msra.mxu0 %v1652
  %2170 = vmatpush.bf16.msra.mxu0 %v1651
  %2171 = vmatpush.bf16.msra.mxu0 %v1650
  %2172 = vmatpush.bf16.msra.mxu0 %v1649
  %2173 = vmatpush.bf16.msra.mxu0 %v1648
  %2174 = vmatpush.bf16.msra.mxu0 %v1647
  %2175 = vmatpush.bf16.msra.mxu0 %v1646
  %2176 = vmatmul.bf16.gmra.mxu0 %v538
  %v2177 = vpop.f32.mrf.mxu0
  %v2178 = vadd.f32 %v2165, %v2177
  %v2179 = vpop.f32.mrf.mxu0
  %2180 = vdwg.mxu0
  %2181 = vmatpush.bf16.msra.mxu0 %v1661
  %2182 = vmatpush.bf16.msra.mxu0 %v1660
  %2183 = vmatpush.bf16.msra.mxu0 %v1659
  %2184 = vmatpush.bf16.msra.mxu0 %v1658
  %2185 = vmatpush.bf16.msra.mxu0 %v1657
  %2186 = vmatpush.bf16.msra.mxu0 %v1656
  %2187 = vmatpush.bf16.msra.mxu0 %v1655
  %2188 = vmatpush.bf16.msra.mxu0 %v1654
  %2189 = vmatmul.bf16.gmra.mxu0 %v539
  %v2190 = vpop.f32.mrf.mxu0
  %v2191 = vadd.f32 %v2178, %v2190
  %v2192 = vpop.f32.mrf.mxu0
  %2193 = vdwg.mxu0
  %2194 = vmatpush.bf16.msra.mxu0 %v1669
  %2195 = vmatpush.bf16.msra.mxu0 %v1668
  %2196 = vmatpush.bf16.msra.mxu0 %v1667
  %2197 = vmatpush.bf16.msra.mxu0 %v1666
  %2198 = vmatpush.bf16.msra.mxu0 %v1665
  %2199 = vmatpush.bf16.msra.mxu0 %v1664
  %2200 = vmatpush.bf16.msra.mxu0 %v1663
  %2201 = vmatpush.bf16.msra.mxu0 %v1662
  %2202 = vmatmul.bf16.gmra.mxu0 %v540
  %v2203 = vpop.f32.mrf.mxu0
  %v2204 = vadd.f32 %v2191, %v2203
  %v2205 = vpop.f32.mrf.mxu0
  %2206 = vdwg.mxu0
  %2207 = vmatpush.bf16.msra.mxu0 %v1677
  %2208 = vmatpush.bf16.msra.mxu0 %v1676
  %2209 = vmatpush.bf16.msra.mxu0 %v1675
  %2210 = vmatpush.bf16.msra.mxu0 %v1674
  %2211 = vmatpush.bf16.msra.mxu0 %v1673
  %2212 = vmatpush.bf16.msra.mxu0 %v1672
  %2213 = vmatpush.bf16.msra.mxu0 %v1671
  %2214 = vmatpush.bf16.msra.mxu0 %v1670
  %2215 = vmatmul.bf16.gmra.mxu0 %v541
  %v2216 = vpop.f32.mrf.mxu0
  %v2217 = vadd.f32 %v2204, %v2216
  %v2218 = vpop.f32.mrf.mxu0
  %2219 = vdwg.mxu0
  %2220 = vmatpush.bf16.msra.mxu0 %v1685
  %2221 = vmatpush.bf16.msra.mxu0 %v1684
  %2222 = vmatpush.bf16.msra.mxu0 %v1683
  %2223 = vmatpush.bf16.msra.mxu0 %v1682
  %2224 = vmatpush.bf16.msra.mxu0 %v1681
  %2225 = vmatpush.bf16.msra.mxu0 %v1680
  %2226 = vmatpush.bf16.msra.mxu0 %v1679
  %2227 = vmatpush.bf16.msra.mxu0 %v1678
  %2228 = vmatmul.bf16.gmra.mxu0 %v542
  %v2229 = vpop.f32.mrf.mxu0
  %v2230 = vadd.f32 %v2217, %v2229
  %v2231 = vpop.f32.mrf.mxu0
  %2232 = vdwg.mxu0
  %2233 = vmatpush.bf16.msra.mxu0 %v1693
  %2234 = vmatpush.bf16.msra.mxu0 %v1692
  %2235 = vmatpush.bf16.msra.mxu0 %v1691
  %2236 = vmatpush.bf16.msra.mxu0 %v1690
  %2237 = vmatpush.bf16.msra.mxu0 %v1689
  %2238 = vmatpush.bf16.msra.mxu0 %v1688
  %2239 = vmatpush.bf16.msra.mxu0 %v1687
  %2240 = vmatpush.bf16.msra.mxu0 %v1686
  %2241 = vmatmul.bf16.gmra.mxu0 %v543
  %v2242 = vpop.f32.mrf.mxu0
  %v2243 = vadd.f32 %v2230, %v2242
  %v2244 = vpop.f32.mrf.mxu0
  %2245 = vdwg.mxu0
  %2246 = vmatpush.bf16.msra.mxu0 %v1701
  %2247 = vmatpush.bf16.msra.mxu0 %v1700
  %2248 = vmatpush.bf16.msra.mxu0 %v1699
  %2249 = vmatpush.bf16.msra.mxu0 %v1698
  %2250 = vmatpush.bf16.msra.mxu0 %v1697
  %2251 = vmatpush.bf16.msra.mxu0 %v1696
  %2252 = vmatpush.bf16.msra.mxu0 %v1695
  %2253 = vmatpush.bf16.msra.mxu0 %v1694
  %2254 = vmatmul.bf16.gmra.mxu0 %v546
  %v2255 = vpop.f32.mrf.mxu0
  %v2256 = vadd.f32 %v2243, %v2255
  %v2257 = vpop.f32.mrf.mxu0
  %2258 = vdwg.mxu0
  %2259 = vmatpush.bf16.msra.mxu0 %v1709
  %2260 = vmatpush.bf16.msra.mxu0 %v1708
  %2261 = vmatpush.bf16.msra.mxu0 %v1707
  %2262 = vmatpush.bf16.msra.mxu0 %v1706
  %2263 = vmatpush.bf16.msra.mxu0 %v1705
  %2264 = vmatpush.bf16.msra.mxu0 %v1704
  %2265 = vmatpush.bf16.msra.mxu0 %v1703
  %2266 = vmatpush.bf16.msra.mxu0 %v1702
  %2267 = vmatmul.bf16.gmra.mxu0 %v547
  %v2268 = vpop.f32.mrf.mxu0
  %v2269 = vadd.f32 %v2256, %v2268
  %v2270 = vpop.f32.mrf.mxu0
  %2271 = vdwg.mxu0
  %2272 = vmatpush.bf16.msra.mxu0 %v1717
  %2273 = vmatpush.bf16.msra.mxu0 %v1716
  %2274 = vmatpush.bf16.msra.mxu0 %v1715
  %2275 = vmatpush.bf16.msra.mxu0 %v1714
  %2276 = vmatpush.bf16.msra.mxu0 %v1713
  %2277 = vmatpush.bf16.msra.mxu0 %v1712
  %2278 = vmatpush.bf16.msra.mxu0 %v1711
  %2279 = vmatpush.bf16.msra.mxu0 %v1710
  %2280 = vmatmul.bf16.gmra.mxu0 %v548
  %v2281 = vpop.f32.mrf.mxu0
  %v2282 = vadd.f32 %v2269, %v2281
  %v2283 = vpop.f32.mrf.mxu0
  %2284 = vdwg.mxu0
  %2285 = vmatpush.bf16.msra.mxu0 %v1725
  %2286 = vmatpush.bf16.msra.mxu0 %v1724
  %2287 = vmatpush.bf16.msra.mxu0 %v1723
  %2288 = vmatpush.bf16.msra.mxu0 %v1722
  %2289 = vmatpush.bf16.msra.mxu0 %v1721
  %2290 = vmatpush.bf16.msra.mxu0 %v1720
  %2291 = vmatpush.bf16.msra.mxu0 %v1719
  %2292 = vmatpush.bf16.msra.mxu0 %v1718
  %2293 = vmatmul.bf16.gmra.mxu0 %v549
  %v2294 = vpop.f32.mrf.mxu0
  %v2295 = vadd.f32 %v2282, %v2294
  %v2296 = vpop.f32.mrf.mxu0
  %2297 = vdwg.mxu0
  %2298 = vmatpush.bf16.msra.mxu0 %v1733
  %2299 = vmatpush.bf16.msra.mxu0 %v1732
  %2300 = vmatpush.bf16.msra.mxu0 %v1731
  %2301 = vmatpush.bf16.msra.mxu0 %v1730
  %2302 = vmatpush.bf16.msra.mxu0 %v1729
  %2303 = vmatpush.bf16.msra.mxu0 %v1728
  %2304 = vmatpush.bf16.msra.mxu0 %v1727
  %2305 = vmatpush.bf16.msra.mxu0 %v1726
  %2306 = vmatmul.bf16.gmra.mxu0 %v550
  %v2307 = vpop.f32.mrf.mxu0
  %v2308 = vadd.f32 %v2295, %v2307
  %v2309 = vpop.f32.mrf.mxu0
  %2310 = vdwg.mxu0
  %2311 = vmatpush.bf16.msra.mxu0 %v1741
  %2312 = vmatpush.bf16.msra.mxu0 %v1740
  %2313 = vmatpush.bf16.msra.mxu0 %v1739
  %2314 = vmatpush.bf16.msra.mxu0 %v1738
  %2315 = vmatpush.bf16.msra.mxu0 %v1737
  %2316 = vmatpush.bf16.msra.mxu0 %v1736
  %2317 = vmatpush.bf16.msra.mxu0 %v1735
  %2318 = vmatpush.bf16.msra.mxu0 %v1734
  %2319 = vmatmul.bf16.gmra.mxu0 %v551
  %v2320 = vpop.f32.mrf.mxu0
  %v2321 = vadd.f32 %v2308, %v2320
  %v2322 = vpop.f32.mrf.mxu0
  %2323 = vdwg.mxu0
  %2324 = vmatpush.bf16.msra.mxu0 %v1749
  %2325 = vmatpush.bf16.msra.mxu0 %v1748
  %2326 = vmatpush.bf16.msra.mxu0 %v1747
  %2327 = vmatpush.bf16.msra.mxu0 %v1746
  %2328 = vmatpush.bf16.msra.mxu0 %v1745
  %2329 = vmatpush.bf16.msra.mxu0 %v1744
  %2330 = vmatpush.bf16.msra.mxu0 %v1743
  %2331 = vmatpush.bf16.msra.mxu0 %v1742
  %2332 = vmatmul.bf16.gmra.mxu0 %v552
  %v2333 = vpop.f32.mrf.mxu0
  %v2334 = vadd.f32 %v2321, %v2333
  %v2335 = vpop.f32.mrf.mxu0
  %2336 = vdwg.mxu0
  %2337 = vmatpush.bf16.msra.mxu0 %v1757
  %2338 = vmatpush.bf16.msra.mxu0 %v1756
  %2339 = vmatpush.bf16.msra.mxu0 %v1755
  %2340 = vmatpush.bf16.msra.mxu0 %v1754
  %2341 = vmatpush.bf16.msra.mxu0 %v1753
  %2342 = vmatpush.bf16.msra.mxu0 %v1752
  %2343 = vmatpush.bf16.msra.mxu0 %v1751
  %2344 = vmatpush.bf16.msra.mxu0 %v1750
  %2345 = vmatmul.bf16.gmra.mxu0 %v553
  %v2346 = vpop.f32.mrf.mxu0
  %v2347 = vadd.f32 %v2334, %v2346
  %v2348 = vpop.f32.mrf.mxu0
  %2349 = vdwg.mxu0
  %2350 = vmatpush.bf16.msra.mxu0 %v1765
  %2351 = vmatpush.bf16.msra.mxu0 %v1764
  %2352 = vmatpush.bf16.msra.mxu0 %v1763
  %2353 = vmatpush.bf16.msra.mxu0 %v1762
  %2354 = vmatpush.bf16.msra.mxu0 %v1761
  %2355 = vmatpush.bf16.msra.mxu0 %v1760
  %2356 = vmatpush.bf16.msra.mxu0 %v1759
  %2357 = vmatpush.bf16.msra.mxu0 %v1758
  %2358 = vmatmul.bf16.gmra.mxu0 %v556
  %v2359 = vpop.f32.mrf.mxu0
  %v2360 = vadd.f32 %v2347, %v2359
  %v2361 = vpop.f32.mrf.mxu0
  %2362 = vdwg.mxu0
  %2363 = vmatpush.bf16.msra.mxu0 %v1773
  %2364 = vmatpush.bf16.msra.mxu0 %v1772
  %2365 = vmatpush.bf16.msra.mxu0 %v1771
  %2366 = vmatpush.bf16.msra.mxu0 %v1770
  %2367 = vmatpush.bf16.msra.mxu0 %v1769
  %2368 = vmatpush.bf16.msra.mxu0 %v1768
  %2369 = vmatpush.bf16.msra.mxu0 %v1767
  %2370 = vmatpush.bf16.msra.mxu0 %v1766
  %2371 = vmatmul.bf16.gmra.mxu0 %v557
  %v2372 = vpop.f32.mrf.mxu0
  %v2373 = vadd.f32 %v2360, %v2372
  %v2374 = vpop.f32.mrf.mxu0
  %2375 = vdwg.mxu0
  %2376 = vmatpush.bf16.msra.mxu0 %v1781
  %2377 = vmatpush.bf16.msra.mxu0 %v1780
  %2378 = vmatpush.bf16.msra.mxu0 %v1779
  %2379 = vmatpush.bf16.msra.mxu0 %v1778
  %2380 = vmatpush.bf16.msra.mxu0 %v1777
  %2381 = vmatpush.bf16.msra.mxu0 %v1776
  %2382 = vmatpush.bf16.msra.mxu0 %v1775
  %2383 = vmatpush.bf16.msra.mxu0 %v1774
  %2384 = vmatmul.bf16.gmra.mxu0 %v558
  %v2385 = vpop.f32.mrf.mxu0
  %v2386 = vadd.f32 %v2373, %v2385
  %v2387 = vpop.f32.mrf.mxu0
  %2388 = vdwg.mxu0
  %2389 = vmatpush.bf16.msra.mxu0 %v1789
  %2390 = vmatpush.bf16.msra.mxu0 %v1788
  %2391 = vmatpush.bf16.msra.mxu0 %v1787
  %2392 = vmatpush.bf16.msra.mxu0 %v1786
  %2393 = vmatpush.bf16.msra.mxu0 %v1785
  %2394 = vmatpush.bf16.msra.mxu0 %v1784
  %2395 = vmatpush.bf16.msra.mxu0 %v1783
  %2396 = vmatpush.bf16.msra.mxu0 %v1782
  %2397 = vmatmul.bf16.gmra.mxu0 %v559
  %v2398 = vpop.f32.mrf.mxu0
  %v2399 = vadd.f32 %v2386, %v2398
  %v2400 = vpop.f32.mrf.mxu0
  %2401 = vdwg.mxu0
  %2402 = vmatpush.bf16.msra.mxu0 %v1797
  %2403 = vmatpush.bf16.msra.mxu0 %v1796
  %2404 = vmatpush.bf16.msra.mxu0 %v1795
  %2405 = vmatpush.bf16.msra.mxu0 %v1794
  %2406 = vmatpush.bf16.msra.mxu0 %v1793
  %2407 = vmatpush.bf16.msra.mxu0 %v1792
  %2408 = vmatpush.bf16.msra.mxu0 %v1791
  %2409 = vmatpush.bf16.msra.mxu0 %v1790
  %2410 = vmatmul.bf16.gmra.mxu0 %v560
  %v2411 = vpop.f32.mrf.mxu0
  %v2412 = vadd.f32 %v2399, %v2411
  %v2413 = vpop.f32.mrf.mxu0
  %2414 = vdwg.mxu0
  %2415 = vmatpush.bf16.msra.mxu0 %v1805
  %2416 = vmatpush.bf16.msra.mxu0 %v1804
  %2417 = vmatpush.bf16.msra.mxu0 %v1803
  %2418 = vmatpush.bf16.msra.mxu0 %v1802
  %2419 = vmatpush.bf16.msra.mxu0 %v1801
  %2420 = vmatpush.bf16.msra.mxu0 %v1800
  %2421 = vmatpush.bf16.msra.mxu0 %v1799
  %2422 = vmatpush.bf16.msra.mxu0 %v1798
  %2423 = vmatmul.bf16.gmra.mxu0 %v561
  %v2424 = vpop.f32.mrf.mxu0
  %v2425 = vadd.f32 %v2412, %v2424
  %v2426 = vpop.f32.mrf.mxu0
  %2427 = vdwg.mxu0
  %2428 = vmatpush.bf16.msra.mxu0 %v1813
  %2429 = vmatpush.bf16.msra.mxu0 %v1812
  %2430 = vmatpush.bf16.msra.mxu0 %v1811
  %2431 = vmatpush.bf16.msra.mxu0 %v1810
  %2432 = vmatpush.bf16.msra.mxu0 %v1809
  %2433 = vmatpush.bf16.msra.mxu0 %v1808
  %2434 = vmatpush.bf16.msra.mxu0 %v1807
  %2435 = vmatpush.bf16.msra.mxu0 %v1806
  %2436 = vmatmul.bf16.gmra.mxu0 %v562
  %v2437 = vpop.f32.mrf.mxu0
  %v2438 = vadd.f32 %v2425, %v2437
  %v2439 = vpop.f32.mrf.mxu0
  %2440 = vdwg.mxu0
  %2441 = vmatpush.bf16.msra.mxu0 %v1821
  %2442 = vmatpush.bf16.msra.mxu0 %v1820
  %2443 = vmatpush.bf16.msra.mxu0 %v1819
  %2444 = vmatpush.bf16.msra.mxu0 %v1818
  %2445 = vmatpush.bf16.msra.mxu0 %v1817
  %2446 = vmatpush.bf16.msra.mxu0 %v1816
  %2447 = vmatpush.bf16.msra.mxu0 %v1815
  %2448 = vmatpush.bf16.msra.mxu0 %v1814
  %2449 = vmatmul.bf16.gmra.mxu0 %v563
  %v2450 = vpop.f32.mrf.mxu0
  %v2451 = vadd.f32 %v2438, %v2450
  %v2452 = vpop.f32.mrf.mxu0
  %2453 = vdwg.mxu0
  %2454 = vmatpush.bf16.msra.mxu0 %v1829
  %2455 = vmatpush.bf16.msra.mxu0 %v1828
  %2456 = vmatpush.bf16.msra.mxu0 %v1827
  %2457 = vmatpush.bf16.msra.mxu0 %v1826
  %2458 = vmatpush.bf16.msra.mxu0 %v1825
  %2459 = vmatpush.bf16.msra.mxu0 %v1824
  %2460 = vmatpush.bf16.msra.mxu0 %v1823
  %2461 = vmatpush.bf16.msra.mxu0 %v1822
  %2462 = vmatmul.bf16.gmra.mxu0 %v566
  %v2463 = vpop.f32.mrf.mxu0
  %v2464 = vadd.f32 %v2451, %v2463
  %v2465 = vpop.f32.mrf.mxu0
  %2466 = vdwg.mxu0
  %2467 = vmatpush.bf16.msra.mxu0 %v1837
  %2468 = vmatpush.bf16.msra.mxu0 %v1836
  %2469 = vmatpush.bf16.msra.mxu0 %v1835
  %2470 = vmatpush.bf16.msra.mxu0 %v1834
  %2471 = vmatpush.bf16.msra.mxu0 %v1833
  %2472 = vmatpush.bf16.msra.mxu0 %v1832
  %2473 = vmatpush.bf16.msra.mxu0 %v1831
  %2474 = vmatpush.bf16.msra.mxu0 %v1830
  %2475 = vmatmul.bf16.gmra.mxu0 %v567
  %v2476 = vpop.f32.mrf.mxu0
  %v2477 = vadd.f32 %v2464, %v2476
  %v2478 = vpop.f32.mrf.mxu0
  %2479 = vdwg.mxu0
  %2480 = vmatpush.bf16.msra.mxu0 %v1845
  %2481 = vmatpush.bf16.msra.mxu0 %v1844
  %2482 = vmatpush.bf16.msra.mxu0 %v1843
  %2483 = vmatpush.bf16.msra.mxu0 %v1842
  %2484 = vmatpush.bf16.msra.mxu0 %v1841
  %2485 = vmatpush.bf16.msra.mxu0 %v1840
  %2486 = vmatpush.bf16.msra.mxu0 %v1839
  %2487 = vmatpush.bf16.msra.mxu0 %v1838
  %2488 = vmatmul.bf16.gmra.mxu0 %v568
  %v2489 = vpop.f32.mrf.mxu0
  %v2490 = vadd.f32 %v2477, %v2489
  %v2491 = vpop.f32.mrf.mxu0
  %2492 = vdwg.mxu0
  %2493 = vmatpush.bf16.msra.mxu0 %v1853
  %2494 = vmatpush.bf16.msra.mxu0 %v1852
  %2495 = vmatpush.bf16.msra.mxu0 %v1851
  %2496 = vmatpush.bf16.msra.mxu0 %v1850
  %2497 = vmatpush.bf16.msra.mxu0 %v1849
  %2498 = vmatpush.bf16.msra.mxu0 %v1848
  %2499 = vmatpush.bf16.msra.mxu0 %v1847
  %2500 = vmatpush.bf16.msra.mxu0 %v1846
  %2501 = vmatmul.bf16.gmra.mxu0 %v569
  %v2502 = vpop.f32.mrf.mxu0
  %v2503 = vadd.f32 %v2490, %v2502
  %v2504 = vpop.f32.mrf.mxu0
  %2505 = vdwg.mxu0
  %2506 = vmatpush.bf16.msra.mxu0 %v1861
  %2507 = vmatpush.bf16.msra.mxu0 %v1860
  %2508 = vmatpush.bf16.msra.mxu0 %v1859
  %2509 = vmatpush.bf16.msra.mxu0 %v1858
  %2510 = vmatpush.bf16.msra.mxu0 %v1857
  %2511 = vmatpush.bf16.msra.mxu0 %v1856
  %2512 = vmatpush.bf16.msra.mxu0 %v1855
  %2513 = vmatpush.bf16.msra.mxu0 %v1854
  %2514 = vmatmul.bf16.gmra.mxu0 %v570
  %v2515 = vpop.f32.mrf.mxu0
  %v2516 = vadd.f32 %v2503, %v2515
  %v2517 = vpop.f32.mrf.mxu0
  %2518 = vdwg.mxu0
  %2519 = vmatpush.bf16.msra.mxu0 %v1869
  %2520 = vmatpush.bf16.msra.mxu0 %v1868
  %2521 = vmatpush.bf16.msra.mxu0 %v1867
  %2522 = vmatpush.bf16.msra.mxu0 %v1866
  %2523 = vmatpush.bf16.msra.mxu0 %v1865
  %2524 = vmatpush.bf16.msra.mxu0 %v1864
  %2525 = vmatpush.bf16.msra.mxu0 %v1863
  %2526 = vmatpush.bf16.msra.mxu0 %v1862
  %2527 = vmatmul.bf16.gmra.mxu0 %v571
  %v2528 = vpop.f32.mrf.mxu0
  %v2529 = vadd.f32 %v2516, %v2528
  %v2530 = vpop.f32.mrf.mxu0
  %2531 = vdwg.mxu0
  %2532 = vmatpush.bf16.msra.mxu0 %v1877
  %2533 = vmatpush.bf16.msra.mxu0 %v1876
  %2534 = vmatpush.bf16.msra.mxu0 %v1875
  %2535 = vmatpush.bf16.msra.mxu0 %v1874
  %2536 = vmatpush.bf16.msra.mxu0 %v1873
  %2537 = vmatpush.bf16.msra.mxu0 %v1872
  %2538 = vmatpush.bf16.msra.mxu0 %v1871
  %2539 = vmatpush.bf16.msra.mxu0 %v1870
  %2540 = vmatmul.bf16.gmra.mxu0 %v572
  %v2541 = vpop.f32.mrf.mxu0
  %v2542 = vadd.f32 %v2529, %v2541
  %v2543 = vpop.f32.mrf.mxu0
  %2544 = vdwg.mxu0
  %2545 = vmatpush.bf16.msra.mxu0 %v1885
  %2546 = vmatpush.bf16.msra.mxu0 %v1884
  %2547 = vmatpush.bf16.msra.mxu0 %v1883
  %2548 = vmatpush.bf16.msra.mxu0 %v1882
  %2549 = vmatpush.bf16.msra.mxu0 %v1881
  %2550 = vmatpush.bf16.msra.mxu0 %v1880
  %2551 = vmatpush.bf16.msra.mxu0 %v1879
  %2552 = vmatpush.bf16.msra.mxu0 %v1878
  %2553 = vmatmul.bf16.gmra.mxu0 %v573
  %v2554 = vpop.f32.mrf.mxu0
  %v2555 = vadd.f32 %v2542, %v2554
  %v2556 = vpop.f32.mrf.mxu0
  %2557 = vdwg.mxu0
  %vm2558 = vcmask 123904
  %2559 = vst.msk [vmem:[%s3] sm:$0x3] %vm2558, %v2555
  // Predicated region
  $region14: #{vae_encoder_forward.5} parent=0 // pred_check
    _
  $region15: #{vae_encoder_forward.5} parent=0 // pred_check_branch
    %2561 = sbr.rel (0) target = $region17
  $region16: #{vae_encoder_forward.5} parent=0 // pred_region
    _
  $region17: #{vae_encoder_forward.5} parent=0 // pred_fallthru
    _
  // Predicated region
  $region18: #{vae_encoder_forward.5} parent=0 // pred_check
    _
  $region19: #{vae_encoder_forward.5} parent=0 // pred_check_branch
    %2563 = sbr.rel (0) target = $region21
  $region20: #{vae_encoder_forward.5} parent=0 // pred_region
    _
  $region21: #{vae_encoder_forward.5} parent=0 // pred_fallthru
    _

</llo_original>
